<compile_context>
chip_gen: v5e
topology: v5e:2x2
jax: 0.10.0
libtpu: 0.0.40
codegen_flags: <defaults>
</compile_context>

<pallas_src>
import functools

import numpy as np
import jax
import jax.numpy as jnp
from jax.experimental import pallas as pl
from jax.experimental.pallas import tpu as pltpu

NUM_CLASSES = 10
INPUT_HW = 16
HIDDEN_LAYERS = [16, 32, 128, 128]     # 3 conv layers -> 2x2x128 = 512 = Linear in-features
EPS = 1e-5


# ---------------- parameter init (deterministic, mirrors the PyTorch module) ----------------

def init_params(key, hidden_layers):
    chans = [3] + list(hidden_layers[:-1])
    params = {"conv": []}
    for i in range(len(chans) - 1):
        cin, cout = chans[i], chans[i + 1]
        key, k1, k2, k3, k4, k5, k6 = jax.random.split(key, 7)
        fan_in = cin * 9
        w = jax.random.normal(k1, (cout, cin, 3, 3), jnp.float32) * (2.0 / fan_in) ** 0.5
        b = jax.random.normal(k2, (cout,), jnp.float32) * 0.01
        gamma = jax.random.uniform(k3, (cout,), jnp.float32, 0.8, 1.2)
        beta = jax.random.normal(k4, (cout,), jnp.float32) * 0.1
        rmean = jax.random.normal(k5, (cout,), jnp.float32) * 0.1
        rvar = jax.random.uniform(k6, (cout,), jnp.float32, 0.9, 1.1)
        params["conv"].append((w, b, gamma, beta, rmean, rvar))
    key, k1, k2 = jax.random.split(key, 3)
    n_conv = len(chans) - 1
    fc_in = hidden_layers[n_conv - 1] * (INPUT_HW // (2 ** n_conv)) ** 2
    params["fc_w"] = jax.random.normal(k1, (NUM_CLASSES, fc_in), jnp.float32) * (1.0 / fc_in) ** 0.5
    params["fc_b"] = jax.random.normal(k2, (NUM_CLASSES,), jnp.float32) * 0.01
    return params


# ---------------- host-side, one-time constant preparation ----------------

def _prepare_constants(params):
    """Build banded conv matrices, folded BN affines, pooling selection matrices, FC matrix."""
    convs = params["conv"]
    geoms = []                                      # (H=W, Cin, Cout) per conv layer
    h, cin = INPUT_HW, 3
    for (w, *_rest) in convs:
        cout = int(w.shape[0])
        geoms.append((h, cin, cout))
        h, cin = h // 2, cout

    banded, row_sel, col_sel, scales, shifts = [], [], [], [], []
    for (h, cin, cout), (w, b, gamma, beta, rmean, rvar) in zip(geoms, convs):
        # Banded weights: slab row layout is (row = padded y, lane = padded_x*Cin + c);
        # for ky tap: B[ky][(xo+kx)*Cin + c, xo*Cout + co] = w[co, c, ky, kx].
        w_np = np.asarray(w, np.float32)            # (cout, cin, 3, 3)
        B = np.zeros((3, (h + 2) * cin, h * cout), np.float32)
        for ky in range(3):
            for kx in range(3):
                blk = w_np[:, :, ky, kx].T          # (cin, cout)
                for xo in range(h):
                    B[ky, (xo + kx) * cin:(xo + kx + 1) * cin,
                      xo * cout:(xo + 1) * cout] = blk
        banded.append(B)

        # Eval-mode BN + conv bias folded into per-channel affine, tiled per x position.
        scale = np.asarray(gamma, np.float32) / np.sqrt(np.asarray(rvar, np.float32) + EPS)
        shift = np.asarray(beta, np.float32) + (np.asarray(b, np.float32)
                                                - np.asarray(rmean, np.float32)) * scale
        scales.append(np.tile(scale, h)[None, :])   # (1, h*cout)
        shifts.append(np.tile(shift, h)[None, :])

        hp = h // 2
        RS = np.zeros((2, hp, h), np.float32)       # even / odd row selection
        for r in range(hp):
            RS[0, r, 2 * r] = 1.0
            RS[1, r, 2 * r + 1] = 1.0
        row_sel.append(RS)

        CS = np.zeros((2, h * cout, hp * cout), np.float32)   # even / odd column-group selection
        for xo in range(hp):
            for c in range(cout):
                CS[0, (2 * xo) * cout + c, xo * cout + c] = 1.0
                CS[1, (2 * xo + 1) * cout + c, xo * cout + c] = 1.0
        col_sel.append(CS)

    # FC: flatten is NCHW (c, h, w) order; fold it into the FC weight, pad 10 -> 128 lanes.
    h_last, _, c_last = geoms[-1]
    hp_last = h_last // 2
    fc_w = np.asarray(params["fc_w"], np.float32)   # (10, hp^2 * c_last)
    fc_b = np.asarray(params["fc_b"], np.float32)
    fc_cols = 128
    Wfc = np.zeros((hp_last, hp_last * c_last, fc_cols), np.float32)
    for hh in range(hp_last):
        for ww in range(hp_last):
            for c in range(c_last):
                f = c * hp_last * hp_last + hh * hp_last + ww
                Wfc[hh, ww * c_last + c, :NUM_CLASSES] = fc_w[:, f]
    fcb = np.zeros((1, fc_cols), np.float32)
    fcb[0, :NUM_CLASSES] = fc_b

    consts = dict(banded=banded, row_sel=row_sel, col_sel=col_sel,
                  scales=scales, shifts=shifts, wfc=Wfc, fcb=fcb)
    return geoms, consts


# ---------------- the fused Pallas kernel ----------------

def _make_kernel(batch, geoms):
    n_layers = len(geoms)

    def kernel(*refs):
        it = iter(refs)
        p_in = next(it)                                   # (batch*(H0+2), (H0+2)*3) f32
        b_refs = [next(it) for _ in range(n_layers)]      # banded conv weights (bf16)
        rs_refs = [next(it) for _ in range(n_layers)]     # row-pool selectors (bf16)
        cs_refs = [next(it) for _ in range(n_layers)]     # col-pool selectors (bf16)
        s_refs = [next(it) for _ in range(n_layers)]      # BN scale (f32, tiled)
        t_refs = [next(it) for _ in range(n_layers)]      # BN shift (f32, tiled)
        wfc_ref = next(it)                                # (hp, hp*C_last, 128) bf16
        fcb_ref = next(it)                                # (1, 128) f32
        out_ref = next(it)                                # (batch, 128) f32
        pad_refs = list(it)                               # n_layers-1 padded-slab scratches

        # Zero the padded activation slabs once (provides the conv zero-padding border).
        for pr in pad_refs:
            pr[...] = jnp.zeros(pr.shape, pr.dtype)

        def conv_bn_relu_pool(src_ref, row0, h, b_ref, s_ref, t_ref, rs_ref, cs_ref):
            # conv3x3(pad=1) as 3 banded matmuls over the ky taps, f32 accumulation.
            acc = None
            for ky in range(3):
                lhs = src_ref[row0 + ky: row0 + ky + h, :].astype(jnp.bfloat16)
                d = jnp.dot(lhs, b_ref[ky], preferred_element_type=jnp.float32)
                acc = d if acc is None else acc + d
            # Folded BN affine + ReLU (ReLU commutes with the max-pool below).
            y = jnp.maximum(acc * s_ref[...] + t_ref[...], 0.0).astype(jnp.bfloat16)
            # 2x2 max-pool via exact 0/1 selection matmuls + elementwise max (lane-dense).
            rmax = jnp.maximum(
                jnp.dot(rs_ref[0], y, preferred_element_type=jnp.float32),
                jnp.dot(rs_ref[1], y, preferred_element_type=jnp.float32),
            ).astype(jnp.bfloat16)
            return jnp.maximum(
                jnp.dot(rmax, cs_ref[0], preferred_element_type=jnp.float32),
                jnp.dot(rmax, cs_ref[1], preferred_element_type=jnp.float32),
            )                                              # (h//2, (h//2)*cout) f32

        for n in range(batch):
            src_ref = p_in
            row0 = n * (geoms[0][0] + 2)
            u = None
            for l, (h, cin, cout) in enumerate(geoms):
                u = conv_bn_relu_pool(src_ref, row0, h, b_refs[l],
                                      s_refs[l], t_refs[l], rs_refs[l], cs_refs[l])
                if l + 1 < n_layers:
                    hn, cinn, _ = geoms[l + 1]             # hn == h//2, cinn == cout
                    nxt = pad_refs[l]
                    r0 = n * (hn + 2)
                    # write pooled activations into the interior of the next padded slab
                    nxt[r0 + 1: r0 + 1 + hn, cinn: cinn + hn * cinn] = u
                    src_ref, row0 = nxt, r0
            # FC (NCHW flatten is folded into wfc); Dropout = identity in eval mode.
            logits = fcb_ref[...]
            for hh in range(u.shape[0]):
                logits = logits + jnp.dot(u[hh:hh + 1, :].astype(jnp.bfloat16),
                                          wfc_ref[hh], preferred_element_type=jnp.float32)
            out_ref[n:n + 1, :] = logits

    return kernel


def _full_spec(shape):
    nd = len(shape)
    return pl.BlockSpec(tuple(shape), lambda i: (0,) * nd)


def build_convnet_forward(params, batch):
    geoms, consts = _prepare_constants(params)
    h0, cin0, _ = geoms[0]

    b_args = [jnp.asarray(a, jnp.bfloat16) for a in consts["banded"]]
    rs_args = [jnp.asarray(a, jnp.bfloat16) for a in consts["row_sel"]]
    cs_args = [jnp.asarray(a, jnp.bfloat16) for a in consts["col_sel"]]
    s_args = [jnp.asarray(a, jnp.float32) for a in consts["scales"]]
    t_args = [jnp.asarray(a, jnp.float32) for a in consts["shifts"]]
    wfc = jnp.asarray(consts["wfc"], jnp.bfloat16)
    fcb = jnp.asarray(consts["fcb"], jnp.float32)
    const_args = b_args + rs_args + cs_args + s_args + t_args + [wfc, fcb]

    p1_shape = (batch * (h0 + 2), (h0 + 2) * cin0)
    in_specs = [_full_spec(p1_shape)] + [_full_spec(a.shape) for a in const_args]
    out_specs = _full_spec((batch, 128))
    scratch_shapes = [pltpu.VMEM((batch * (h + 2), (h + 2) * cin), jnp.float32)
                      for (h, cin, _cout) in geoms[1:]]

    fused = pl.pallas_call(
        _make_kernel(batch, geoms),
        out_shape=jax.ShapeDtypeStruct((batch, 128), jnp.float32),
        grid=(1,),
        in_specs=in_specs,
        out_specs=out_specs,
        scratch_shapes=scratch_shapes,
        compiler_params=pltpu.CompilerParams(
            dimension_semantics=("arbitrary",),
            vmem_limit_bytes=32 * 1024 * 1024,
        ),
    )

    @jax.jit
    def forward(x_nchw):
        # NCHW -> NHWC, spatial zero-pad for the first conv, then flatten to the
        # (row = n*(H+2)+y, lane = x*Cin + c) slab layout the kernel expects.
        x = jnp.transpose(x_nchw, (0, 2, 3, 1)).astype(jnp.float32)
        xp = jnp.pad(x, ((0, 0), (1, 1), (1, 1), (0, 0)))
        p1 = xp.reshape(batch * (h0 + 2), (h0 + 2) * cin0)
        out = fused(p1, *const_args)
        return out[:, :NUM_CLASSES]

    return forward


# ---------------- pure-XLA reference (eval-mode semantics) ----------------

def reference_forward(params, x_nchw):
    x = jnp.transpose(x_nchw, (0, 2, 3, 1)).astype(jnp.float32)
    for (w, b, gamma, beta, rmean, rvar) in params["conv"]:
        wk = jnp.transpose(w, (2, 3, 1, 0))                       # HWIO
        y = jax.lax.conv_general_dilated(
            x, wk, window_strides=(1, 1), padding="SAME",
            dimension_numbers=("NHWC", "HWIO", "NHWC"))
        y = y + b[None, None, None, :]
        scale = gamma / jnp.sqrt(rvar + EPS)
        y = (y - rmean) * scale + beta
        y = jax.lax.reduce_window(y, -jnp.inf, jax.lax.max,
                                  (1, 2, 2, 1), (1, 2, 2, 1), "VALID")
        x = jnp.maximum(y, 0.0)
    n = x.shape[0]
    feat = jnp.transpose(x, (0, 3, 1, 2)).reshape(n, -1)          # NCHW flatten
    return feat @ params["fc_w"].T + params["fc_b"][None, :]


if __name__ == "__main__":
    key = jax.random.PRNGKey(0)
    kp, kx = jax.random.split(key)
    params = init_params(kp, HIDDEN_LAYERS)

    batch = 2
    x = jax.random.normal(kx, (batch, 3, INPUT_HW, INPUT_HW), jnp.float32)   # NCHW like PyTorch

    forward = build_convnet_forward(params, batch)
    out = forward(x)
    jax.block_until_ready(out)
    assert out.shape == (batch, NUM_CLASSES)

    # Numerical check against a pure-XLA reference of the same eval-mode forward
    # (tolerance accounts for bf16 weights/activations with f32 accumulation).
    ref = jax.jit(functools.partial(reference_forward, params))(x)
    jax.block_until_ready(ref)
    np.testing.assert_allclose(np.asarray(out), np.asarray(ref), rtol=0.1, atol=0.2)

    print("KERNEL_OK")
</pallas_src>

<mosaic_0001>
module attributes {stable_mosaic.version = 11 : i64} {
  func.func @kernel(%arg0: i32, %arg1: memref<36x54xf32, #tpu.memory_space<vmem>>, %arg2: memref<3x54x256xbf16, #tpu.memory_space<vmem>>, %arg3: memref<3x160x256xbf16, #tpu.memory_space<vmem>>, %arg4: memref<3x192x512xbf16, #tpu.memory_space<vmem>>, %arg5: memref<2x8x16xbf16, #tpu.memory_space<vmem>>, %arg6: memref<2x4x8xbf16, #tpu.memory_space<vmem>>, %arg7: memref<2x2x4xbf16, #tpu.memory_space<vmem>>, %arg8: memref<2x256x128xbf16, #tpu.memory_space<vmem>>, %arg9: memref<2x256x128xbf16, #tpu.memory_space<vmem>>, %arg10: memref<2x512x256xbf16, #tpu.memory_space<vmem>>, %arg11: memref<1x256xf32, #tpu.memory_space<vmem>>, %arg12: memref<1x256xf32, #tpu.memory_space<vmem>>, %arg13: memref<1x512xf32, #tpu.memory_space<vmem>>, %arg14: memref<1x256xf32, #tpu.memory_space<vmem>>, %arg15: memref<1x256xf32, #tpu.memory_space<vmem>>, %arg16: memref<1x512xf32, #tpu.memory_space<vmem>>, %arg17: memref<2x256x128xbf16, #tpu.memory_space<vmem>>, %arg18: memref<1x128xf32, #tpu.memory_space<vmem>>, %arg19: memref<2x128xf32, #tpu.memory_space<vmem>>, %arg20: memref<20x160xf32, #tpu.memory_space<vmem>>, %arg21: memref<12x192xf32, #tpu.memory_space<vmem>>) attributes {dimension_semantics = [#tpu.dimension_semantics<arbitrary>], iteration_bounds = array<i64: 1>, scalar_prefetch = 0 : i64, scratch_operands = 2 : i64, tpu.core_type = #tpu.core_type<tc>, window_params = [{pipeline_mode = #tpu.pipeline_mode<synchronous>, transform_indices = @transform_0, window_bounds = array<i64: 36, 54>}, {pipeline_mode = #tpu.pipeline_mode<synchronous>, transform_indices = @transform_1, window_bounds = array<i64: 3, 54, 256>}, {pipeline_mode = #tpu.pipeline_mode<synchronous>, transform_indices = @transform_2, window_bounds = array<i64: 3, 160, 256>}, {pipeline_mode = #tpu.pipeline_mode<synchronous>, transform_indices = @transform_3, window_bounds = array<i64: 3, 192, 512>}, {pipeline_mode = #tpu.pipeline_mode<synchronous>, transform_indices = @transform_4, window_bounds = array<i64: 2, 8, 16>}, {pipeline_mode = #tpu.pipeline_mode<synchronous>, transform_indices = @transform_5, window_bounds = array<i64: 2, 4, 8>}, {pipeline_mode = #tpu.pipeline_mode<synchronous>, transform_indices = @transform_6, window_bounds = array<i64: 2, 2, 4>}, {pipeline_mode = #tpu.pipeline_mode<synchronous>, transform_indices = @transform_7, window_bounds = array<i64: 2, 256, 128>}, {pipeline_mode = #tpu.pipeline_mode<synchronous>, transform_indices = @transform_8, window_bounds = array<i64: 2, 256, 128>}, {pipeline_mode = #tpu.pipeline_mode<synchronous>, transform_indices = @transform_9, window_bounds = array<i64: 2, 512, 256>}, {pipeline_mode = #tpu.pipeline_mode<synchronous>, transform_indices = @transform_10, window_bounds = array<i64: 1, 256>}, {pipeline_mode = #tpu.pipeline_mode<synchronous>, transform_indices = @transform_11, window_bounds = array<i64: 1, 256>}, {pipeline_mode = #tpu.pipeline_mode<synchronous>, transform_indices = @transform_12, window_bounds = array<i64: 1, 512>}, {pipeline_mode = #tpu.pipeline_mode<synchronous>, transform_indices = @transform_13, window_bounds = array<i64: 1, 256>}, {pipeline_mode = #tpu.pipeline_mode<synchronous>, transform_indices = @transform_14, window_bounds = array<i64: 1, 256>}, {pipeline_mode = #tpu.pipeline_mode<synchronous>, transform_indices = @transform_15, window_bounds = array<i64: 1, 512>}, {pipeline_mode = #tpu.pipeline_mode<synchronous>, transform_indices = @transform_16, window_bounds = array<i64: 2, 256, 128>}, {pipeline_mode = #tpu.pipeline_mode<synchronous>, transform_indices = @transform_17, window_bounds = array<i64: 1, 128>}, {pipeline_mode = #tpu.pipeline_mode<synchronous>, transform_indices = @transform_18, window_bounds = array<i64: 2, 128>}]} {
    %cst = arith.constant 0.000000e+00 : f32
    %0 = vector.broadcast %cst : f32 to vector<20x160xf32>
    %c0 = arith.constant 0 : index
    %c0_0 = arith.constant 0 : index
    %1 = vector.load %arg20[%c0, %c0_0] : memref<20x160xf32, #tpu.memory_space<vmem>>, vector<20x160xf32>
    tpu.vector_store %arg20[%c0, %c0_0], %0 {strides = array<i32>} : memref<20x160xf32, #tpu.memory_space<vmem>>, vector<20x160xf32>,
    %cst_1 = arith.constant 0.000000e+00 : f32
    %2 = vector.broadcast %cst_1 : f32 to vector<12x192xf32>
    %c0_2 = arith.constant 0 : index
    %c0_3 = arith.constant 0 : index
    %3 = vector.load %arg21[%c0_2, %c0_3] : memref<12x192xf32, #tpu.memory_space<vmem>>, vector<12x192xf32>
    tpu.vector_store %arg21[%c0_2, %c0_3], %2 {strides = array<i32>} : memref<12x192xf32, #tpu.memory_space<vmem>>, vector<12x192xf32>,
    %c0_4 = arith.constant 0 : index
    %c0_5 = arith.constant 0 : index
    %4 = vector.load %arg1[%c0_4, %c0_5] : memref<36x54xf32, #tpu.memory_space<vmem>>, vector<16x54xf32>
    %5 = arith.truncf %4 : vector<16x54xf32> to vector<16x54xbf16>
    %c0_6 = arith.constant 0 : index
    %c0_7 = arith.constant 0 : index
    %c0_8 = arith.constant 0 : index
    %6 = vector.load %arg2[%c0_6, %c0_7, %c0_8] : memref<3x54x256xbf16, #tpu.memory_space<vmem>>, vector<1x54x256xbf16>
    %7 = vector.shape_cast %6 : vector<1x54x256xbf16> to vector<54x256xbf16>
    %cst_9 = arith.constant dense<0.000000e+00> : vector<16x256xf32>
    %8 = tpu.matmul %5, %7, %cst_9 {dimension_numbers = #tpu.dot_dimension_numbers<[1], [0], [0], [1], [0, 0, 1, 1], [], []>} : vector<16x54xbf16>, vector<54x256xbf16>, vector<16x256xf32> -> vector<16x256xf32>
    %c1 = arith.constant 1 : index
    %c0_10 = arith.constant 0 : index
    %9 = vector.load %arg1[%c1, %c0_10] : memref<36x54xf32, #tpu.memory_space<vmem>>, vector<16x54xf32>
    %10 = arith.truncf %9 : vector<16x54xf32> to vector<16x54xbf16>
    %c1_11 = arith.constant 1 : index
    %c0_12 = arith.constant 0 : index
    %c0_13 = arith.constant 0 : index
    %11 = vector.load %arg2[%c1_11, %c0_12, %c0_13] : memref<3x54x256xbf16, #tpu.memory_space<vmem>>, vector<1x54x256xbf16>
    %12 = vector.shape_cast %11 : vector<1x54x256xbf16> to vector<54x256xbf16>
    %cst_14 = arith.constant dense<0.000000e+00> : vector<16x256xf32>
    %13 = tpu.matmul %10, %12, %cst_14 {dimension_numbers = #tpu.dot_dimension_numbers<[1], [0], [0], [1], [0, 0, 1, 1], [], []>} : vector<16x54xbf16>, vector<54x256xbf16>, vector<16x256xf32> -> vector<16x256xf32>
    %14 = arith.addf %8, %13 : vector<16x256xf32>
    %c2 = arith.constant 2 : index
    %c0_15 = arith.constant 0 : index
    %15 = vector.load %arg1[%c2, %c0_15] : memref<36x54xf32, #tpu.memory_space<vmem>>, vector<16x54xf32>
    %16 = arith.truncf %15 : vector<16x54xf32> to vector<16x54xbf16>
    %c2_16 = arith.constant 2 : index
    %c0_17 = arith.constant 0 : index
    %c0_18 = arith.constant 0 : index
    %17 = vector.load %arg2[%c2_16, %c0_17, %c0_18] : memref<3x54x256xbf16, #tpu.memory_space<vmem>>, vector<1x54x256xbf16>
    %18 = vector.shape_cast %17 : vector<1x54x256xbf16> to vector<54x256xbf16>
    %cst_19 = arith.constant dense<0.000000e+00> : vector<16x256xf32>
    %19 = tpu.matmul %16, %18, %cst_19 {dimension_numbers = #tpu.dot_dimension_numbers<[1], [0], [0], [1], [0, 0, 1, 1], [], []>} : vector<16x54xbf16>, vector<54x256xbf16>, vector<16x256xf32> -> vector<16x256xf32>
    %20 = arith.addf %14, %19 : vector<16x256xf32>
    %c0_20 = arith.constant 0 : index
    %c0_21 = arith.constant 0 : index
    %21 = vector.load %arg11[%c0_20, %c0_21] : memref<1x256xf32, #tpu.memory_space<vmem>>, vector<1x256xf32>
    %22 = vector.broadcast %21 : vector<1x256xf32> to vector<16x256xf32>
    %23 = arith.mulf %20, %22 : vector<16x256xf32>
    %c0_22 = arith.constant 0 : index
    %c0_23 = arith.constant 0 : index
    %24 = vector.load %arg14[%c0_22, %c0_23] : memref<1x256xf32, #tpu.memory_space<vmem>>, vector<1x256xf32>
    %25 = vector.broadcast %24 : vector<1x256xf32> to vector<16x256xf32>
    %26 = arith.addf %23, %25 : vector<16x256xf32>
    %cst_24 = arith.constant 0.000000e+00 : f32
    %27 = vector.broadcast %cst_24 : f32 to vector<16x256xf32>
    %28 = arith.maximumf %26, %27 : vector<16x256xf32>
    %29 = arith.truncf %28 : vector<16x256xf32> to vector<16x256xbf16>
    %c0_25 = arith.constant 0 : index
    %c0_26 = arith.constant 0 : index
    %c0_27 = arith.constant 0 : index
    %30 = vector.load %arg5[%c0_25, %c0_26, %c0_27] : memref<2x8x16xbf16, #tpu.memory_space<vmem>>, vector<1x8x16xbf16>
    %31 = vector.shape_cast %30 : vector<1x8x16xbf16> to vector<8x16xbf16>
    %cst_28 = arith.constant dense<0.000000e+00> : vector<8x256xf32>
    %32 = tpu.matmul %31, %29, %cst_28 {dimension_numbers = #tpu.dot_dimension_numbers<[1], [0], [0], [1], [0, 0, 1, 1], [], []>} : vector<8x16xbf16>, vector<16x256xbf16>, vector<8x256xf32> -> vector<8x256xf32>
    %c1_29 = arith.constant 1 : index
    %c0_30 = arith.constant 0 : index
    %c0_31 = arith.constant 0 : index
    %33 = vector.load %arg5[%c1_29, %c0_30, %c0_31] : memref<2x8x16xbf16, #tpu.memory_space<vmem>>, vector<1x8x16xbf16>
    %34 = vector.shape_cast %33 : vector<1x8x16xbf16> to vector<8x16xbf16>
    %cst_32 = arith.constant dense<0.000000e+00> : vector<8x256xf32>
    %35 = tpu.matmul %34, %29, %cst_32 {dimension_numbers = #tpu.dot_dimension_numbers<[1], [0], [0], [1], [0, 0, 1, 1], [], []>} : vector<8x16xbf16>, vector<16x256xbf16>, vector<8x256xf32> -> vector<8x256xf32>
    %36 = arith.maximumf %32, %35 : vector<8x256xf32>
    %37 = arith.truncf %36 : vector<8x256xf32> to vector<8x256xbf16>
    %c0_33 = arith.constant 0 : index
    %c0_34 = arith.constant 0 : index
    %c0_35 = arith.constant 0 : index
    %38 = vector.load %arg8[%c0_33, %c0_34, %c0_35] : memref<2x256x128xbf16, #tpu.memory_space<vmem>>, vector<1x256x128xbf16>
    %39 = vector.shape_cast %38 : vector<1x256x128xbf16> to vector<256x128xbf16>
    %cst_36 = arith.constant dense<0.000000e+00> : vector<8x128xf32>
    %40 = tpu.matmul %37, %39, %cst_36 {dimension_numbers = #tpu.dot_dimension_numbers<[1], [0], [0], [1], [0, 0, 1, 1], [], []>} : vector<8x256xbf16>, vector<256x128xbf16>, vector<8x128xf32> -> vector<8x128xf32>
    %c1_37 = arith.constant 1 : index
    %c0_38 = arith.constant 0 : index
    %c0_39 = arith.constant 0 : index
    %41 = vector.load %arg8[%c1_37, %c0_38, %c0_39] : memref<2x256x128xbf16, #tpu.memory_space<vmem>>, vector<1x256x128xbf16>
    %42 = vector.shape_cast %41 : vector<1x256x128xbf16> to vector<256x128xbf16>
    %cst_40 = arith.constant dense<0.000000e+00> : vector<8x128xf32>
    %43 = tpu.matmul %37, %42, %cst_40 {dimension_numbers = #tpu.dot_dimension_numbers<[1], [0], [0], [1], [0, 0, 1, 1], [], []>} : vector<8x256xbf16>, vector<256x128xbf16>, vector<8x128xf32> -> vector<8x128xf32>
    %44 = arith.maximumf %40, %43 : vector<8x128xf32>
    %c1_41 = arith.constant 1 : index
    %c16 = arith.constant 16 : index
    %45 = vector.load %arg20[%c1_41, %c16] : memref<20x160xf32, #tpu.memory_space<vmem>>, vector<8x128xf32>
    tpu.vector_store %arg20[%c1_41, %c16], %44 {strides = array<i32>} : memref<20x160xf32, #tpu.memory_space<vmem>>, vector<8x128xf32>,
    %c0_42 = arith.constant 0 : index
    %c0_43 = arith.constant 0 : index
    %46 = vector.load %arg20[%c0_42, %c0_43] : memref<20x160xf32, #tpu.memory_space<vmem>>, vector<8x160xf32>
    %47 = arith.truncf %46 : vector<8x160xf32> to vector<8x160xbf16>
    %c0_44 = arith.constant 0 : index
    %c0_45 = arith.constant 0 : index
    %c0_46 = arith.constant 0 : index
    %48 = vector.load %arg3[%c0_44, %c0_45, %c0_46] : memref<3x160x256xbf16, #tpu.memory_space<vmem>>, vector<1x160x256xbf16>
    %49 = vector.shape_cast %48 : vector<1x160x256xbf16> to vector<160x256xbf16>
    %cst_47 = arith.constant dense<0.000000e+00> : vector<8x256xf32>
    %50 = tpu.matmul %47, %49, %cst_47 {dimension_numbers = #tpu.dot_dimension_numbers<[1], [0], [0], [1], [0, 0, 1, 1], [], []>} : vector<8x160xbf16>, vector<160x256xbf16>, vector<8x256xf32> -> vector<8x256xf32>
    %c1_48 = arith.constant 1 : index
    %c0_49 = arith.constant 0 : index
    %51 = vector.load %arg20[%c1_48, %c0_49] : memref<20x160xf32, #tpu.memory_space<vmem>>, vector<8x160xf32>
    %52 = arith.truncf %51 : vector<8x160xf32> to vector<8x160xbf16>
    %c1_50 = arith.constant 1 : index
    %c0_51 = arith.constant 0 : index
    %c0_52 = arith.constant 0 : index
    %53 = vector.load %arg3[%c1_50, %c0_51, %c0_52] : memref<3x160x256xbf16, #tpu.memory_space<vmem>>, vector<1x160x256xbf16>
    %54 = vector.shape_cast %53 : vector<1x160x256xbf16> to vector<160x256xbf16>
    %cst_53 = arith.constant dense<0.000000e+00> : vector<8x256xf32>
    %55 = tpu.matmul %52, %54, %cst_53 {dimension_numbers = #tpu.dot_dimension_numbers<[1], [0], [0], [1], [0, 0, 1, 1], [], []>} : vector<8x160xbf16>, vector<160x256xbf16>, vector<8x256xf32> -> vector<8x256xf32>
    %56 = arith.addf %50, %55 : vector<8x256xf32>
    %c2_54 = arith.constant 2 : index
    %c0_55 = arith.constant 0 : index
    %57 = vector.load %arg20[%c2_54, %c0_55] : memref<20x160xf32, #tpu.memory_space<vmem>>, vector<8x160xf32>
    %58 = arith.truncf %57 : vector<8x160xf32> to vector<8x160xbf16>
    %c2_56 = arith.constant 2 : index
    %c0_57 = arith.constant 0 : index
    %c0_58 = arith.constant 0 : index
    %59 = vector.load %arg3[%c2_56, %c0_57, %c0_58] : memref<3x160x256xbf16, #tpu.memory_space<vmem>>, vector<1x160x256xbf16>
    %60 = vector.shape_cast %59 : vector<1x160x256xbf16> to vector<160x256xbf16>
    %cst_59 = arith.constant dense<0.000000e+00> : vector<8x256xf32>
    %61 = tpu.matmul %58, %60, %cst_59 {dimension_numbers = #tpu.dot_dimension_numbers<[1], [0], [0], [1], [0, 0, 1, 1], [], []>} : vector<8x160xbf16>, vector<160x256xbf16>, vector<8x256xf32> -> vector<8x256xf32>
    %62 = arith.addf %56, %61 : vector<8x256xf32>
    %c0_60 = arith.constant 0 : index
    %c0_61 = arith.constant 0 : index
    %63 = vector.load %arg12[%c0_60, %c0_61] : memref<1x256xf32, #tpu.memory_space<vmem>>, vector<1x256xf32>
    %64 = vector.broadcast %63 : vector<1x256xf32> to vector<8x256xf32>
    %65 = arith.mulf %62, %64 : vector<8x256xf32>
    %c0_62 = arith.constant 0 : index
    %c0_63 = arith.constant 0 : index
    %66 = vector.load %arg15[%c0_62, %c0_63] : memref<1x256xf32, #tpu.memory_space<vmem>>, vector<1x256xf32>
    %67 = vector.broadcast %66 : vector<1x256xf32> to vector<8x256xf32>
    %68 = arith.addf %65, %67 : vector<8x256xf32>
    %cst_64 = arith.constant 0.000000e+00 : f32
    %69 = vector.broadcast %cst_64 : f32 to vector<8x256xf32>
    %70 = arith.maximumf %68, %69 : vector<8x256xf32>
    %71 = arith.truncf %70 : vector<8x256xf32> to vector<8x256xbf16>
    %c0_65 = arith.constant 0 : index
    %c0_66 = arith.constant 0 : index
    %c0_67 = arith.constant 0 : index
    %72 = vector.load %arg6[%c0_65, %c0_66, %c0_67] : memref<2x4x8xbf16, #tpu.memory_space<vmem>>, vector<1x4x8xbf16>
    %73 = vector.shape_cast %72 : vector<1x4x8xbf16> to vector<4x8xbf16>
    %cst_68 = arith.constant dense<0.000000e+00> : vector<4x256xf32>
    %74 = tpu.matmul %73, %71, %cst_68 {dimension_numbers = #tpu.dot_dimension_numbers<[1], [0], [0], [1], [0, 0, 1, 1], [], []>} : vector<4x8xbf16>, vector<8x256xbf16>, vector<4x256xf32> -> vector<4x256xf32>
    %c1_69 = arith.constant 1 : index
    %c0_70 = arith.constant 0 : index
    %c0_71 = arith.constant 0 : index
    %75 = vector.load %arg6[%c1_69, %c0_70, %c0_71] : memref<2x4x8xbf16, #tpu.memory_space<vmem>>, vector<1x4x8xbf16>
    %76 = vector.shape_cast %75 : vector<1x4x8xbf16> to vector<4x8xbf16>
    %cst_72 = arith.constant dense<0.000000e+00> : vector<4x256xf32>
    %77 = tpu.matmul %76, %71, %cst_72 {dimension_numbers = #tpu.dot_dimension_numbers<[1], [0], [0], [1], [0, 0, 1, 1], [], []>} : vector<4x8xbf16>, vector<8x256xbf16>, vector<4x256xf32> -> vector<4x256xf32>
    %78 = arith.maximumf %74, %77 : vector<4x256xf32>
    %79 = arith.truncf %78 : vector<4x256xf32> to vector<4x256xbf16>
    %c0_73 = arith.constant 0 : index
    %c0_74 = arith.constant 0 : index
    %c0_75 = arith.constant 0 : index
    %80 = vector.load %arg9[%c0_73, %c0_74, %c0_75] : memref<2x256x128xbf16, #tpu.memory_space<vmem>>, vector<1x256x128xbf16>
    %81 = vector.shape_cast %80 : vector<1x256x128xbf16> to vector<256x128xbf16>
    %cst_76 = arith.constant dense<0.000000e+00> : vector<4x128xf32>
    %82 = tpu.matmul %79, %81, %cst_76 {dimension_numbers = #tpu.dot_dimension_numbers<[1], [0], [0], [1], [0, 0, 1, 1], [], []>} : vector<4x256xbf16>, vector<256x128xbf16>, vector<4x128xf32> -> vector<4x128xf32>
    %c1_77 = arith.constant 1 : index
    %c0_78 = arith.constant 0 : index
    %c0_79 = arith.constant 0 : index
    %83 = vector.load %arg9[%c1_77, %c0_78, %c0_79] : memref<2x256x128xbf16, #tpu.memory_space<vmem>>, vector<1x256x128xbf16>
    %84 = vector.shape_cast %83 : vector<1x256x128xbf16> to vector<256x128xbf16>
    %cst_80 = arith.constant dense<0.000000e+00> : vector<4x128xf32>
    %85 = tpu.matmul %79, %84, %cst_80 {dimension_numbers = #tpu.dot_dimension_numbers<[1], [0], [0], [1], [0, 0, 1, 1], [], []>} : vector<4x256xbf16>, vector<256x128xbf16>, vector<4x128xf32> -> vector<4x128xf32>
    %86 = arith.maximumf %82, %85 : vector<4x128xf32>
    %c1_81 = arith.constant 1 : index
    %c32 = arith.constant 32 : index
    %87 = vector.load %arg21[%c1_81, %c32] : memref<12x192xf32, #tpu.memory_space<vmem>>, vector<4x128xf32>
    tpu.vector_store %arg21[%c1_81, %c32], %86 {strides = array<i32>} : memref<12x192xf32, #tpu.memory_space<vmem>>, vector<4x128xf32>,
    %c0_82 = arith.constant 0 : index
    %c0_83 = arith.constant 0 : index
    %88 = vector.load %arg21[%c0_82, %c0_83] : memref<12x192xf32, #tpu.memory_space<vmem>>, vector<4x192xf32>
    %89 = arith.truncf %88 : vector<4x192xf32> to vector<4x192xbf16>
    %c0_84 = arith.constant 0 : index
    %c0_85 = arith.constant 0 : index
    %c0_86 = arith.constant 0 : index
    %90 = vector.load %arg4[%c0_84, %c0_85, %c0_86] : memref<3x192x512xbf16, #tpu.memory_space<vmem>>, vector<1x192x512xbf16>
    %91 = vector.shape_cast %90 : vector<1x192x512xbf16> to vector<192x512xbf16>
    %cst_87 = arith.constant dense<0.000000e+00> : vector<4x512xf32>
    %92 = tpu.matmul %89, %91, %cst_87 {dimension_numbers = #tpu.dot_dimension_numbers<[1], [0], [0], [1], [0, 0, 1, 1], [], []>} : vector<4x192xbf16>, vector<192x512xbf16>, vector<4x512xf32> -> vector<4x512xf32>
    %c1_88 = arith.constant 1 : index
    %c0_89 = arith.constant 0 : index
    %93 = vector.load %arg21[%c1_88, %c0_89] : memref<12x192xf32, #tpu.memory_space<vmem>>, vector<4x192xf32>
    %94 = arith.truncf %93 : vector<4x192xf32> to vector<4x192xbf16>
    %c1_90 = arith.constant 1 : index
    %c0_91 = arith.constant 0 : index
    %c0_92 = arith.constant 0 : index
    %95 = vector.load %arg4[%c1_90, %c0_91, %c0_92] : memref<3x192x512xbf16, #tpu.memory_space<vmem>>, vector<1x192x512xbf16>
    %96 = vector.shape_cast %95 : vector<1x192x512xbf16> to vector<192x512xbf16>
    %cst_93 = arith.constant dense<0.000000e+00> : vector<4x512xf32>
    %97 = tpu.matmul %94, %96, %cst_93 {dimension_numbers = #tpu.dot_dimension_numbers<[1], [0], [0], [1], [0, 0, 1, 1], [], []>} : vector<4x192xbf16>, vector<192x512xbf16>, vector<4x512xf32> -> vector<4x512xf32>
    %98 = arith.addf %92, %97 : vector<4x512xf32>
    %c2_94 = arith.constant 2 : index
    %c0_95 = arith.constant 0 : index
    %99 = vector.load %arg21[%c2_94, %c0_95] : memref<12x192xf32, #tpu.memory_space<vmem>>, vector<4x192xf32>
    %100 = arith.truncf %99 : vector<4x192xf32> to vector<4x192xbf16>
    %c2_96 = arith.constant 2 : index
    %c0_97 = arith.constant 0 : index
    %c0_98 = arith.constant 0 : index
    %101 = vector.load %arg4[%c2_96, %c0_97, %c0_98] : memref<3x192x512xbf16, #tpu.memory_space<vmem>>, vector<1x192x512xbf16>
    %102 = vector.shape_cast %101 : vector<1x192x512xbf16> to vector<192x512xbf16>
    %cst_99 = arith.constant dense<0.000000e+00> : vector<4x512xf32>
    %103 = tpu.matmul %100, %102, %cst_99 {dimension_numbers = #tpu.dot_dimension_numbers<[1], [0], [0], [1], [0, 0, 1, 1], [], []>} : vector<4x192xbf16>, vector<192x512xbf16>, vector<4x512xf32> -> vector<4x512xf32>
    %104 = arith.addf %98, %103 : vector<4x512xf32>
    %c0_100 = arith.constant 0 : index
    %c0_101 = arith.constant 0 : index
    %105 = vector.load %arg13[%c0_100, %c0_101] : memref<1x512xf32, #tpu.memory_space<vmem>>, vector<1x512xf32>
    %106 = vector.broadcast %105 : vector<1x512xf32> to vector<4x512xf32>
    %107 = arith.mulf %104, %106 : vector<4x512xf32>
    %c0_102 = arith.constant 0 : index
    %c0_103 = arith.constant 0 : index
    %108 = vector.load %arg16[%c0_102, %c0_103] : memref<1x512xf32, #tpu.memory_space<vmem>>, vector<1x512xf32>
    %109 = vector.broadcast %108 : vector<1x512xf32> to vector<4x512xf32>
    %110 = arith.addf %107, %109 : vector<4x512xf32>
    %cst_104 = arith.constant 0.000000e+00 : f32
    %111 = vector.broadcast %cst_104 : f32 to vector<4x512xf32>
    %112 = arith.maximumf %110, %111 : vector<4x512xf32>
    %113 = arith.truncf %112 : vector<4x512xf32> to vector<4x512xbf16>
    %c0_105 = arith.constant 0 : index
    %c0_106 = arith.constant 0 : index
    %c0_107 = arith.constant 0 : index
    %114 = vector.load %arg7[%c0_105, %c0_106, %c0_107] : memref<2x2x4xbf16, #tpu.memory_space<vmem>>, vector<1x2x4xbf16>
    %115 = vector.shape_cast %114 : vector<1x2x4xbf16> to vector<2x4xbf16>
    %cst_108 = arith.constant dense<0.000000e+00> : vector<2x512xf32>
    %116 = tpu.matmul %115, %113, %cst_108 {dimension_numbers = #tpu.dot_dimension_numbers<[1], [0], [0], [1], [0, 0, 1, 1], [], []>} : vector<2x4xbf16>, vector<4x512xbf16>, vector<2x512xf32> -> vector<2x512xf32>
    %c1_109 = arith.constant 1 : index
    %c0_110 = arith.constant 0 : index
    %c0_111 = arith.constant 0 : index
    %117 = vector.load %arg7[%c1_109, %c0_110, %c0_111] : memref<2x2x4xbf16, #tpu.memory_space<vmem>>, vector<1x2x4xbf16>
    %118 = vector.shape_cast %117 : vector<1x2x4xbf16> to vector<2x4xbf16>
    %cst_112 = arith.constant dense<0.000000e+00> : vector<2x512xf32>
    %119 = tpu.matmul %118, %113, %cst_112 {dimension_numbers = #tpu.dot_dimension_numbers<[1], [0], [0], [1], [0, 0, 1, 1], [], []>} : vector<2x4xbf16>, vector<4x512xbf16>, vector<2x512xf32> -> vector<2x512xf32>
    %120 = arith.maximumf %116, %119 : vector<2x512xf32>
    %121 = arith.truncf %120 : vector<2x512xf32> to vector<2x512xbf16>
    %c0_113 = arith.constant 0 : index
    %c0_114 = arith.constant 0 : index
    %c0_115 = arith.constant 0 : index
    %122 = vector.load %arg10[%c0_113, %c0_114, %c0_115] : memref<2x512x256xbf16, #tpu.memory_space<vmem>>, vector<1x512x256xbf16>
    %123 = vector.shape_cast %122 : vector<1x512x256xbf16> to vector<512x256xbf16>
    %cst_116 = arith.constant dense<0.000000e+00> : vector<2x256xf32>
    %124 = tpu.matmul %121, %123, %cst_116 {dimension_numbers = #tpu.dot_dimension_numbers<[1], [0], [0], [1], [0, 0, 1, 1], [], []>} : vector<2x512xbf16>, vector<512x256xbf16>, vector<2x256xf32> -> vector<2x256xf32>
    %c1_117 = arith.constant 1 : index
    %c0_118 = arith.constant 0 : index
    %c0_119 = arith.constant 0 : index
    %125 = vector.load %arg10[%c1_117, %c0_118, %c0_119] : memref<2x512x256xbf16, #tpu.memory_space<vmem>>, vector<1x512x256xbf16>
    %126 = vector.shape_cast %125 : vector<1x512x256xbf16> to vector<512x256xbf16>
    %cst_120 = arith.constant dense<0.000000e+00> : vector<2x256xf32>
    %127 = tpu.matmul %121, %126, %cst_120 {dimension_numbers = #tpu.dot_dimension_numbers<[1], [0], [0], [1], [0, 0, 1, 1], [], []>} : vector<2x512xbf16>, vector<512x256xbf16>, vector<2x256xf32> -> vector<2x256xf32>
    %128 = arith.maximumf %124, %127 : vector<2x256xf32>
    %c0_121 = arith.constant 0 : index
    %c0_122 = arith.constant 0 : index
    %129 = vector.load %arg18[%c0_121, %c0_122] : memref<1x128xf32, #tpu.memory_space<vmem>>, vector<1x128xf32>
    %130 = vector.extract_strided_slice %128 {offsets = [0, 0], sizes = [1, 256], strides = [1, 1]} : vector<2x256xf32> to vector<1x256xf32>
    %131 = arith.truncf %130 : vector<1x256xf32> to vector<1x256xbf16>
    %c0_123 = arith.constant 0 : index
    %c0_124 = arith.constant 0 : index
    %c0_125 = arith.constant 0 : index
    %132 = vector.load %arg17[%c0_123, %c0_124, %c0_125] : memref<2x256x128xbf16, #tpu.memory_space<vmem>>, vector<1x256x128xbf16>
    %133 = vector.shape_cast %132 : vector<1x256x128xbf16> to vector<256x128xbf16>
    %cst_126 = arith.constant dense<0.000000e+00> : vector<1x128xf32>
    %134 = tpu.matmul %131, %133, %cst_126 {dimension_numbers = #tpu.dot_dimension_numbers<[1], [0], [0], [1], [0, 0, 1, 1], [], []>} : vector<1x256xbf16>, vector<256x128xbf16>, vector<1x128xf32> -> vector<1x128xf32>
    %135 = arith.addf %129, %134 : vector<1x128xf32>
    %136 = vector.extract_strided_slice %128 {offsets = [1, 0], sizes = [1, 256], strides = [1, 1]} : vector<2x256xf32> to vector<1x256xf32>
    %137 = arith.truncf %136 : vector<1x256xf32> to vector<1x256xbf16>
    %c1_127 = arith.constant 1 : index
    %c0_128 = arith.constant 0 : index
    %c0_129 = arith.constant 0 : index
    %138 = vector.load %arg17[%c1_127, %c0_128, %c0_129] : memref<2x256x128xbf16, #tpu.memory_space<vmem>>, vector<1x256x128xbf16>
    %139 = vector.shape_cast %138 : vector<1x256x128xbf16> to vector<256x128xbf16>
    %cst_130 = arith.constant dense<0.000000e+00> : vector<1x128xf32>
    %140 = tpu.matmul %137, %139, %cst_130 {dimension_numbers = #tpu.dot_dimension_numbers<[1], [0], [0], [1], [0, 0, 1, 1], [], []>} : vector<1x256xbf16>, vector<256x128xbf16>, vector<1x128xf32> -> vector<1x128xf32>
    %141 = arith.addf %135, %140 : vector<1x128xf32>
    %c0_131 = arith.constant 0 : index
    %c0_132 = arith.constant 0 : index
    %142 = vector.load %arg19[%c0_131, %c0_132] : memref<2x128xf32, #tpu.memory_space<vmem>>, vector<1x128xf32>
    tpu.vector_store %arg19[%c0_131, %c0_132], %141 {strides = array<i32>} : memref<2x128xf32, #tpu.memory_space<vmem>>, vector<1x128xf32>,
    %c18 = arith.constant 18 : index
    %c0_133 = arith.constant 0 : index
    %143 = vector.load %arg1[%c18, %c0_133] : memref<36x54xf32, #tpu.memory_space<vmem>>, vector<16x54xf32>
    %144 = arith.truncf %143 : vector<16x54xf32> to vector<16x54xbf16>
    %c0_134 = arith.constant 0 : index
    %c0_135 = arith.constant 0 : index
    %c0_136 = arith.constant 0 : index
    %145 = vector.load %arg2[%c0_134, %c0_135, %c0_136] : memref<3x54x256xbf16, #tpu.memory_space<vmem>>, vector<1x54x256xbf16>
    %146 = vector.shape_cast %145 : vector<1x54x256xbf16> to vector<54x256xbf16>
    %cst_137 = arith.constant dense<0.000000e+00> : vector<16x256xf32>
    %147 = tpu.matmul %144, %146, %cst_137 {dimension_numbers = #tpu.dot_dimension_numbers<[1], [0], [0], [1], [0, 0, 1, 1], [], []>} : vector<16x54xbf16>, vector<54x256xbf16>, vector<16x256xf32> -> vector<16x256xf32>
    %c19 = arith.constant 19 : index
    %c0_138 = arith.constant 0 : index
    %148 = vector.load %arg1[%c19, %c0_138] : memref<36x54xf32, #tpu.memory_space<vmem>>, vector<16x54xf32>
    %149 = arith.truncf %148 : vector<16x54xf32> to vector<16x54xbf16>
    %c1_139 = arith.constant 1 : index
    %c0_140 = arith.constant 0 : index
    %c0_141 = arith.constant 0 : index
    %150 = vector.load %arg2[%c1_139, %c0_140, %c0_141] : memref<3x54x256xbf16, #tpu.memory_space<vmem>>, vector<1x54x256xbf16>
    %151 = vector.shape_cast %150 : vector<1x54x256xbf16> to vector<54x256xbf16>
    %cst_142 = arith.constant dense<0.000000e+00> : vector<16x256xf32>
    %152 = tpu.matmul %149, %151, %cst_142 {dimension_numbers = #tpu.dot_dimension_numbers<[1], [0], [0], [1], [0, 0, 1, 1], [], []>} : vector<16x54xbf16>, vector<54x256xbf16>, vector<16x256xf32> -> vector<16x256xf32>
    %153 = arith.addf %147, %152 : vector<16x256xf32>
    %c20 = arith.constant 20 : index
    %c0_143 = arith.constant 0 : index
    %154 = vector.load %arg1[%c20, %c0_143] : memref<36x54xf32, #tpu.memory_space<vmem>>, vector<16x54xf32>
    %155 = arith.truncf %154 : vector<16x54xf32> to vector<16x54xbf16>
    %c2_144 = arith.constant 2 : index
    %c0_145 = arith.constant 0 : index
    %c0_146 = arith.constant 0 : index
    %156 = vector.load %arg2[%c2_144, %c0_145, %c0_146] : memref<3x54x256xbf16, #tpu.memory_space<vmem>>, vector<1x54x256xbf16>
    %157 = vector.shape_cast %156 : vector<1x54x256xbf16> to vector<54x256xbf16>
    %cst_147 = arith.constant dense<0.000000e+00> : vector<16x256xf32>
    %158 = tpu.matmul %155, %157, %cst_147 {dimension_numbers = #tpu.dot_dimension_numbers<[1], [0], [0], [1], [0, 0, 1, 1], [], []>} : vector<16x54xbf16>, vector<54x256xbf16>, vector<16x256xf32> -> vector<16x256xf32>
    %159 = arith.addf %153, %158 : vector<16x256xf32>
    %c0_148 = arith.constant 0 : index
    %c0_149 = arith.constant 0 : index
    %160 = vector.load %arg11[%c0_148, %c0_149] : memref<1x256xf32, #tpu.memory_space<vmem>>, vector<1x256xf32>
    %161 = vector.broadcast %160 : vector<1x256xf32> to vector<16x256xf32>
    %162 = arith.mulf %159, %161 : vector<16x256xf32>
    %c0_150 = arith.constant 0 : index
    %c0_151 = arith.constant 0 : index
    %163 = vector.load %arg14[%c0_150, %c0_151] : memref<1x256xf32, #tpu.memory_space<vmem>>, vector<1x256xf32>
    %164 = vector.broadcast %163 : vector<1x256xf32> to vector<16x256xf32>
    %165 = arith.addf %162, %164 : vector<16x256xf32>
    %cst_152 = arith.constant 0.000000e+00 : f32
    %166 = vector.broadcast %cst_152 : f32 to vector<16x256xf32>
    %167 = arith.maximumf %165, %166 : vector<16x256xf32>
    %168 = arith.truncf %167 : vector<16x256xf32> to vector<16x256xbf16>
    %c0_153 = arith.constant 0 : index
    %c0_154 = arith.constant 0 : index
    %c0_155 = arith.constant 0 : index
    %169 = vector.load %arg5[%c0_153, %c0_154, %c0_155] : memref<2x8x16xbf16, #tpu.memory_space<vmem>>, vector<1x8x16xbf16>
    %170 = vector.shape_cast %169 : vector<1x8x16xbf16> to vector<8x16xbf16>
    %cst_156 = arith.constant dense<0.000000e+00> : vector<8x256xf32>
    %171 = tpu.matmul %170, %168, %cst_156 {dimension_numbers = #tpu.dot_dimension_numbers<[1], [0], [0], [1], [0, 0, 1, 1], [], []>} : vector<8x16xbf16>, vector<16x256xbf16>, vector<8x256xf32> -> vector<8x256xf32>
    %c1_157 = arith.constant 1 : index
    %c0_158 = arith.constant 0 : index
    %c0_159 = arith.constant 0 : index
    %172 = vector.load %arg5[%c1_157, %c0_158, %c0_159] : memref<2x8x16xbf16, #tpu.memory_space<vmem>>, vector<1x8x16xbf16>
    %173 = vector.shape_cast %172 : vector<1x8x16xbf16> to vector<8x16xbf16>
    %cst_160 = arith.constant dense<0.000000e+00> : vector<8x256xf32>
    %174 = tpu.matmul %173, %168, %cst_160 {dimension_numbers = #tpu.dot_dimension_numbers<[1], [0], [0], [1], [0, 0, 1, 1], [], []>} : vector<8x16xbf16>, vector<16x256xbf16>, vector<8x256xf32> -> vector<8x256xf32>
    %175 = arith.maximumf %171, %174 : vector<8x256xf32>
    %176 = arith.truncf %175 : vector<8x256xf32> to vector<8x256xbf16>
    %c0_161 = arith.constant 0 : index
    %c0_162 = arith.constant 0 : index
    %c0_163 = arith.constant 0 : index
    %177 = vector.load %arg8[%c0_161, %c0_162, %c0_163] : memref<2x256x128xbf16, #tpu.memory_space<vmem>>, vector<1x256x128xbf16>
    %178 = vector.shape_cast %177 : vector<1x256x128xbf16> to vector<256x128xbf16>
    %cst_164 = arith.constant dense<0.000000e+00> : vector<8x128xf32>
    %179 = tpu.matmul %176, %178, %cst_164 {dimension_numbers = #tpu.dot_dimension_numbers<[1], [0], [0], [1], [0, 0, 1, 1], [], []>} : vector<8x256xbf16>, vector<256x128xbf16>, vector<8x128xf32> -> vector<8x128xf32>
    %c1_165 = arith.constant 1 : index
    %c0_166 = arith.constant 0 : index
    %c0_167 = arith.constant 0 : index
    %180 = vector.load %arg8[%c1_165, %c0_166, %c0_167] : memref<2x256x128xbf16, #tpu.memory_space<vmem>>, vector<1x256x128xbf16>
    %181 = vector.shape_cast %180 : vector<1x256x128xbf16> to vector<256x128xbf16>
    %cst_168 = arith.constant dense<0.000000e+00> : vector<8x128xf32>
    %182 = tpu.matmul %176, %181, %cst_168 {dimension_numbers = #tpu.dot_dimension_numbers<[1], [0], [0], [1], [0, 0, 1, 1], [], []>} : vector<8x256xbf16>, vector<256x128xbf16>, vector<8x128xf32> -> vector<8x128xf32>
    %183 = arith.maximumf %179, %182 : vector<8x128xf32>
    %c11 = arith.constant 11 : index
    %c16_169 = arith.constant 16 : index
    %184 = vector.load %arg20[%c11, %c16_169] : memref<20x160xf32, #tpu.memory_space<vmem>>, vector<8x128xf32>
    tpu.vector_store %arg20[%c11, %c16_169], %183 {strides = array<i32>} : memref<20x160xf32, #tpu.memory_space<vmem>>, vector<8x128xf32>,
    %c10 = arith.constant 10 : index
    %c0_170 = arith.constant 0 : index
    %185 = vector.load %arg20[%c10, %c0_170] : memref<20x160xf32, #tpu.memory_space<vmem>>, vector<8x160xf32>
    %186 = arith.truncf %185 : vector<8x160xf32> to vector<8x160xbf16>
    %c0_171 = arith.constant 0 : index
    %c0_172 = arith.constant 0 : index
    %c0_173 = arith.constant 0 : index
    %187 = vector.load %arg3[%c0_171, %c0_172, %c0_173] : memref<3x160x256xbf16, #tpu.memory_space<vmem>>, vector<1x160x256xbf16>
    %188 = vector.shape_cast %187 : vector<1x160x256xbf16> to vector<160x256xbf16>
    %cst_174 = arith.constant dense<0.000000e+00> : vector<8x256xf32>
    %189 = tpu.matmul %186, %188, %cst_174 {dimension_numbers = #tpu.dot_dimension_numbers<[1], [0], [0], [1], [0, 0, 1, 1], [], []>} : vector<8x160xbf16>, vector<160x256xbf16>, vector<8x256xf32> -> vector<8x256xf32>
    %c11_175 = arith.constant 11 : index
    %c0_176 = arith.constant 0 : index
    %190 = vector.load %arg20[%c11_175, %c0_176] : memref<20x160xf32, #tpu.memory_space<vmem>>, vector<8x160xf32>
    %191 = arith.truncf %190 : vector<8x160xf32> to vector<8x160xbf16>
    %c1_177 = arith.constant 1 : index
    %c0_178 = arith.constant 0 : index
    %c0_179 = arith.constant 0 : index
    %192 = vector.load %arg3[%c1_177, %c0_178, %c0_179] : memref<3x160x256xbf16, #tpu.memory_space<vmem>>, vector<1x160x256xbf16>
    %193 = vector.shape_cast %192 : vector<1x160x256xbf16> to vector<160x256xbf16>
    %cst_180 = arith.constant dense<0.000000e+00> : vector<8x256xf32>
    %194 = tpu.matmul %191, %193, %cst_180 {dimension_numbers = #tpu.dot_dimension_numbers<[1], [0], [0], [1], [0, 0, 1, 1], [], []>} : vector<8x160xbf16>, vector<160x256xbf16>, vector<8x256xf32> -> vector<8x256xf32>
    %195 = arith.addf %189, %194 : vector<8x256xf32>
    %c12 = arith.constant 12 : index
    %c0_181 = arith.constant 0 : index
    %196 = vector.load %arg20[%c12, %c0_181] : memref<20x160xf32, #tpu.memory_space<vmem>>, vector<8x160xf32>
    %197 = arith.truncf %196 : vector<8x160xf32> to vector<8x160xbf16>
    %c2_182 = arith.constant 2 : index
    %c0_183 = arith.constant 0 : index
    %c0_184 = arith.constant 0 : index
    %198 = vector.load %arg3[%c2_182, %c0_183, %c0_184] : memref<3x160x256xbf16, #tpu.memory_space<vmem>>, vector<1x160x256xbf16>
    %199 = vector.shape_cast %198 : vector<1x160x256xbf16> to vector<160x256xbf16>
    %cst_185 = arith.constant dense<0.000000e+00> : vector<8x256xf32>
    %200 = tpu.matmul %197, %199, %cst_185 {dimension_numbers = #tpu.dot_dimension_numbers<[1], [0], [0], [1], [0, 0, 1, 1], [], []>} : vector<8x160xbf16>, vector<160x256xbf16>, vector<8x256xf32> -> vector<8x256xf32>
    %201 = arith.addf %195, %200 : vector<8x256xf32>
    %c0_186 = arith.constant 0 : index
    %c0_187 = arith.constant 0 : index
    %202 = vector.load %arg12[%c0_186, %c0_187] : memref<1x256xf32, #tpu.memory_space<vmem>>, vector<1x256xf32>
    %203 = vector.broadcast %202 : vector<1x256xf32> to vector<8x256xf32>
    %204 = arith.mulf %201, %203 : vector<8x256xf32>
    %c0_188 = arith.constant 0 : index
    %c0_189 = arith.constant 0 : index
    %205 = vector.load %arg15[%c0_188, %c0_189] : memref<1x256xf32, #tpu.memory_space<vmem>>, vector<1x256xf32>
    %206 = vector.broadcast %205 : vector<1x256xf32> to vector<8x256xf32>
    %207 = arith.addf %204, %206 : vector<8x256xf32>
    %cst_190 = arith.constant 0.000000e+00 : f32
    %208 = vector.broadcast %cst_190 : f32 to vector<8x256xf32>
    %209 = arith.maximumf %207, %208 : vector<8x256xf32>
    %210 = arith.truncf %209 : vector<8x256xf32> to vector<8x256xbf16>
    %c0_191 = arith.constant 0 : index
    %c0_192 = arith.constant 0 : index
    %c0_193 = arith.constant 0 : index
    %211 = vector.load %arg6[%c0_191, %c0_192, %c0_193] : memref<2x4x8xbf16, #tpu.memory_space<vmem>>, vector<1x4x8xbf16>
    %212 = vector.shape_cast %211 : vector<1x4x8xbf16> to vector<4x8xbf16>
    %cst_194 = arith.constant dense<0.000000e+00> : vector<4x256xf32>
    %213 = tpu.matmul %212, %210, %cst_194 {dimension_numbers = #tpu.dot_dimension_numbers<[1], [0], [0], [1], [0, 0, 1, 1], [], []>} : vector<4x8xbf16>, vector<8x256xbf16>, vector<4x256xf32> -> vector<4x256xf32>
    %c1_195 = arith.constant 1 : index
    %c0_196 = arith.constant 0 : index
    %c0_197 = arith.constant 0 : index
    %214 = vector.load %arg6[%c1_195, %c0_196, %c0_197] : memref<2x4x8xbf16, #tpu.memory_space<vmem>>, vector<1x4x8xbf16>
    %215 = vector.shape_cast %214 : vector<1x4x8xbf16> to vector<4x8xbf16>
    %cst_198 = arith.constant dense<0.000000e+00> : vector<4x256xf32>
    %216 = tpu.matmul %215, %210, %cst_198 {dimension_numbers = #tpu.dot_dimension_numbers<[1], [0], [0], [1], [0, 0, 1, 1], [], []>} : vector<4x8xbf16>, vector<8x256xbf16>, vector<4x256xf32> -> vector<4x256xf32>
    %217 = arith.maximumf %213, %216 : vector<4x256xf32>
    %218 = arith.truncf %217 : vector<4x256xf32> to vector<4x256xbf16>
    %c0_199 = arith.constant 0 : index
    %c0_200 = arith.constant 0 : index
    %c0_201 = arith.constant 0 : index
    %219 = vector.load %arg9[%c0_199, %c0_200, %c0_201] : memref<2x256x128xbf16, #tpu.memory_space<vmem>>, vector<1x256x128xbf16>
    %220 = vector.shape_cast %219 : vector<1x256x128xbf16> to vector<256x128xbf16>
    %cst_202 = arith.constant dense<0.000000e+00> : vector<4x128xf32>
    %221 = tpu.matmul %218, %220, %cst_202 {dimension_numbers = #tpu.dot_dimension_numbers<[1], [0], [0], [1], [0, 0, 1, 1], [], []>} : vector<4x256xbf16>, vector<256x128xbf16>, vector<4x128xf32> -> vector<4x128xf32>
    %c1_203 = arith.constant 1 : index
    %c0_204 = arith.constant 0 : index
    %c0_205 = arith.constant 0 : index
    %222 = vector.load %arg9[%c1_203, %c0_204, %c0_205] : memref<2x256x128xbf16, #tpu.memory_space<vmem>>, vector<1x256x128xbf16>
    %223 = vector.shape_cast %222 : vector<1x256x128xbf16> to vector<256x128xbf16>
    %cst_206 = arith.constant dense<0.000000e+00> : vector<4x128xf32>
    %224 = tpu.matmul %218, %223, %cst_206 {dimension_numbers = #tpu.dot_dimension_numbers<[1], [0], [0], [1], [0, 0, 1, 1], [], []>} : vector<4x256xbf16>, vector<256x128xbf16>, vector<4x128xf32> -> vector<4x128xf32>
    %225 = arith.maximumf %221, %224 : vector<4x128xf32>
    %c7 = arith.constant 7 : index
    %c32_207 = arith.constant 32 : index
    %226 = vector.load %arg21[%c7, %c32_207] : memref<12x192xf32, #tpu.memory_space<vmem>>, vector<4x128xf32>
    tpu.vector_store %arg21[%c7, %c32_207], %225 {strides = array<i32>} : memref<12x192xf32, #tpu.memory_space<vmem>>, vector<4x128xf32>,
    %c6 = arith.constant 6 : index
    %c0_208 = arith.constant 0 : index
    %227 = vector.load %arg21[%c6, %c0_208] : memref<12x192xf32, #tpu.memory_space<vmem>>, vector<4x192xf32>
    %228 = arith.truncf %227 : vector<4x192xf32> to vector<4x192xbf16>
    %c0_209 = arith.constant 0 : index
    %c0_210 = arith.constant 0 : index
    %c0_211 = arith.constant 0 : index
    %229 = vector.load %arg4[%c0_209, %c0_210, %c0_211] : memref<3x192x512xbf16, #tpu.memory_space<vmem>>, vector<1x192x512xbf16>
    %230 = vector.shape_cast %229 : vector<1x192x512xbf16> to vector<192x512xbf16>
    %cst_212 = arith.constant dense<0.000000e+00> : vector<4x512xf32>
    %231 = tpu.matmul %228, %230, %cst_212 {dimension_numbers = #tpu.dot_dimension_numbers<[1], [0], [0], [1], [0, 0, 1, 1], [], []>} : vector<4x192xbf16>, vector<192x512xbf16>, vector<4x512xf32> -> vector<4x512xf32>
    %c7_213 = arith.constant 7 : index
    %c0_214 = arith.constant 0 : index
    %232 = vector.load %arg21[%c7_213, %c0_214] : memref<12x192xf32, #tpu.memory_space<vmem>>, vector<4x192xf32>
    %233 = arith.truncf %232 : vector<4x192xf32> to vector<4x192xbf16>
    %c1_215 = arith.constant 1 : index
    %c0_216 = arith.constant 0 : index
    %c0_217 = arith.constant 0 : index
    %234 = vector.load %arg4[%c1_215, %c0_216, %c0_217] : memref<3x192x512xbf16, #tpu.memory_space<vmem>>, vector<1x192x512xbf16>
    %235 = vector.shape_cast %234 : vector<1x192x512xbf16> to vector<192x512xbf16>
    %cst_218 = arith.constant dense<0.000000e+00> : vector<4x512xf32>
    %236 = tpu.matmul %233, %235, %cst_218 {dimension_numbers = #tpu.dot_dimension_numbers<[1], [0], [0], [1], [0, 0, 1, 1], [], []>} : vector<4x192xbf16>, vector<192x512xbf16>, vector<4x512xf32> -> vector<4x512xf32>
    %237 = arith.addf %231, %236 : vector<4x512xf32>
    %c8 = arith.constant 8 : index
    %c0_219 = arith.constant 0 : index
    %238 = vector.load %arg21[%c8, %c0_219] : memref<12x192xf32, #tpu.memory_space<vmem>>, vector<4x192xf32>
    %239 = arith.truncf %238 : vector<4x192xf32> to vector<4x192xbf16>
    %c2_220 = arith.constant 2 : index
    %c0_221 = arith.constant 0 : index
    %c0_222 = arith.constant 0 : index
    %240 = vector.load %arg4[%c2_220, %c0_221, %c0_222] : memref<3x192x512xbf16, #tpu.memory_space<vmem>>, vector<1x192x512xbf16>
    %241 = vector.shape_cast %240 : vector<1x192x512xbf16> to vector<192x512xbf16>
    %cst_223 = arith.constant dense<0.000000e+00> : vector<4x512xf32>
    %242 = tpu.matmul %239, %241, %cst_223 {dimension_numbers = #tpu.dot_dimension_numbers<[1], [0], [0], [1], [0, 0, 1, 1], [], []>} : vector<4x192xbf16>, vector<192x512xbf16>, vector<4x512xf32> -> vector<4x512xf32>
    %243 = arith.addf %237, %242 : vector<4x512xf32>
    %c0_224 = arith.constant 0 : index
    %c0_225 = arith.constant 0 : index
    %244 = vector.load %arg13[%c0_224, %c0_225] : memref<1x512xf32, #tpu.memory_space<vmem>>, vector<1x512xf32>
    %245 = vector.broadcast %244 : vector<1x512xf32> to vector<4x512xf32>
    %246 = arith.mulf %243, %245 : vector<4x512xf32>
    %c0_226 = arith.constant 0 : index
    %c0_227 = arith.constant 0 : index
    %247 = vector.load %arg16[%c0_226, %c0_227] : memref<1x512xf32, #tpu.memory_space<vmem>>, vector<1x512xf32>
    %248 = vector.broadcast %247 : vector<1x512xf32> to vector<4x512xf32>
    %249 = arith.addf %246, %248 : vector<4x512xf32>
    %cst_228 = arith.constant 0.000000e+00 : f32
    %250 = vector.broadcast %cst_228 : f32 to vector<4x512xf32>
    %251 = arith.maximumf %249, %250 : vector<4x512xf32>
    %252 = arith.truncf %251 : vector<4x512xf32> to vector<4x512xbf16>
    %c0_229 = arith.constant 0 : index
    %c0_230 = arith.constant 0 : index
    %c0_231 = arith.constant 0 : index
    %253 = vector.load %arg7[%c0_229, %c0_230, %c0_231] : memref<2x2x4xbf16, #tpu.memory_space<vmem>>, vector<1x2x4xbf16>
    %254 = vector.shape_cast %253 : vector<1x2x4xbf16> to vector<2x4xbf16>
    %cst_232 = arith.constant dense<0.000000e+00> : vector<2x512xf32>
    %255 = tpu.matmul %254, %252, %cst_232 {dimension_numbers = #tpu.dot_dimension_numbers<[1], [0], [0], [1], [0, 0, 1, 1], [], []>} : vector<2x4xbf16>, vector<4x512xbf16>, vector<2x512xf32> -> vector<2x512xf32>
    %c1_233 = arith.constant 1 : index
    %c0_234 = arith.constant 0 : index
    %c0_235 = arith.constant 0 : index
    %256 = vector.load %arg7[%c1_233, %c0_234, %c0_235] : memref<2x2x4xbf16, #tpu.memory_space<vmem>>, vector<1x2x4xbf16>
    %257 = vector.shape_cast %256 : vector<1x2x4xbf16> to vector<2x4xbf16>
    %cst_236 = arith.constant dense<0.000000e+00> : vector<2x512xf32>
    %258 = tpu.matmul %257, %252, %cst_236 {dimension_numbers = #tpu.dot_dimension_numbers<[1], [0], [0], [1], [0, 0, 1, 1], [], []>} : vector<2x4xbf16>, vector<4x512xbf16>, vector<2x512xf32> -> vector<2x512xf32>
    %259 = arith.maximumf %255, %258 : vector<2x512xf32>
    %260 = arith.truncf %259 : vector<2x512xf32> to vector<2x512xbf16>
    %c0_237 = arith.constant 0 : index
    %c0_238 = arith.constant 0 : index
    %c0_239 = arith.constant 0 : index
    %261 = vector.load %arg10[%c0_237, %c0_238, %c0_239] : memref<2x512x256xbf16, #tpu.memory_space<vmem>>, vector<1x512x256xbf16>
    %262 = vector.shape_cast %261 : vector<1x512x256xbf16> to vector<512x256xbf16>
    %cst_240 = arith.constant dense<0.000000e+00> : vector<2x256xf32>
    %263 = tpu.matmul %260, %262, %cst_240 {dimension_numbers = #tpu.dot_dimension_numbers<[1], [0], [0], [1], [0, 0, 1, 1], [], []>} : vector<2x512xbf16>, vector<512x256xbf16>, vector<2x256xf32> -> vector<2x256xf32>
    %c1_241 = arith.constant 1 : index
    %c0_242 = arith.constant 0 : index
    %c0_243 = arith.constant 0 : index
    %264 = vector.load %arg10[%c1_241, %c0_242, %c0_243] : memref<2x512x256xbf16, #tpu.memory_space<vmem>>, vector<1x512x256xbf16>
    %265 = vector.shape_cast %264 : vector<1x512x256xbf16> to vector<512x256xbf16>
    %cst_244 = arith.constant dense<0.000000e+00> : vector<2x256xf32>
    %266 = tpu.matmul %260, %265, %cst_244 {dimension_numbers = #tpu.dot_dimension_numbers<[1], [0], [0], [1], [0, 0, 1, 1], [], []>} : vector<2x512xbf16>, vector<512x256xbf16>, vector<2x256xf32> -> vector<2x256xf32>
    %267 = arith.maximumf %263, %266 : vector<2x256xf32>
    %c0_245 = arith.constant 0 : index
    %c0_246 = arith.constant 0 : index
    %268 = vector.load %arg18[%c0_245, %c0_246] : memref<1x128xf32, #tpu.memory_space<vmem>>, vector<1x128xf32>
    %269 = vector.extract_strided_slice %267 {offsets = [0, 0], sizes = [1, 256], strides = [1, 1]} : vector<2x256xf32> to vector<1x256xf32>
    %270 = arith.truncf %269 : vector<1x256xf32> to vector<1x256xbf16>
    %c0_247 = arith.constant 0 : index
    %c0_248 = arith.constant 0 : index
    %c0_249 = arith.constant 0 : index
    %271 = vector.load %arg17[%c0_247, %c0_248, %c0_249] : memref<2x256x128xbf16, #tpu.memory_space<vmem>>, vector<1x256x128xbf16>
    %272 = vector.shape_cast %271 : vector<1x256x128xbf16> to vector<256x128xbf16>
    %cst_250 = arith.constant dense<0.000000e+00> : vector<1x128xf32>
    %273 = tpu.matmul %270, %272, %cst_250 {dimension_numbers = #tpu.dot_dimension_numbers<[1], [0], [0], [1], [0, 0, 1, 1], [], []>} : vector<1x256xbf16>, vector<256x128xbf16>, vector<1x128xf32> -> vector<1x128xf32>
    %274 = arith.addf %268, %273 : vector<1x128xf32>
    %275 = vector.extract_strided_slice %267 {offsets = [1, 0], sizes = [1, 256], strides = [1, 1]} : vector<2x256xf32> to vector<1x256xf32>
    %276 = arith.truncf %275 : vector<1x256xf32> to vector<1x256xbf16>
    %c1_251 = arith.constant 1 : index
    %c0_252 = arith.constant 0 : index
    %c0_253 = arith.constant 0 : index
    %277 = vector.load %arg17[%c1_251, %c0_252, %c0_253] : memref<2x256x128xbf16, #tpu.memory_space<vmem>>, vector<1x256x128xbf16>
    %278 = vector.shape_cast %277 : vector<1x256x128xbf16> to vector<256x128xbf16>
    %cst_254 = arith.constant dense<0.000000e+00> : vector<1x128xf32>
    %279 = tpu.matmul %276, %278, %cst_254 {dimension_numbers = #tpu.dot_dimension_numbers<[1], [0], [0], [1], [0, 0, 1, 1], [], []>} : vector<1x256xbf16>, vector<256x128xbf16>, vector<1x128xf32> -> vector<1x128xf32>
    %280 = arith.addf %274, %279 : vector<1x128xf32>
    %c1_255 = arith.constant 1 : index
    %c0_256 = arith.constant 0 : index
    %281 = vector.load %arg19[%c1_255, %c0_256] : memref<2x128xf32, #tpu.memory_space<vmem>>, vector<1x128xf32>
    tpu.vector_store %arg19[%c1_255, %c0_256], %280 {strides = array<i32>} : memref<2x128xf32, #tpu.memory_space<vmem>>, vector<1x128xf32>,
    return
  }
  func.func @transform_0(%arg0: i32) -> (i32, i32) {
    %c0_i32 = arith.constant 0 : i32
    %c0_i32_0 = arith.constant 0 : i32
    %c0_i32_1 = arith.constant 0 : i32
    return %c0_i32, %c0_i32_0 : i32, i32
  }
  func.func @transform_1(%arg0: i32) -> (i32, i32, i32) {
    %c0_i32 = arith.constant 0 : i32
    %c0_i32_0 = arith.constant 0 : i32
    %c0_i32_1 = arith.constant 0 : i32
    %c0_i32_2 = arith.constant 0 : i32
    return %c0_i32, %c0_i32_0, %c0_i32_1 : i32, i32, i32
  }
  func.func @transform_2(%arg0: i32) -> (i32, i32, i32) {
    %c0_i32 = arith.constant 0 : i32
    %c0_i32_0 = arith.constant 0 : i32
    %c0_i32_1 = arith.constant 0 : i32
    %c0_i32_2 = arith.constant 0 : i32
    return %c0_i32, %c0_i32_0, %c0_i32_1 : i32, i32, i32
  }
  func.func @transform_3(%arg0: i32) -> (i32, i32, i32) {
    %c0_i32 = arith.constant 0 : i32
    %c0_i32_0 = arith.constant 0 : i32
    %c0_i32_1 = arith.constant 0 : i32
    %c0_i32_2 = arith.constant 0 : i32
    return %c0_i32, %c0_i32_0, %c0_i32_1 : i32, i32, i32
  }
  func.func @transform_4(%arg0: i32) -> (i32, i32, i32) {
    %c0_i32 = arith.constant 0 : i32
    %c0_i32_0 = arith.constant 0 : i32
    %c0_i32_1 = arith.constant 0 : i32
    %c0_i32_2 = arith.constant 0 : i32
    return %c0_i32, %c0_i32_0, %c0_i32_1 : i32, i32, i32
  }
  func.func @transform_5(%arg0: i32) -> (i32, i32, i32) {
    %c0_i32 = arith.constant 0 : i32
    %c0_i32_0 = arith.constant 0 : i32
    %c0_i32_1 = arith.constant 0 : i32
    %c0_i32_2 = arith.constant 0 : i32
    return %c0_i32, %c0_i32_0, %c0_i32_1 : i32, i32, i32
  }
  func.func @transform_6(%arg0: i32) -> (i32, i32, i32) {
    %c0_i32 = arith.constant 0 : i32
    %c0_i32_0 = arith.constant 0 : i32
    %c0_i32_1 = arith.constant 0 : i32
    %c0_i32_2 = arith.constant 0 : i32
    return %c0_i32, %c0_i32_0, %c0_i32_1 : i32, i32, i32
  }
  func.func @transform_7(%arg0: i32) -> (i32, i32, i32) {
    %c0_i32 = arith.constant 0 : i32
    %c0_i32_0 = arith.constant 0 : i32
    %c0_i32_1 = arith.constant 0 : i32
    %c0_i32_2 = arith.constant 0 : i32
    return %c0_i32, %c0_i32_0, %c0_i32_1 : i32, i32, i32
  }
  func.func @transform_8(%arg0: i32) -> (i32, i32, i32) {
    %c0_i32 = arith.constant 0 : i32
    %c0_i32_0 = arith.constant 0 : i32
    %c0_i32_1 = arith.constant 0 : i32
    %c0_i32_2 = arith.constant 0 : i32
    return %c0_i32, %c0_i32_0, %c0_i32_1 : i32, i32, i32
  }
  func.func @transform_9(%arg0: i32) -> (i32, i32, i32) {
    %c0_i32 = arith.constant 0 : i32
    %c0_i32_0 = arith.constant 0 : i32
    %c0_i32_1 = arith.constant 0 : i32
    %c0_i32_2 = arith.constant 0 : i32
    return %c0_i32, %c0_i32_0, %c0_i32_1 : i32, i32, i32
  }
  func.func @transform_10(%arg0: i32) -> (i32, i32) {
    %c0_i32 = arith.constant 0 : i32
    %c0_i32_0 = arith.constant 0 : i32
    %c0_i32_1 = arith.constant 0 : i32
    return %c0_i32, %c0_i32_0 : i32, i32
  }
  func.func @transform_11(%arg0: i32) -> (i32, i32) {
    %c0_i32 = arith.constant 0 : i32
    %c0_i32_0 = arith.constant 0 : i32
    %c0_i32_1 = arith.constant 0 : i32
    return %c0_i32, %c0_i32_0 : i32, i32
  }
  func.func @transform_12(%arg0: i32) -> (i32, i32) {
    %c0_i32 = arith.constant 0 : i32
    %c0_i32_0 = arith.constant 0 : i32
    %c0_i32_1 = arith.constant 0 : i32
    return %c0_i32, %c0_i32_0 : i32, i32
  }
  func.func @transform_13(%arg0: i32) -> (i32, i32) {
    %c0_i32 = arith.constant 0 : i32
    %c0_i32_0 = arith.constant 0 : i32
    %c0_i32_1 = arith.constant 0 : i32
    return %c0_i32, %c0_i32_0 : i32, i32
  }
  func.func @transform_14(%arg0: i32) -> (i32, i32) {
    %c0_i32 = arith.constant 0 : i32
    %c0_i32_0 = arith.constant 0 : i32
    %c0_i32_1 = arith.constant 0 : i32
    return %c0_i32, %c0_i32_0 : i32, i32
  }
  func.func @transform_15(%arg0: i32) -> (i32, i32) {
    %c0_i32 = arith.constant 0 : i32
    %c0_i32_0 = arith.constant 0 : i32
    %c0_i32_1 = arith.constant 0 : i32
    return %c0_i32, %c0_i32_0 : i32, i32
  }
  func.func @transform_16(%arg0: i32) -> (i32, i32, i32) {
    %c0_i32 = arith.constant 0 : i32
    %c0_i32_0 = arith.constant 0 : i32
    %c0_i32_1 = arith.constant 0 : i32
    %c0_i32_2 = arith.constant 0 : i32
    return %c0_i32, %c0_i32_0, %c0_i32_1 : i32, i32, i32
  }
  func.func @transform_17(%arg0: i32) -> (i32, i32) {
    %c0_i32 = arith.constant 0 : i32
    %c0_i32_0 = arith.constant 0 : i32
    %c0_i32_1 = arith.constant 0 : i32
    return %c0_i32, %c0_i32_0 : i32, i32
  }
  func.func @transform_18(%arg0: i32) -> (i32, i32) {
    %c0_i32 = arith.constant 0 : i32
    %c0_i32_0 = arith.constant 0 : i32
    %c0_i32_1 = arith.constant 0 : i32
    return %c0_i32, %c0_i32_0 : i32, i32
  }
}

</mosaic_0001>

<llo_original>
// kernel: forward.1
$region0: #{forward.1}
  #allocation0 [shape = 'u32[]', space=smem, size = 0x4, offset = 0x4, fixed_abs, tag = 'smem constant byte address 0x4 - core index']
  #allocation1 [shape = 'u32[72,128]{1,0:T(1,128)}', space=vmem, size = 0x9000, scoped, tag = 'internal scratch']
  #allocation2 [shape = 'f32[20,160]{1,0:T(8,128)}', space=vmem, size = 0x6000, scoped, tag = 'scratch operand']
  #allocation3 [shape = 'f32[12,192]{1,0:T(8,128)}', space=vmem, size = 0x4000, scoped, tag = 'scratch operand']
  %s0 = inlined_call_operand.vmem [shape: f32[36,54], index: 0, kind: input, shape index: {}]
  %s1 = inlined_call_operand.vmem [shape: bf16[3,54,256], index: 1, kind: input, shape index: {}]
  %s2 = inlined_call_operand.vmem [shape: bf16[3,160,256], index: 2, kind: input, shape index: {}]
  %s3 = inlined_call_operand.hbm [shape: bf16[3,192,512], index: 3, kind: input, shape index: {}]
  %s4 = inlined_call_operand.vmem [shape: bf16[2,8,16], index: 4, kind: input, shape index: {}]
  %s5 = inlined_call_operand.hbm [shape: bf16[2,4,8], index: 5, kind: input, shape index: {}]
  %s6 = inlined_call_operand.hbm [shape: bf16[2,2,4], index: 6, kind: input, shape index: {}]
  %s7 = inlined_call_operand.hbm [shape: bf16[2,256,128], index: 7, kind: input, shape index: {}]
  %s8 = inlined_call_operand.hbm [shape: bf16[2,256,128], index: 8, kind: input, shape index: {}]
  %s9 = inlined_call_operand.hbm [shape: bf16[2,512,256], index: 9, kind: input, shape index: {}]
  %s10 = inlined_call_operand.hbm [shape: f32[1,256], index: 10, kind: input, shape index: {}]
  %s11 = inlined_call_operand.hbm [shape: f32[1,256], index: 11, kind: input, shape index: {}]
  %s12 = inlined_call_operand.vmem [shape: f32[1,512], index: 12, kind: input, shape index: {}]
  %s13 = inlined_call_operand.vmem [shape: f32[1,256], index: 13, kind: input, shape index: {}]
  %s14 = inlined_call_operand.vmem [shape: f32[1,256], index: 14, kind: input, shape index: {}]
  %s15 = inlined_call_operand.vmem [shape: f32[1,512], index: 15, kind: input, shape index: {}]
  %s16 = inlined_call_operand.hbm [shape: bf16[2,256,128], index: 16, kind: input, shape index: {}]
  %s17 = inlined_call_operand.vmem [shape: f32[1,128], index: 17, kind: input, shape index: {}]
  %s18 = inlined_call_operand.hbm [shape: f32[2,128], index: 18, kind: output, shape index: {}]
  %s19 = sld [smem:[#allocation0]]
  $region118: #{forward.1} parent=0
    _
  %s21 = ssub.s32 1, %s19
  %s22 = scalar_select 0, %s21, %s19
  $region1: #{forward.1} parent=0
    #allocation4 [shape = 'u8[589824]{0}', space=vmem, size = 0x90000, scoped, tag = 'input window, operand 3, single buffered']
    #allocation5 [shape = 's32[1]{0}', space=sflag, size = 0x4, scoped, tag = 'scoped memory for forward.1']
    #allocation6 [shape = 's32[1]{0}', space=sflag, size = 0x4, scoped, tag = 'scoped memory for forward.1']
    #allocation7 [shape = 'u8[2048]{0}', space=vmem, size = 0x800, scoped, tag = 'input window, operand 5, single buffered']
    #allocation8 [shape = 's32[1]{0}', space=sflag, size = 0x4, scoped, tag = 'scoped memory for forward.1']
    #allocation9 [shape = 'u8[1024]{0}', space=vmem, size = 0x400, scoped, tag = 'input window, operand 6, single buffered']
    #allocation10 [shape = 'u8[131072]{0}', space=vmem, size = 0x20000, scoped, tag = 'input window, operand 7, single buffered']
    #allocation11 [shape = 's32[1]{0}', space=sflag, size = 0x4, scoped, tag = 'scoped memory for forward.1']
    #allocation12 [shape = 'u8[131072]{0}', space=vmem, size = 0x20000, scoped, tag = 'input window, operand 8, single buffered']
    #allocation13 [shape = 'u8[524288]{0}', space=vmem, size = 0x80000, scoped, tag = 'input window, operand 9, single buffered']
    #allocation14 [shape = 's32[1]{0}', space=sflag, size = 0x4, scoped, tag = 'scoped memory for forward.1']
    #allocation15 [shape = 'u8[1024]{0}', space=vmem, size = 0x400, scoped, tag = 'input window, operand 10, single buffered']
    #allocation16 [shape = 'u8[1024]{0}', space=vmem, size = 0x400, scoped, tag = 'input window, operand 11, single buffered']
    #allocation17 [shape = 's32[1]{0}', space=sflag, size = 0x4, scoped, tag = 'scoped memory for forward.1']
    #allocation18 [shape = 'u8[131072]{0}', space=vmem, size = 0x20000, scoped, tag = 'input window, operand 16, single buffered']
    #allocation19 [shape = 'u8[1024]{0}', space=vmem, size = 0x400, scoped, tag = 'output window, operand 0, single buffered']
    %23 = vsyncpa [#allocation5], 0
    %24 = vsyncpa [#allocation8], 0
    %25 = vsyncpa [#allocation11], 0
    %26 = vsyncpa [#allocation14], 0
    %27 = vsyncpa [#allocation17], 0
    %28 = vsyncpa [#allocation6], 0
    // Predicated region
    $region2: #{forward.1} parent=1 // pred_check
      _
    $region3: #{forward.1} parent=1 // pred_check_branch
      %30 = sbr.rel (0) target = $region5
    $region4: #{forward.1} parent=1 // pred_region
      _
    $region5: #{forward.1} parent=1 // pred_fallthru
      _
    // Predicated region
    $region6: #{forward.1} parent=1 // pred_check
      _
    $region7: #{forward.1} parent=1 // pred_check_branch
      %32 = sbr.rel (0) target = $region9
    $region8: #{forward.1} parent=1 // pred_region
      _
    $region9: #{forward.1} parent=1 // pred_fallthru
      _
    // Predicated region
    $region10: #{forward.1} parent=1 // pred_check
      _
    $region11: #{forward.1} parent=1 // pred_check_branch
      %34 = sbr.rel (0) target = $region13
    $region12: #{forward.1} parent=1 // pred_region
      _
    $region13: #{forward.1} parent=1 // pred_fallthru
      _
    // Predicated region
    $region14: #{forward.1} parent=1 // pred_check
      _
    $region15: #{forward.1} parent=1 // pred_check_branch
      %36 = sbr.rel (0) target = $region17
    $region16: #{forward.1} parent=1 // pred_region
      %38 = vsyncadd [#allocation5], 0
      %s39 = sshll.u32 %s3, 4
      %s40 = int_to_ptr.hbm [resolvable:$true] %s39
      %s41 = sshll.u32 [#allocation4], 4
      %s42 = int_to_ptr.vmem [resolvable:$true] %s41
      %47 = dma.hbm_to_vmem [thread:$0]  %s40, 18432, %s42, [#allocation5], 256, 256, 16
    $region17: #{forward.1} parent=1 // pred_fallthru
      _
    // Predicated region
    $region18: #{forward.1} parent=1 // pred_check
      _
    $region19: #{forward.1} parent=1 // pred_check_branch
      %49 = sbr.rel (0) target = $region21
    $region20: #{forward.1} parent=1 // pred_region
      _
    $region21: #{forward.1} parent=1 // pred_fallthru
      _
    // Predicated region
    $region22: #{forward.1} parent=1 // pred_check
      _
    $region23: #{forward.1} parent=1 // pred_check_branch
      %51 = sbr.rel (0) target = $region25
    $region24: #{forward.1} parent=1 // pred_region
      %53 = vsyncadd [#allocation8], 0
      %s54 = sshll.u32 %s5, 4
      %s55 = int_to_ptr.hbm [resolvable:$true] %s54
      %s56 = sshll.u32 [#allocation7], 4
      %s57 = int_to_ptr.vmem [resolvable:$true] %s56
      %62 = dma.hbm_to_vmem [thread:$0]  %s55, 64, %s57, [#allocation8], 32, 32, 2
    $region25: #{forward.1} parent=1 // pred_fallthru
      _
    // Predicated region
    $region26: #{forward.1} parent=1 // pred_check
      _
    $region27: #{forward.1} parent=1 // pred_check_branch
      %64 = sbr.rel (0) target = $region29
    $region28: #{forward.1} parent=1 // pred_region
      %66 = vsyncadd [#allocation8], 0
      %s67 = sshll.u32 %s6, 4
      %s68 = int_to_ptr.hbm [resolvable:$true] %s67
      %s69 = sshll.u32 [#allocation9], 4
      %s70 = int_to_ptr.vmem [resolvable:$true] %s69
      %75 = dma.hbm_to_vmem [thread:$0]  %s68, 32, %s70, [#allocation8], 16, 16, 1
    $region29: #{forward.1} parent=1 // pred_fallthru
      _
    // Predicated region
    $region30: #{forward.1} parent=1 // pred_check
      _
    $region31: #{forward.1} parent=1 // pred_check_branch
      %77 = sbr.rel (0) target = $region33
    $region32: #{forward.1} parent=1 // pred_region
      %79 = vsyncadd [#allocation11], 0
      %s80 = sshll.u32 %s7, 4
      %s81 = int_to_ptr.hbm [resolvable:$true] %s80
      %s82 = sshll.u32 [#allocation10], 4
      %s83 = int_to_ptr.vmem [resolvable:$true] %s82
      %88 = dma.hbm_to_vmem [thread:$0]  %s81, 4096, %s83, [#allocation11], 64, 64, 4
    $region33: #{forward.1} parent=1 // pred_fallthru
      _
    // Predicated region
    $region34: #{forward.1} parent=1 // pred_check
      _
    $region35: #{forward.1} parent=1 // pred_check_branch
      %90 = sbr.rel (0) target = $region37
    $region36: #{forward.1} parent=1 // pred_region
      %92 = vsyncadd [#allocation11], 0
      %s93 = sshll.u32 %s8, 4
      %s94 = int_to_ptr.hbm [resolvable:$true] %s93
      %s95 = sshll.u32 [#allocation12], 4
      %s96 = int_to_ptr.vmem [resolvable:$true] %s95
      %101 = dma.hbm_to_vmem [thread:$0]  %s94, 4096, %s96, [#allocation11], 64, 64, 4
    $region37: #{forward.1} parent=1 // pred_fallthru
      _
    // Predicated region
    $region38: #{forward.1} parent=1 // pred_check
      _
    $region39: #{forward.1} parent=1 // pred_check_branch
      %103 = sbr.rel (0) target = $region41
    $region40: #{forward.1} parent=1 // pred_region
      %105 = vsyncadd [#allocation14], 0
      %s106 = sshll.u32 %s9, 4
      %s107 = int_to_ptr.hbm [resolvable:$true] %s106
      %s108 = sshll.u32 [#allocation13], 4
      %s109 = int_to_ptr.vmem [resolvable:$true] %s108
      %114 = dma.hbm_to_vmem [thread:$0]  %s107, 16384, %s109, [#allocation14], 128, 128, 8
    $region41: #{forward.1} parent=1 // pred_fallthru
      _
    // Predicated region
    $region42: #{forward.1} parent=1 // pred_check
      _
    $region43: #{forward.1} parent=1 // pred_check_branch
      %116 = sbr.rel (0) target = $region45
    $region44: #{forward.1} parent=1 // pred_region
      %118 = vsyncadd [#allocation14], 0
      %s120 = sshll.u32 %s10, 4
      %s121 = int_to_ptr.hbm [resolvable:$true] %s120
      %s122 = sshll.u32 [#allocation15], 4
      %s123 = int_to_ptr.vmem [resolvable:$true] %s122
      %125 = dma.hbm_to_vmem [thread:$0]  %s121, 32, %s123, [#allocation14]
    $region45: #{forward.1} parent=1 // pred_fallthru
      _
    // Predicated region
    $region46: #{forward.1} parent=1 // pred_check
      _
    $region47: #{forward.1} parent=1 // pred_check_branch
      %127 = sbr.rel (0) target = $region49
    $region48: #{forward.1} parent=1 // pred_region
      %129 = vsyncadd [#allocation17], 0
      %s131 = sshll.u32 %s11, 4
      %s132 = int_to_ptr.hbm [resolvable:$true] %s131
      %s133 = sshll.u32 [#allocation16], 4
      %s134 = int_to_ptr.vmem [resolvable:$true] %s133
      %136 = dma.hbm_to_vmem [thread:$0]  %s132, 32, %s134, [#allocation17]
    $region49: #{forward.1} parent=1 // pred_fallthru
      _
    // Predicated region
    $region50: #{forward.1} parent=1 // pred_check
      _
    $region51: #{forward.1} parent=1 // pred_check_branch
      %138 = sbr.rel (0) target = $region53
    $region52: #{forward.1} parent=1 // pred_region
      _
    $region53: #{forward.1} parent=1 // pred_fallthru
      _
    // Predicated region
    $region54: #{forward.1} parent=1 // pred_check
      _
    $region55: #{forward.1} parent=1 // pred_check_branch
      %140 = sbr.rel (0) target = $region57
    $region56: #{forward.1} parent=1 // pred_region
      _
    $region57: #{forward.1} parent=1 // pred_fallthru
      _
    // Predicated region
    $region58: #{forward.1} parent=1 // pred_check
      _
    $region59: #{forward.1} parent=1 // pred_check_branch
      %142 = sbr.rel (0) target = $region61
    $region60: #{forward.1} parent=1 // pred_region
      _
    $region61: #{forward.1} parent=1 // pred_fallthru
      _
    // Predicated region
    $region62: #{forward.1} parent=1 // pred_check
      _
    $region63: #{forward.1} parent=1 // pred_check_branch
      %144 = sbr.rel (0) target = $region65
    $region64: #{forward.1} parent=1 // pred_region
      _
    $region65: #{forward.1} parent=1 // pred_fallthru
      _
    // Predicated region
    $region66: #{forward.1} parent=1 // pred_check
      _
    $region67: #{forward.1} parent=1 // pred_check_branch
      %146 = sbr.rel (0) target = $region69
    $region68: #{forward.1} parent=1 // pred_region
      %148 = vsyncadd [#allocation17], 0
      %s149 = sshll.u32 %s16, 4
      %s150 = int_to_ptr.hbm [resolvable:$true] %s149
      %s151 = sshll.u32 [#allocation18], 4
      %s152 = int_to_ptr.vmem [resolvable:$true] %s151
      %157 = dma.hbm_to_vmem [thread:$0]  %s150, 4096, %s152, [#allocation17], 64, 64, 4
    $region69: #{forward.1} parent=1 // pred_fallthru
      _
    // Predicated region
    $region70: #{forward.1} parent=1 // pred_check
      _
    $region71: #{forward.1} parent=1 // pred_check_branch
      %159 = sbr.rel (0) target = $region73
    $region72: #{forward.1} parent=1 // pred_region
      _
    $region73: #{forward.1} parent=1 // pred_fallthru
      _
    // Predicated region
    $region74: #{forward.1} parent=1 // pred_check
      _
    $region75: #{forward.1} parent=1 // pred_check_branch
      %161 = sbr.rel (0) target = $region77
    $region76: #{forward.1} parent=1 // pred_region
      %163 = dma.done [#allocation5], 18432
    $region77: #{forward.1} parent=1 // pred_fallthru
      _
    // Predicated region
    $region78: #{forward.1} parent=1 // pred_check
      _
    $region79: #{forward.1} parent=1 // pred_check_branch
      %165 = sbr.rel (0) target = $region81
    $region80: #{forward.1} parent=1 // pred_region
      %167 = dma.done [#allocation8], 64
    $region81: #{forward.1} parent=1 // pred_fallthru
      _
    // Predicated region
    $region82: #{forward.1} parent=1 // pred_check
      _
    $region83: #{forward.1} parent=1 // pred_check_branch
      %169 = sbr.rel (0) target = $region85
    $region84: #{forward.1} parent=1 // pred_region
      %171 = dma.done [#allocation8], 32
    $region85: #{forward.1} parent=1 // pred_fallthru
      _
    // Predicated region
    $region86: #{forward.1} parent=1 // pred_check
      _
    $region87: #{forward.1} parent=1 // pred_check_branch
      %173 = sbr.rel (0) target = $region89
    $region88: #{forward.1} parent=1 // pred_region
      %175 = dma.done [#allocation11], 4096
    $region89: #{forward.1} parent=1 // pred_fallthru
      _
    // Predicated region
    $region90: #{forward.1} parent=1 // pred_check
      _
    $region91: #{forward.1} parent=1 // pred_check_branch
      %177 = sbr.rel (0) target = $region93
    $region92: #{forward.1} parent=1 // pred_region
      %179 = dma.done [#allocation11], 4096
    $region93: #{forward.1} parent=1 // pred_fallthru
      _
    // Predicated region
    $region94: #{forward.1} parent=1 // pred_check
      _
    $region95: #{forward.1} parent=1 // pred_check_branch
      %181 = sbr.rel (0) target = $region97
    $region96: #{forward.1} parent=1 // pred_region
      %183 = dma.done [#allocation14], 16384
    $region97: #{forward.1} parent=1 // pred_fallthru
      _
    // Predicated region
    $region98: #{forward.1} parent=1 // pred_check
      _
    $region99: #{forward.1} parent=1 // pred_check_branch
      %185 = sbr.rel (0) target = $region101
    $region100: #{forward.1} parent=1 // pred_region
      %187 = dma.done [#allocation14], 32
    $region101: #{forward.1} parent=1 // pred_fallthru
      _
    // Predicated region
    $region102: #{forward.1} parent=1 // pred_check
      _
    $region103: #{forward.1} parent=1 // pred_check_branch
      %189 = sbr.rel (0) target = $region105
    $region104: #{forward.1} parent=1 // pred_region
      %191 = dma.done [#allocation17], 32
    $region105: #{forward.1} parent=1 // pred_fallthru
      _
    // Predicated region
    $region106: #{forward.1} parent=1 // pred_check
      _
    $region107: #{forward.1} parent=1 // pred_check_branch
      %193 = sbr.rel (0) target = $region109
    $region108: #{forward.1} parent=1 // pred_region
      %195 = dma.done [#allocation17], 4096
    $region109: #{forward.1} parent=1 // pred_fallthru
      _
    %197 = vst [vmem:[#allocation2] sm:$0xff] 0.0
    %vm198 = vcmask 261120
    %199 = vst.msk [vmem:[#allocation2 + $0x8] sm:$0xff] %vm198, 0.0
    %200 = vst [vmem:[#allocation2 + $0x10] sm:$0xff] 0.0
    %201 = vst.msk [vmem:[#allocation2 + $0x18] sm:$0xff] %vm198, 0.0
    %202 = vst [vmem:[#allocation2 + $0x20] sm:$0xf] 0.0
    %vm203 = vcmask 257024
    %204 = vst.msk [vmem:[#allocation2 + $0x28] sm:$0xf] %vm203, 0.0
    %205 = vst [vmem:[#allocation3] sm:$0xff] 0.0
    %vm206 = vcmask 523264
    %207 = vst.msk [vmem:[#allocation3 + $0x8] sm:$0xff] %vm206, 0.0
    %208 = vst [vmem:[#allocation3 + $0x10] sm:$0xf] 0.0
    %vm209 = vcmask 519168
    %210 = vst.msk [vmem:[#allocation3 + $0x18] sm:$0xf] %vm209, 0.0
    %v211 = vld [vmem:[%s0] sm:$0xff]
    %v212 = vld [vmem:[%s0 + $0x8] sm:$0xff]
    %v213 = vpack.c.bf16 %v212, %v211
    %v214 = vld [vmem:[%s1] sm:$0xff]
    %v215 = vld [vmem:[%s1 + $0x8] sm:$0xff]
    %v216 = vld [vmem:[%s1 + $0x10] sm:$0xff]
    %v217 = vld [vmem:[%s1 + $0x18] sm:$0xff]
    %v218 = vld [vmem:[%s1 + $0x20] sm:$0xff]
    %v219 = vld [vmem:[%s1 + $0x28] sm:$0xff]
    %v220 = vld [vmem:[%s1 + $0x30] sm:$0x77]
    %v221 = vld [vmem:[%s0 + $0x1] sm:$0xff]
    %v222 = vld [vmem:[%s0 + $0x9] sm:$0xff]
    %v223 = vpack.c.bf16 %v222, %v221
    %s224 = scalar_lea.vmem %s1, 56
    %v225 = vld [vmem:[%s224] sm:$0xff]
    %v226 = vld [vmem:[%s224 + $0x8] sm:$0xff]
    %v227 = vld [vmem:[%s224 + $0x10] sm:$0xff]
    %v228 = vld [vmem:[%s224 + $0x18] sm:$0xff]
    %v229 = vld [vmem:[%s224 + $0x20] sm:$0xff]
    %v230 = vld [vmem:[%s224 + $0x28] sm:$0xff]
    %v231 = vld [vmem:[%s224 + $0x30] sm:$0x77]
    %v239 = vunpack.c.l.b16 %v225
    %v240 = vunpack.c.h.b16 %v225
    %v241 = vunpack.c.l.b16 %v226
    %v242 = vunpack.c.h.b16 %v226
    %v243 = vunpack.c.l.b16 %v227
    %v244 = vunpack.c.h.b16 %v227
    %v245 = vunpack.c.l.b16 %v228
    %v246 = vunpack.c.h.b16 %v228
    %v247 = vunpack.c.l.b16 %v229
    %v248 = vunpack.c.h.b16 %v229
    %v249 = vunpack.c.l.b16 %v230
    %v250 = vunpack.c.h.b16 %v230
    %v251 = vunpack.c.l.b16 %v231
    %v252 = vunpack.c.h.b16 %v231
    %v253 = vpack.c.b16 %v241, %v239
    %v254 = vpack.c.b16 %v242, %v240
    %v255 = vpack.c.b16 %v245, %v243
    %v256 = vpack.c.b16 %v246, %v244
    %v257 = vpack.c.b16 %v249, %v247
    %v258 = vpack.c.b16 %v250, %v248
    %v259 = vpack.c.b16 %v251, %v251
    %v260 = vpack.c.b16 %v252, %v252
    %vm267 = vcmask 441344
    %v269 = vsel %vm267, %v223, 0
    %vm271 = vcmask 1042432
    %v273 = vsel %vm271, %v259, 0
    %v276 = vsel %vm271, %v260, 0
    %278 = vmatpush.bf16.msra.mxu0 0
    %279 = vmatpush.bf16.msra.mxu0 0
    %280 = vmatpush.bf16.msra.mxu0 0
    %281 = vmatpush.bf16.msra.mxu0 0
    %282 = vmatpush.bf16.msra.mxu0 %v273
    %283 = vmatpush.bf16.msra.mxu0 %v257
    %284 = vmatpush.bf16.msra.mxu0 %v255
    %285 = vmatpush.bf16.msra.mxu0 %v253
    %286 = vmatmul.bf16.gmra.mxu0 %v269
    %v287 = vpop.f32.mrf.mxu0
    %v288 = vadd.f32 0.0, %v287
    %v289 = vpop.f32.mrf.mxu0
    %v290 = vadd.f32 0.0, %v289
    %291 = vdwg.mxu0
    %292 = vmatpush.bf16.msra.mxu0 0
    %293 = vmatpush.bf16.msra.mxu0 0
    %294 = vmatpush.bf16.msra.mxu0 0
    %295 = vmatpush.bf16.msra.mxu0 0
    %296 = vmatpush.bf16.msra.mxu0 %v276
    %297 = vmatpush.bf16.msra.mxu0 %v258
    %298 = vmatpush.bf16.msra.mxu0 %v256
    %299 = vmatpush.bf16.msra.mxu0 %v254
    %300 = vmatmul.bf16.gmra.mxu0 %v269
    %v301 = vpop.f32.mrf.mxu0
    %v302 = vadd.f32 0.0, %v301
    %v303 = vpop.f32.mrf.mxu0
    %v304 = vadd.f32 0.0, %v303
    %305 = vdwg.mxu0
    %v313 = vunpack.c.l.b16 %v214
    %v314 = vunpack.c.h.b16 %v214
    %v315 = vunpack.c.l.b16 %v215
    %v316 = vunpack.c.h.b16 %v215
    %v317 = vunpack.c.l.b16 %v216
    %v318 = vunpack.c.h.b16 %v216
    %v319 = vunpack.c.l.b16 %v217
    %v320 = vunpack.c.h.b16 %v217
    %v321 = vunpack.c.l.b16 %v218
    %v322 = vunpack.c.h.b16 %v218
    %v323 = vunpack.c.l.b16 %v219
    %v324 = vunpack.c.h.b16 %v219
    %v325 = vunpack.c.l.b16 %v220
    %v326 = vunpack.c.h.b16 %v220
    %v327 = vpack.c.b16 %v315, %v313
    %v328 = vpack.c.b16 %v316, %v314
    %v329 = vpack.c.b16 %v319, %v317
    %v330 = vpack.c.b16 %v320, %v318
    %v331 = vpack.c.b16 %v323, %v321
    %v332 = vpack.c.b16 %v324, %v322
    %v333 = vpack.c.b16 %v325, %v325
    %v334 = vpack.c.b16 %v326, %v326
    %v342 = vsel %vm267, %v213, 0
    %v345 = vsel %vm271, %v333, 0
    %v348 = vsel %vm271, %v334, 0
    %350 = vmatpush.bf16.msra.mxu0 0
    %351 = vmatpush.bf16.msra.mxu0 0
    %352 = vmatpush.bf16.msra.mxu0 0
    %353 = vmatpush.bf16.msra.mxu0 0
    %354 = vmatpush.bf16.msra.mxu0 %v345
    %355 = vmatpush.bf16.msra.mxu0 %v331
    %356 = vmatpush.bf16.msra.mxu0 %v329
    %357 = vmatpush.bf16.msra.mxu0 %v327
    %358 = vmatmul.bf16.gmra.mxu0 %v342
    %v359 = vpop.f32.mrf.mxu0
    %v360 = vadd.f32 %v288, %v359
    %v361 = vpop.f32.mrf.mxu0
    %v362 = vadd.f32 %v290, %v361
    %363 = vdwg.mxu0
    %364 = vmatpush.bf16.msra.mxu0 0
    %365 = vmatpush.bf16.msra.mxu0 0
    %366 = vmatpush.bf16.msra.mxu0 0
    %367 = vmatpush.bf16.msra.mxu0 0
    %368 = vmatpush.bf16.msra.mxu0 %v348
    %369 = vmatpush.bf16.msra.mxu0 %v332
    %370 = vmatpush.bf16.msra.mxu0 %v330
    %371 = vmatpush.bf16.msra.mxu0 %v328
    %372 = vmatmul.bf16.gmra.mxu0 %v342
    %v373 = vpop.f32.mrf.mxu0
    %v374 = vadd.f32 %v302, %v373
    %v375 = vpop.f32.mrf.mxu0
    %v376 = vadd.f32 %v304, %v375
    %377 = vdwg.mxu0
    %v378 = vld [vmem:[%s0 + $0x2] sm:$0xff]
    %v379 = vld [vmem:[%s0 + $0xa] sm:$0xff]
    %v380 = vpack.c.bf16 %v379, %v378
    %s381 = scalar_lea.vmem %s1, 112
    %v382 = vld [vmem:[%s381] sm:$0xff]
    %v383 = vld [vmem:[%s381 + $0x8] sm:$0xff]
    %v384 = vld [vmem:[%s381 + $0x10] sm:$0xff]
    %v385 = vld [vmem:[%s381 + $0x18] sm:$0xff]
    %v386 = vld [vmem:[%s381 + $0x20] sm:$0xff]
    %v387 = vld [vmem:[%s381 + $0x28] sm:$0xff]
    %v388 = vld [vmem:[%s381 + $0x30] sm:$0x77]
    %v396 = vunpack.c.l.b16 %v382
    %v397 = vunpack.c.h.b16 %v382
    %v398 = vunpack.c.l.b16 %v383
    %v399 = vunpack.c.h.b16 %v383
    %v400 = vunpack.c.l.b16 %v384
    %v401 = vunpack.c.h.b16 %v384
    %v402 = vunpack.c.l.b16 %v385
    %v403 = vunpack.c.h.b16 %v385
    %v404 = vunpack.c.l.b16 %v386
    %v405 = vunpack.c.h.b16 %v386
    %v406 = vunpack.c.l.b16 %v387
    %v407 = vunpack.c.h.b16 %v387
    %v408 = vunpack.c.l.b16 %v388
    %v409 = vunpack.c.h.b16 %v388
    %v410 = vpack.c.b16 %v398, %v396
    %v411 = vpack.c.b16 %v399, %v397
    %v412 = vpack.c.b16 %v402, %v400
    %v413 = vpack.c.b16 %v403, %v401
    %v414 = vpack.c.b16 %v406, %v404
    %v415 = vpack.c.b16 %v407, %v405
    %v416 = vpack.c.b16 %v408, %v408
    %v417 = vpack.c.b16 %v409, %v409
    %v425 = vsel %vm267, %v380, 0
    %v428 = vsel %vm271, %v416, 0
    %v431 = vsel %vm271, %v417, 0
    %433 = vmatpush.bf16.msra.mxu0 0
    %434 = vmatpush.bf16.msra.mxu0 0
    %435 = vmatpush.bf16.msra.mxu0 0
    %436 = vmatpush.bf16.msra.mxu0 0
    %437 = vmatpush.bf16.msra.mxu0 %v428
    %438 = vmatpush.bf16.msra.mxu0 %v414
    %439 = vmatpush.bf16.msra.mxu0 %v412
    %440 = vmatpush.bf16.msra.mxu0 %v410
    %441 = vmatmul.bf16.gmra.mxu0 %v425
    %v442 = vpop.f32.mrf.mxu0
    %v443 = vadd.f32 0.0, %v442
    %v444 = vpop.f32.mrf.mxu0
    %v445 = vadd.f32 0.0, %v444
    %446 = vdwg.mxu0
    %447 = vmatpush.bf16.msra.mxu0 0
    %448 = vmatpush.bf16.msra.mxu0 0
    %449 = vmatpush.bf16.msra.mxu0 0
    %450 = vmatpush.bf16.msra.mxu0 0
    %451 = vmatpush.bf16.msra.mxu0 %v431
    %452 = vmatpush.bf16.msra.mxu0 %v415
    %453 = vmatpush.bf16.msra.mxu0 %v413
    %454 = vmatpush.bf16.msra.mxu0 %v411
    %455 = vmatmul.bf16.gmra.mxu0 %v425
    %v456 = vpop.f32.mrf.mxu0
    %v457 = vadd.f32 0.0, %v456
    %v458 = vpop.f32.mrf.mxu0
    %v459 = vadd.f32 0.0, %v458
    %460 = vdwg.mxu0
    %v461 = vadd.f32 %v360, %v443
    %v462 = vadd.f32 %v374, %v457
    %v463 = vadd.f32 %v362, %v445
    %v464 = vadd.f32 %v376, %v459
    %v465 = vld [vmem:[#allocation15] sm:$0x3]
    %v467 = vperm.slane %v465, 0
    %v468 = vperm.slane %v465, 1
    %v471 = vmul.f32 %v461, %v467
    %v472 = vmul.f32 %v462, %v468
    %v473 = vmul.f32 %v463, %v467
    %v474 = vmul.f32 %v464, %v468
    %v475 = vld [vmem:[%s13] sm:$0x3]
    %v477 = vperm.slane %v475, 0
    %v478 = vperm.slane %v475, 1
    %v481 = vadd.f32 %v471, %v477
    %v482 = vadd.f32 %v472, %v478
    %v483 = vadd.f32 %v473, %v477
    %v484 = vadd.f32 %v474, %v478
    %v485 = vmax.f32 %v481, 0.0
    %v486 = vmax.f32 %v482, 0.0
    %v487 = vmax.f32 %v483, 0.0
    %v488 = vmax.f32 %v484, 0.0
    %v489 = vpack.c.bf16 %v487, %v485
    %v490 = vpack.c.bf16 %v488, %v486
    %v491 = vld [vmem:[%s4] sm:$0xf]
    %vm492 = vcmask 130048
    %v494 = vsel %vm492, %v491, 0
    %496 = vmatpush.bf16.msra.mxu0 0
    %497 = vmatpush.bf16.msra.mxu0 0
    %498 = vmatpush.bf16.msra.mxu0 0
    %499 = vmatpush.bf16.msra.mxu0 0
    %500 = vmatpush.bf16.msra.mxu0 0
    %501 = vmatpush.bf16.msra.mxu0 0
    %502 = vmatpush.bf16.msra.mxu0 0
    %503 = vmatpush.bf16.msra.mxu0 %v489
    %504 = vmatmul.bf16.gmra.mxu0 %v494
    %v505 = vpop.f32.mrf.mxu0
    %v506 = vadd.f32 0.0, %v505
    %v507 = vpop.f32.mrf.mxu0
    %508 = vdwg.mxu0
    %509 = vmatpush.bf16.msra.mxu0 0
    %510 = vmatpush.bf16.msra.mxu0 0
    %511 = vmatpush.bf16.msra.mxu0 0
    %512 = vmatpush.bf16.msra.mxu0 0
    %513 = vmatpush.bf16.msra.mxu0 0
    %514 = vmatpush.bf16.msra.mxu0 0
    %515 = vmatpush.bf16.msra.mxu0 0
    %516 = vmatpush.bf16.msra.mxu0 %v490
    %517 = vmatmul.bf16.gmra.mxu0 %v494
    %v518 = vpop.f32.mrf.mxu0
    %v519 = vadd.f32 0.0, %v518
    %v520 = vpop.f32.mrf.mxu0
    %521 = vdwg.mxu0
    %s522 = scalar_lea.vmem %s4, 4
    %v523 = vld [vmem:[%s522] sm:$0xf]
    %v525 = vsel %vm492, %v523, 0
    %527 = vmatpush.bf16.msra.mxu0 0
    %528 = vmatpush.bf16.msra.mxu0 0
    %529 = vmatpush.bf16.msra.mxu0 0
    %530 = vmatpush.bf16.msra.mxu0 0
    %531 = vmatpush.bf16.msra.mxu0 0
    %532 = vmatpush.bf16.msra.mxu0 0
    %533 = vmatpush.bf16.msra.mxu0 0
    %534 = vmatpush.bf16.msra.mxu0 %v489
    %535 = vmatmul.bf16.gmra.mxu0 %v525
    %v536 = vpop.f32.mrf.mxu0
    %v537 = vadd.f32 0.0, %v536
    %v538 = vpop.f32.mrf.mxu0
    %539 = vdwg.mxu0
    %540 = vmatpush.bf16.msra.mxu0 0
    %541 = vmatpush.bf16.msra.mxu0 0
    %542 = vmatpush.bf16.msra.mxu0 0
    %543 = vmatpush.bf16.msra.mxu0 0
    %544 = vmatpush.bf16.msra.mxu0 0
    %545 = vmatpush.bf16.msra.mxu0 0
    %546 = vmatpush.bf16.msra.mxu0 0
    %547 = vmatpush.bf16.msra.mxu0 %v490
    %548 = vmatmul.bf16.gmra.mxu0 %v525
    %v549 = vpop.f32.mrf.mxu0
    %v550 = vadd.f32 0.0, %v549
    %v551 = vpop.f32.mrf.mxu0
    %552 = vdwg.mxu0
    %v553 = vmax.f32 %v506, %v537
    %v554 = vmax.f32 %v519, %v550
    %v555 = vpack.c.bf16 %v553, %v553
    %v556 = vpack.c.bf16 %v554, %v554
    %v557 = vld [vmem:[#allocation10] sm:$0xf]
    %v558 = vld [vmem:[#allocation10 + $0x4] sm:$0xf]
    %v559 = vld [vmem:[#allocation10 + $0x8] sm:$0xf]
    %v560 = vld [vmem:[#allocation10 + $0xc] sm:$0xf]
    %v561 = vld [vmem:[#allocation10 + $0x10] sm:$0xf]
    %v562 = vld [vmem:[#allocation10 + $0x14] sm:$0xf]
    %v563 = vld [vmem:[#allocation10 + $0x18] sm:$0xf]
    %v564 = vld [vmem:[#allocation10 + $0x1c] sm:$0xf]
    %v565 = vld [vmem:[#allocation10 + $0x20] sm:$0xf]
    %v566 = vld [vmem:[#allocation10 + $0x24] sm:$0xf]
    %v567 = vld [vmem:[#allocation10 + $0x28] sm:$0xf]
    %v568 = vld [vmem:[#allocation10 + $0x2c] sm:$0xf]
    %v569 = vld [vmem:[#allocation10 + $0x30] sm:$0xf]
    %v570 = vld [vmem:[#allocation10 + $0x34] sm:$0xf]
    %v571 = vld [vmem:[#allocation10 + $0x38] sm:$0xf]
    %v572 = vld [vmem:[#allocation10 + $0x3c] sm:$0xf]
    %v573 = vld [vmem:[#allocation10 + $0x40] sm:$0xf]
    %v574 = vld [vmem:[#allocation10 + $0x44] sm:$0xf]
    %v575 = vld [vmem:[#allocation10 + $0x48] sm:$0xf]
    %v576 = vld [vmem:[#allocation10 + $0x4c] sm:$0xf]
    %v577 = vld [vmem:[#allocation10 + $0x50] sm:$0xf]
    %v578 = vld [vmem:[#allocation10 + $0x54] sm:$0xf]
    %v579 = vld [vmem:[#allocation10 + $0x58] sm:$0xf]
    %v580 = vld [vmem:[#allocation10 + $0x5c] sm:$0xf]
    %v581 = vld [vmem:[#allocation10 + $0x60] sm:$0xf]
    %v582 = vld [vmem:[#allocation10 + $0x64] sm:$0xf]
    %v583 = vld [vmem:[#allocation10 + $0x68] sm:$0xf]
    %v584 = vld [vmem:[#allocation10 + $0x6c] sm:$0xf]
    %v585 = vld [vmem:[#allocation10 + $0x70] sm:$0xf]
    %v586 = vld [vmem:[#allocation10 + $0x74] sm:$0xf]
    %v587 = vld [vmem:[#allocation10 + $0x78] sm:$0xf]
    %v588 = vld [vmem:[#allocation10 + $0x7c] sm:$0xf]
    %v621 = vunpack.c.l.b16 %v557
    %v622 = vunpack.c.l.b16 %v558
    %v623 = vunpack.c.l.b16 %v559
    %v624 = vunpack.c.l.b16 %v560
    %v625 = vunpack.c.l.b16 %v561
    %v626 = vunpack.c.l.b16 %v562
    %v627 = vunpack.c.l.b16 %v563
    %v628 = vunpack.c.l.b16 %v564
    %v629 = vunpack.c.l.b16 %v565
    %v630 = vunpack.c.l.b16 %v566
    %v631 = vunpack.c.l.b16 %v567
    %v632 = vunpack.c.l.b16 %v568
    %v633 = vunpack.c.l.b16 %v569
    %v634 = vunpack.c.l.b16 %v570
    %v635 = vunpack.c.l.b16 %v571
    %v636 = vunpack.c.l.b16 %v572
    %v637 = vunpack.c.l.b16 %v573
    %v638 = vunpack.c.l.b16 %v574
    %v639 = vunpack.c.l.b16 %v575
    %v640 = vunpack.c.l.b16 %v576
    %v641 = vunpack.c.l.b16 %v577
    %v642 = vunpack.c.l.b16 %v578
    %v643 = vunpack.c.l.b16 %v579
    %v644 = vunpack.c.l.b16 %v580
    %v645 = vunpack.c.l.b16 %v581
    %v646 = vunpack.c.l.b16 %v582
    %v647 = vunpack.c.l.b16 %v583
    %v648 = vunpack.c.l.b16 %v584
    %v649 = vunpack.c.l.b16 %v585
    %v650 = vunpack.c.l.b16 %v586
    %v651 = vunpack.c.l.b16 %v587
    %v652 = vunpack.c.l.b16 %v588
    %v653 = vpack.c.b16 %v622, %v621
    %v654 = vpack.c.b16 %v624, %v623
    %v655 = vpack.c.b16 %v626, %v625
    %v656 = vpack.c.b16 %v628, %v627
    %v657 = vpack.c.b16 %v630, %v629
    %v658 = vpack.c.b16 %v632, %v631
    %v659 = vpack.c.b16 %v634, %v633
    %v660 = vpack.c.b16 %v636, %v635
    %v661 = vpack.c.b16 %v638, %v637
    %v662 = vpack.c.b16 %v640, %v639
    %v663 = vpack.c.b16 %v642, %v641
    %v664 = vpack.c.b16 %v644, %v643
    %v665 = vpack.c.b16 %v646, %v645
    %v666 = vpack.c.b16 %v648, %v647
    %v667 = vpack.c.b16 %v650, %v649
    %v668 = vpack.c.b16 %v652, %v651
    %685 = vmatpush.bf16.msra.mxu0 %v660
    %686 = vmatpush.bf16.msra.mxu0 %v659
    %687 = vmatpush.bf16.msra.mxu0 %v658
    %688 = vmatpush.bf16.msra.mxu0 %v657
    %689 = vmatpush.bf16.msra.mxu0 %v656
    %690 = vmatpush.bf16.msra.mxu0 %v655
    %691 = vmatpush.bf16.msra.mxu0 %v654
    %692 = vmatpush.bf16.msra.mxu0 %v653
    %693 = vmatmul.bf16.gmra.mxu0 %v555
    %v694 = vpop.f32.mrf.mxu0
    %v695 = vadd.f32 0.0, %v694
    %v696 = vpop.f32.mrf.mxu0
    %697 = vdwg.mxu0
    %698 = vmatpush.bf16.msra.mxu0 %v668
    %699 = vmatpush.bf16.msra.mxu0 %v667
    %700 = vmatpush.bf16.msra.mxu0 %v666
    %701 = vmatpush.bf16.msra.mxu0 %v665
    %702 = vmatpush.bf16.msra.mxu0 %v664
    %703 = vmatpush.bf16.msra.mxu0 %v663
    %704 = vmatpush.bf16.msra.mxu0 %v662
    %705 = vmatpush.bf16.msra.mxu0 %v661
    %706 = vmatmul.bf16.gmra.mxu0 %v556
    %v707 = vpop.f32.mrf.mxu0
    %v708 = vadd.f32 %v695, %v707
    %v709 = vpop.f32.mrf.mxu0
    %710 = vdwg.mxu0
    %s711 = scalar_lea.vmem [#allocation10], 128
    %v712 = vld [vmem:[%s711] sm:$0xf]
    %v713 = vld [vmem:[%s711 + $0x4] sm:$0xf]
    %v714 = vld [vmem:[%s711 + $0x8] sm:$0xf]
    %v715 = vld [vmem:[%s711 + $0xc] sm:$0xf]
    %v716 = vld [vmem:[%s711 + $0x10] sm:$0xf]
    %v717 = vld [vmem:[%s711 + $0x14] sm:$0xf]
    %v718 = vld [vmem:[%s711 + $0x18] sm:$0xf]
    %v719 = vld [vmem:[%s711 + $0x1c] sm:$0xf]
    %v720 = vld [vmem:[%s711 + $0x20] sm:$0xf]
    %v721 = vld [vmem:[%s711 + $0x24] sm:$0xf]
    %v722 = vld [vmem:[%s711 + $0x28] sm:$0xf]
    %v723 = vld [vmem:[%s711 + $0x2c] sm:$0xf]
    %v724 = vld [vmem:[%s711 + $0x30] sm:$0xf]
    %v725 = vld [vmem:[%s711 + $0x34] sm:$0xf]
    %v726 = vld [vmem:[%s711 + $0x38] sm:$0xf]
    %v727 = vld [vmem:[%s711 + $0x3c] sm:$0xf]
    %v728 = vld [vmem:[%s711 + $0x40] sm:$0xf]
    %v729 = vld [vmem:[%s711 + $0x44] sm:$0xf]
    %v730 = vld [vmem:[%s711 + $0x48] sm:$0xf]
    %v731 = vld [vmem:[%s711 + $0x4c] sm:$0xf]
    %v732 = vld [vmem:[%s711 + $0x50] sm:$0xf]
    %v733 = vld [vmem:[%s711 + $0x54] sm:$0xf]
    %v734 = vld [vmem:[%s711 + $0x58] sm:$0xf]
    %v735 = vld [vmem:[%s711 + $0x5c] sm:$0xf]
    %v736 = vld [vmem:[%s711 + $0x60] sm:$0xf]
    %v737 = vld [vmem:[%s711 + $0x64] sm:$0xf]
    %v738 = vld [vmem:[%s711 + $0x68] sm:$0xf]
    %v739 = vld [vmem:[%s711 + $0x6c] sm:$0xf]
    %v740 = vld [vmem:[%s711 + $0x70] sm:$0xf]
    %v741 = vld [vmem:[%s711 + $0x74] sm:$0xf]
    %v742 = vld [vmem:[%s711 + $0x78] sm:$0xf]
    %v743 = vld [vmem:[%s711 + $0x7c] sm:$0xf]
    %v776 = vunpack.c.l.b16 %v712
    %v777 = vunpack.c.l.b16 %v713
    %v778 = vunpack.c.l.b16 %v714
    %v779 = vunpack.c.l.b16 %v715
    %v780 = vunpack.c.l.b16 %v716
    %v781 = vunpack.c.l.b16 %v717
    %v782 = vunpack.c.l.b16 %v718
    %v783 = vunpack.c.l.b16 %v719
    %v784 = vunpack.c.l.b16 %v720
    %v785 = vunpack.c.l.b16 %v721
    %v786 = vunpack.c.l.b16 %v722
    %v787 = vunpack.c.l.b16 %v723
    %v788 = vunpack.c.l.b16 %v724
    %v789 = vunpack.c.l.b16 %v725
    %v790 = vunpack.c.l.b16 %v726
    %v791 = vunpack.c.l.b16 %v727
    %v792 = vunpack.c.l.b16 %v728
    %v793 = vunpack.c.l.b16 %v729
    %v794 = vunpack.c.l.b16 %v730
    %v795 = vunpack.c.l.b16 %v731
    %v796 = vunpack.c.l.b16 %v732
    %v797 = vunpack.c.l.b16 %v733
    %v798 = vunpack.c.l.b16 %v734
    %v799 = vunpack.c.l.b16 %v735
    %v800 = vunpack.c.l.b16 %v736
    %v801 = vunpack.c.l.b16 %v737
    %v802 = vunpack.c.l.b16 %v738
    %v803 = vunpack.c.l.b16 %v739
    %v804 = vunpack.c.l.b16 %v740
    %v805 = vunpack.c.l.b16 %v741
    %v806 = vunpack.c.l.b16 %v742
    %v807 = vunpack.c.l.b16 %v743
    %v808 = vpack.c.b16 %v777, %v776
    %v809 = vpack.c.b16 %v779, %v778
    %v810 = vpack.c.b16 %v781, %v780
    %v811 = vpack.c.b16 %v783, %v782
    %v812 = vpack.c.b16 %v785, %v784
    %v813 = vpack.c.b16 %v787, %v786
    %v814 = vpack.c.b16 %v789, %v788
    %v815 = vpack.c.b16 %v791, %v790
    %v816 = vpack.c.b16 %v793, %v792
    %v817 = vpack.c.b16 %v795, %v794
    %v818 = vpack.c.b16 %v797, %v796
    %v819 = vpack.c.b16 %v799, %v798
    %v820 = vpack.c.b16 %v801, %v800
    %v821 = vpack.c.b16 %v803, %v802
    %v822 = vpack.c.b16 %v805, %v804
    %v823 = vpack.c.b16 %v807, %v806
    %840 = vmatpush.bf16.msra.mxu0 %v815
    %841 = vmatpush.bf16.msra.mxu0 %v814
    %842 = vmatpush.bf16.msra.mxu0 %v813
    %843 = vmatpush.bf16.msra.mxu0 %v812
    %844 = vmatpush.bf16.msra.mxu0 %v811
    %845 = vmatpush.bf16.msra.mxu0 %v810
    %846 = vmatpush.bf16.msra.mxu0 %v809
    %847 = vmatpush.bf16.msra.mxu0 %v808
    %848 = vmatmul.bf16.gmra.mxu0 %v555
    %v849 = vpop.f32.mrf.mxu0
    %v850 = vadd.f32 0.0, %v849
    %v851 = vpop.f32.mrf.mxu0
    %852 = vdwg.mxu0
    %853 = vmatpush.bf16.msra.mxu0 %v823
    %854 = vmatpush.bf16.msra.mxu0 %v822
    %855 = vmatpush.bf16.msra.mxu0 %v821
    %856 = vmatpush.bf16.msra.mxu0 %v820
    %857 = vmatpush.bf16.msra.mxu0 %v819
    %858 = vmatpush.bf16.msra.mxu0 %v818
    %859 = vmatpush.bf16.msra.mxu0 %v817
    %860 = vmatpush.bf16.msra.mxu0 %v816
    %861 = vmatmul.bf16.gmra.mxu0 %v556
    %v862 = vpop.f32.mrf.mxu0
    %v863 = vadd.f32 %v850, %v862
    %v864 = vpop.f32.mrf.mxu0
    %865 = vdwg.mxu0
    %v866 = vmax.f32 %v708, %v863
    %v868 = vrot.slane %v866, 7
    %869 = vrot.lane.b32.xlu0 %v868, 16
    %v870 = vpop.permute.xlu0 %869
    %vm872 = vcmask 1047681
    %873 = vst.msk [vmem:[#allocation2] sm:$0xfe] %vm872, %v870
    %vm874 = vcmask 130049
    %875 = vst.msk [vmem:[#allocation2 + $0x8] sm:$0xfe] %vm874, %v870
    %vm876 = vcmask 1040512
    %877 = vst.msk [vmem:[#allocation2 + $0x10] sm:$0x1] %vm876, %v870
    %vm878 = vcmask 122880
    %879 = vst.msk [vmem:[#allocation2 + $0x18] sm:$0x1] %vm878, %v870
    %v880 = vld [vmem:[#allocation2] sm:$0xff]
    %v881 = vld [vmem:[#allocation2 + $0x8] sm:$0xff]
    %v882 = vpack.c.bf16 %v880, %v880
    %v883 = vpack.c.bf16 %v881, %v881
    %v884 = vld [vmem:[%s2] sm:$0xff]
    %v885 = vld [vmem:[%s2 + $0x8] sm:$0xff]
    %v886 = vld [vmem:[%s2 + $0x10] sm:$0xff]
    %v887 = vld [vmem:[%s2 + $0x18] sm:$0xff]
    %v888 = vld [vmem:[%s2 + $0x20] sm:$0xff]
    %v889 = vld [vmem:[%s2 + $0x28] sm:$0xff]
    %v890 = vld [vmem:[%s2 + $0x30] sm:$0xff]
    %v891 = vld [vmem:[%s2 + $0x38] sm:$0xff]
    %v892 = vld [vmem:[%s2 + $0x40] sm:$0xff]
    %v893 = vld [vmem:[%s2 + $0x48] sm:$0xff]
    %v894 = vld [vmem:[%s2 + $0x50] sm:$0xff]
    %v895 = vld [vmem:[%s2 + $0x58] sm:$0xff]
    %v896 = vld [vmem:[%s2 + $0x60] sm:$0xff]
    %v897 = vld [vmem:[%s2 + $0x68] sm:$0xff]
    %v898 = vld [vmem:[%s2 + $0x70] sm:$0xff]
    %v899 = vld [vmem:[%s2 + $0x78] sm:$0xff]
    %v900 = vld [vmem:[%s2 + $0x80] sm:$0xff]
    %v901 = vld [vmem:[%s2 + $0x88] sm:$0xff]
    %v902 = vld [vmem:[%s2 + $0x90] sm:$0xff]
    %v903 = vld [vmem:[%s2 + $0x98] sm:$0xff]
    %v904 = vld [vmem:[#allocation2] sm:$0xfe]
    %v905 = vld [vmem:[#allocation2 + $0x8] sm:$0xfe]
    %v906 = vld [vmem:[#allocation2 + $0x10] sm:$0x1]
    %v907 = vld [vmem:[#allocation2 + $0x18] sm:$0x1]
    %v908 = vpack.c.bf16 %v906, %v904
    %v909 = vpack.c.bf16 %v907, %v905
    %s910 = scalar_lea.vmem %s2, 160
    %v911 = vld [vmem:[%s910] sm:$0xff]
    %v912 = vld [vmem:[%s910 + $0x8] sm:$0xff]
    %v913 = vld [vmem:[%s910 + $0x10] sm:$0xff]
    %v914 = vld [vmem:[%s910 + $0x18] sm:$0xff]
    %v915 = vld [vmem:[%s910 + $0x20] sm:$0xff]
    %v916 = vld [vmem:[%s910 + $0x28] sm:$0xff]
    %v917 = vld [vmem:[%s910 + $0x30] sm:$0xff]
    %v918 = vld [vmem:[%s910 + $0x38] sm:$0xff]
    %v919 = vld [vmem:[%s910 + $0x40] sm:$0xff]
    %v920 = vld [vmem:[%s910 + $0x48] sm:$0xff]
    %v921 = vld [vmem:[%s910 + $0x50] sm:$0xff]
    %v922 = vld [vmem:[%s910 + $0x58] sm:$0xff]
    %v923 = vld [vmem:[%s910 + $0x60] sm:$0xff]
    %v924 = vld [vmem:[%s910 + $0x68] sm:$0xff]
    %v925 = vld [vmem:[%s910 + $0x70] sm:$0xff]
    %v926 = vld [vmem:[%s910 + $0x78] sm:$0xff]
    %v927 = vld [vmem:[%s910 + $0x80] sm:$0xff]
    %v928 = vld [vmem:[%s910 + $0x88] sm:$0xff]
    %v929 = vld [vmem:[%s910 + $0x90] sm:$0xff]
    %v930 = vld [vmem:[%s910 + $0x98] sm:$0xff]
    %v932 = vshrl.u32 %v908, 16
    %v934 = vshll.u32 %v908, 16
    %v936 = vrot.slane %v934, 1
    %v937 = vor.u32 %v932, %v936
    %v939 = vshrl.u32 %v909, 16
    %v941 = vshll.u32 %v909, 16
    %v943 = vrot.slane %v941, 1
    %v944 = vor.u32 %v939, %v943
    %v966 = vunpack.c.l.b16 %v911
    %v967 = vunpack.c.h.b16 %v911
    %v968 = vunpack.c.l.b16 %v912
    %v969 = vunpack.c.h.b16 %v912
    %v970 = vunpack.c.l.b16 %v913
    %v971 = vunpack.c.h.b16 %v913
    %v972 = vunpack.c.l.b16 %v914
    %v973 = vunpack.c.h.b16 %v914
    %v974 = vunpack.c.l.b16 %v915
    %v975 = vunpack.c.h.b16 %v915
    %v976 = vunpack.c.l.b16 %v916
    %v977 = vunpack.c.h.b16 %v916
    %v978 = vunpack.c.l.b16 %v917
    %v979 = vunpack.c.h.b16 %v917
    %v980 = vunpack.c.l.b16 %v918
    %v981 = vunpack.c.h.b16 %v918
    %v982 = vunpack.c.l.b16 %v919
    %v983 = vunpack.c.h.b16 %v919
    %v984 = vunpack.c.l.b16 %v920
    %v985 = vunpack.c.h.b16 %v920
    %v986 = vunpack.c.l.b16 %v921
    %v987 = vunpack.c.h.b16 %v921
    %v988 = vunpack.c.l.b16 %v922
    %v989 = vunpack.c.h.b16 %v922
    %v990 = vunpack.c.l.b16 %v923
    %v991 = vunpack.c.h.b16 %v923
    %v992 = vunpack.c.l.b16 %v924
    %v993 = vunpack.c.h.b16 %v924
    %v994 = vunpack.c.l.b16 %v925
    %v995 = vunpack.c.h.b16 %v925
    %v996 = vunpack.c.l.b16 %v926
    %v997 = vunpack.c.h.b16 %v926
    %v998 = vunpack.c.l.b16 %v927
    %v999 = vunpack.c.h.b16 %v927
    %v1000 = vunpack.c.l.b16 %v928
    %v1001 = vunpack.c.h.b16 %v928
    %v1002 = vunpack.c.l.b16 %v929
    %v1003 = vunpack.c.h.b16 %v929
    %v1004 = vunpack.c.l.b16 %v930
    %v1005 = vunpack.c.h.b16 %v930
    %v1006 = vpack.c.b16 %v968, %v966
    %v1007 = vpack.c.b16 %v969, %v967
    %v1008 = vpack.c.b16 %v972, %v970
    %v1009 = vpack.c.b16 %v973, %v971
    %v1010 = vpack.c.b16 %v976, %v974
    %v1011 = vpack.c.b16 %v977, %v975
    %v1012 = vpack.c.b16 %v980, %v978
    %v1013 = vpack.c.b16 %v981, %v979
    %v1014 = vpack.c.b16 %v984, %v982
    %v1015 = vpack.c.b16 %v985, %v983
    %v1016 = vpack.c.b16 %v988, %v986
    %v1017 = vpack.c.b16 %v989, %v987
    %v1018 = vpack.c.b16 %v992, %v990
    %v1019 = vpack.c.b16 %v993, %v991
    %v1020 = vpack.c.b16 %v996, %v994
    %v1021 = vpack.c.b16 %v997, %v995
    %v1022 = vpack.c.b16 %v1000, %v998
    %v1023 = vpack.c.b16 %v1001, %v999
    %v1024 = vpack.c.b16 %v1004, %v1002
    %v1025 = vpack.c.b16 %v1005, %v1003
    %v1047 = vsel %vm198, %v944, 0
    %1049 = vmatpush.bf16.msra.mxu0 %v1020
    %1050 = vmatpush.bf16.msra.mxu0 %v1018
    %1051 = vmatpush.bf16.msra.mxu0 %v1016
    %1052 = vmatpush.bf16.msra.mxu0 %v1014
    %1053 = vmatpush.bf16.msra.mxu0 %v1012
    %1054 = vmatpush.bf16.msra.mxu0 %v1010
    %1055 = vmatpush.bf16.msra.mxu0 %v1008
    %1056 = vmatpush.bf16.msra.mxu0 %v1006
    %1057 = vmatmul.bf16.gmra.mxu0 %v937
    %v1058 = vpop.f32.mrf.mxu0
    %v1059 = vadd.f32 0.0, %v1058
    %v1060 = vpop.f32.mrf.mxu0
    %1061 = vdwg.mxu0
    %1062 = vmatpush.bf16.msra.mxu0 0
    %1063 = vmatpush.bf16.msra.mxu0 0
    %1064 = vmatpush.bf16.msra.mxu0 0
    %1065 = vmatpush.bf16.msra.mxu0 0
    %1066 = vmatpush.bf16.msra.mxu0 0
    %1067 = vmatpush.bf16.msra.mxu0 0
    %1068 = vmatpush.bf16.msra.mxu0 %v1024
    %1069 = vmatpush.bf16.msra.mxu0 %v1022
    %1070 = vmatmul.bf16.gmra.mxu0 %v1047
    %v1071 = vpop.f32.mrf.mxu0
    %v1072 = vadd.f32 %v1059, %v1071
    %v1073 = vpop.f32.mrf.mxu0
    %1074 = vdwg.mxu0
    %1075 = vmatpush.bf16.msra.mxu0 %v1021
    %1076 = vmatpush.bf16.msra.mxu0 %v1019
    %1077 = vmatpush.bf16.msra.mxu0 %v1017
    %1078 = vmatpush.bf16.msra.mxu0 %v1015
    %1079 = vmatpush.bf16.msra.mxu0 %v1013
    %1080 = vmatpush.bf16.msra.mxu0 %v1011
    %1081 = vmatpush.bf16.msra.mxu0 %v1009
    %1082 = vmatpush.bf16.msra.mxu0 %v1007
    %1083 = vmatmul.bf16.gmra.mxu0 %v937
    %v1084 = vpop.f32.mrf.mxu0
    %v1085 = vadd.f32 0.0, %v1084
    %v1086 = vpop.f32.mrf.mxu0
    %1087 = vdwg.mxu0
    %1088 = vmatpush.bf16.msra.mxu0 0
    %1089 = vmatpush.bf16.msra.mxu0 0
    %1090 = vmatpush.bf16.msra.mxu0 0
    %1091 = vmatpush.bf16.msra.mxu0 0
    %1092 = vmatpush.bf16.msra.mxu0 0
    %1093 = vmatpush.bf16.msra.mxu0 0
    %1094 = vmatpush.bf16.msra.mxu0 %v1025
    %1095 = vmatpush.bf16.msra.mxu0 %v1023
    %1096 = vmatmul.bf16.gmra.mxu0 %v1047
    %v1097 = vpop.f32.mrf.mxu0
    %v1098 = vadd.f32 %v1085, %v1097
    %v1099 = vpop.f32.mrf.mxu0
    %1100 = vdwg.mxu0
    %v1121 = vunpack.c.l.b16 %v884
    %v1122 = vunpack.c.h.b16 %v884
    %v1123 = vunpack.c.l.b16 %v885
    %v1124 = vunpack.c.h.b16 %v885
    %v1125 = vunpack.c.l.b16 %v886
    %v1126 = vunpack.c.h.b16 %v886
    %v1127 = vunpack.c.l.b16 %v887
    %v1128 = vunpack.c.h.b16 %v887
    %v1129 = vunpack.c.l.b16 %v888
    %v1130 = vunpack.c.h.b16 %v888
    %v1131 = vunpack.c.l.b16 %v889
    %v1132 = vunpack.c.h.b16 %v889
    %v1133 = vunpack.c.l.b16 %v890
    %v1134 = vunpack.c.h.b16 %v890
    %v1135 = vunpack.c.l.b16 %v891
    %v1136 = vunpack.c.h.b16 %v891
    %v1137 = vunpack.c.l.b16 %v892
    %v1138 = vunpack.c.h.b16 %v892
    %v1139 = vunpack.c.l.b16 %v893
    %v1140 = vunpack.c.h.b16 %v893
    %v1141 = vunpack.c.l.b16 %v894
    %v1142 = vunpack.c.h.b16 %v894
    %v1143 = vunpack.c.l.b16 %v895
    %v1144 = vunpack.c.h.b16 %v895
    %v1145 = vunpack.c.l.b16 %v896
    %v1146 = vunpack.c.h.b16 %v896
    %v1147 = vunpack.c.l.b16 %v897
    %v1148 = vunpack.c.h.b16 %v897
    %v1149 = vunpack.c.l.b16 %v898
    %v1150 = vunpack.c.h.b16 %v898
    %v1151 = vunpack.c.l.b16 %v899
    %v1152 = vunpack.c.h.b16 %v899
    %v1153 = vunpack.c.l.b16 %v900
    %v1154 = vunpack.c.h.b16 %v900
    %v1155 = vunpack.c.l.b16 %v901
    %v1156 = vunpack.c.h.b16 %v901
    %v1157 = vunpack.c.l.b16 %v902
    %v1158 = vunpack.c.h.b16 %v902
    %v1159 = vunpack.c.l.b16 %v903
    %v1160 = vunpack.c.h.b16 %v903
    %v1161 = vpack.c.b16 %v1123, %v1121
    %v1162 = vpack.c.b16 %v1124, %v1122
    %v1163 = vpack.c.b16 %v1127, %v1125
    %v1164 = vpack.c.b16 %v1128, %v1126
    %v1165 = vpack.c.b16 %v1131, %v1129
    %v1166 = vpack.c.b16 %v1132, %v1130
    %v1167 = vpack.c.b16 %v1135, %v1133
    %v1168 = vpack.c.b16 %v1136, %v1134
    %v1169 = vpack.c.b16 %v1139, %v1137
    %v1170 = vpack.c.b16 %v1140, %v1138
    %v1171 = vpack.c.b16 %v1143, %v1141
    %v1172 = vpack.c.b16 %v1144, %v1142
    %v1173 = vpack.c.b16 %v1147, %v1145
    %v1174 = vpack.c.b16 %v1148, %v1146
    %v1175 = vpack.c.b16 %v1151, %v1149
    %v1176 = vpack.c.b16 %v1152, %v1150
    %v1177 = vpack.c.b16 %v1155, %v1153
    %v1178 = vpack.c.b16 %v1156, %v1154
    %v1179 = vpack.c.b16 %v1159, %v1157
    %v1180 = vpack.c.b16 %v1160, %v1158
    %v1202 = vsel %vm198, %v883, 0
    %1204 = vmatpush.bf16.msra.mxu0 %v1175
    %1205 = vmatpush.bf16.msra.mxu0 %v1173
    %1206 = vmatpush.bf16.msra.mxu0 %v1171
    %1207 = vmatpush.bf16.msra.mxu0 %v1169
    %1208 = vmatpush.bf16.msra.mxu0 %v1167
    %1209 = vmatpush.bf16.msra.mxu0 %v1165
    %1210 = vmatpush.bf16.msra.mxu0 %v1163
    %1211 = vmatpush.bf16.msra.mxu0 %v1161
    %1212 = vmatmul.bf16.gmra.mxu0 %v882
    %v1213 = vpop.f32.mrf.mxu0
    %v1214 = vadd.f32 %v1072, %v1213
    %v1215 = vpop.f32.mrf.mxu0
    %1216 = vdwg.mxu0
    %1217 = vmatpush.bf16.msra.mxu0 0
    %1218 = vmatpush.bf16.msra.mxu0 0
    %1219 = vmatpush.bf16.msra.mxu0 0
    %1220 = vmatpush.bf16.msra.mxu0 0
    %1221 = vmatpush.bf16.msra.mxu0 0
    %1222 = vmatpush.bf16.msra.mxu0 0
    %1223 = vmatpush.bf16.msra.mxu0 %v1179
    %1224 = vmatpush.bf16.msra.mxu0 %v1177
    %1225 = vmatmul.bf16.gmra.mxu0 %v1202
    %v1226 = vpop.f32.mrf.mxu0
    %v1227 = vadd.f32 %v1214, %v1226
    %v1228 = vpop.f32.mrf.mxu0
    %1229 = vdwg.mxu0
    %1230 = vmatpush.bf16.msra.mxu0 %v1176
    %1231 = vmatpush.bf16.msra.mxu0 %v1174
    %1232 = vmatpush.bf16.msra.mxu0 %v1172
    %1233 = vmatpush.bf16.msra.mxu0 %v1170
    %1234 = vmatpush.bf16.msra.mxu0 %v1168
    %1235 = vmatpush.bf16.msra.mxu0 %v1166
    %1236 = vmatpush.bf16.msra.mxu0 %v1164
    %1237 = vmatpush.bf16.msra.mxu0 %v1162
    %1238 = vmatmul.bf16.gmra.mxu0 %v882
    %v1239 = vpop.f32.mrf.mxu0
    %v1240 = vadd.f32 %v1098, %v1239
    %v1241 = vpop.f32.mrf.mxu0
    %1242 = vdwg.mxu0
    %1243 = vmatpush.bf16.msra.mxu0 0
    %1244 = vmatpush.bf16.msra.mxu0 0
    %1245 = vmatpush.bf16.msra.mxu0 0
    %1246 = vmatpush.bf16.msra.mxu0 0
    %1247 = vmatpush.bf16.msra.mxu0 0
    %1248 = vmatpush.bf16.msra.mxu0 0
    %1249 = vmatpush.bf16.msra.mxu0 %v1180
    %1250 = vmatpush.bf16.msra.mxu0 %v1178
    %1251 = vmatmul.bf16.gmra.mxu0 %v1202
    %v1252 = vpop.f32.mrf.mxu0
    %v1253 = vadd.f32 %v1240, %v1252
    %v1254 = vpop.f32.mrf.mxu0
    %1255 = vdwg.mxu0
    %v1256 = vld [vmem:[#allocation2] sm:$0xfc]
    %v1257 = vld [vmem:[#allocation2 + $0x8] sm:$0xfc]
    %v1258 = vld [vmem:[#allocation2 + $0x10] sm:$0x3]
    %v1259 = vld [vmem:[#allocation2 + $0x18] sm:$0x3]
    %v1260 = vpack.c.bf16 %v1258, %v1256
    %v1261 = vpack.c.bf16 %v1259, %v1257
    %s1262 = scalar_lea.vmem %s2, 320
    %v1263 = vld [vmem:[%s1262] sm:$0xff]
    %v1264 = vld [vmem:[%s1262 + $0x8] sm:$0xff]
    %v1265 = vld [vmem:[%s1262 + $0x10] sm:$0xff]
    %v1266 = vld [vmem:[%s1262 + $0x18] sm:$0xff]
    %v1267 = vld [vmem:[%s1262 + $0x20] sm:$0xff]
    %v1268 = vld [vmem:[%s1262 + $0x28] sm:$0xff]
    %v1269 = vld [vmem:[%s1262 + $0x30] sm:$0xff]
    %v1270 = vld [vmem:[%s1262 + $0x38] sm:$0xff]
    %v1271 = vld [vmem:[%s1262 + $0x40] sm:$0xff]
    %v1272 = vld [vmem:[%s1262 + $0x48] sm:$0xff]
    %v1273 = vld [vmem:[%s1262 + $0x50] sm:$0xff]
    %v1274 = vld [vmem:[%s1262 + $0x58] sm:$0xff]
    %v1275 = vld [vmem:[%s1262 + $0x60] sm:$0xff]
    %v1276 = vld [vmem:[%s1262 + $0x68] sm:$0xff]
    %v1277 = vld [vmem:[%s1262 + $0x70] sm:$0xff]
    %v1278 = vld [vmem:[%s1262 + $0x78] sm:$0xff]
    %v1279 = vld [vmem:[%s1262 + $0x80] sm:$0xff]
    %v1280 = vld [vmem:[%s1262 + $0x88] sm:$0xff]
    %v1281 = vld [vmem:[%s1262 + $0x90] sm:$0xff]
    %v1282 = vld [vmem:[%s1262 + $0x98] sm:$0xff]
    %v1285 = vrot.slane %v1260, 1
    %v1286 = vrot.slane %v1261, 1
    %v1308 = vunpack.c.l.b16 %v1263
    %v1309 = vunpack.c.h.b16 %v1263
    %v1310 = vunpack.c.l.b16 %v1264
    %v1311 = vunpack.c.h.b16 %v1264
    %v1312 = vunpack.c.l.b16 %v1265
    %v1313 = vunpack.c.h.b16 %v1265
    %v1314 = vunpack.c.l.b16 %v1266
    %v1315 = vunpack.c.h.b16 %v1266
    %v1316 = vunpack.c.l.b16 %v1267
    %v1317 = vunpack.c.h.b16 %v1267
    %v1318 = vunpack.c.l.b16 %v1268
    %v1319 = vunpack.c.h.b16 %v1268
    %v1320 = vunpack.c.l.b16 %v1269
    %v1321 = vunpack.c.h.b16 %v1269
    %v1322 = vunpack.c.l.b16 %v1270
    %v1323 = vunpack.c.h.b16 %v1270
    %v1324 = vunpack.c.l.b16 %v1271
    %v1325 = vunpack.c.h.b16 %v1271
    %v1326 = vunpack.c.l.b16 %v1272
    %v1327 = vunpack.c.h.b16 %v1272
    %v1328 = vunpack.c.l.b16 %v1273
    %v1329 = vunpack.c.h.b16 %v1273
    %v1330 = vunpack.c.l.b16 %v1274
    %v1331 = vunpack.c.h.b16 %v1274
    %v1332 = vunpack.c.l.b16 %v1275
    %v1333 = vunpack.c.h.b16 %v1275
    %v1334 = vunpack.c.l.b16 %v1276
    %v1335 = vunpack.c.h.b16 %v1276
    %v1336 = vunpack.c.l.b16 %v1277
    %v1337 = vunpack.c.h.b16 %v1277
    %v1338 = vunpack.c.l.b16 %v1278
    %v1339 = vunpack.c.h.b16 %v1278
    %v1340 = vunpack.c.l.b16 %v1279
    %v1341 = vunpack.c.h.b16 %v1279
    %v1342 = vunpack.c.l.b16 %v1280
    %v1343 = vunpack.c.h.b16 %v1280
    %v1344 = vunpack.c.l.b16 %v1281
    %v1345 = vunpack.c.h.b16 %v1281
    %v1346 = vunpack.c.l.b16 %v1282
    %v1347 = vunpack.c.h.b16 %v1282
    %v1348 = vpack.c.b16 %v1310, %v1308
    %v1349 = vpack.c.b16 %v1311, %v1309
    %v1350 = vpack.c.b16 %v1314, %v1312
    %v1351 = vpack.c.b16 %v1315, %v1313
    %v1352 = vpack.c.b16 %v1318, %v1316
    %v1353 = vpack.c.b16 %v1319, %v1317
    %v1354 = vpack.c.b16 %v1322, %v1320
    %v1355 = vpack.c.b16 %v1323, %v1321
    %v1356 = vpack.c.b16 %v1326, %v1324
    %v1357 = vpack.c.b16 %v1327, %v1325
    %v1358 = vpack.c.b16 %v1330, %v1328
    %v1359 = vpack.c.b16 %v1331, %v1329
    %v1360 = vpack.c.b16 %v1334, %v1332
    %v1361 = vpack.c.b16 %v1335, %v1333
    %v1362 = vpack.c.b16 %v1338, %v1336
    %v1363 = vpack.c.b16 %v1339, %v1337
    %v1364 = vpack.c.b16 %v1342, %v1340
    %v1365 = vpack.c.b16 %v1343, %v1341
    %v1366 = vpack.c.b16 %v1346, %v1344
    %v1367 = vpack.c.b16 %v1347, %v1345
    %v1389 = vsel %vm198, %v1286, 0
    %1391 = vmatpush.bf16.msra.mxu0 %v1362
    %1392 = vmatpush.bf16.msra.mxu0 %v1360
    %1393 = vmatpush.bf16.msra.mxu0 %v1358
    %1394 = vmatpush.bf16.msra.mxu0 %v1356
    %1395 = vmatpush.bf16.msra.mxu0 %v1354
    %1396 = vmatpush.bf16.msra.mxu0 %v1352
    %1397 = vmatpush.bf16.msra.mxu0 %v1350
    %1398 = vmatpush.bf16.msra.mxu0 %v1348
    %1399 = vmatmul.bf16.gmra.mxu0 %v1285
    %v1400 = vpop.f32.mrf.mxu0
    %v1401 = vadd.f32 0.0, %v1400
    %v1402 = vpop.f32.mrf.mxu0
    %1403 = vdwg.mxu0
    %1404 = vmatpush.bf16.msra.mxu0 0
    %1405 = vmatpush.bf16.msra.mxu0 0
    %1406 = vmatpush.bf16.msra.mxu0 0
    %1407 = vmatpush.bf16.msra.mxu0 0
    %1408 = vmatpush.bf16.msra.mxu0 0
    %1409 = vmatpush.bf16.msra.mxu0 0
    %1410 = vmatpush.bf16.msra.mxu0 %v1366
    %1411 = vmatpush.bf16.msra.mxu0 %v1364
    %1412 = vmatmul.bf16.gmra.mxu0 %v1389
    %v1413 = vpop.f32.mrf.mxu0
    %v1414 = vadd.f32 %v1401, %v1413
    %v1415 = vpop.f32.mrf.mxu0
    %1416 = vdwg.mxu0
    %1417 = vmatpush.bf16.msra.mxu0 %v1363
    %1418 = vmatpush.bf16.msra.mxu0 %v1361
    %1419 = vmatpush.bf16.msra.mxu0 %v1359
    %1420 = vmatpush.bf16.msra.mxu0 %v1357
    %1421 = vmatpush.bf16.msra.mxu0 %v1355
    %1422 = vmatpush.bf16.msra.mxu0 %v1353
    %1423 = vmatpush.bf16.msra.mxu0 %v1351
    %1424 = vmatpush.bf16.msra.mxu0 %v1349
    %1425 = vmatmul.bf16.gmra.mxu0 %v1285
    %v1426 = vpop.f32.mrf.mxu0
    %v1427 = vadd.f32 0.0, %v1426
    %v1428 = vpop.f32.mrf.mxu0
    %1429 = vdwg.mxu0
    %1430 = vmatpush.bf16.msra.mxu0 0
    %1431 = vmatpush.bf16.msra.mxu0 0
    %1432 = vmatpush.bf16.msra.mxu0 0
    %1433 = vmatpush.bf16.msra.mxu0 0
    %1434 = vmatpush.bf16.msra.mxu0 0
    %1435 = vmatpush.bf16.msra.mxu0 0
    %1436 = vmatpush.bf16.msra.mxu0 %v1367
    %1437 = vmatpush.bf16.msra.mxu0 %v1365
    %1438 = vmatmul.bf16.gmra.mxu0 %v1389
    %v1439 = vpop.f32.mrf.mxu0
    %v1440 = vadd.f32 %v1427, %v1439
    %v1441 = vpop.f32.mrf.mxu0
    %1442 = vdwg.mxu0
    %v1443 = vadd.f32 %v1227, %v1414
    %v1444 = vadd.f32 %v1253, %v1440
    %v1445 = vld [vmem:[#allocation16] sm:$0x3]
    %v1447 = vperm.slane %v1445, 0
    %v1448 = vperm.slane %v1445, 1
    %v1451 = vmul.f32 %v1443, %v1447
    %v1452 = vmul.f32 %v1444, %v1448
    %v1453 = vld [vmem:[%s14] sm:$0x3]
    %v1455 = vperm.slane %v1453, 0
    %v1456 = vperm.slane %v1453, 1
    %v1459 = vadd.f32 %v1451, %v1455
    %v1460 = vadd.f32 %v1452, %v1456
    %v1461 = vmax.f32 %v1459, 0.0
    %v1462 = vmax.f32 %v1460, 0.0
    %v1463 = vpack.c.bf16 %v1461, %v1461
    %v1464 = vpack.c.bf16 %v1462, %v1462
    %v1465 = vld [vmem:[#allocation7] sm:$0x3]
    %vm1466 = vcmask 64512
    %v1468 = vsel %vm1466, %v1465, 0
    %vm1470 = vcmask 1043456
    %v1472 = vsel %vm1470, %v1463, 0
    %v1475 = vsel %vm1470, %v1464, 0
    %1477 = vmatpush.bf16.msra.mxu0 0
    %1478 = vmatpush.bf16.msra.mxu0 0
    %1479 = vmatpush.bf16.msra.mxu0 0
    %1480 = vmatpush.bf16.msra.mxu0 0
    %1481 = vmatpush.bf16.msra.mxu0 0
    %1482 = vmatpush.bf16.msra.mxu0 0
    %1483 = vmatpush.bf16.msra.mxu0 0
    %1484 = vmatpush.bf16.msra.mxu0 %v1472
    %1485 = vmatmul.bf16.gmra.mxu0 %v1468
    %v1486 = vpop.f32.mrf.mxu0
    %v1487 = vadd.f32 0.0, %v1486
    %v1488 = vpop.f32.mrf.mxu0
    %1489 = vdwg.mxu0
    %1490 = vmatpush.bf16.msra.mxu0 0
    %1491 = vmatpush.bf16.msra.mxu0 0
    %1492 = vmatpush.bf16.msra.mxu0 0
    %1493 = vmatpush.bf16.msra.mxu0 0
    %1494 = vmatpush.bf16.msra.mxu0 0
    %1495 = vmatpush.bf16.msra.mxu0 0
    %1496 = vmatpush.bf16.msra.mxu0 0
    %1497 = vmatpush.bf16.msra.mxu0 %v1475
    %1498 = vmatmul.bf16.gmra.mxu0 %v1468
    %v1499 = vpop.f32.mrf.mxu0
    %v1500 = vadd.f32 0.0, %v1499
    %v1501 = vpop.f32.mrf.mxu0
    %1502 = vdwg.mxu0
    %s1503 = scalar_lea.vmem [#allocation7], 2
    %v1504 = vld [vmem:[%s1503] sm:$0x3]
    %v1506 = vsel %vm1466, %v1504, 0
    %1508 = vmatpush.bf16.msra.mxu0 0
    %1509 = vmatpush.bf16.msra.mxu0 0
    %1510 = vmatpush.bf16.msra.mxu0 0
    %1511 = vmatpush.bf16.msra.mxu0 0
    %1512 = vmatpush.bf16.msra.mxu0 0
    %1513 = vmatpush.bf16.msra.mxu0 0
    %1514 = vmatpush.bf16.msra.mxu0 0
    %1515 = vmatpush.bf16.msra.mxu0 %v1472
    %1516 = vmatmul.bf16.gmra.mxu0 %v1506
    %v1517 = vpop.f32.mrf.mxu0
    %v1518 = vadd.f32 0.0, %v1517
    %v1519 = vpop.f32.mrf.mxu0
    %1520 = vdwg.mxu0
    %1521 = vmatpush.bf16.msra.mxu0 0
    %1522 = vmatpush.bf16.msra.mxu0 0
    %1523 = vmatpush.bf16.msra.mxu0 0
    %1524 = vmatpush.bf16.msra.mxu0 0
    %1525 = vmatpush.bf16.msra.mxu0 0
    %1526 = vmatpush.bf16.msra.mxu0 0
    %1527 = vmatpush.bf16.msra.mxu0 0
    %1528 = vmatpush.bf16.msra.mxu0 %v1475
    %1529 = vmatmul.bf16.gmra.mxu0 %v1506
    %v1530 = vpop.f32.mrf.mxu0
    %v1531 = vadd.f32 0.0, %v1530
    %v1532 = vpop.f32.mrf.mxu0
    %1533 = vdwg.mxu0
    %v1534 = vmax.f32 %v1487, %v1518
    %v1535 = vmax.f32 %v1500, %v1531
    %v1536 = vpack.c.bf16 %v1534, %v1534
    %v1537 = vpack.c.bf16 %v1535, %v1535
    %v1538 = vld [vmem:[#allocation12] sm:$0xf]
    %v1539 = vld [vmem:[#allocation12 + $0x4] sm:$0xf]
    %v1540 = vld [vmem:[#allocation12 + $0x8] sm:$0xf]
    %v1541 = vld [vmem:[#allocation12 + $0xc] sm:$0xf]
    %v1542 = vld [vmem:[#allocation12 + $0x10] sm:$0xf]
    %v1543 = vld [vmem:[#allocation12 + $0x14] sm:$0xf]
    %v1544 = vld [vmem:[#allocation12 + $0x18] sm:$0xf]
    %v1545 = vld [vmem:[#allocation12 + $0x1c] sm:$0xf]
    %v1546 = vld [vmem:[#allocation12 + $0x20] sm:$0xf]
    %v1547 = vld [vmem:[#allocation12 + $0x24] sm:$0xf]
    %v1548 = vld [vmem:[#allocation12 + $0x28] sm:$0xf]
    %v1549 = vld [vmem:[#allocation12 + $0x2c] sm:$0xf]
    %v1550 = vld [vmem:[#allocation12 + $0x30] sm:$0xf]
    %v1551 = vld [vmem:[#allocation12 + $0x34] sm:$0xf]
    %v1552 = vld [vmem:[#allocation12 + $0x38] sm:$0xf]
    %v1553 = vld [vmem:[#allocation12 + $0x3c] sm:$0xf]
    %v1554 = vld [vmem:[#allocation12 + $0x40] sm:$0xf]
    %v1555 = vld [vmem:[#allocation12 + $0x44] sm:$0xf]
    %v1556 = vld [vmem:[#allocation12 + $0x48] sm:$0xf]
    %v1557 = vld [vmem:[#allocation12 + $0x4c] sm:$0xf]
    %v1558 = vld [vmem:[#allocation12 + $0x50] sm:$0xf]
    %v1559 = vld [vmem:[#allocation12 + $0x54] sm:$0xf]
    %v1560 = vld [vmem:[#allocation12 + $0x58] sm:$0xf]
    %v1561 = vld [vmem:[#allocation12 + $0x5c] sm:$0xf]
    %v1562 = vld [vmem:[#allocation12 + $0x60] sm:$0xf]
    %v1563 = vld [vmem:[#allocation12 + $0x64] sm:$0xf]
    %v1564 = vld [vmem:[#allocation12 + $0x68] sm:$0xf]
    %v1565 = vld [vmem:[#allocation12 + $0x6c] sm:$0xf]
    %v1566 = vld [vmem:[#allocation12 + $0x70] sm:$0xf]
    %v1567 = vld [vmem:[#allocation12 + $0x74] sm:$0xf]
    %v1568 = vld [vmem:[#allocation12 + $0x78] sm:$0xf]
    %v1569 = vld [vmem:[#allocation12 + $0x7c] sm:$0xf]
    %v1602 = vunpack.c.l.b16 %v1538
    %v1603 = vunpack.c.l.b16 %v1539
    %v1604 = vunpack.c.l.b16 %v1540
    %v1605 = vunpack.c.l.b16 %v1541
    %v1606 = vunpack.c.l.b16 %v1542
    %v1607 = vunpack.c.l.b16 %v1543
    %v1608 = vunpack.c.l.b16 %v1544
    %v1609 = vunpack.c.l.b16 %v1545
    %v1610 = vunpack.c.l.b16 %v1546
    %v1611 = vunpack.c.l.b16 %v1547
    %v1612 = vunpack.c.l.b16 %v1548
    %v1613 = vunpack.c.l.b16 %v1549
    %v1614 = vunpack.c.l.b16 %v1550
    %v1615 = vunpack.c.l.b16 %v1551
    %v1616 = vunpack.c.l.b16 %v1552
    %v1617 = vunpack.c.l.b16 %v1553
    %v1618 = vunpack.c.l.b16 %v1554
    %v1619 = vunpack.c.l.b16 %v1555
    %v1620 = vunpack.c.l.b16 %v1556
    %v1621 = vunpack.c.l.b16 %v1557
    %v1622 = vunpack.c.l.b16 %v1558
    %v1623 = vunpack.c.l.b16 %v1559
    %v1624 = vunpack.c.l.b16 %v1560
    %v1625 = vunpack.c.l.b16 %v1561
    %v1626 = vunpack.c.l.b16 %v1562
    %v1627 = vunpack.c.l.b16 %v1563
    %v1628 = vunpack.c.l.b16 %v1564
    %v1629 = vunpack.c.l.b16 %v1565
    %v1630 = vunpack.c.l.b16 %v1566
    %v1631 = vunpack.c.l.b16 %v1567
    %v1632 = vunpack.c.l.b16 %v1568
    %v1633 = vunpack.c.l.b16 %v1569
    %v1634 = vpack.c.b16 %v1603, %v1602
    %v1635 = vpack.c.b16 %v1605, %v1604
    %v1636 = vpack.c.b16 %v1607, %v1606
    %v1637 = vpack.c.b16 %v1609, %v1608
    %v1638 = vpack.c.b16 %v1611, %v1610
    %v1639 = vpack.c.b16 %v1613, %v1612
    %v1640 = vpack.c.b16 %v1615, %v1614
    %v1641 = vpack.c.b16 %v1617, %v1616
    %v1642 = vpack.c.b16 %v1619, %v1618
    %v1643 = vpack.c.b16 %v1621, %v1620
    %v1644 = vpack.c.b16 %v1623, %v1622
    %v1645 = vpack.c.b16 %v1625, %v1624
    %v1646 = vpack.c.b16 %v1627, %v1626
    %v1647 = vpack.c.b16 %v1629, %v1628
    %v1648 = vpack.c.b16 %v1631, %v1630
    %v1649 = vpack.c.b16 %v1633, %v1632
    %1666 = vmatpush.bf16.msra.mxu0 %v1641
    %1667 = vmatpush.bf16.msra.mxu0 %v1640
    %1668 = vmatpush.bf16.msra.mxu0 %v1639
    %1669 = vmatpush.bf16.msra.mxu0 %v1638
    %1670 = vmatpush.bf16.msra.mxu0 %v1637
    %1671 = vmatpush.bf16.msra.mxu0 %v1636
    %1672 = vmatpush.bf16.msra.mxu0 %v1635
    %1673 = vmatpush.bf16.msra.mxu0 %v1634
    %1674 = vmatmul.bf16.gmra.mxu0 %v1536
    %v1675 = vpop.f32.mrf.mxu0
    %v1676 = vadd.f32 0.0, %v1675
    %v1677 = vpop.f32.mrf.mxu0
    %1678 = vdwg.mxu0
    %1679 = vmatpush.bf16.msra.mxu0 %v1649
    %1680 = vmatpush.bf16.msra.mxu0 %v1648
    %1681 = vmatpush.bf16.msra.mxu0 %v1647
    %1682 = vmatpush.bf16.msra.mxu0 %v1646
    %1683 = vmatpush.bf16.msra.mxu0 %v1645
    %1684 = vmatpush.bf16.msra.mxu0 %v1644
    %1685 = vmatpush.bf16.msra.mxu0 %v1643
    %1686 = vmatpush.bf16.msra.mxu0 %v1642
    %1687 = vmatmul.bf16.gmra.mxu0 %v1537
    %v1688 = vpop.f32.mrf.mxu0
    %v1689 = vadd.f32 %v1676, %v1688
    %v1690 = vpop.f32.mrf.mxu0
    %1691 = vdwg.mxu0
    %s1692 = scalar_lea.vmem [#allocation12], 128
    %v1693 = vld [vmem:[%s1692] sm:$0xf]
    %v1694 = vld [vmem:[%s1692 + $0x4] sm:$0xf]
    %v1695 = vld [vmem:[%s1692 + $0x8] sm:$0xf]
    %v1696 = vld [vmem:[%s1692 + $0xc] sm:$0xf]
    %v1697 = vld [vmem:[%s1692 + $0x10] sm:$0xf]
    %v1698 = vld [vmem:[%s1692 + $0x14] sm:$0xf]
    %v1699 = vld [vmem:[%s1692 + $0x18] sm:$0xf]
    %v1700 = vld [vmem:[%s1692 + $0x1c] sm:$0xf]
    %v1701 = vld [vmem:[%s1692 + $0x20] sm:$0xf]
    %v1702 = vld [vmem:[%s1692 + $0x24] sm:$0xf]
    %v1703 = vld [vmem:[%s1692 + $0x28] sm:$0xf]
    %v1704 = vld [vmem:[%s1692 + $0x2c] sm:$0xf]
    %v1705 = vld [vmem:[%s1692 + $0x30] sm:$0xf]
    %v1706 = vld [vmem:[%s1692 + $0x34] sm:$0xf]
    %v1707 = vld [vmem:[%s1692 + $0x38] sm:$0xf]
    %v1708 = vld [vmem:[%s1692 + $0x3c] sm:$0xf]
    %v1709 = vld [vmem:[%s1692 + $0x40] sm:$0xf]
    %v1710 = vld [vmem:[%s1692 + $0x44] sm:$0xf]
    %v1711 = vld [vmem:[%s1692 + $0x48] sm:$0xf]
    %v1712 = vld [vmem:[%s1692 + $0x4c] sm:$0xf]
    %v1713 = vld [vmem:[%s1692 + $0x50] sm:$0xf]
    %v1714 = vld [vmem:[%s1692 + $0x54] sm:$0xf]
    %v1715 = vld [vmem:[%s1692 + $0x58] sm:$0xf]
    %v1716 = vld [vmem:[%s1692 + $0x5c] sm:$0xf]
    %v1717 = vld [vmem:[%s1692 + $0x60] sm:$0xf]
    %v1718 = vld [vmem:[%s1692 + $0x64] sm:$0xf]
    %v1719 = vld [vmem:[%s1692 + $0x68] sm:$0xf]
    %v1720 = vld [vmem:[%s1692 + $0x6c] sm:$0xf]
    %v1721 = vld [vmem:[%s1692 + $0x70] sm:$0xf]
    %v1722 = vld [vmem:[%s1692 + $0x74] sm:$0xf]
    %v1723 = vld [vmem:[%s1692 + $0x78] sm:$0xf]
    %v1724 = vld [vmem:[%s1692 + $0x7c] sm:$0xf]
    %v1757 = vunpack.c.l.b16 %v1693
    %v1758 = vunpack.c.l.b16 %v1694
    %v1759 = vunpack.c.l.b16 %v1695
    %v1760 = vunpack.c.l.b16 %v1696
    %v1761 = vunpack.c.l.b16 %v1697
    %v1762 = vunpack.c.l.b16 %v1698
    %v1763 = vunpack.c.l.b16 %v1699
    %v1764 = vunpack.c.l.b16 %v1700
    %v1765 = vunpack.c.l.b16 %v1701
    %v1766 = vunpack.c.l.b16 %v1702
    %v1767 = vunpack.c.l.b16 %v1703
    %v1768 = vunpack.c.l.b16 %v1704
    %v1769 = vunpack.c.l.b16 %v1705
    %v1770 = vunpack.c.l.b16 %v1706
    %v1771 = vunpack.c.l.b16 %v1707
    %v1772 = vunpack.c.l.b16 %v1708
    %v1773 = vunpack.c.l.b16 %v1709
    %v1774 = vunpack.c.l.b16 %v1710
    %v1775 = vunpack.c.l.b16 %v1711
    %v1776 = vunpack.c.l.b16 %v1712
    %v1777 = vunpack.c.l.b16 %v1713
    %v1778 = vunpack.c.l.b16 %v1714
    %v1779 = vunpack.c.l.b16 %v1715
    %v1780 = vunpack.c.l.b16 %v1716
    %v1781 = vunpack.c.l.b16 %v1717
    %v1782 = vunpack.c.l.b16 %v1718
    %v1783 = vunpack.c.l.b16 %v1719
    %v1784 = vunpack.c.l.b16 %v1720
    %v1785 = vunpack.c.l.b16 %v1721
    %v1786 = vunpack.c.l.b16 %v1722
    %v1787 = vunpack.c.l.b16 %v1723
    %v1788 = vunpack.c.l.b16 %v1724
    %v1789 = vpack.c.b16 %v1758, %v1757
    %v1790 = vpack.c.b16 %v1760, %v1759
    %v1791 = vpack.c.b16 %v1762, %v1761
    %v1792 = vpack.c.b16 %v1764, %v1763
    %v1793 = vpack.c.b16 %v1766, %v1765
    %v1794 = vpack.c.b16 %v1768, %v1767
    %v1795 = vpack.c.b16 %v1770, %v1769
    %v1796 = vpack.c.b16 %v1772, %v1771
    %v1797 = vpack.c.b16 %v1774, %v1773
    %v1798 = vpack.c.b16 %v1776, %v1775
    %v1799 = vpack.c.b16 %v1778, %v1777
    %v1800 = vpack.c.b16 %v1780, %v1779
    %v1801 = vpack.c.b16 %v1782, %v1781
    %v1802 = vpack.c.b16 %v1784, %v1783
    %v1803 = vpack.c.b16 %v1786, %v1785
    %v1804 = vpack.c.b16 %v1788, %v1787
    %1821 = vmatpush.bf16.msra.mxu0 %v1796
    %1822 = vmatpush.bf16.msra.mxu0 %v1795
    %1823 = vmatpush.bf16.msra.mxu0 %v1794
    %1824 = vmatpush.bf16.msra.mxu0 %v1793
    %1825 = vmatpush.bf16.msra.mxu0 %v1792
    %1826 = vmatpush.bf16.msra.mxu0 %v1791
    %1827 = vmatpush.bf16.msra.mxu0 %v1790
    %1828 = vmatpush.bf16.msra.mxu0 %v1789
    %1829 = vmatmul.bf16.gmra.mxu0 %v1536
    %v1830 = vpop.f32.mrf.mxu0
    %v1831 = vadd.f32 0.0, %v1830
    %v1832 = vpop.f32.mrf.mxu0
    %1833 = vdwg.mxu0
    %1834 = vmatpush.bf16.msra.mxu0 %v1804
    %1835 = vmatpush.bf16.msra.mxu0 %v1803
    %1836 = vmatpush.bf16.msra.mxu0 %v1802
    %1837 = vmatpush.bf16.msra.mxu0 %v1801
    %1838 = vmatpush.bf16.msra.mxu0 %v1800
    %1839 = vmatpush.bf16.msra.mxu0 %v1799
    %1840 = vmatpush.bf16.msra.mxu0 %v1798
    %1841 = vmatpush.bf16.msra.mxu0 %v1797
    %1842 = vmatmul.bf16.gmra.mxu0 %v1537
    %v1843 = vpop.f32.mrf.mxu0
    %v1844 = vadd.f32 %v1831, %v1843
    %v1845 = vpop.f32.mrf.mxu0
    %1846 = vdwg.mxu0
    %v1847 = vmax.f32 %v1689, %v1844
    %v1849 = vrot.slane %v1847, 7
    %1850 = vrot.lane.b32.xlu0 %v1849, 32
    %v1851 = vpop.permute.xlu0 %1850
    %vm1853 = vcmask 1044737
    %1854 = vst.msk [vmem:[#allocation3] sm:$0x1e] %vm1853, %v1851
    %vm1855 = vcmask 258049
    %1856 = vst.msk [vmem:[#allocation3 + $0x8] sm:$0x1e] %vm1855, %v1851
    %v1857 = vld [vmem:[#allocation3] sm:$0xf]
    %v1858 = vld [vmem:[#allocation3 + $0x8] sm:$0xf]
    %v1859 = vpack.c.bf16 %v1857, %v1857
    %v1860 = vpack.c.bf16 %v1858, %v1858
    %v1861 = vld [vmem:[#allocation4] sm:$0xff]
    %v1862 = vld [vmem:[#allocation4 + $0x8] sm:$0xff]
    %v1863 = vld [vmem:[#allocation4 + $0x10] sm:$0xff]
    %v1864 = vld [vmem:[#allocation4 + $0x18] sm:$0xff]
    %v1865 = vld [vmem:[#allocation4 + $0x20] sm:$0xff]
    %v1866 = vld [vmem:[#allocation4 + $0x28] sm:$0xff]
    %v1867 = vld [vmem:[#allocation4 + $0x30] sm:$0xff]
    %v1868 = vld [vmem:[#allocation4 + $0x38] sm:$0xff]
    %v1869 = vld [vmem:[#allocation4 + $0x40] sm:$0xff]
    %v1870 = vld [vmem:[#allocation4 + $0x48] sm:$0xff]
    %v1871 = vld [vmem:[#allocation4 + $0x50] sm:$0xff]
    %v1872 = vld [vmem:[#allocation4 + $0x58] sm:$0xff]
    %v1873 = vld [vmem:[#allocation4 + $0x60] sm:$0xff]
    %v1874 = vld [vmem:[#allocation4 + $0x68] sm:$0xff]
    %v1875 = vld [vmem:[#allocation4 + $0x70] sm:$0xff]
    %v1876 = vld [vmem:[#allocation4 + $0x78] sm:$0xff]
    %v1877 = vld [vmem:[#allocation4 + $0x80] sm:$0xff]
    %v1878 = vld [vmem:[#allocation4 + $0x88] sm:$0xff]
    %v1879 = vld [vmem:[#allocation4 + $0x90] sm:$0xff]
    %v1880 = vld [vmem:[#allocation4 + $0x98] sm:$0xff]
    %v1881 = vld [vmem:[#allocation4 + $0xa0] sm:$0xff]
    %v1882 = vld [vmem:[#allocation4 + $0xa8] sm:$0xff]
    %v1883 = vld [vmem:[#allocation4 + $0xb0] sm:$0xff]
    %v1884 = vld [vmem:[#allocation4 + $0xb8] sm:$0xff]
    %v1885 = vld [vmem:[#allocation4 + $0xc0] sm:$0xff]
    %v1886 = vld [vmem:[#allocation4 + $0xc8] sm:$0xff]
    %v1887 = vld [vmem:[#allocation4 + $0xd0] sm:$0xff]
    %v1888 = vld [vmem:[#allocation4 + $0xd8] sm:$0xff]
    %v1889 = vld [vmem:[#allocation4 + $0xe0] sm:$0xff]
    %v1890 = vld [vmem:[#allocation4 + $0xe8] sm:$0xff]
    %v1891 = vld [vmem:[#allocation4 + $0xf0] sm:$0xff]
    %v1892 = vld [vmem:[#allocation4 + $0xf8] sm:$0xff]
    %v1893 = vld [vmem:[#allocation4 + $0x100] sm:$0xff]
    %v1894 = vld [vmem:[#allocation4 + $0x108] sm:$0xff]
    %v1895 = vld [vmem:[#allocation4 + $0x110] sm:$0xff]
    %v1896 = vld [vmem:[#allocation4 + $0x118] sm:$0xff]
    %v1897 = vld [vmem:[#allocation4 + $0x120] sm:$0xff]
    %v1898 = vld [vmem:[#allocation4 + $0x128] sm:$0xff]
    %v1899 = vld [vmem:[#allocation4 + $0x130] sm:$0xff]
    %v1900 = vld [vmem:[#allocation4 + $0x138] sm:$0xff]
    %v1901 = vld [vmem:[#allocation4 + $0x140] sm:$0xff]
    %v1902 = vld [vmem:[#allocation4 + $0x148] sm:$0xff]
    %v1903 = vld [vmem:[#allocation4 + $0x150] sm:$0xff]
    %v1904 = vld [vmem:[#allocation4 + $0x158] sm:$0xff]
    %v1905 = vld [vmem:[#allocation4 + $0x160] sm:$0xff]
    %v1906 = vld [vmem:[#allocation4 + $0x168] sm:$0xff]
    %v1907 = vld [vmem:[#allocation4 + $0x170] sm:$0xff]
    %v1908 = vld [vmem:[#allocation4 + $0x178] sm:$0xff]
    %v1909 = vld [vmem:[#allocation3] sm:$0x1e]
    %v1910 = vld [vmem:[#allocation3 + $0x8] sm:$0x1e]
    %v1911 = vpack.c.bf16 %v1909, %v1909
    %v1912 = vpack.c.bf16 %v1910, %v1910
    %s1913 = scalar_lea.vmem [#allocation4], 384
    %v1914 = vld [vmem:[%s1913] sm:$0xff]
    %v1915 = vld [vmem:[%s1913 + $0x8] sm:$0xff]
    %v1916 = vld [vmem:[%s1913 + $0x10] sm:$0xff]
    %v1917 = vld [vmem:[%s1913 + $0x18] sm:$0xff]
    %v1918 = vld [vmem:[%s1913 + $0x20] sm:$0xff]
    %v1919 = vld [vmem:[%s1913 + $0x28] sm:$0xff]
    %v1920 = vld [vmem:[%s1913 + $0x30] sm:$0xff]
    %v1921 = vld [vmem:[%s1913 + $0x38] sm:$0xff]
    %v1922 = vld [vmem:[%s1913 + $0x40] sm:$0xff]
    %v1923 = vld [vmem:[%s1913 + $0x48] sm:$0xff]
    %v1924 = vld [vmem:[%s1913 + $0x50] sm:$0xff]
    %v1925 = vld [vmem:[%s1913 + $0x58] sm:$0xff]
    %v1926 = vld [vmem:[%s1913 + $0x60] sm:$0xff]
    %v1927 = vld [vmem:[%s1913 + $0x68] sm:$0xff]
    %v1928 = vld [vmem:[%s1913 + $0x70] sm:$0xff]
    %v1929 = vld [vmem:[%s1913 + $0x78] sm:$0xff]
    %v1930 = vld [vmem:[%s1913 + $0x80] sm:$0xff]
    %v1931 = vld [vmem:[%s1913 + $0x88] sm:$0xff]
    %v1932 = vld [vmem:[%s1913 + $0x90] sm:$0xff]
    %v1933 = vld [vmem:[%s1913 + $0x98] sm:$0xff]
    %v1934 = vld [vmem:[%s1913 + $0xa0] sm:$0xff]
    %v1935 = vld [vmem:[%s1913 + $0xa8] sm:$0xff]
    %v1936 = vld [vmem:[%s1913 + $0xb0] sm:$0xff]
    %v1937 = vld [vmem:[%s1913 + $0xb8] sm:$0xff]
    %v1938 = vld [vmem:[%s1913 + $0xc0] sm:$0xff]
    %v1939 = vld [vmem:[%s1913 + $0xc8] sm:$0xff]
    %v1940 = vld [vmem:[%s1913 + $0xd0] sm:$0xff]
    %v1941 = vld [vmem:[%s1913 + $0xd8] sm:$0xff]
    %v1942 = vld [vmem:[%s1913 + $0xe0] sm:$0xff]
    %v1943 = vld [vmem:[%s1913 + $0xe8] sm:$0xff]
    %v1944 = vld [vmem:[%s1913 + $0xf0] sm:$0xff]
    %v1945 = vld [vmem:[%s1913 + $0xf8] sm:$0xff]
    %v1946 = vld [vmem:[%s1913 + $0x100] sm:$0xff]
    %v1947 = vld [vmem:[%s1913 + $0x108] sm:$0xff]
    %v1948 = vld [vmem:[%s1913 + $0x110] sm:$0xff]
    %v1949 = vld [vmem:[%s1913 + $0x118] sm:$0xff]
    %v1950 = vld [vmem:[%s1913 + $0x120] sm:$0xff]
    %v1951 = vld [vmem:[%s1913 + $0x128] sm:$0xff]
    %v1952 = vld [vmem:[%s1913 + $0x130] sm:$0xff]
    %v1953 = vld [vmem:[%s1913 + $0x138] sm:$0xff]
    %v1954 = vld [vmem:[%s1913 + $0x140] sm:$0xff]
    %v1955 = vld [vmem:[%s1913 + $0x148] sm:$0xff]
    %v1956 = vld [vmem:[%s1913 + $0x150] sm:$0xff]
    %v1957 = vld [vmem:[%s1913 + $0x158] sm:$0xff]
    %v1958 = vld [vmem:[%s1913 + $0x160] sm:$0xff]
    %v1959 = vld [vmem:[%s1913 + $0x168] sm:$0xff]
    %v1960 = vld [vmem:[%s1913 + $0x170] sm:$0xff]
    %v1961 = vld [vmem:[%s1913 + $0x178] sm:$0xff]
    %v1963 = vshrl.u32 %v1911, 16
    %v1965 = vshll.u32 %v1911, 16
    %v1967 = vrot.slane %v1965, 1
    %v1968 = vor.u32 %v1963, %v1967
    %v1970 = vshrl.u32 %v1912, 16
    %v1972 = vshll.u32 %v1912, 16
    %v1974 = vrot.slane %v1972, 1
    %v1975 = vor.u32 %v1970, %v1974
    %v2025 = vunpack.c.l.b16 %v1914
    %v2026 = vunpack.c.h.b16 %v1914
    %v2027 = vunpack.c.l.b16 %v1915
    %v2028 = vunpack.c.h.b16 %v1915
    %v2029 = vunpack.c.l.b16 %v1916
    %v2030 = vunpack.c.h.b16 %v1916
    %v2031 = vunpack.c.l.b16 %v1917
    %v2032 = vunpack.c.h.b16 %v1917
    %v2033 = vunpack.c.l.b16 %v1918
    %v2034 = vunpack.c.h.b16 %v1918
    %v2035 = vunpack.c.l.b16 %v1919
    %v2036 = vunpack.c.h.b16 %v1919
    %v2037 = vunpack.c.l.b16 %v1920
    %v2038 = vunpack.c.h.b16 %v1920
    %v2039 = vunpack.c.l.b16 %v1921
    %v2040 = vunpack.c.h.b16 %v1921
    %v2041 = vunpack.c.l.b16 %v1922
    %v2042 = vunpack.c.h.b16 %v1922
    %v2043 = vunpack.c.l.b16 %v1923
    %v2044 = vunpack.c.h.b16 %v1923
    %v2045 = vunpack.c.l.b16 %v1924
    %v2046 = vunpack.c.h.b16 %v1924
    %v2047 = vunpack.c.l.b16 %v1925
    %v2048 = vunpack.c.h.b16 %v1925
    %v2049 = vunpack.c.l.b16 %v1926
    %v2050 = vunpack.c.h.b16 %v1926
    %v2051 = vunpack.c.l.b16 %v1927
    %v2052 = vunpack.c.h.b16 %v1927
    %v2053 = vunpack.c.l.b16 %v1928
    %v2054 = vunpack.c.h.b16 %v1928
    %v2055 = vunpack.c.l.b16 %v1929
    %v2056 = vunpack.c.h.b16 %v1929
    %v2057 = vunpack.c.l.b16 %v1930
    %v2058 = vunpack.c.h.b16 %v1930
    %v2059 = vunpack.c.l.b16 %v1931
    %v2060 = vunpack.c.h.b16 %v1931
    %v2061 = vunpack.c.l.b16 %v1932
    %v2062 = vunpack.c.h.b16 %v1932
    %v2063 = vunpack.c.l.b16 %v1933
    %v2064 = vunpack.c.h.b16 %v1933
    %v2065 = vunpack.c.l.b16 %v1934
    %v2066 = vunpack.c.h.b16 %v1934
    %v2067 = vunpack.c.l.b16 %v1935
    %v2068 = vunpack.c.h.b16 %v1935
    %v2069 = vunpack.c.l.b16 %v1936
    %v2070 = vunpack.c.h.b16 %v1936
    %v2071 = vunpack.c.l.b16 %v1937
    %v2072 = vunpack.c.h.b16 %v1937
    %v2073 = vunpack.c.l.b16 %v1938
    %v2074 = vunpack.c.h.b16 %v1938
    %v2075 = vunpack.c.l.b16 %v1939
    %v2076 = vunpack.c.h.b16 %v1939
    %v2077 = vunpack.c.l.b16 %v1940
    %v2078 = vunpack.c.h.b16 %v1940
    %v2079 = vunpack.c.l.b16 %v1941
    %v2080 = vunpack.c.h.b16 %v1941
    %v2081 = vunpack.c.l.b16 %v1942
    %v2082 = vunpack.c.h.b16 %v1942
    %v2083 = vunpack.c.l.b16 %v1943
    %v2084 = vunpack.c.h.b16 %v1943
    %v2085 = vunpack.c.l.b16 %v1944
    %v2086 = vunpack.c.h.b16 %v1944
    %v2087 = vunpack.c.l.b16 %v1945
    %v2088 = vunpack.c.h.b16 %v1945
    %v2089 = vunpack.c.l.b16 %v1946
    %v2090 = vunpack.c.h.b16 %v1946
    %v2091 = vunpack.c.l.b16 %v1947
    %v2092 = vunpack.c.h.b16 %v1947
    %v2093 = vunpack.c.l.b16 %v1948
    %v2094 = vunpack.c.h.b16 %v1948
    %v2095 = vunpack.c.l.b16 %v1949
    %v2096 = vunpack.c.h.b16 %v1949
    %v2097 = vunpack.c.l.b16 %v1950
    %v2098 = vunpack.c.h.b16 %v1950
    %v2099 = vunpack.c.l.b16 %v1951
    %v2100 = vunpack.c.h.b16 %v1951
    %v2101 = vunpack.c.l.b16 %v1952
    %v2102 = vunpack.c.h.b16 %v1952
    %v2103 = vunpack.c.l.b16 %v1953
    %v2104 = vunpack.c.h.b16 %v1953
    %v2105 = vunpack.c.l.b16 %v1954
    %v2106 = vunpack.c.h.b16 %v1954
    %v2107 = vunpack.c.l.b16 %v1955
    %v2108 = vunpack.c.h.b16 %v1955
    %v2109 = vunpack.c.l.b16 %v1956
    %v2110 = vunpack.c.h.b16 %v1956
    %v2111 = vunpack.c.l.b16 %v1957
    %v2112 = vunpack.c.h.b16 %v1957
    %v2113 = vunpack.c.l.b16 %v1958
    %v2114 = vunpack.c.h.b16 %v1958
    %v2115 = vunpack.c.l.b16 %v1959
    %v2116 = vunpack.c.h.b16 %v1959
    %v2117 = vunpack.c.l.b16 %v1960
    %v2118 = vunpack.c.h.b16 %v1960
    %v2119 = vunpack.c.l.b16 %v1961
    %v2120 = vunpack.c.h.b16 %v1961
    %v2121 = vpack.c.b16 %v2029, %v2025
    %v2122 = vpack.c.b16 %v2030, %v2026
    %v2123 = vpack.c.b16 %v2031, %v2027
    %v2124 = vpack.c.b16 %v2032, %v2028
    %v2125 = vpack.c.b16 %v2037, %v2033
    %v2126 = vpack.c.b16 %v2038, %v2034
    %v2127 = vpack.c.b16 %v2039, %v2035
    %v2128 = vpack.c.b16 %v2040, %v2036
    %v2129 = vpack.c.b16 %v2045, %v2041
    %v2130 = vpack.c.b16 %v2046, %v2042
    %v2131 = vpack.c.b16 %v2047, %v2043
    %v2132 = vpack.c.b16 %v2048, %v2044
    %v2133 = vpack.c.b16 %v2053, %v2049
    %v2134 = vpack.c.b16 %v2054, %v2050
    %v2135 = vpack.c.b16 %v2055, %v2051
    %v2136 = vpack.c.b16 %v2056, %v2052
    %v2137 = vpack.c.b16 %v2061, %v2057
    %v2138 = vpack.c.b16 %v2062, %v2058
    %v2139 = vpack.c.b16 %v2063, %v2059
    %v2140 = vpack.c.b16 %v2064, %v2060
    %v2141 = vpack.c.b16 %v2069, %v2065
    %v2142 = vpack.c.b16 %v2070, %v2066
    %v2143 = vpack.c.b16 %v2071, %v2067
    %v2144 = vpack.c.b16 %v2072, %v2068
    %v2145 = vpack.c.b16 %v2077, %v2073
    %v2146 = vpack.c.b16 %v2078, %v2074
    %v2147 = vpack.c.b16 %v2079, %v2075
    %v2148 = vpack.c.b16 %v2080, %v2076
    %v2149 = vpack.c.b16 %v2085, %v2081
    %v2150 = vpack.c.b16 %v2086, %v2082
    %v2151 = vpack.c.b16 %v2087, %v2083
    %v2152 = vpack.c.b16 %v2088, %v2084
    %v2153 = vpack.c.b16 %v2093, %v2089
    %v2154 = vpack.c.b16 %v2094, %v2090
    %v2155 = vpack.c.b16 %v2095, %v2091
    %v2156 = vpack.c.b16 %v2096, %v2092
    %v2157 = vpack.c.b16 %v2101, %v2097
    %v2158 = vpack.c.b16 %v2102, %v2098
    %v2159 = vpack.c.b16 %v2103, %v2099
    %v2160 = vpack.c.b16 %v2104, %v2100
    %v2161 = vpack.c.b16 %v2109, %v2105
    %v2162 = vpack.c.b16 %v2110, %v2106
    %v2163 = vpack.c.b16 %v2111, %v2107
    %v2164 = vpack.c.b16 %v2112, %v2108
    %v2165 = vpack.c.b16 %v2117, %v2113
    %v2166 = vpack.c.b16 %v2118, %v2114
    %v2167 = vpack.c.b16 %v2119, %v2115
    %v2168 = vpack.c.b16 %v2120, %v2116
    %v2218 = vsel %vm206, %v1975, 0
    %2220 = vmatpush.bf16.msra.mxu0 %v2149
    %2221 = vmatpush.bf16.msra.mxu0 %v2145
    %2222 = vmatpush.bf16.msra.mxu0 %v2141
    %2223 = vmatpush.bf16.msra.mxu0 %v2137
    %2224 = vmatpush.bf16.msra.mxu0 %v2133
    %2225 = vmatpush.bf16.msra.mxu0 %v2129
    %2226 = vmatpush.bf16.msra.mxu0 %v2125
    %2227 = vmatpush.bf16.msra.mxu0 %v2121
    %2228 = vmatmul.bf16.gmra.mxu0 %v1968
    %v2229 = vpop.f32.mrf.mxu0
    %v2230 = vadd.f32 0.0, %v2229
    %v2231 = vpop.f32.mrf.mxu0
    %2232 = vdwg.mxu0
    %2233 = vmatpush.bf16.msra.mxu0 0
    %2234 = vmatpush.bf16.msra.mxu0 0
    %2235 = vmatpush.bf16.msra.mxu0 0
    %2236 = vmatpush.bf16.msra.mxu0 0
    %2237 = vmatpush.bf16.msra.mxu0 %v2165
    %2238 = vmatpush.bf16.msra.mxu0 %v2161
    %2239 = vmatpush.bf16.msra.mxu0 %v2157
    %2240 = vmatpush.bf16.msra.mxu0 %v2153
    %2241 = vmatmul.bf16.gmra.mxu0 %v2218
    %v2242 = vpop.f32.mrf.mxu0
    %v2243 = vadd.f32 %v2230, %v2242
    %v2244 = vpop.f32.mrf.mxu0
    %2245 = vdwg.mxu0
    %2246 = vmatpush.bf16.msra.mxu0 %v2150
    %2247 = vmatpush.bf16.msra.mxu0 %v2146
    %2248 = vmatpush.bf16.msra.mxu0 %v2142
    %2249 = vmatpush.bf16.msra.mxu0 %v2138
    %2250 = vmatpush.bf16.msra.mxu0 %v2134
    %2251 = vmatpush.bf16.msra.mxu0 %v2130
    %2252 = vmatpush.bf16.msra.mxu0 %v2126
    %2253 = vmatpush.bf16.msra.mxu0 %v2122
    %2254 = vmatmul.bf16.gmra.mxu0 %v1968
    %v2255 = vpop.f32.mrf.mxu0
    %v2256 = vadd.f32 0.0, %v2255
    %v2257 = vpop.f32.mrf.mxu0
    %2258 = vdwg.mxu0
    %2259 = vmatpush.bf16.msra.mxu0 0
    %2260 = vmatpush.bf16.msra.mxu0 0
    %2261 = vmatpush.bf16.msra.mxu0 0
    %2262 = vmatpush.bf16.msra.mxu0 0
    %2263 = vmatpush.bf16.msra.mxu0 %v2166
    %2264 = vmatpush.bf16.msra.mxu0 %v2162
    %2265 = vmatpush.bf16.msra.mxu0 %v2158
    %2266 = vmatpush.bf16.msra.mxu0 %v2154
    %2267 = vmatmul.bf16.gmra.mxu0 %v2218
    %v2268 = vpop.f32.mrf.mxu0
    %v2269 = vadd.f32 %v2256, %v2268
    %v2270 = vpop.f32.mrf.mxu0
    %2271 = vdwg.mxu0
    %2272 = vmatpush.bf16.msra.mxu0 %v2151
    %2273 = vmatpush.bf16.msra.mxu0 %v2147
    %2274 = vmatpush.bf16.msra.mxu0 %v2143
    %2275 = vmatpush.bf16.msra.mxu0 %v2139
    %2276 = vmatpush.bf16.msra.mxu0 %v2135
    %2277 = vmatpush.bf16.msra.mxu0 %v2131
    %2278 = vmatpush.bf16.msra.mxu0 %v2127
    %2279 = vmatpush.bf16.msra.mxu0 %v2123
    %2280 = vmatmul.bf16.gmra.mxu0 %v1968
    %v2281 = vpop.f32.mrf.mxu0
    %v2282 = vadd.f32 0.0, %v2281
    %v2283 = vpop.f32.mrf.mxu0
    %2284 = vdwg.mxu0
    %2285 = vmatpush.bf16.msra.mxu0 0
    %2286 = vmatpush.bf16.msra.mxu0 0
    %2287 = vmatpush.bf16.msra.mxu0 0
    %2288 = vmatpush.bf16.msra.mxu0 0
    %2289 = vmatpush.bf16.msra.mxu0 %v2167
    %2290 = vmatpush.bf16.msra.mxu0 %v2163
    %2291 = vmatpush.bf16.msra.mxu0 %v2159
    %2292 = vmatpush.bf16.msra.mxu0 %v2155
    %2293 = vmatmul.bf16.gmra.mxu0 %v2218
    %v2294 = vpop.f32.mrf.mxu0
    %v2295 = vadd.f32 %v2282, %v2294
    %v2296 = vpop.f32.mrf.mxu0
    %2297 = vdwg.mxu0
    %2298 = vmatpush.bf16.msra.mxu0 %v2152
    %2299 = vmatpush.bf16.msra.mxu0 %v2148
    %2300 = vmatpush.bf16.msra.mxu0 %v2144
    %2301 = vmatpush.bf16.msra.mxu0 %v2140
    %2302 = vmatpush.bf16.msra.mxu0 %v2136
    %2303 = vmatpush.bf16.msra.mxu0 %v2132
    %2304 = vmatpush.bf16.msra.mxu0 %v2128
    %2305 = vmatpush.bf16.msra.mxu0 %v2124
    %2306 = vmatmul.bf16.gmra.mxu0 %v1968
    %v2307 = vpop.f32.mrf.mxu0
    %v2308 = vadd.f32 0.0, %v2307
    %v2309 = vpop.f32.mrf.mxu0
    %2310 = vdwg.mxu0
    %2311 = vmatpush.bf16.msra.mxu0 0
    %2312 = vmatpush.bf16.msra.mxu0 0
    %2313 = vmatpush.bf16.msra.mxu0 0
    %2314 = vmatpush.bf16.msra.mxu0 0
    %2315 = vmatpush.bf16.msra.mxu0 %v2168
    %2316 = vmatpush.bf16.msra.mxu0 %v2164
    %2317 = vmatpush.bf16.msra.mxu0 %v2160
    %2318 = vmatpush.bf16.msra.mxu0 %v2156
    %2319 = vmatmul.bf16.gmra.mxu0 %v2218
    %v2320 = vpop.f32.mrf.mxu0
    %v2321 = vadd.f32 %v2308, %v2320
    %v2322 = vpop.f32.mrf.mxu0
    %2323 = vdwg.mxu0
    %v2372 = vunpack.c.l.b16 %v1861
    %v2373 = vunpack.c.h.b16 %v1861
    %v2374 = vunpack.c.l.b16 %v1862
    %v2375 = vunpack.c.h.b16 %v1862
    %v2376 = vunpack.c.l.b16 %v1863
    %v2377 = vunpack.c.h.b16 %v1863
    %v2378 = vunpack.c.l.b16 %v1864
    %v2379 = vunpack.c.h.b16 %v1864
    %v2380 = vunpack.c.l.b16 %v1865
    %v2381 = vunpack.c.h.b16 %v1865
    %v2382 = vunpack.c.l.b16 %v1866
    %v2383 = vunpack.c.h.b16 %v1866
    %v2384 = vunpack.c.l.b16 %v1867
    %v2385 = vunpack.c.h.b16 %v1867
    %v2386 = vunpack.c.l.b16 %v1868
    %v2387 = vunpack.c.h.b16 %v1868
    %v2388 = vunpack.c.l.b16 %v1869
    %v2389 = vunpack.c.h.b16 %v1869
    %v2390 = vunpack.c.l.b16 %v1870
    %v2391 = vunpack.c.h.b16 %v1870
    %v2392 = vunpack.c.l.b16 %v1871
    %v2393 = vunpack.c.h.b16 %v1871
    %v2394 = vunpack.c.l.b16 %v1872
    %v2395 = vunpack.c.h.b16 %v1872
    %v2396 = vunpack.c.l.b16 %v1873
    %v2397 = vunpack.c.h.b16 %v1873
    %v2398 = vunpack.c.l.b16 %v1874
    %v2399 = vunpack.c.h.b16 %v1874
    %v2400 = vunpack.c.l.b16 %v1875
    %v2401 = vunpack.c.h.b16 %v1875
    %v2402 = vunpack.c.l.b16 %v1876
    %v2403 = vunpack.c.h.b16 %v1876
    %v2404 = vunpack.c.l.b16 %v1877
    %v2405 = vunpack.c.h.b16 %v1877
    %v2406 = vunpack.c.l.b16 %v1878
    %v2407 = vunpack.c.h.b16 %v1878
    %v2408 = vunpack.c.l.b16 %v1879
    %v2409 = vunpack.c.h.b16 %v1879
    %v2410 = vunpack.c.l.b16 %v1880
    %v2411 = vunpack.c.h.b16 %v1880
    %v2412 = vunpack.c.l.b16 %v1881
    %v2413 = vunpack.c.h.b16 %v1881
    %v2414 = vunpack.c.l.b16 %v1882
    %v2415 = vunpack.c.h.b16 %v1882
    %v2416 = vunpack.c.l.b16 %v1883
    %v2417 = vunpack.c.h.b16 %v1883
    %v2418 = vunpack.c.l.b16 %v1884
    %v2419 = vunpack.c.h.b16 %v1884
    %v2420 = vunpack.c.l.b16 %v1885
    %v2421 = vunpack.c.h.b16 %v1885
    %v2422 = vunpack.c.l.b16 %v1886
    %v2423 = vunpack.c.h.b16 %v1886
    %v2424 = vunpack.c.l.b16 %v1887
    %v2425 = vunpack.c.h.b16 %v1887
    %v2426 = vunpack.c.l.b16 %v1888
    %v2427 = vunpack.c.h.b16 %v1888
    %v2428 = vunpack.c.l.b16 %v1889
    %v2429 = vunpack.c.h.b16 %v1889
    %v2430 = vunpack.c.l.b16 %v1890
    %v2431 = vunpack.c.h.b16 %v1890
    %v2432 = vunpack.c.l.b16 %v1891
    %v2433 = vunpack.c.h.b16 %v1891
    %v2434 = vunpack.c.l.b16 %v1892
    %v2435 = vunpack.c.h.b16 %v1892
    %v2436 = vunpack.c.l.b16 %v1893
    %v2437 = vunpack.c.h.b16 %v1893
    %v2438 = vunpack.c.l.b16 %v1894
    %v2439 = vunpack.c.h.b16 %v1894
    %v2440 = vunpack.c.l.b16 %v1895
    %v2441 = vunpack.c.h.b16 %v1895
    %v2442 = vunpack.c.l.b16 %v1896
    %v2443 = vunpack.c.h.b16 %v1896
    %v2444 = vunpack.c.l.b16 %v1897
    %v2445 = vunpack.c.h.b16 %v1897
    %v2446 = vunpack.c.l.b16 %v1898
    %v2447 = vunpack.c.h.b16 %v1898
    %v2448 = vunpack.c.l.b16 %v1899
    %v2449 = vunpack.c.h.b16 %v1899
    %v2450 = vunpack.c.l.b16 %v1900
    %v2451 = vunpack.c.h.b16 %v1900
    %v2452 = vunpack.c.l.b16 %v1901
    %v2453 = vunpack.c.h.b16 %v1901
    %v2454 = vunpack.c.l.b16 %v1902
    %v2455 = vunpack.c.h.b16 %v1902
    %v2456 = vunpack.c.l.b16 %v1903
    %v2457 = vunpack.c.h.b16 %v1903
    %v2458 = vunpack.c.l.b16 %v1904
    %v2459 = vunpack.c.h.b16 %v1904
    %v2460 = vunpack.c.l.b16 %v1905
    %v2461 = vunpack.c.h.b16 %v1905
    %v2462 = vunpack.c.l.b16 %v1906
    %v2463 = vunpack.c.h.b16 %v1906
    %v2464 = vunpack.c.l.b16 %v1907
    %v2465 = vunpack.c.h.b16 %v1907
    %v2466 = vunpack.c.l.b16 %v1908
    %v2467 = vunpack.c.h.b16 %v1908
    %v2468 = vpack.c.b16 %v2376, %v2372
    %v2469 = vpack.c.b16 %v2377, %v2373
    %v2470 = vpack.c.b16 %v2378, %v2374
    %v2471 = vpack.c.b16 %v2379, %v2375
    %v2472 = vpack.c.b16 %v2384, %v2380
    %v2473 = vpack.c.b16 %v2385, %v2381
    %v2474 = vpack.c.b16 %v2386, %v2382
    %v2475 = vpack.c.b16 %v2387, %v2383
    %v2476 = vpack.c.b16 %v2392, %v2388
    %v2477 = vpack.c.b16 %v2393, %v2389
    %v2478 = vpack.c.b16 %v2394, %v2390
    %v2479 = vpack.c.b16 %v2395, %v2391
    %v2480 = vpack.c.b16 %v2400, %v2396
    %v2481 = vpack.c.b16 %v2401, %v2397
    %v2482 = vpack.c.b16 %v2402, %v2398
    %v2483 = vpack.c.b16 %v2403, %v2399
    %v2484 = vpack.c.b16 %v2408, %v2404
    %v2485 = vpack.c.b16 %v2409, %v2405
    %v2486 = vpack.c.b16 %v2410, %v2406
    %v2487 = vpack.c.b16 %v2411, %v2407
    %v2488 = vpack.c.b16 %v2416, %v2412
    %v2489 = vpack.c.b16 %v2417, %v2413
    %v2490 = vpack.c.b16 %v2418, %v2414
    %v2491 = vpack.c.b16 %v2419, %v2415
    %v2492 = vpack.c.b16 %v2424, %v2420
    %v2493 = vpack.c.b16 %v2425, %v2421
    %v2494 = vpack.c.b16 %v2426, %v2422
    %v2495 = vpack.c.b16 %v2427, %v2423
    %v2496 = vpack.c.b16 %v2432, %v2428
    %v2497 = vpack.c.b16 %v2433, %v2429
    %v2498 = vpack.c.b16 %v2434, %v2430
    %v2499 = vpack.c.b16 %v2435, %v2431
    %v2500 = vpack.c.b16 %v2440, %v2436
    %v2501 = vpack.c.b16 %v2441, %v2437
    %v2502 = vpack.c.b16 %v2442, %v2438
    %v2503 = vpack.c.b16 %v2443, %v2439
    %v2504 = vpack.c.b16 %v2448, %v2444
    %v2505 = vpack.c.b16 %v2449, %v2445
    %v2506 = vpack.c.b16 %v2450, %v2446
    %v2507 = vpack.c.b16 %v2451, %v2447
    %v2508 = vpack.c.b16 %v2456, %v2452
    %v2509 = vpack.c.b16 %v2457, %v2453
    %v2510 = vpack.c.b16 %v2458, %v2454
    %v2511 = vpack.c.b16 %v2459, %v2455
    %v2512 = vpack.c.b16 %v2464, %v2460
    %v2513 = vpack.c.b16 %v2465, %v2461
    %v2514 = vpack.c.b16 %v2466, %v2462
    %v2515 = vpack.c.b16 %v2467, %v2463
    %v2565 = vsel %vm206, %v1860, 0
    %2567 = vmatpush.bf16.msra.mxu0 %v2496
    %2568 = vmatpush.bf16.msra.mxu0 %v2492
    %2569 = vmatpush.bf16.msra.mxu0 %v2488
    %2570 = vmatpush.bf16.msra.mxu0 %v2484
    %2571 = vmatpush.bf16.msra.mxu0 %v2480
    %2572 = vmatpush.bf16.msra.mxu0 %v2476
    %2573 = vmatpush.bf16.msra.mxu0 %v2472
    %2574 = vmatpush.bf16.msra.mxu0 %v2468
    %2575 = vmatmul.bf16.gmra.mxu0 %v1859
    %v2576 = vpop.f32.mrf.mxu0
    %v2577 = vadd.f32 %v2243, %v2576
    %v2578 = vpop.f32.mrf.mxu0
    %2579 = vdwg.mxu0
    %2580 = vmatpush.bf16.msra.mxu0 0
    %2581 = vmatpush.bf16.msra.mxu0 0
    %2582 = vmatpush.bf16.msra.mxu0 0
    %2583 = vmatpush.bf16.msra.mxu0 0
    %2584 = vmatpush.bf16.msra.mxu0 %v2512
    %2585 = vmatpush.bf16.msra.mxu0 %v2508
    %2586 = vmatpush.bf16.msra.mxu0 %v2504
    %2587 = vmatpush.bf16.msra.mxu0 %v2500
    %2588 = vmatmul.bf16.gmra.mxu0 %v2565
    %v2589 = vpop.f32.mrf.mxu0
    %v2590 = vadd.f32 %v2577, %v2589
    %v2591 = vpop.f32.mrf.mxu0
    %2592 = vdwg.mxu0
    %2593 = vmatpush.bf16.msra.mxu0 %v2497
    %2594 = vmatpush.bf16.msra.mxu0 %v2493
    %2595 = vmatpush.bf16.msra.mxu0 %v2489
    %2596 = vmatpush.bf16.msra.mxu0 %v2485
    %2597 = vmatpush.bf16.msra.mxu0 %v2481
    %2598 = vmatpush.bf16.msra.mxu0 %v2477
    %2599 = vmatpush.bf16.msra.mxu0 %v2473
    %2600 = vmatpush.bf16.msra.mxu0 %v2469
    %2601 = vmatmul.bf16.gmra.mxu0 %v1859
    %v2602 = vpop.f32.mrf.mxu0
    %v2603 = vadd.f32 %v2269, %v2602
    %v2604 = vpop.f32.mrf.mxu0
    %2605 = vdwg.mxu0
    %2606 = vmatpush.bf16.msra.mxu0 0
    %2607 = vmatpush.bf16.msra.mxu0 0
    %2608 = vmatpush.bf16.msra.mxu0 0
    %2609 = vmatpush.bf16.msra.mxu0 0
    %2610 = vmatpush.bf16.msra.mxu0 %v2513
    %2611 = vmatpush.bf16.msra.mxu0 %v2509
    %2612 = vmatpush.bf16.msra.mxu0 %v2505
    %2613 = vmatpush.bf16.msra.mxu0 %v2501
    %2614 = vmatmul.bf16.gmra.mxu0 %v2565
    %v2615 = vpop.f32.mrf.mxu0
    %v2616 = vadd.f32 %v2603, %v2615
    %v2617 = vpop.f32.mrf.mxu0
    %2618 = vdwg.mxu0
    %2619 = vmatpush.bf16.msra.mxu0 %v2498
    %2620 = vmatpush.bf16.msra.mxu0 %v2494
    %2621 = vmatpush.bf16.msra.mxu0 %v2490
    %2622 = vmatpush.bf16.msra.mxu0 %v2486
    %2623 = vmatpush.bf16.msra.mxu0 %v2482
    %2624 = vmatpush.bf16.msra.mxu0 %v2478
    %2625 = vmatpush.bf16.msra.mxu0 %v2474
    %2626 = vmatpush.bf16.msra.mxu0 %v2470
    %2627 = vmatmul.bf16.gmra.mxu0 %v1859
    %v2628 = vpop.f32.mrf.mxu0
    %v2629 = vadd.f32 %v2295, %v2628
    %v2630 = vpop.f32.mrf.mxu0
    %2631 = vdwg.mxu0
    %2632 = vmatpush.bf16.msra.mxu0 0
    %2633 = vmatpush.bf16.msra.mxu0 0
    %2634 = vmatpush.bf16.msra.mxu0 0
    %2635 = vmatpush.bf16.msra.mxu0 0
    %2636 = vmatpush.bf16.msra.mxu0 %v2514
    %2637 = vmatpush.bf16.msra.mxu0 %v2510
    %2638 = vmatpush.bf16.msra.mxu0 %v2506
    %2639 = vmatpush.bf16.msra.mxu0 %v2502
    %2640 = vmatmul.bf16.gmra.mxu0 %v2565
    %v2641 = vpop.f32.mrf.mxu0
    %v2642 = vadd.f32 %v2629, %v2641
    %v2643 = vpop.f32.mrf.mxu0
    %2644 = vdwg.mxu0
    %2645 = vmatpush.bf16.msra.mxu0 %v2499
    %2646 = vmatpush.bf16.msra.mxu0 %v2495
    %2647 = vmatpush.bf16.msra.mxu0 %v2491
    %2648 = vmatpush.bf16.msra.mxu0 %v2487
    %2649 = vmatpush.bf16.msra.mxu0 %v2483
    %2650 = vmatpush.bf16.msra.mxu0 %v2479
    %2651 = vmatpush.bf16.msra.mxu0 %v2475
    %2652 = vmatpush.bf16.msra.mxu0 %v2471
    %2653 = vmatmul.bf16.gmra.mxu0 %v1859
    %v2654 = vpop.f32.mrf.mxu0
    %v2655 = vadd.f32 %v2321, %v2654
    %v2656 = vpop.f32.mrf.mxu0
    %2657 = vdwg.mxu0
    %2658 = vmatpush.bf16.msra.mxu0 0
    %2659 = vmatpush.bf16.msra.mxu0 0
    %2660 = vmatpush.bf16.msra.mxu0 0
    %2661 = vmatpush.bf16.msra.mxu0 0
    %2662 = vmatpush.bf16.msra.mxu0 %v2515
    %2663 = vmatpush.bf16.msra.mxu0 %v2511
    %2664 = vmatpush.bf16.msra.mxu0 %v2507
    %2665 = vmatpush.bf16.msra.mxu0 %v2503
    %2666 = vmatmul.bf16.gmra.mxu0 %v2565
    %v2667 = vpop.f32.mrf.mxu0
    %v2668 = vadd.f32 %v2655, %v2667
    %v2669 = vpop.f32.mrf.mxu0
    %2670 = vdwg.mxu0
    %v2671 = vld [vmem:[#allocation3] sm:$0x3c]
    %v2672 = vld [vmem:[#allocation3 + $0x8] sm:$0x3c]
    %v2673 = vpack.c.bf16 %v2671, %v2671
    %v2674 = vpack.c.bf16 %v2672, %v2672
    %s2675 = scalar_lea.vmem [#allocation4], 768
    %v2676 = vld [vmem:[%s2675] sm:$0xff]
    %v2677 = vld [vmem:[%s2675 + $0x8] sm:$0xff]
    %v2678 = vld [vmem:[%s2675 + $0x10] sm:$0xff]
    %v2679 = vld [vmem:[%s2675 + $0x18] sm:$0xff]
    %v2680 = vld [vmem:[%s2675 + $0x20] sm:$0xff]
    %v2681 = vld [vmem:[%s2675 + $0x28] sm:$0xff]
    %v2682 = vld [vmem:[%s2675 + $0x30] sm:$0xff]
    %v2683 = vld [vmem:[%s2675 + $0x38] sm:$0xff]
    %v2684 = vld [vmem:[%s2675 + $0x40] sm:$0xff]
    %v2685 = vld [vmem:[%s2675 + $0x48] sm:$0xff]
    %v2686 = vld [vmem:[%s2675 + $0x50] sm:$0xff]
    %v2687 = vld [vmem:[%s2675 + $0x58] sm:$0xff]
    %v2688 = vld [vmem:[%s2675 + $0x60] sm:$0xff]
    %v2689 = vld [vmem:[%s2675 + $0x68] sm:$0xff]
    %v2690 = vld [vmem:[%s2675 + $0x70] sm:$0xff]
    %v2691 = vld [vmem:[%s2675 + $0x78] sm:$0xff]
    %v2692 = vld [vmem:[%s2675 + $0x80] sm:$0xff]
    %v2693 = vld [vmem:[%s2675 + $0x88] sm:$0xff]
    %v2694 = vld [vmem:[%s2675 + $0x90] sm:$0xff]
    %v2695 = vld [vmem:[%s2675 + $0x98] sm:$0xff]
    %v2696 = vld [vmem:[%s2675 + $0xa0] sm:$0xff]
    %v2697 = vld [vmem:[%s2675 + $0xa8] sm:$0xff]
    %v2698 = vld [vmem:[%s2675 + $0xb0] sm:$0xff]
    %v2699 = vld [vmem:[%s2675 + $0xb8] sm:$0xff]
    %v2700 = vld [vmem:[%s2675 + $0xc0] sm:$0xff]
    %v2701 = vld [vmem:[%s2675 + $0xc8] sm:$0xff]
    %v2702 = vld [vmem:[%s2675 + $0xd0] sm:$0xff]
    %v2703 = vld [vmem:[%s2675 + $0xd8] sm:$0xff]
    %v2704 = vld [vmem:[%s2675 + $0xe0] sm:$0xff]
    %v2705 = vld [vmem:[%s2675 + $0xe8] sm:$0xff]
    %v2706 = vld [vmem:[%s2675 + $0xf0] sm:$0xff]
    %v2707 = vld [vmem:[%s2675 + $0xf8] sm:$0xff]
    %v2708 = vld [vmem:[%s2675 + $0x100] sm:$0xff]
    %v2709 = vld [vmem:[%s2675 + $0x108] sm:$0xff]
    %v2710 = vld [vmem:[%s2675 + $0x110] sm:$0xff]
    %v2711 = vld [vmem:[%s2675 + $0x118] sm:$0xff]
    %v2712 = vld [vmem:[%s2675 + $0x120] sm:$0xff]
    %v2713 = vld [vmem:[%s2675 + $0x128] sm:$0xff]
    %v2714 = vld [vmem:[%s2675 + $0x130] sm:$0xff]
    %v2715 = vld [vmem:[%s2675 + $0x138] sm:$0xff]
    %v2716 = vld [vmem:[%s2675 + $0x140] sm:$0xff]
    %v2717 = vld [vmem:[%s2675 + $0x148] sm:$0xff]
    %v2718 = vld [vmem:[%s2675 + $0x150] sm:$0xff]
    %v2719 = vld [vmem:[%s2675 + $0x158] sm:$0xff]
    %v2720 = vld [vmem:[%s2675 + $0x160] sm:$0xff]
    %v2721 = vld [vmem:[%s2675 + $0x168] sm:$0xff]
    %v2722 = vld [vmem:[%s2675 + $0x170] sm:$0xff]
    %v2723 = vld [vmem:[%s2675 + $0x178] sm:$0xff]
    %v2726 = vrot.slane %v2673, 1
    %v2727 = vrot.slane %v2674, 1
    %v2777 = vunpack.c.l.b16 %v2676
    %v2778 = vunpack.c.h.b16 %v2676
    %v2779 = vunpack.c.l.b16 %v2677
    %v2780 = vunpack.c.h.b16 %v2677
    %v2781 = vunpack.c.l.b16 %v2678
    %v2782 = vunpack.c.h.b16 %v2678
    %v2783 = vunpack.c.l.b16 %v2679
    %v2784 = vunpack.c.h.b16 %v2679
    %v2785 = vunpack.c.l.b16 %v2680
    %v2786 = vunpack.c.h.b16 %v2680
    %v2787 = vunpack.c.l.b16 %v2681
    %v2788 = vunpack.c.h.b16 %v2681
    %v2789 = vunpack.c.l.b16 %v2682
    %v2790 = vunpack.c.h.b16 %v2682
    %v2791 = vunpack.c.l.b16 %v2683
    %v2792 = vunpack.c.h.b16 %v2683
    %v2793 = vunpack.c.l.b16 %v2684
    %v2794 = vunpack.c.h.b16 %v2684
    %v2795 = vunpack.c.l.b16 %v2685
    %v2796 = vunpack.c.h.b16 %v2685
    %v2797 = vunpack.c.l.b16 %v2686
    %v2798 = vunpack.c.h.b16 %v2686
    %v2799 = vunpack.c.l.b16 %v2687
    %v2800 = vunpack.c.h.b16 %v2687
    %v2801 = vunpack.c.l.b16 %v2688
    %v2802 = vunpack.c.h.b16 %v2688
    %v2803 = vunpack.c.l.b16 %v2689
    %v2804 = vunpack.c.h.b16 %v2689
    %v2805 = vunpack.c.l.b16 %v2690
    %v2806 = vunpack.c.h.b16 %v2690
    %v2807 = vunpack.c.l.b16 %v2691
    %v2808 = vunpack.c.h.b16 %v2691
    %v2809 = vunpack.c.l.b16 %v2692
    %v2810 = vunpack.c.h.b16 %v2692
    %v2811 = vunpack.c.l.b16 %v2693
    %v2812 = vunpack.c.h.b16 %v2693
    %v2813 = vunpack.c.l.b16 %v2694
    %v2814 = vunpack.c.h.b16 %v2694
    %v2815 = vunpack.c.l.b16 %v2695
    %v2816 = vunpack.c.h.b16 %v2695
    %v2817 = vunpack.c.l.b16 %v2696
    %v2818 = vunpack.c.h.b16 %v2696
    %v2819 = vunpack.c.l.b16 %v2697
    %v2820 = vunpack.c.h.b16 %v2697
    %v2821 = vunpack.c.l.b16 %v2698
    %v2822 = vunpack.c.h.b16 %v2698
    %v2823 = vunpack.c.l.b16 %v2699
    %v2824 = vunpack.c.h.b16 %v2699
    %v2825 = vunpack.c.l.b16 %v2700
    %v2826 = vunpack.c.h.b16 %v2700
    %v2827 = vunpack.c.l.b16 %v2701
    %v2828 = vunpack.c.h.b16 %v2701
    %v2829 = vunpack.c.l.b16 %v2702
    %v2830 = vunpack.c.h.b16 %v2702
    %v2831 = vunpack.c.l.b16 %v2703
    %v2832 = vunpack.c.h.b16 %v2703
    %v2833 = vunpack.c.l.b16 %v2704
    %v2834 = vunpack.c.h.b16 %v2704
    %v2835 = vunpack.c.l.b16 %v2705
    %v2836 = vunpack.c.h.b16 %v2705
    %v2837 = vunpack.c.l.b16 %v2706
    %v2838 = vunpack.c.h.b16 %v2706
    %v2839 = vunpack.c.l.b16 %v2707
    %v2840 = vunpack.c.h.b16 %v2707
    %v2841 = vunpack.c.l.b16 %v2708
    %v2842 = vunpack.c.h.b16 %v2708
    %v2843 = vunpack.c.l.b16 %v2709
    %v2844 = vunpack.c.h.b16 %v2709
    %v2845 = vunpack.c.l.b16 %v2710
    %v2846 = vunpack.c.h.b16 %v2710
    %v2847 = vunpack.c.l.b16 %v2711
    %v2848 = vunpack.c.h.b16 %v2711
    %v2849 = vunpack.c.l.b16 %v2712
    %v2850 = vunpack.c.h.b16 %v2712
    %v2851 = vunpack.c.l.b16 %v2713
    %v2852 = vunpack.c.h.b16 %v2713
    %v2853 = vunpack.c.l.b16 %v2714
    %v2854 = vunpack.c.h.b16 %v2714
    %v2855 = vunpack.c.l.b16 %v2715
    %v2856 = vunpack.c.h.b16 %v2715
    %v2857 = vunpack.c.l.b16 %v2716
    %v2858 = vunpack.c.h.b16 %v2716
    %v2859 = vunpack.c.l.b16 %v2717
    %v2860 = vunpack.c.h.b16 %v2717
    %v2861 = vunpack.c.l.b16 %v2718
    %v2862 = vunpack.c.h.b16 %v2718
    %v2863 = vunpack.c.l.b16 %v2719
    %v2864 = vunpack.c.h.b16 %v2719
    %v2865 = vunpack.c.l.b16 %v2720
    %v2866 = vunpack.c.h.b16 %v2720
    %v2867 = vunpack.c.l.b16 %v2721
    %v2868 = vunpack.c.h.b16 %v2721
    %v2869 = vunpack.c.l.b16 %v2722
    %v2870 = vunpack.c.h.b16 %v2722
    %v2871 = vunpack.c.l.b16 %v2723
    %v2872 = vunpack.c.h.b16 %v2723
    %v2873 = vpack.c.b16 %v2781, %v2777
    %v2874 = vpack.c.b16 %v2782, %v2778
    %v2875 = vpack.c.b16 %v2783, %v2779
    %v2876 = vpack.c.b16 %v2784, %v2780
    %v2877 = vpack.c.b16 %v2789, %v2785
    %v2878 = vpack.c.b16 %v2790, %v2786
    %v2879 = vpack.c.b16 %v2791, %v2787
    %v2880 = vpack.c.b16 %v2792, %v2788
    %v2881 = vpack.c.b16 %v2797, %v2793
    %v2882 = vpack.c.b16 %v2798, %v2794
    %v2883 = vpack.c.b16 %v2799, %v2795
    %v2884 = vpack.c.b16 %v2800, %v2796
    %v2885 = vpack.c.b16 %v2805, %v2801
    %v2886 = vpack.c.b16 %v2806, %v2802
    %v2887 = vpack.c.b16 %v2807, %v2803
    %v2888 = vpack.c.b16 %v2808, %v2804
    %v2889 = vpack.c.b16 %v2813, %v2809
    %v2890 = vpack.c.b16 %v2814, %v2810
    %v2891 = vpack.c.b16 %v2815, %v2811
    %v2892 = vpack.c.b16 %v2816, %v2812
    %v2893 = vpack.c.b16 %v2821, %v2817
    %v2894 = vpack.c.b16 %v2822, %v2818
    %v2895 = vpack.c.b16 %v2823, %v2819
    %v2896 = vpack.c.b16 %v2824, %v2820
    %v2897 = vpack.c.b16 %v2829, %v2825
    %v2898 = vpack.c.b16 %v2830, %v2826
    %v2899 = vpack.c.b16 %v2831, %v2827
    %v2900 = vpack.c.b16 %v2832, %v2828
    %v2901 = vpack.c.b16 %v2837, %v2833
    %v2902 = vpack.c.b16 %v2838, %v2834
    %v2903 = vpack.c.b16 %v2839, %v2835
    %v2904 = vpack.c.b16 %v2840, %v2836
    %v2905 = vpack.c.b16 %v2845, %v2841
    %v2906 = vpack.c.b16 %v2846, %v2842
    %v2907 = vpack.c.b16 %v2847, %v2843
    %v2908 = vpack.c.b16 %v2848, %v2844
    %v2909 = vpack.c.b16 %v2853, %v2849
    %v2910 = vpack.c.b16 %v2854, %v2850
    %v2911 = vpack.c.b16 %v2855, %v2851
    %v2912 = vpack.c.b16 %v2856, %v2852
    %v2913 = vpack.c.b16 %v2861, %v2857
    %v2914 = vpack.c.b16 %v2862, %v2858
    %v2915 = vpack.c.b16 %v2863, %v2859
    %v2916 = vpack.c.b16 %v2864, %v2860
    %v2917 = vpack.c.b16 %v2869, %v2865
    %v2918 = vpack.c.b16 %v2870, %v2866
    %v2919 = vpack.c.b16 %v2871, %v2867
    %v2920 = vpack.c.b16 %v2872, %v2868
    %v2970 = vsel %vm206, %v2727, 0
    %2972 = vmatpush.bf16.msra.mxu0 %v2901
    %2973 = vmatpush.bf16.msra.mxu0 %v2897
    %2974 = vmatpush.bf16.msra.mxu0 %v2893
    %2975 = vmatpush.bf16.msra.mxu0 %v2889
    %2976 = vmatpush.bf16.msra.mxu0 %v2885
    %2977 = vmatpush.bf16.msra.mxu0 %v2881
    %2978 = vmatpush.bf16.msra.mxu0 %v2877
    %2979 = vmatpush.bf16.msra.mxu0 %v2873
    %2980 = vmatmul.bf16.gmra.mxu0 %v2726
    %v2981 = vpop.f32.mrf.mxu0
    %v2982 = vadd.f32 0.0, %v2981
    %v2983 = vpop.f32.mrf.mxu0
    %2984 = vdwg.mxu0
    %2985 = vmatpush.bf16.msra.mxu0 0
    %2986 = vmatpush.bf16.msra.mxu0 0
    %2987 = vmatpush.bf16.msra.mxu0 0
    %2988 = vmatpush.bf16.msra.mxu0 0
    %2989 = vmatpush.bf16.msra.mxu0 %v2917
    %2990 = vmatpush.bf16.msra.mxu0 %v2913
    %2991 = vmatpush.bf16.msra.mxu0 %v2909
    %2992 = vmatpush.bf16.msra.mxu0 %v2905
    %2993 = vmatmul.bf16.gmra.mxu0 %v2970
    %v2994 = vpop.f32.mrf.mxu0
    %v2995 = vadd.f32 %v2982, %v2994
    %v2996 = vpop.f32.mrf.mxu0
    %2997 = vdwg.mxu0
    %2998 = vmatpush.bf16.msra.mxu0 %v2902
    %2999 = vmatpush.bf16.msra.mxu0 %v2898
    %3000 = vmatpush.bf16.msra.mxu0 %v2894
    %3001 = vmatpush.bf16.msra.mxu0 %v2890
    %3002 = vmatpush.bf16.msra.mxu0 %v2886
    %3003 = vmatpush.bf16.msra.mxu0 %v2882
    %3004 = vmatpush.bf16.msra.mxu0 %v2878
    %3005 = vmatpush.bf16.msra.mxu0 %v2874
    %3006 = vmatmul.bf16.gmra.mxu0 %v2726
    %v3007 = vpop.f32.mrf.mxu0
    %v3008 = vadd.f32 0.0, %v3007
    %v3009 = vpop.f32.mrf.mxu0
    %3010 = vdwg.mxu0
    %3011 = vmatpush.bf16.msra.mxu0 0
    %3012 = vmatpush.bf16.msra.mxu0 0
    %3013 = vmatpush.bf16.msra.mxu0 0
    %3014 = vmatpush.bf16.msra.mxu0 0
    %3015 = vmatpush.bf16.msra.mxu0 %v2918
    %3016 = vmatpush.bf16.msra.mxu0 %v2914
    %3017 = vmatpush.bf16.msra.mxu0 %v2910
    %3018 = vmatpush.bf16.msra.mxu0 %v2906
    %3019 = vmatmul.bf16.gmra.mxu0 %v2970
    %v3020 = vpop.f32.mrf.mxu0
    %v3021 = vadd.f32 %v3008, %v3020
    %v3022 = vpop.f32.mrf.mxu0
    %3023 = vdwg.mxu0
    %3024 = vmatpush.bf16.msra.mxu0 %v2903
    %3025 = vmatpush.bf16.msra.mxu0 %v2899
    %3026 = vmatpush.bf16.msra.mxu0 %v2895
    %3027 = vmatpush.bf16.msra.mxu0 %v2891
    %3028 = vmatpush.bf16.msra.mxu0 %v2887
    %3029 = vmatpush.bf16.msra.mxu0 %v2883
    %3030 = vmatpush.bf16.msra.mxu0 %v2879
    %3031 = vmatpush.bf16.msra.mxu0 %v2875
    %3032 = vmatmul.bf16.gmra.mxu0 %v2726
    %v3033 = vpop.f32.mrf.mxu0
    %v3034 = vadd.f32 0.0, %v3033
    %v3035 = vpop.f32.mrf.mxu0
    %3036 = vdwg.mxu0
    %3037 = vmatpush.bf16.msra.mxu0 0
    %3038 = vmatpush.bf16.msra.mxu0 0
    %3039 = vmatpush.bf16.msra.mxu0 0
    %3040 = vmatpush.bf16.msra.mxu0 0
    %3041 = vmatpush.bf16.msra.mxu0 %v2919
    %3042 = vmatpush.bf16.msra.mxu0 %v2915
    %3043 = vmatpush.bf16.msra.mxu0 %v2911
    %3044 = vmatpush.bf16.msra.mxu0 %v2907
    %3045 = vmatmul.bf16.gmra.mxu0 %v2970
    %v3046 = vpop.f32.mrf.mxu0
    %v3047 = vadd.f32 %v3034, %v3046
    %v3048 = vpop.f32.mrf.mxu0
    %3049 = vdwg.mxu0
    %3050 = vmatpush.bf16.msra.mxu0 %v2904
    %3051 = vmatpush.bf16.msra.mxu0 %v2900
    %3052 = vmatpush.bf16.msra.mxu0 %v2896
    %3053 = vmatpush.bf16.msra.mxu0 %v2892
    %3054 = vmatpush.bf16.msra.mxu0 %v2888
    %3055 = vmatpush.bf16.msra.mxu0 %v2884
    %3056 = vmatpush.bf16.msra.mxu0 %v2880
    %3057 = vmatpush.bf16.msra.mxu0 %v2876
    %3058 = vmatmul.bf16.gmra.mxu0 %v2726
    %v3059 = vpop.f32.mrf.mxu0
    %v3060 = vadd.f32 0.0, %v3059
    %v3061 = vpop.f32.mrf.mxu0
    %3062 = vdwg.mxu0
    %3063 = vmatpush.bf16.msra.mxu0 0
    %3064 = vmatpush.bf16.msra.mxu0 0
    %3065 = vmatpush.bf16.msra.mxu0 0
    %3066 = vmatpush.bf16.msra.mxu0 0
    %3067 = vmatpush.bf16.msra.mxu0 %v2920
    %3068 = vmatpush.bf16.msra.mxu0 %v2916
    %3069 = vmatpush.bf16.msra.mxu0 %v2912
    %3070 = vmatpush.bf16.msra.mxu0 %v2908
    %3071 = vmatmul.bf16.gmra.mxu0 %v2970
    %v3072 = vpop.f32.mrf.mxu0
    %v3073 = vadd.f32 %v3060, %v3072
    %v3074 = vpop.f32.mrf.mxu0
    %3075 = vdwg.mxu0
    %v3076 = vadd.f32 %v2590, %v2995
    %v3077 = vadd.f32 %v2616, %v3021
    %v3078 = vadd.f32 %v2642, %v3047
    %v3079 = vadd.f32 %v2668, %v3073
    %v3080 = vld [vmem:[%s12] sm:$0xf]
    %v3082 = vperm.slane %v3080, 0
    %v3083 = vperm.slane %v3080, 1
    %v3084 = vperm.slane %v3080, 2
    %v3085 = vperm.slane %v3080, 3
    %v3090 = vmul.f32 %v3076, %v3082
    %v3091 = vmul.f32 %v3077, %v3083
    %v3092 = vmul.f32 %v3078, %v3084
    %v3093 = vmul.f32 %v3079, %v3085
    %v3094 = vld [vmem:[%s15] sm:$0xf]
    %v3096 = vperm.slane %v3094, 0
    %v3097 = vperm.slane %v3094, 1
    %v3098 = vperm.slane %v3094, 2
    %v3099 = vperm.slane %v3094, 3
    %v3104 = vadd.f32 %v3090, %v3096
    %v3105 = vadd.f32 %v3091, %v3097
    %v3106 = vadd.f32 %v3092, %v3098
    %v3107 = vadd.f32 %v3093, %v3099
    %v3108 = vmax.f32 %v3104, 0.0
    %v3109 = vmax.f32 %v3105, 0.0
    %v3110 = vmax.f32 %v3106, 0.0
    %v3111 = vmax.f32 %v3107, 0.0
    %v3112 = vpack.c.bf16 %v3108, %v3108
    %v3113 = vpack.c.bf16 %v3109, %v3109
    %v3114 = vpack.c.bf16 %v3110, %v3110
    %v3115 = vpack.c.bf16 %v3111, %v3111
    %v3116 = vld [vmem:[#allocation9] sm:$0x1]
    %vm3117 = vcmask 31744
    %v3119 = vsel %vm3117, %v3116, 0
    %vm3121 = vcmask 1041408
    %v3123 = vsel %vm3121, %v3112, 0
    %v3126 = vsel %vm3121, %v3113, 0
    %v3129 = vsel %vm3121, %v3114, 0
    %v3132 = vsel %vm3121, %v3115, 0
    %3134 = vmatpush.bf16.msra.mxu0 0
    %3135 = vmatpush.bf16.msra.mxu0 0
    %3136 = vmatpush.bf16.msra.mxu0 0
    %3137 = vmatpush.bf16.msra.mxu0 0
    %3138 = vmatpush.bf16.msra.mxu0 0
    %3139 = vmatpush.bf16.msra.mxu0 0
    %3140 = vmatpush.bf16.msra.mxu0 0
    %3141 = vmatpush.bf16.msra.mxu0 %v3123
    %3142 = vmatmul.bf16.gmra.mxu0 %v3119
    %v3143 = vpop.f32.mrf.mxu0
    %v3144 = vadd.f32 0.0, %v3143
    %v3145 = vpop.f32.mrf.mxu0
    %3146 = vdwg.mxu0
    %3147 = vmatpush.bf16.msra.mxu0 0
    %3148 = vmatpush.bf16.msra.mxu0 0
    %3149 = vmatpush.bf16.msra.mxu0 0
    %3150 = vmatpush.bf16.msra.mxu0 0
    %3151 = vmatpush.bf16.msra.mxu0 0
    %3152 = vmatpush.bf16.msra.mxu0 0
    %3153 = vmatpush.bf16.msra.mxu0 0
    %3154 = vmatpush.bf16.msra.mxu0 %v3126
    %3155 = vmatmul.bf16.gmra.mxu0 %v3119
    %v3156 = vpop.f32.mrf.mxu0
    %v3157 = vadd.f32 0.0, %v3156
    %v3158 = vpop.f32.mrf.mxu0
    %3159 = vdwg.mxu0
    %3160 = vmatpush.bf16.msra.mxu0 0
    %3161 = vmatpush.bf16.msra.mxu0 0
    %3162 = vmatpush.bf16.msra.mxu0 0
    %3163 = vmatpush.bf16.msra.mxu0 0
    %3164 = vmatpush.bf16.msra.mxu0 0
    %3165 = vmatpush.bf16.msra.mxu0 0
    %3166 = vmatpush.bf16.msra.mxu0 0
    %3167 = vmatpush.bf16.msra.mxu0 %v3129
    %3168 = vmatmul.bf16.gmra.mxu0 %v3119
    %v3169 = vpop.f32.mrf.mxu0
    %v3170 = vadd.f32 0.0, %v3169
    %v3171 = vpop.f32.mrf.mxu0
    %3172 = vdwg.mxu0
    %3173 = vmatpush.bf16.msra.mxu0 0
    %3174 = vmatpush.bf16.msra.mxu0 0
    %3175 = vmatpush.bf16.msra.mxu0 0
    %3176 = vmatpush.bf16.msra.mxu0 0
    %3177 = vmatpush.bf16.msra.mxu0 0
    %3178 = vmatpush.bf16.msra.mxu0 0
    %3179 = vmatpush.bf16.msra.mxu0 0
    %3180 = vmatpush.bf16.msra.mxu0 %v3132
    %3181 = vmatmul.bf16.gmra.mxu0 %v3119
    %v3182 = vpop.f32.mrf.mxu0
    %v3183 = vadd.f32 0.0, %v3182
    %v3184 = vpop.f32.mrf.mxu0
    %3185 = vdwg.mxu0
    %s3186 = scalar_lea.vmem [#allocation9], 1
    %v3187 = vld [vmem:[%s3186] sm:$0x1]
    %v3189 = vsel %vm3117, %v3187, 0
    %3191 = vmatpush.bf16.msra.mxu0 0
    %3192 = vmatpush.bf16.msra.mxu0 0
    %3193 = vmatpush.bf16.msra.mxu0 0
    %3194 = vmatpush.bf16.msra.mxu0 0
    %3195 = vmatpush.bf16.msra.mxu0 0
    %3196 = vmatpush.bf16.msra.mxu0 0
    %3197 = vmatpush.bf16.msra.mxu0 0
    %3198 = vmatpush.bf16.msra.mxu0 %v3123
    %3199 = vmatmul.bf16.gmra.mxu0 %v3189
    %v3200 = vpop.f32.mrf.mxu0
    %v3201 = vadd.f32 0.0, %v3200
    %v3202 = vpop.f32.mrf.mxu0
    %3203 = vdwg.mxu0
    %3204 = vmatpush.bf16.msra.mxu0 0
    %3205 = vmatpush.bf16.msra.mxu0 0
    %3206 = vmatpush.bf16.msra.mxu0 0
    %3207 = vmatpush.bf16.msra.mxu0 0
    %3208 = vmatpush.bf16.msra.mxu0 0
    %3209 = vmatpush.bf16.msra.mxu0 0
    %3210 = vmatpush.bf16.msra.mxu0 0
    %3211 = vmatpush.bf16.msra.mxu0 %v3126
    %3212 = vmatmul.bf16.gmra.mxu0 %v3189
    %v3213 = vpop.f32.mrf.mxu0
    %v3214 = vadd.f32 0.0, %v3213
    %v3215 = vpop.f32.mrf.mxu0
    %3216 = vdwg.mxu0
    %3217 = vmatpush.bf16.msra.mxu0 0
    %3218 = vmatpush.bf16.msra.mxu0 0
    %3219 = vmatpush.bf16.msra.mxu0 0
    %3220 = vmatpush.bf16.msra.mxu0 0
    %3221 = vmatpush.bf16.msra.mxu0 0
    %3222 = vmatpush.bf16.msra.mxu0 0
    %3223 = vmatpush.bf16.msra.mxu0 0
    %3224 = vmatpush.bf16.msra.mxu0 %v3129
    %3225 = vmatmul.bf16.gmra.mxu0 %v3189
    %v3226 = vpop.f32.mrf.mxu0
    %v3227 = vadd.f32 0.0, %v3226
    %v3228 = vpop.f32.mrf.mxu0
    %3229 = vdwg.mxu0
    %3230 = vmatpush.bf16.msra.mxu0 0
    %3231 = vmatpush.bf16.msra.mxu0 0
    %3232 = vmatpush.bf16.msra.mxu0 0
    %3233 = vmatpush.bf16.msra.mxu0 0
    %3234 = vmatpush.bf16.msra.mxu0 0
    %3235 = vmatpush.bf16.msra.mxu0 0
    %3236 = vmatpush.bf16.msra.mxu0 0
    %3237 = vmatpush.bf16.msra.mxu0 %v3132
    %3238 = vmatmul.bf16.gmra.mxu0 %v3189
    %v3239 = vpop.f32.mrf.mxu0
    %v3240 = vadd.f32 0.0, %v3239
    %v3241 = vpop.f32.mrf.mxu0
    %3242 = vdwg.mxu0
    %v3243 = vmax.f32 %v3144, %v3201
    %v3244 = vmax.f32 %v3157, %v3214
    %v3245 = vmax.f32 %v3170, %v3227
    %v3246 = vmax.f32 %v3183, %v3240
    %v3247 = vpack.c.bf16 %v3243, %v3243
    %v3248 = vpack.c.bf16 %v3244, %v3244
    %v3249 = vpack.c.bf16 %v3245, %v3245
    %v3250 = vpack.c.bf16 %v3246, %v3246
    %v3251 = vld [vmem:[#allocation13] sm:$0xff]
    %v3252 = vld [vmem:[#allocation13 + $0x8] sm:$0xff]
    %v3253 = vld [vmem:[#allocation13 + $0x10] sm:$0xff]
    %v3254 = vld [vmem:[#allocation13 + $0x18] sm:$0xff]
    %v3255 = vld [vmem:[#allocation13 + $0x20] sm:$0xff]
    %v3256 = vld [vmem:[#allocation13 + $0x28] sm:$0xff]
    %v3257 = vld [vmem:[#allocation13 + $0x30] sm:$0xff]
    %v3258 = vld [vmem:[#allocation13 + $0x38] sm:$0xff]
    %v3259 = vld [vmem:[#allocation13 + $0x40] sm:$0xff]
    %v3260 = vld [vmem:[#allocation13 + $0x48] sm:$0xff]
    %v3261 = vld [vmem:[#allocation13 + $0x50] sm:$0xff]
    %v3262 = vld [vmem:[#allocation13 + $0x58] sm:$0xff]
    %v3263 = vld [vmem:[#allocation13 + $0x60] sm:$0xff]
    %v3264 = vld [vmem:[#allocation13 + $0x68] sm:$0xff]
    %v3265 = vld [vmem:[#allocation13 + $0x70] sm:$0xff]
    %v3266 = vld [vmem:[#allocation13 + $0x78] sm:$0xff]
    %v3267 = vld [vmem:[#allocation13 + $0x80] sm:$0xff]
    %v3268 = vld [vmem:[#allocation13 + $0x88] sm:$0xff]
    %v3269 = vld [vmem:[#allocation13 + $0x90] sm:$0xff]
    %v3270 = vld [vmem:[#allocation13 + $0x98] sm:$0xff]
    %v3271 = vld [vmem:[#allocation13 + $0xa0] sm:$0xff]
    %v3272 = vld [vmem:[#allocation13 + $0xa8] sm:$0xff]
    %v3273 = vld [vmem:[#allocation13 + $0xb0] sm:$0xff]
    %v3274 = vld [vmem:[#allocation13 + $0xb8] sm:$0xff]
    %v3275 = vld [vmem:[#allocation13 + $0xc0] sm:$0xff]
    %v3276 = vld [vmem:[#allocation13 + $0xc8] sm:$0xff]
    %v3277 = vld [vmem:[#allocation13 + $0xd0] sm:$0xff]
    %v3278 = vld [vmem:[#allocation13 + $0xd8] sm:$0xff]
    %v3279 = vld [vmem:[#allocation13 + $0xe0] sm:$0xff]
    %v3280 = vld [vmem:[#allocation13 + $0xe8] sm:$0xff]
    %v3281 = vld [vmem:[#allocation13 + $0xf0] sm:$0xff]
    %v3282 = vld [vmem:[#allocation13 + $0xf8] sm:$0xff]
    %v3283 = vld [vmem:[#allocation13 + $0x100] sm:$0xff]
    %v3284 = vld [vmem:[#allocation13 + $0x108] sm:$0xff]
    %v3285 = vld [vmem:[#allocation13 + $0x110] sm:$0xff]
    %v3286 = vld [vmem:[#allocation13 + $0x118] sm:$0xff]
    %v3287 = vld [vmem:[#allocation13 + $0x120] sm:$0xff]
    %v3288 = vld [vmem:[#allocation13 + $0x128] sm:$0xff]
    %v3289 = vld [vmem:[#allocation13 + $0x130] sm:$0xff]
    %v3290 = vld [vmem:[#allocation13 + $0x138] sm:$0xff]
    %v3291 = vld [vmem:[#allocation13 + $0x140] sm:$0xff]
    %v3292 = vld [vmem:[#allocation13 + $0x148] sm:$0xff]
    %v3293 = vld [vmem:[#allocation13 + $0x150] sm:$0xff]
    %v3294 = vld [vmem:[#allocation13 + $0x158] sm:$0xff]
    %v3295 = vld [vmem:[#allocation13 + $0x160] sm:$0xff]
    %v3296 = vld [vmem:[#allocation13 + $0x168] sm:$0xff]
    %v3297 = vld [vmem:[#allocation13 + $0x170] sm:$0xff]
    %v3298 = vld [vmem:[#allocation13 + $0x178] sm:$0xff]
    %v3299 = vld [vmem:[#allocation13 + $0x180] sm:$0xff]
    %v3300 = vld [vmem:[#allocation13 + $0x188] sm:$0xff]
    %v3301 = vld [vmem:[#allocation13 + $0x190] sm:$0xff]
    %v3302 = vld [vmem:[#allocation13 + $0x198] sm:$0xff]
    %v3303 = vld [vmem:[#allocation13 + $0x1a0] sm:$0xff]
    %v3304 = vld [vmem:[#allocation13 + $0x1a8] sm:$0xff]
    %v3305 = vld [vmem:[#allocation13 + $0x1b0] sm:$0xff]
    %v3306 = vld [vmem:[#allocation13 + $0x1b8] sm:$0xff]
    %v3307 = vld [vmem:[#allocation13 + $0x1c0] sm:$0xff]
    %v3308 = vld [vmem:[#allocation13 + $0x1c8] sm:$0xff]
    %v3309 = vld [vmem:[#allocation13 + $0x1d0] sm:$0xff]
    %v3310 = vld [vmem:[#allocation13 + $0x1d8] sm:$0xff]
    %v3311 = vld [vmem:[#allocation13 + $0x1e0] sm:$0xff]
    %v3312 = vld [vmem:[#allocation13 + $0x1e8] sm:$0xff]
    %v3313 = vld [vmem:[#allocation13 + $0x1f0] sm:$0xff]
    %v3314 = vld [vmem:[#allocation13 + $0x1f8] sm:$0xff]
    %v3379 = vunpack.c.l.b16 %v3251
    %v3380 = vunpack.c.h.b16 %v3251
    %v3381 = vunpack.c.l.b16 %v3252
    %v3382 = vunpack.c.h.b16 %v3252
    %v3383 = vunpack.c.l.b16 %v3253
    %v3384 = vunpack.c.h.b16 %v3253
    %v3385 = vunpack.c.l.b16 %v3254
    %v3386 = vunpack.c.h.b16 %v3254
    %v3387 = vunpack.c.l.b16 %v3255
    %v3388 = vunpack.c.h.b16 %v3255
    %v3389 = vunpack.c.l.b16 %v3256
    %v3390 = vunpack.c.h.b16 %v3256
    %v3391 = vunpack.c.l.b16 %v3257
    %v3392 = vunpack.c.h.b16 %v3257
    %v3393 = vunpack.c.l.b16 %v3258
    %v3394 = vunpack.c.h.b16 %v3258
    %v3395 = vunpack.c.l.b16 %v3259
    %v3396 = vunpack.c.h.b16 %v3259
    %v3397 = vunpack.c.l.b16 %v3260
    %v3398 = vunpack.c.h.b16 %v3260
    %v3399 = vunpack.c.l.b16 %v3261
    %v3400 = vunpack.c.h.b16 %v3261
    %v3401 = vunpack.c.l.b16 %v3262
    %v3402 = vunpack.c.h.b16 %v3262
    %v3403 = vunpack.c.l.b16 %v3263
    %v3404 = vunpack.c.h.b16 %v3263
    %v3405 = vunpack.c.l.b16 %v3264
    %v3406 = vunpack.c.h.b16 %v3264
    %v3407 = vunpack.c.l.b16 %v3265
    %v3408 = vunpack.c.h.b16 %v3265
    %v3409 = vunpack.c.l.b16 %v3266
    %v3410 = vunpack.c.h.b16 %v3266
    %v3411 = vunpack.c.l.b16 %v3267
    %v3412 = vunpack.c.h.b16 %v3267
    %v3413 = vunpack.c.l.b16 %v3268
    %v3414 = vunpack.c.h.b16 %v3268
    %v3415 = vunpack.c.l.b16 %v3269
    %v3416 = vunpack.c.h.b16 %v3269
    %v3417 = vunpack.c.l.b16 %v3270
    %v3418 = vunpack.c.h.b16 %v3270
    %v3419 = vunpack.c.l.b16 %v3271
    %v3420 = vunpack.c.h.b16 %v3271
    %v3421 = vunpack.c.l.b16 %v3272
    %v3422 = vunpack.c.h.b16 %v3272
    %v3423 = vunpack.c.l.b16 %v3273
    %v3424 = vunpack.c.h.b16 %v3273
    %v3425 = vunpack.c.l.b16 %v3274
    %v3426 = vunpack.c.h.b16 %v3274
    %v3427 = vunpack.c.l.b16 %v3275
    %v3428 = vunpack.c.h.b16 %v3275
    %v3429 = vunpack.c.l.b16 %v3276
    %v3430 = vunpack.c.h.b16 %v3276
    %v3431 = vunpack.c.l.b16 %v3277
    %v3432 = vunpack.c.h.b16 %v3277
    %v3433 = vunpack.c.l.b16 %v3278
    %v3434 = vunpack.c.h.b16 %v3278
    %v3435 = vunpack.c.l.b16 %v3279
    %v3436 = vunpack.c.h.b16 %v3279
    %v3437 = vunpack.c.l.b16 %v3280
    %v3438 = vunpack.c.h.b16 %v3280
    %v3439 = vunpack.c.l.b16 %v3281
    %v3440 = vunpack.c.h.b16 %v3281
    %v3441 = vunpack.c.l.b16 %v3282
    %v3442 = vunpack.c.h.b16 %v3282
    %v3443 = vunpack.c.l.b16 %v3283
    %v3444 = vunpack.c.h.b16 %v3283
    %v3445 = vunpack.c.l.b16 %v3284
    %v3446 = vunpack.c.h.b16 %v3284
    %v3447 = vunpack.c.l.b16 %v3285
    %v3448 = vunpack.c.h.b16 %v3285
    %v3449 = vunpack.c.l.b16 %v3286
    %v3450 = vunpack.c.h.b16 %v3286
    %v3451 = vunpack.c.l.b16 %v3287
    %v3452 = vunpack.c.h.b16 %v3287
    %v3453 = vunpack.c.l.b16 %v3288
    %v3454 = vunpack.c.h.b16 %v3288
    %v3455 = vunpack.c.l.b16 %v3289
    %v3456 = vunpack.c.h.b16 %v3289
    %v3457 = vunpack.c.l.b16 %v3290
    %v3458 = vunpack.c.h.b16 %v3290
    %v3459 = vunpack.c.l.b16 %v3291
    %v3460 = vunpack.c.h.b16 %v3291
    %v3461 = vunpack.c.l.b16 %v3292
    %v3462 = vunpack.c.h.b16 %v3292
    %v3463 = vunpack.c.l.b16 %v3293
    %v3464 = vunpack.c.h.b16 %v3293
    %v3465 = vunpack.c.l.b16 %v3294
    %v3466 = vunpack.c.h.b16 %v3294
    %v3467 = vunpack.c.l.b16 %v3295
    %v3468 = vunpack.c.h.b16 %v3295
    %v3469 = vunpack.c.l.b16 %v3296
    %v3470 = vunpack.c.h.b16 %v3296
    %v3471 = vunpack.c.l.b16 %v3297
    %v3472 = vunpack.c.h.b16 %v3297
    %v3473 = vunpack.c.l.b16 %v3298
    %v3474 = vunpack.c.h.b16 %v3298
    %v3475 = vunpack.c.l.b16 %v3299
    %v3476 = vunpack.c.h.b16 %v3299
    %v3477 = vunpack.c.l.b16 %v3300
    %v3478 = vunpack.c.h.b16 %v3300
    %v3479 = vunpack.c.l.b16 %v3301
    %v3480 = vunpack.c.h.b16 %v3301
    %v3481 = vunpack.c.l.b16 %v3302
    %v3482 = vunpack.c.h.b16 %v3302
    %v3483 = vunpack.c.l.b16 %v3303
    %v3484 = vunpack.c.h.b16 %v3303
    %v3485 = vunpack.c.l.b16 %v3304
    %v3486 = vunpack.c.h.b16 %v3304
    %v3487 = vunpack.c.l.b16 %v3305
    %v3488 = vunpack.c.h.b16 %v3305
    %v3489 = vunpack.c.l.b16 %v3306
    %v3490 = vunpack.c.h.b16 %v3306
    %v3491 = vunpack.c.l.b16 %v3307
    %v3492 = vunpack.c.h.b16 %v3307
    %v3493 = vunpack.c.l.b16 %v3308
    %v3494 = vunpack.c.h.b16 %v3308
    %v3495 = vunpack.c.l.b16 %v3309
    %v3496 = vunpack.c.h.b16 %v3309
    %v3497 = vunpack.c.l.b16 %v3310
    %v3498 = vunpack.c.h.b16 %v3310
    %v3499 = vunpack.c.l.b16 %v3311
    %v3500 = vunpack.c.h.b16 %v3311
    %v3501 = vunpack.c.l.b16 %v3312
    %v3502 = vunpack.c.h.b16 %v3312
    %v3503 = vunpack.c.l.b16 %v3313
    %v3504 = vunpack.c.h.b16 %v3313
    %v3505 = vunpack.c.l.b16 %v3314
    %v3506 = vunpack.c.h.b16 %v3314
    %v3507 = vpack.c.b16 %v3381, %v3379
    %v3508 = vpack.c.b16 %v3382, %v3380
    %v3509 = vpack.c.b16 %v3385, %v3383
    %v3510 = vpack.c.b16 %v3386, %v3384
    %v3511 = vpack.c.b16 %v3389, %v3387
    %v3512 = vpack.c.b16 %v3390, %v3388
    %v3513 = vpack.c.b16 %v3393, %v3391
    %v3514 = vpack.c.b16 %v3394, %v3392
    %v3515 = vpack.c.b16 %v3397, %v3395
    %v3516 = vpack.c.b16 %v3398, %v3396
    %v3517 = vpack.c.b16 %v3401, %v3399
    %v3518 = vpack.c.b16 %v3402, %v3400
    %v3519 = vpack.c.b16 %v3405, %v3403
    %v3520 = vpack.c.b16 %v3406, %v3404
    %v3521 = vpack.c.b16 %v3409, %v3407
    %v3522 = vpack.c.b16 %v3410, %v3408
    %v3523 = vpack.c.b16 %v3413, %v3411
    %v3524 = vpack.c.b16 %v3414, %v3412
    %v3525 = vpack.c.b16 %v3417, %v3415
    %v3526 = vpack.c.b16 %v3418, %v3416
    %v3527 = vpack.c.b16 %v3421, %v3419
    %v3528 = vpack.c.b16 %v3422, %v3420
    %v3529 = vpack.c.b16 %v3425, %v3423
    %v3530 = vpack.c.b16 %v3426, %v3424
    %v3531 = vpack.c.b16 %v3429, %v3427
    %v3532 = vpack.c.b16 %v3430, %v3428
    %v3533 = vpack.c.b16 %v3433, %v3431
    %v3534 = vpack.c.b16 %v3434, %v3432
    %v3535 = vpack.c.b16 %v3437, %v3435
    %v3536 = vpack.c.b16 %v3438, %v3436
    %v3537 = vpack.c.b16 %v3441, %v3439
    %v3538 = vpack.c.b16 %v3442, %v3440
    %v3539 = vpack.c.b16 %v3445, %v3443
    %v3540 = vpack.c.b16 %v3446, %v3444
    %v3541 = vpack.c.b16 %v3449, %v3447
    %v3542 = vpack.c.b16 %v3450, %v3448
    %v3543 = vpack.c.b16 %v3453, %v3451
    %v3544 = vpack.c.b16 %v3454, %v3452
    %v3545 = vpack.c.b16 %v3457, %v3455
    %v3546 = vpack.c.b16 %v3458, %v3456
    %v3547 = vpack.c.b16 %v3461, %v3459
    %v3548 = vpack.c.b16 %v3462, %v3460
    %v3549 = vpack.c.b16 %v3465, %v3463
    %v3550 = vpack.c.b16 %v3466, %v3464
    %v3551 = vpack.c.b16 %v3469, %v3467
    %v3552 = vpack.c.b16 %v3470, %v3468
    %v3553 = vpack.c.b16 %v3473, %v3471
    %v3554 = vpack.c.b16 %v3474, %v3472
    %v3555 = vpack.c.b16 %v3477, %v3475
    %v3556 = vpack.c.b16 %v3478, %v3476
    %v3557 = vpack.c.b16 %v3481, %v3479
    %v3558 = vpack.c.b16 %v3482, %v3480
    %v3559 = vpack.c.b16 %v3485, %v3483
    %v3560 = vpack.c.b16 %v3486, %v3484
    %v3561 = vpack.c.b16 %v3489, %v3487
    %v3562 = vpack.c.b16 %v3490, %v3488
    %v3563 = vpack.c.b16 %v3493, %v3491
    %v3564 = vpack.c.b16 %v3494, %v3492
    %v3565 = vpack.c.b16 %v3497, %v3495
    %v3566 = vpack.c.b16 %v3498, %v3496
    %v3567 = vpack.c.b16 %v3501, %v3499
    %v3568 = vpack.c.b16 %v3502, %v3500
    %v3569 = vpack.c.b16 %v3505, %v3503
    %v3570 = vpack.c.b16 %v3506, %v3504
    %3635 = vmatpush.bf16.msra.mxu0 %v3521
    %3636 = vmatpush.bf16.msra.mxu0 %v3519
    %3637 = vmatpush.bf16.msra.mxu0 %v3517
    %3638 = vmatpush.bf16.msra.mxu0 %v3515
    %3639 = vmatpush.bf16.msra.mxu0 %v3513
    %3640 = vmatpush.bf16.msra.mxu0 %v3511
    %3641 = vmatpush.bf16.msra.mxu0 %v3509
    %3642 = vmatpush.bf16.msra.mxu0 %v3507
    %3643 = vmatmul.bf16.gmra.mxu0 %v3247
    %v3644 = vpop.f32.mrf.mxu0
    %v3645 = vadd.f32 0.0, %v3644
    %v3646 = vpop.f32.mrf.mxu0
    %3647 = vdwg.mxu0
    %3648 = vmatpush.bf16.msra.mxu0 %v3537
    %3649 = vmatpush.bf16.msra.mxu0 %v3535
    %3650 = vmatpush.bf16.msra.mxu0 %v3533
    %3651 = vmatpush.bf16.msra.mxu0 %v3531
    %3652 = vmatpush.bf16.msra.mxu0 %v3529
    %3653 = vmatpush.bf16.msra.mxu0 %v3527
    %3654 = vmatpush.bf16.msra.mxu0 %v3525
    %3655 = vmatpush.bf16.msra.mxu0 %v3523
    %3656 = vmatmul.bf16.gmra.mxu0 %v3248
    %v3657 = vpop.f32.mrf.mxu0
    %v3658 = vadd.f32 %v3645, %v3657
    %v3659 = vpop.f32.mrf.mxu0
    %3660 = vdwg.mxu0
    %3661 = vmatpush.bf16.msra.mxu0 %v3553
    %3662 = vmatpush.bf16.msra.mxu0 %v3551
    %3663 = vmatpush.bf16.msra.mxu0 %v3549
    %3664 = vmatpush.bf16.msra.mxu0 %v3547
    %3665 = vmatpush.bf16.msra.mxu0 %v3545
    %3666 = vmatpush.bf16.msra.mxu0 %v3543
    %3667 = vmatpush.bf16.msra.mxu0 %v3541
    %3668 = vmatpush.bf16.msra.mxu0 %v3539
    %3669 = vmatmul.bf16.gmra.mxu0 %v3249
    %v3670 = vpop.f32.mrf.mxu0
    %v3671 = vadd.f32 %v3658, %v3670
    %v3672 = vpop.f32.mrf.mxu0
    %3673 = vdwg.mxu0
    %3674 = vmatpush.bf16.msra.mxu0 %v3569
    %3675 = vmatpush.bf16.msra.mxu0 %v3567
    %3676 = vmatpush.bf16.msra.mxu0 %v3565
    %3677 = vmatpush.bf16.msra.mxu0 %v3563
    %3678 = vmatpush.bf16.msra.mxu0 %v3561
    %3679 = vmatpush.bf16.msra.mxu0 %v3559
    %3680 = vmatpush.bf16.msra.mxu0 %v3557
    %3681 = vmatpush.bf16.msra.mxu0 %v3555
    %3682 = vmatmul.bf16.gmra.mxu0 %v3250
    %v3683 = vpop.f32.mrf.mxu0
    %v3684 = vadd.f32 %v3671, %v3683
    %v3685 = vpop.f32.mrf.mxu0
    %3686 = vdwg.mxu0
    %3687 = vmatpush.bf16.msra.mxu0 %v3522
    %3688 = vmatpush.bf16.msra.mxu0 %v3520
    %3689 = vmatpush.bf16.msra.mxu0 %v3518
    %3690 = vmatpush.bf16.msra.mxu0 %v3516
    %3691 = vmatpush.bf16.msra.mxu0 %v3514
    %3692 = vmatpush.bf16.msra.mxu0 %v3512
    %3693 = vmatpush.bf16.msra.mxu0 %v3510
    %3694 = vmatpush.bf16.msra.mxu0 %v3508
    %3695 = vmatmul.bf16.gmra.mxu0 %v3247
    %v3696 = vpop.f32.mrf.mxu0
    %v3697 = vadd.f32 0.0, %v3696
    %v3698 = vpop.f32.mrf.mxu0
    %3699 = vdwg.mxu0
    %3700 = vmatpush.bf16.msra.mxu0 %v3538
    %3701 = vmatpush.bf16.msra.mxu0 %v3536
    %3702 = vmatpush.bf16.msra.mxu0 %v3534
    %3703 = vmatpush.bf16.msra.mxu0 %v3532
    %3704 = vmatpush.bf16.msra.mxu0 %v3530
    %3705 = vmatpush.bf16.msra.mxu0 %v3528
    %3706 = vmatpush.bf16.msra.mxu0 %v3526
    %3707 = vmatpush.bf16.msra.mxu0 %v3524
    %3708 = vmatmul.bf16.gmra.mxu0 %v3248
    %v3709 = vpop.f32.mrf.mxu0
    %v3710 = vadd.f32 %v3697, %v3709
    %v3711 = vpop.f32.mrf.mxu0
    %3712 = vdwg.mxu0
    %3713 = vmatpush.bf16.msra.mxu0 %v3554
    %3714 = vmatpush.bf16.msra.mxu0 %v3552
    %3715 = vmatpush.bf16.msra.mxu0 %v3550
    %3716 = vmatpush.bf16.msra.mxu0 %v3548
    %3717 = vmatpush.bf16.msra.mxu0 %v3546
    %3718 = vmatpush.bf16.msra.mxu0 %v3544
    %3719 = vmatpush.bf16.msra.mxu0 %v3542
    %3720 = vmatpush.bf16.msra.mxu0 %v3540
    %3721 = vmatmul.bf16.gmra.mxu0 %v3249
    %v3722 = vpop.f32.mrf.mxu0
    %v3723 = vadd.f32 %v3710, %v3722
    %v3724 = vpop.f32.mrf.mxu0
    %3725 = vdwg.mxu0
    %3726 = vmatpush.bf16.msra.mxu0 %v3570
    %3727 = vmatpush.bf16.msra.mxu0 %v3568
    %3728 = vmatpush.bf16.msra.mxu0 %v3566
    %3729 = vmatpush.bf16.msra.mxu0 %v3564
    %3730 = vmatpush.bf16.msra.mxu0 %v3562
    %3731 = vmatpush.bf16.msra.mxu0 %v3560
    %3732 = vmatpush.bf16.msra.mxu0 %v3558
    %3733 = vmatpush.bf16.msra.mxu0 %v3556
    %3734 = vmatmul.bf16.gmra.mxu0 %v3250
    %v3735 = vpop.f32.mrf.mxu0
    %v3736 = vadd.f32 %v3723, %v3735
    %v3737 = vpop.f32.mrf.mxu0
    %3738 = vdwg.mxu0
    %s3739 = scalar_lea.vmem [#allocation13], 512
    %v3740 = vld [vmem:[%s3739] sm:$0xff]
    %v3741 = vld [vmem:[%s3739 + $0x8] sm:$0xff]
    %v3742 = vld [vmem:[%s3739 + $0x10] sm:$0xff]
    %v3743 = vld [vmem:[%s3739 + $0x18] sm:$0xff]
    %v3744 = vld [vmem:[%s3739 + $0x20] sm:$0xff]
    %v3745 = vld [vmem:[%s3739 + $0x28] sm:$0xff]
    %v3746 = vld [vmem:[%s3739 + $0x30] sm:$0xff]
    %v3747 = vld [vmem:[%s3739 + $0x38] sm:$0xff]
    %v3748 = vld [vmem:[%s3739 + $0x40] sm:$0xff]
    %v3749 = vld [vmem:[%s3739 + $0x48] sm:$0xff]
    %v3750 = vld [vmem:[%s3739 + $0x50] sm:$0xff]
    %v3751 = vld [vmem:[%s3739 + $0x58] sm:$0xff]
    %v3752 = vld [vmem:[%s3739 + $0x60] sm:$0xff]
    %v3753 = vld [vmem:[%s3739 + $0x68] sm:$0xff]
    %v3754 = vld [vmem:[%s3739 + $0x70] sm:$0xff]
    %v3755 = vld [vmem:[%s3739 + $0x78] sm:$0xff]
    %v3756 = vld [vmem:[%s3739 + $0x80] sm:$0xff]
    %v3757 = vld [vmem:[%s3739 + $0x88] sm:$0xff]
    %v3758 = vld [vmem:[%s3739 + $0x90] sm:$0xff]
    %v3759 = vld [vmem:[%s3739 + $0x98] sm:$0xff]
    %v3760 = vld [vmem:[%s3739 + $0xa0] sm:$0xff]
    %v3761 = vld [vmem:[%s3739 + $0xa8] sm:$0xff]
    %v3762 = vld [vmem:[%s3739 + $0xb0] sm:$0xff]
    %v3763 = vld [vmem:[%s3739 + $0xb8] sm:$0xff]
    %v3764 = vld [vmem:[%s3739 + $0xc0] sm:$0xff]
    %v3765 = vld [vmem:[%s3739 + $0xc8] sm:$0xff]
    %v3766 = vld [vmem:[%s3739 + $0xd0] sm:$0xff]
    %v3767 = vld [vmem:[%s3739 + $0xd8] sm:$0xff]
    %v3768 = vld [vmem:[%s3739 + $0xe0] sm:$0xff]
    %v3769 = vld [vmem:[%s3739 + $0xe8] sm:$0xff]
    %v3770 = vld [vmem:[%s3739 + $0xf0] sm:$0xff]
    %v3771 = vld [vmem:[%s3739 + $0xf8] sm:$0xff]
    %v3772 = vld [vmem:[%s3739 + $0x100] sm:$0xff]
    %v3773 = vld [vmem:[%s3739 + $0x108] sm:$0xff]
    %v3774 = vld [vmem:[%s3739 + $0x110] sm:$0xff]
    %v3775 = vld [vmem:[%s3739 + $0x118] sm:$0xff]
    %v3776 = vld [vmem:[%s3739 + $0x120] sm:$0xff]
    %v3777 = vld [vmem:[%s3739 + $0x128] sm:$0xff]
    %v3778 = vld [vmem:[%s3739 + $0x130] sm:$0xff]
    %v3779 = vld [vmem:[%s3739 + $0x138] sm:$0xff]
    %v3780 = vld [vmem:[%s3739 + $0x140] sm:$0xff]
    %v3781 = vld [vmem:[%s3739 + $0x148] sm:$0xff]
    %v3782 = vld [vmem:[%s3739 + $0x150] sm:$0xff]
    %v3783 = vld [vmem:[%s3739 + $0x158] sm:$0xff]
    %v3784 = vld [vmem:[%s3739 + $0x160] sm:$0xff]
    %v3785 = vld [vmem:[%s3739 + $0x168] sm:$0xff]
    %v3786 = vld [vmem:[%s3739 + $0x170] sm:$0xff]
    %v3787 = vld [vmem:[%s3739 + $0x178] sm:$0xff]
    %v3788 = vld [vmem:[%s3739 + $0x180] sm:$0xff]
    %v3789 = vld [vmem:[%s3739 + $0x188] sm:$0xff]
    %v3790 = vld [vmem:[%s3739 + $0x190] sm:$0xff]
    %v3791 = vld [vmem:[%s3739 + $0x198] sm:$0xff]
    %v3792 = vld [vmem:[%s3739 + $0x1a0] sm:$0xff]
    %v3793 = vld [vmem:[%s3739 + $0x1a8] sm:$0xff]
    %v3794 = vld [vmem:[%s3739 + $0x1b0] sm:$0xff]
    %v3795 = vld [vmem:[%s3739 + $0x1b8] sm:$0xff]
    %v3796 = vld [vmem:[%s3739 + $0x1c0] sm:$0xff]
    %v3797 = vld [vmem:[%s3739 + $0x1c8] sm:$0xff]
    %v3798 = vld [vmem:[%s3739 + $0x1d0] sm:$0xff]
    %v3799 = vld [vmem:[%s3739 + $0x1d8] sm:$0xff]
    %v3800 = vld [vmem:[%s3739 + $0x1e0] sm:$0xff]
    %v3801 = vld [vmem:[%s3739 + $0x1e8] sm:$0xff]
    %v3802 = vld [vmem:[%s3739 + $0x1f0] sm:$0xff]
    %v3803 = vld [vmem:[%s3739 + $0x1f8] sm:$0xff]
    %v3868 = vunpack.c.l.b16 %v3740
    %v3869 = vunpack.c.h.b16 %v3740
    %v3870 = vunpack.c.l.b16 %v3741
    %v3871 = vunpack.c.h.b16 %v3741
    %v3872 = vunpack.c.l.b16 %v3742
    %v3873 = vunpack.c.h.b16 %v3742
    %v3874 = vunpack.c.l.b16 %v3743
    %v3875 = vunpack.c.h.b16 %v3743
    %v3876 = vunpack.c.l.b16 %v3744
    %v3877 = vunpack.c.h.b16 %v3744
    %v3878 = vunpack.c.l.b16 %v3745
    %v3879 = vunpack.c.h.b16 %v3745
    %v3880 = vunpack.c.l.b16 %v3746
    %v3881 = vunpack.c.h.b16 %v3746
    %v3882 = vunpack.c.l.b16 %v3747
    %v3883 = vunpack.c.h.b16 %v3747
    %v3884 = vunpack.c.l.b16 %v3748
    %v3885 = vunpack.c.h.b16 %v3748
    %v3886 = vunpack.c.l.b16 %v3749
    %v3887 = vunpack.c.h.b16 %v3749
    %v3888 = vunpack.c.l.b16 %v3750
    %v3889 = vunpack.c.h.b16 %v3750
    %v3890 = vunpack.c.l.b16 %v3751
    %v3891 = vunpack.c.h.b16 %v3751
    %v3892 = vunpack.c.l.b16 %v3752
    %v3893 = vunpack.c.h.b16 %v3752
    %v3894 = vunpack.c.l.b16 %v3753
    %v3895 = vunpack.c.h.b16 %v3753
    %v3896 = vunpack.c.l.b16 %v3754
    %v3897 = vunpack.c.h.b16 %v3754
    %v3898 = vunpack.c.l.b16 %v3755
    %v3899 = vunpack.c.h.b16 %v3755
    %v3900 = vunpack.c.l.b16 %v3756
    %v3901 = vunpack.c.h.b16 %v3756
    %v3902 = vunpack.c.l.b16 %v3757
    %v3903 = vunpack.c.h.b16 %v3757
    %v3904 = vunpack.c.l.b16 %v3758
    %v3905 = vunpack.c.h.b16 %v3758
    %v3906 = vunpack.c.l.b16 %v3759
    %v3907 = vunpack.c.h.b16 %v3759
    %v3908 = vunpack.c.l.b16 %v3760
    %v3909 = vunpack.c.h.b16 %v3760
    %v3910 = vunpack.c.l.b16 %v3761
    %v3911 = vunpack.c.h.b16 %v3761
    %v3912 = vunpack.c.l.b16 %v3762
    %v3913 = vunpack.c.h.b16 %v3762
    %v3914 = vunpack.c.l.b16 %v3763
    %v3915 = vunpack.c.h.b16 %v3763
    %v3916 = vunpack.c.l.b16 %v3764
    %v3917 = vunpack.c.h.b16 %v3764
    %v3918 = vunpack.c.l.b16 %v3765
    %v3919 = vunpack.c.h.b16 %v3765
    %v3920 = vunpack.c.l.b16 %v3766
    %v3921 = vunpack.c.h.b16 %v3766
    %v3922 = vunpack.c.l.b16 %v3767
    %v3923 = vunpack.c.h.b16 %v3767
    %v3924 = vunpack.c.l.b16 %v3768
    %v3925 = vunpack.c.h.b16 %v3768
    %v3926 = vunpack.c.l.b16 %v3769
    %v3927 = vunpack.c.h.b16 %v3769
    %v3928 = vunpack.c.l.b16 %v3770
    %v3929 = vunpack.c.h.b16 %v3770
    %v3930 = vunpack.c.l.b16 %v3771
    %v3931 = vunpack.c.h.b16 %v3771
    %v3932 = vunpack.c.l.b16 %v3772
    %v3933 = vunpack.c.h.b16 %v3772
    %v3934 = vunpack.c.l.b16 %v3773
    %v3935 = vunpack.c.h.b16 %v3773
    %v3936 = vunpack.c.l.b16 %v3774
    %v3937 = vunpack.c.h.b16 %v3774
    %v3938 = vunpack.c.l.b16 %v3775
    %v3939 = vunpack.c.h.b16 %v3775
    %v3940 = vunpack.c.l.b16 %v3776
    %v3941 = vunpack.c.h.b16 %v3776
    %v3942 = vunpack.c.l.b16 %v3777
    %v3943 = vunpack.c.h.b16 %v3777
    %v3944 = vunpack.c.l.b16 %v3778
    %v3945 = vunpack.c.h.b16 %v3778
    %v3946 = vunpack.c.l.b16 %v3779
    %v3947 = vunpack.c.h.b16 %v3779
    %v3948 = vunpack.c.l.b16 %v3780
    %v3949 = vunpack.c.h.b16 %v3780
    %v3950 = vunpack.c.l.b16 %v3781
    %v3951 = vunpack.c.h.b16 %v3781
    %v3952 = vunpack.c.l.b16 %v3782
    %v3953 = vunpack.c.h.b16 %v3782
    %v3954 = vunpack.c.l.b16 %v3783
    %v3955 = vunpack.c.h.b16 %v3783
    %v3956 = vunpack.c.l.b16 %v3784
    %v3957 = vunpack.c.h.b16 %v3784
    %v3958 = vunpack.c.l.b16 %v3785
    %v3959 = vunpack.c.h.b16 %v3785
    %v3960 = vunpack.c.l.b16 %v3786
    %v3961 = vunpack.c.h.b16 %v3786
    %v3962 = vunpack.c.l.b16 %v3787
    %v3963 = vunpack.c.h.b16 %v3787
    %v3964 = vunpack.c.l.b16 %v3788
    %v3965 = vunpack.c.h.b16 %v3788
    %v3966 = vunpack.c.l.b16 %v3789
    %v3967 = vunpack.c.h.b16 %v3789
    %v3968 = vunpack.c.l.b16 %v3790
    %v3969 = vunpack.c.h.b16 %v3790
    %v3970 = vunpack.c.l.b16 %v3791
    %v3971 = vunpack.c.h.b16 %v3791
    %v3972 = vunpack.c.l.b16 %v3792
    %v3973 = vunpack.c.h.b16 %v3792
    %v3974 = vunpack.c.l.b16 %v3793
    %v3975 = vunpack.c.h.b16 %v3793
    %v3976 = vunpack.c.l.b16 %v3794
    %v3977 = vunpack.c.h.b16 %v3794
    %v3978 = vunpack.c.l.b16 %v3795
    %v3979 = vunpack.c.h.b16 %v3795
    %v3980 = vunpack.c.l.b16 %v3796
    %v3981 = vunpack.c.h.b16 %v3796
    %v3982 = vunpack.c.l.b16 %v3797
    %v3983 = vunpack.c.h.b16 %v3797
    %v3984 = vunpack.c.l.b16 %v3798
    %v3985 = vunpack.c.h.b16 %v3798
    %v3986 = vunpack.c.l.b16 %v3799
    %v3987 = vunpack.c.h.b16 %v3799
    %v3988 = vunpack.c.l.b16 %v3800
    %v3989 = vunpack.c.h.b16 %v3800
    %v3990 = vunpack.c.l.b16 %v3801
    %v3991 = vunpack.c.h.b16 %v3801
    %v3992 = vunpack.c.l.b16 %v3802
    %v3993 = vunpack.c.h.b16 %v3802
    %v3994 = vunpack.c.l.b16 %v3803
    %v3995 = vunpack.c.h.b16 %v3803
    %v3996 = vpack.c.b16 %v3870, %v3868
    %v3997 = vpack.c.b16 %v3871, %v3869
    %v3998 = vpack.c.b16 %v3874, %v3872
    %v3999 = vpack.c.b16 %v3875, %v3873
    %v4000 = vpack.c.b16 %v3878, %v3876
    %v4001 = vpack.c.b16 %v3879, %v3877
    %v4002 = vpack.c.b16 %v3882, %v3880
    %v4003 = vpack.c.b16 %v3883, %v3881
    %v4004 = vpack.c.b16 %v3886, %v3884
    %v4005 = vpack.c.b16 %v3887, %v3885
    %v4006 = vpack.c.b16 %v3890, %v3888
    %v4007 = vpack.c.b16 %v3891, %v3889
    %v4008 = vpack.c.b16 %v3894, %v3892
    %v4009 = vpack.c.b16 %v3895, %v3893
    %v4010 = vpack.c.b16 %v3898, %v3896
    %v4011 = vpack.c.b16 %v3899, %v3897
    %v4012 = vpack.c.b16 %v3902, %v3900
    %v4013 = vpack.c.b16 %v3903, %v3901
    %v4014 = vpack.c.b16 %v3906, %v3904
    %v4015 = vpack.c.b16 %v3907, %v3905
    %v4016 = vpack.c.b16 %v3910, %v3908
    %v4017 = vpack.c.b16 %v3911, %v3909
    %v4018 = vpack.c.b16 %v3914, %v3912
    %v4019 = vpack.c.b16 %v3915, %v3913
    %v4020 = vpack.c.b16 %v3918, %v3916
    %v4021 = vpack.c.b16 %v3919, %v3917
    %v4022 = vpack.c.b16 %v3922, %v3920
    %v4023 = vpack.c.b16 %v3923, %v3921
    %v4024 = vpack.c.b16 %v3926, %v3924
    %v4025 = vpack.c.b16 %v3927, %v3925
    %v4026 = vpack.c.b16 %v3930, %v3928
    %v4027 = vpack.c.b16 %v3931, %v3929
    %v4028 = vpack.c.b16 %v3934, %v3932
    %v4029 = vpack.c.b16 %v3935, %v3933
    %v4030 = vpack.c.b16 %v3938, %v3936
    %v4031 = vpack.c.b16 %v3939, %v3937
    %v4032 = vpack.c.b16 %v3942, %v3940
    %v4033 = vpack.c.b16 %v3943, %v3941
    %v4034 = vpack.c.b16 %v3946, %v3944
    %v4035 = vpack.c.b16 %v3947, %v3945
    %v4036 = vpack.c.b16 %v3950, %v3948
    %v4037 = vpack.c.b16 %v3951, %v3949
    %v4038 = vpack.c.b16 %v3954, %v3952
    %v4039 = vpack.c.b16 %v3955, %v3953
    %v4040 = vpack.c.b16 %v3958, %v3956
    %v4041 = vpack.c.b16 %v3959, %v3957
    %v4042 = vpack.c.b16 %v3962, %v3960
    %v4043 = vpack.c.b16 %v3963, %v3961
    %v4044 = vpack.c.b16 %v3966, %v3964
    %v4045 = vpack.c.b16 %v3967, %v3965
    %v4046 = vpack.c.b16 %v3970, %v3968
    %v4047 = vpack.c.b16 %v3971, %v3969
    %v4048 = vpack.c.b16 %v3974, %v3972
    %v4049 = vpack.c.b16 %v3975, %v3973
    %v4050 = vpack.c.b16 %v3978, %v3976
    %v4051 = vpack.c.b16 %v3979, %v3977
    %v4052 = vpack.c.b16 %v3982, %v3980
    %v4053 = vpack.c.b16 %v3983, %v3981
    %v4054 = vpack.c.b16 %v3986, %v3984
    %v4055 = vpack.c.b16 %v3987, %v3985
    %v4056 = vpack.c.b16 %v3990, %v3988
    %v4057 = vpack.c.b16 %v3991, %v3989
    %v4058 = vpack.c.b16 %v3994, %v3992
    %v4059 = vpack.c.b16 %v3995, %v3993
    %4124 = vmatpush.bf16.msra.mxu0 %v4010
    %4125 = vmatpush.bf16.msra.mxu0 %v4008
    %4126 = vmatpush.bf16.msra.mxu0 %v4006
    %4127 = vmatpush.bf16.msra.mxu0 %v4004
    %4128 = vmatpush.bf16.msra.mxu0 %v4002
    %4129 = vmatpush.bf16.msra.mxu0 %v4000
    %4130 = vmatpush.bf16.msra.mxu0 %v3998
    %4131 = vmatpush.bf16.msra.mxu0 %v3996
    %4132 = vmatmul.bf16.gmra.mxu0 %v3247
    %v4133 = vpop.f32.mrf.mxu0
    %v4134 = vadd.f32 0.0, %v4133
    %v4135 = vpop.f32.mrf.mxu0
    %4136 = vdwg.mxu0
    %4137 = vmatpush.bf16.msra.mxu0 %v4026
    %4138 = vmatpush.bf16.msra.mxu0 %v4024
    %4139 = vmatpush.bf16.msra.mxu0 %v4022
    %4140 = vmatpush.bf16.msra.mxu0 %v4020
    %4141 = vmatpush.bf16.msra.mxu0 %v4018
    %4142 = vmatpush.bf16.msra.mxu0 %v4016
    %4143 = vmatpush.bf16.msra.mxu0 %v4014
    %4144 = vmatpush.bf16.msra.mxu0 %v4012
    %4145 = vmatmul.bf16.gmra.mxu0 %v3248
    %v4146 = vpop.f32.mrf.mxu0
    %v4147 = vadd.f32 %v4134, %v4146
    %v4148 = vpop.f32.mrf.mxu0
    %4149 = vdwg.mxu0
    %4150 = vmatpush.bf16.msra.mxu0 %v4042
    %4151 = vmatpush.bf16.msra.mxu0 %v4040
    %4152 = vmatpush.bf16.msra.mxu0 %v4038
    %4153 = vmatpush.bf16.msra.mxu0 %v4036
    %4154 = vmatpush.bf16.msra.mxu0 %v4034
    %4155 = vmatpush.bf16.msra.mxu0 %v4032
    %4156 = vmatpush.bf16.msra.mxu0 %v4030
    %4157 = vmatpush.bf16.msra.mxu0 %v4028
    %4158 = vmatmul.bf16.gmra.mxu0 %v3249
    %v4159 = vpop.f32.mrf.mxu0
    %v4160 = vadd.f32 %v4147, %v4159
    %v4161 = vpop.f32.mrf.mxu0
    %4162 = vdwg.mxu0
    %4163 = vmatpush.bf16.msra.mxu0 %v4058
    %4164 = vmatpush.bf16.msra.mxu0 %v4056
    %4165 = vmatpush.bf16.msra.mxu0 %v4054
    %4166 = vmatpush.bf16.msra.mxu0 %v4052
    %4167 = vmatpush.bf16.msra.mxu0 %v4050
    %4168 = vmatpush.bf16.msra.mxu0 %v4048
    %4169 = vmatpush.bf16.msra.mxu0 %v4046
    %4170 = vmatpush.bf16.msra.mxu0 %v4044
    %4171 = vmatmul.bf16.gmra.mxu0 %v3250
    %v4172 = vpop.f32.mrf.mxu0
    %v4173 = vadd.f32 %v4160, %v4172
    %v4174 = vpop.f32.mrf.mxu0
    %4175 = vdwg.mxu0
    %4176 = vmatpush.bf16.msra.mxu0 %v4011
    %4177 = vmatpush.bf16.msra.mxu0 %v4009
    %4178 = vmatpush.bf16.msra.mxu0 %v4007
    %4179 = vmatpush.bf16.msra.mxu0 %v4005
    %4180 = vmatpush.bf16.msra.mxu0 %v4003
    %4181 = vmatpush.bf16.msra.mxu0 %v4001
    %4182 = vmatpush.bf16.msra.mxu0 %v3999
    %4183 = vmatpush.bf16.msra.mxu0 %v3997
    %4184 = vmatmul.bf16.gmra.mxu0 %v3247
    %v4185 = vpop.f32.mrf.mxu0
    %v4186 = vadd.f32 0.0, %v4185
    %v4187 = vpop.f32.mrf.mxu0
    %4188 = vdwg.mxu0
    %4189 = vmatpush.bf16.msra.mxu0 %v4027
    %4190 = vmatpush.bf16.msra.mxu0 %v4025
    %4191 = vmatpush.bf16.msra.mxu0 %v4023
    %4192 = vmatpush.bf16.msra.mxu0 %v4021
    %4193 = vmatpush.bf16.msra.mxu0 %v4019
    %4194 = vmatpush.bf16.msra.mxu0 %v4017
    %4195 = vmatpush.bf16.msra.mxu0 %v4015
    %4196 = vmatpush.bf16.msra.mxu0 %v4013
    %4197 = vmatmul.bf16.gmra.mxu0 %v3248
    %v4198 = vpop.f32.mrf.mxu0
    %v4199 = vadd.f32 %v4186, %v4198
    %v4200 = vpop.f32.mrf.mxu0
    %4201 = vdwg.mxu0
    %4202 = vmatpush.bf16.msra.mxu0 %v4043
    %4203 = vmatpush.bf16.msra.mxu0 %v4041
    %4204 = vmatpush.bf16.msra.mxu0 %v4039
    %4205 = vmatpush.bf16.msra.mxu0 %v4037
    %4206 = vmatpush.bf16.msra.mxu0 %v4035
    %4207 = vmatpush.bf16.msra.mxu0 %v4033
    %4208 = vmatpush.bf16.msra.mxu0 %v4031
    %4209 = vmatpush.bf16.msra.mxu0 %v4029
    %4210 = vmatmul.bf16.gmra.mxu0 %v3249
    %v4211 = vpop.f32.mrf.mxu0
    %v4212 = vadd.f32 %v4199, %v4211
    %v4213 = vpop.f32.mrf.mxu0
    %4214 = vdwg.mxu0
    %4215 = vmatpush.bf16.msra.mxu0 %v4059
    %4216 = vmatpush.bf16.msra.mxu0 %v4057
    %4217 = vmatpush.bf16.msra.mxu0 %v4055
    %4218 = vmatpush.bf16.msra.mxu0 %v4053
    %4219 = vmatpush.bf16.msra.mxu0 %v4051
    %4220 = vmatpush.bf16.msra.mxu0 %v4049
    %4221 = vmatpush.bf16.msra.mxu0 %v4047
    %4222 = vmatpush.bf16.msra.mxu0 %v4045
    %4223 = vmatmul.bf16.gmra.mxu0 %v3250
    %v4224 = vpop.f32.mrf.mxu0
    %v4225 = vadd.f32 %v4212, %v4224
    %v4226 = vpop.f32.mrf.mxu0
    %4227 = vdwg.mxu0
    %v4228 = vmax.f32 %v3684, %v4173
    %v4229 = vmax.f32 %v3736, %v4225
    %v4230 = vld [vmem:[%s17] sm:$0x1]
    %v4231 = vpack.c.bf16 %v4228, %v4228
    %v4232 = vpack.c.bf16 %v4229, %v4229
    %v4233 = vld [vmem:[#allocation18] sm:$0xf]
    %v4234 = vld [vmem:[#allocation18 + $0x4] sm:$0xf]
    %v4235 = vld [vmem:[#allocation18 + $0x8] sm:$0xf]
    %v4236 = vld [vmem:[#allocation18 + $0xc] sm:$0xf]
    %v4237 = vld [vmem:[#allocation18 + $0x10] sm:$0xf]
    %v4238 = vld [vmem:[#allocation18 + $0x14] sm:$0xf]
    %v4239 = vld [vmem:[#allocation18 + $0x18] sm:$0xf]
    %v4240 = vld [vmem:[#allocation18 + $0x1c] sm:$0xf]
    %v4241 = vld [vmem:[#allocation18 + $0x20] sm:$0xf]
    %v4242 = vld [vmem:[#allocation18 + $0x24] sm:$0xf]
    %v4243 = vld [vmem:[#allocation18 + $0x28] sm:$0xf]
    %v4244 = vld [vmem:[#allocation18 + $0x2c] sm:$0xf]
    %v4245 = vld [vmem:[#allocation18 + $0x30] sm:$0xf]
    %v4246 = vld [vmem:[#allocation18 + $0x34] sm:$0xf]
    %v4247 = vld [vmem:[#allocation18 + $0x38] sm:$0xf]
    %v4248 = vld [vmem:[#allocation18 + $0x3c] sm:$0xf]
    %v4249 = vld [vmem:[#allocation18 + $0x40] sm:$0xf]
    %v4250 = vld [vmem:[#allocation18 + $0x44] sm:$0xf]
    %v4251 = vld [vmem:[#allocation18 + $0x48] sm:$0xf]
    %v4252 = vld [vmem:[#allocation18 + $0x4c] sm:$0xf]
    %v4253 = vld [vmem:[#allocation18 + $0x50] sm:$0xf]
    %v4254 = vld [vmem:[#allocation18 + $0x54] sm:$0xf]
    %v4255 = vld [vmem:[#allocation18 + $0x58] sm:$0xf]
    %v4256 = vld [vmem:[#allocation18 + $0x5c] sm:$0xf]
    %v4257 = vld [vmem:[#allocation18 + $0x60] sm:$0xf]
    %v4258 = vld [vmem:[#allocation18 + $0x64] sm:$0xf]
    %v4259 = vld [vmem:[#allocation18 + $0x68] sm:$0xf]
    %v4260 = vld [vmem:[#allocation18 + $0x6c] sm:$0xf]
    %v4261 = vld [vmem:[#allocation18 + $0x70] sm:$0xf]
    %v4262 = vld [vmem:[#allocation18 + $0x74] sm:$0xf]
    %v4263 = vld [vmem:[#allocation18 + $0x78] sm:$0xf]
    %v4264 = vld [vmem:[#allocation18 + $0x7c] sm:$0xf]
    %v4297 = vunpack.c.l.b16 %v4233
    %v4298 = vunpack.c.l.b16 %v4234
    %v4299 = vunpack.c.l.b16 %v4235
    %v4300 = vunpack.c.l.b16 %v4236
    %v4301 = vunpack.c.l.b16 %v4237
    %v4302 = vunpack.c.l.b16 %v4238
    %v4303 = vunpack.c.l.b16 %v4239
    %v4304 = vunpack.c.l.b16 %v4240
    %v4305 = vunpack.c.l.b16 %v4241
    %v4306 = vunpack.c.l.b16 %v4242
    %v4307 = vunpack.c.l.b16 %v4243
    %v4308 = vunpack.c.l.b16 %v4244
    %v4309 = vunpack.c.l.b16 %v4245
    %v4310 = vunpack.c.l.b16 %v4246
    %v4311 = vunpack.c.l.b16 %v4247
    %v4312 = vunpack.c.l.b16 %v4248
    %v4313 = vunpack.c.l.b16 %v4249
    %v4314 = vunpack.c.l.b16 %v4250
    %v4315 = vunpack.c.l.b16 %v4251
    %v4316 = vunpack.c.l.b16 %v4252
    %v4317 = vunpack.c.l.b16 %v4253
    %v4318 = vunpack.c.l.b16 %v4254
    %v4319 = vunpack.c.l.b16 %v4255
    %v4320 = vunpack.c.l.b16 %v4256
    %v4321 = vunpack.c.l.b16 %v4257
    %v4322 = vunpack.c.l.b16 %v4258
    %v4323 = vunpack.c.l.b16 %v4259
    %v4324 = vunpack.c.l.b16 %v4260
    %v4325 = vunpack.c.l.b16 %v4261
    %v4326 = vunpack.c.l.b16 %v4262
    %v4327 = vunpack.c.l.b16 %v4263
    %v4328 = vunpack.c.l.b16 %v4264
    %v4329 = vpack.c.b16 %v4298, %v4297
    %v4330 = vpack.c.b16 %v4300, %v4299
    %v4331 = vpack.c.b16 %v4302, %v4301
    %v4332 = vpack.c.b16 %v4304, %v4303
    %v4333 = vpack.c.b16 %v4306, %v4305
    %v4334 = vpack.c.b16 %v4308, %v4307
    %v4335 = vpack.c.b16 %v4310, %v4309
    %v4336 = vpack.c.b16 %v4312, %v4311
    %v4337 = vpack.c.b16 %v4314, %v4313
    %v4338 = vpack.c.b16 %v4316, %v4315
    %v4339 = vpack.c.b16 %v4318, %v4317
    %v4340 = vpack.c.b16 %v4320, %v4319
    %v4341 = vpack.c.b16 %v4322, %v4321
    %v4342 = vpack.c.b16 %v4324, %v4323
    %v4343 = vpack.c.b16 %v4326, %v4325
    %v4344 = vpack.c.b16 %v4328, %v4327
    %4361 = vmatpush.bf16.msra.mxu0 %v4336
    %4362 = vmatpush.bf16.msra.mxu0 %v4335
    %4363 = vmatpush.bf16.msra.mxu0 %v4334
    %4364 = vmatpush.bf16.msra.mxu0 %v4333
    %4365 = vmatpush.bf16.msra.mxu0 %v4332
    %4366 = vmatpush.bf16.msra.mxu0 %v4331
    %4367 = vmatpush.bf16.msra.mxu0 %v4330
    %4368 = vmatpush.bf16.msra.mxu0 %v4329
    %4369 = vmatmul.bf16.gmra.mxu0 %v4231
    %v4370 = vpop.f32.mrf.mxu0
    %v4371 = vadd.f32 0.0, %v4370
    %v4372 = vpop.f32.mrf.mxu0
    %4373 = vdwg.mxu0
    %4374 = vmatpush.bf16.msra.mxu0 %v4344
    %4375 = vmatpush.bf16.msra.mxu0 %v4343
    %4376 = vmatpush.bf16.msra.mxu0 %v4342
    %4377 = vmatpush.bf16.msra.mxu0 %v4341
    %4378 = vmatpush.bf16.msra.mxu0 %v4340
    %4379 = vmatpush.bf16.msra.mxu0 %v4339
    %4380 = vmatpush.bf16.msra.mxu0 %v4338
    %4381 = vmatpush.bf16.msra.mxu0 %v4337
    %4382 = vmatmul.bf16.gmra.mxu0 %v4232
    %v4383 = vpop.f32.mrf.mxu0
    %v4384 = vadd.f32 %v4371, %v4383
    %v4385 = vpop.f32.mrf.mxu0
    %4386 = vdwg.mxu0
    %v4387 = vadd.f32 %v4230, %v4384
    %s4388 = scalar_lea.vmem [#allocation18], 128
    %v4389 = vld [vmem:[%s4388] sm:$0xf]
    %v4390 = vld [vmem:[%s4388 + $0x4] sm:$0xf]
    %v4391 = vld [vmem:[%s4388 + $0x8] sm:$0xf]
    %v4392 = vld [vmem:[%s4388 + $0xc] sm:$0xf]
    %v4393 = vld [vmem:[%s4388 + $0x10] sm:$0xf]
    %v4394 = vld [vmem:[%s4388 + $0x14] sm:$0xf]
    %v4395 = vld [vmem:[%s4388 + $0x18] sm:$0xf]
    %v4396 = vld [vmem:[%s4388 + $0x1c] sm:$0xf]
    %v4397 = vld [vmem:[%s4388 + $0x20] sm:$0xf]
    %v4398 = vld [vmem:[%s4388 + $0x24] sm:$0xf]
    %v4399 = vld [vmem:[%s4388 + $0x28] sm:$0xf]
    %v4400 = vld [vmem:[%s4388 + $0x2c] sm:$0xf]
    %v4401 = vld [vmem:[%s4388 + $0x30] sm:$0xf]
    %v4402 = vld [vmem:[%s4388 + $0x34] sm:$0xf]
    %v4403 = vld [vmem:[%s4388 + $0x38] sm:$0xf]
    %v4404 = vld [vmem:[%s4388 + $0x3c] sm:$0xf]
    %v4405 = vld [vmem:[%s4388 + $0x40] sm:$0xf]
    %v4406 = vld [vmem:[%s4388 + $0x44] sm:$0xf]
    %v4407 = vld [vmem:[%s4388 + $0x48] sm:$0xf]
    %v4408 = vld [vmem:[%s4388 + $0x4c] sm:$0xf]
    %v4409 = vld [vmem:[%s4388 + $0x50] sm:$0xf]
    %v4410 = vld [vmem:[%s4388 + $0x54] sm:$0xf]
    %v4411 = vld [vmem:[%s4388 + $0x58] sm:$0xf]
    %v4412 = vld [vmem:[%s4388 + $0x5c] sm:$0xf]
    %v4413 = vld [vmem:[%s4388 + $0x60] sm:$0xf]
    %v4414 = vld [vmem:[%s4388 + $0x64] sm:$0xf]
    %v4415 = vld [vmem:[%s4388 + $0x68] sm:$0xf]
    %v4416 = vld [vmem:[%s4388 + $0x6c] sm:$0xf]
    %v4417 = vld [vmem:[%s4388 + $0x70] sm:$0xf]
    %v4418 = vld [vmem:[%s4388 + $0x74] sm:$0xf]
    %v4419 = vld [vmem:[%s4388 + $0x78] sm:$0xf]
    %v4420 = vld [vmem:[%s4388 + $0x7c] sm:$0xf]
    %v4422 = vshrl.u32 %v4231, 16
    %v4425 = vshrl.u32 %v4232, 16
    %v4461 = vunpack.c.l.b16 %v4389
    %v4462 = vunpack.c.l.b16 %v4390
    %v4463 = vunpack.c.l.b16 %v4391
    %v4464 = vunpack.c.l.b16 %v4392
    %v4465 = vunpack.c.l.b16 %v4393
    %v4466 = vunpack.c.l.b16 %v4394
    %v4467 = vunpack.c.l.b16 %v4395
    %v4468 = vunpack.c.l.b16 %v4396
    %v4469 = vunpack.c.l.b16 %v4397
    %v4470 = vunpack.c.l.b16 %v4398
    %v4471 = vunpack.c.l.b16 %v4399
    %v4472 = vunpack.c.l.b16 %v4400
    %v4473 = vunpack.c.l.b16 %v4401
    %v4474 = vunpack.c.l.b16 %v4402
    %v4475 = vunpack.c.l.b16 %v4403
    %v4476 = vunpack.c.l.b16 %v4404
    %v4477 = vunpack.c.l.b16 %v4405
    %v4478 = vunpack.c.l.b16 %v4406
    %v4479 = vunpack.c.l.b16 %v4407
    %v4480 = vunpack.c.l.b16 %v4408
    %v4481 = vunpack.c.l.b16 %v4409
    %v4482 = vunpack.c.l.b16 %v4410
    %v4483 = vunpack.c.l.b16 %v4411
    %v4484 = vunpack.c.l.b16 %v4412
    %v4485 = vunpack.c.l.b16 %v4413
    %v4486 = vunpack.c.l.b16 %v4414
    %v4487 = vunpack.c.l.b16 %v4415
    %v4488 = vunpack.c.l.b16 %v4416
    %v4489 = vunpack.c.l.b16 %v4417
    %v4490 = vunpack.c.l.b16 %v4418
    %v4491 = vunpack.c.l.b16 %v4419
    %v4492 = vunpack.c.l.b16 %v4420
    %v4493 = vpack.c.b16 %v4462, %v4461
    %v4494 = vpack.c.b16 %v4464, %v4463
    %v4495 = vpack.c.b16 %v4466, %v4465
    %v4496 = vpack.c.b16 %v4468, %v4467
    %v4497 = vpack.c.b16 %v4470, %v4469
    %v4498 = vpack.c.b16 %v4472, %v4471
    %v4499 = vpack.c.b16 %v4474, %v4473
    %v4500 = vpack.c.b16 %v4476, %v4475
    %v4501 = vpack.c.b16 %v4478, %v4477
    %v4502 = vpack.c.b16 %v4480, %v4479
    %v4503 = vpack.c.b16 %v4482, %v4481
    %v4504 = vpack.c.b16 %v4484, %v4483
    %v4505 = vpack.c.b16 %v4486, %v4485
    %v4506 = vpack.c.b16 %v4488, %v4487
    %v4507 = vpack.c.b16 %v4490, %v4489
    %v4508 = vpack.c.b16 %v4492, %v4491
    %4525 = vmatpush.bf16.msra.mxu0 %v4500
    %4526 = vmatpush.bf16.msra.mxu0 %v4499
    %4527 = vmatpush.bf16.msra.mxu0 %v4498
    %4528 = vmatpush.bf16.msra.mxu0 %v4497
    %4529 = vmatpush.bf16.msra.mxu0 %v4496
    %4530 = vmatpush.bf16.msra.mxu0 %v4495
    %4531 = vmatpush.bf16.msra.mxu0 %v4494
    %4532 = vmatpush.bf16.msra.mxu0 %v4493
    %4533 = vmatmul.bf16.gmra.mxu0 %v4422
    %v4534 = vpop.f32.mrf.mxu0
    %v4535 = vadd.f32 0.0, %v4534
    %v4536 = vpop.f32.mrf.mxu0
    %4537 = vdwg.mxu0
    %4538 = vmatpush.bf16.msra.mxu0 %v4508
    %4539 = vmatpush.bf16.msra.mxu0 %v4507
    %4540 = vmatpush.bf16.msra.mxu0 %v4506
    %4541 = vmatpush.bf16.msra.mxu0 %v4505
    %4542 = vmatpush.bf16.msra.mxu0 %v4504
    %4543 = vmatpush.bf16.msra.mxu0 %v4503
    %4544 = vmatpush.bf16.msra.mxu0 %v4502
    %4545 = vmatpush.bf16.msra.mxu0 %v4501
    %4546 = vmatmul.bf16.gmra.mxu0 %v4425
    %v4547 = vpop.f32.mrf.mxu0
    %v4548 = vadd.f32 %v4535, %v4547
    %v4549 = vpop.f32.mrf.mxu0
    %4550 = vdwg.mxu0
    %v4551 = vadd.f32 %v4387, %v4548
    %4552 = vst [vmem:[#allocation19] sm:$0x1] %v4551
    %v4553 = vld [vmem:[%s0 + $0x12] sm:$0xff]
    %v4554 = vld [vmem:[%s0 + $0x1a] sm:$0xff]
    %v4555 = vpack.c.bf16 %v4554, %v4553
    %v4556 = vld [vmem:[%s1] sm:$0xff]
    %v4557 = vld [vmem:[%s1 + $0x8] sm:$0xff]
    %v4558 = vld [vmem:[%s1 + $0x10] sm:$0xff]
    %v4559 = vld [vmem:[%s1 + $0x18] sm:$0xff]
    %v4560 = vld [vmem:[%s1 + $0x20] sm:$0xff]
    %v4561 = vld [vmem:[%s1 + $0x28] sm:$0xff]
    %v4562 = vld [vmem:[%s1 + $0x30] sm:$0x77]
    %v4563 = vld [vmem:[%s0 + $0x13] sm:$0xff]
    %v4564 = vld [vmem:[%s0 + $0x1b] sm:$0xff]
    %v4565 = vpack.c.bf16 %v4564, %v4563
    %v4566 = vld [vmem:[%s224] sm:$0xff]
    %v4567 = vld [vmem:[%s224 + $0x8] sm:$0xff]
    %v4568 = vld [vmem:[%s224 + $0x10] sm:$0xff]
    %v4569 = vld [vmem:[%s224 + $0x18] sm:$0xff]
    %v4570 = vld [vmem:[%s224 + $0x20] sm:$0xff]
    %v4571 = vld [vmem:[%s224 + $0x28] sm:$0xff]
    %v4572 = vld [vmem:[%s224 + $0x30] sm:$0x77]
    %v4580 = vunpack.c.l.b16 %v4566
    %v4581 = vunpack.c.h.b16 %v4566
    %v4582 = vunpack.c.l.b16 %v4567
    %v4583 = vunpack.c.h.b16 %v4567
    %v4584 = vunpack.c.l.b16 %v4568
    %v4585 = vunpack.c.h.b16 %v4568
    %v4586 = vunpack.c.l.b16 %v4569
    %v4587 = vunpack.c.h.b16 %v4569
    %v4588 = vunpack.c.l.b16 %v4570
    %v4589 = vunpack.c.h.b16 %v4570
    %v4590 = vunpack.c.l.b16 %v4571
    %v4591 = vunpack.c.h.b16 %v4571
    %v4592 = vunpack.c.l.b16 %v4572
    %v4593 = vunpack.c.h.b16 %v4572
    %v4594 = vpack.c.b16 %v4582, %v4580
    %v4595 = vpack.c.b16 %v4583, %v4581
    %v4596 = vpack.c.b16 %v4586, %v4584
    %v4597 = vpack.c.b16 %v4587, %v4585
    %v4598 = vpack.c.b16 %v4590, %v4588
    %v4599 = vpack.c.b16 %v4591, %v4589
    %v4600 = vpack.c.b16 %v4592, %v4592
    %v4601 = vpack.c.b16 %v4593, %v4593
    %v4609 = vsel %vm267, %v4565, 0
    %v4612 = vsel %vm271, %v4600, 0
    %v4615 = vsel %vm271, %v4601, 0
    %4617 = vmatpush.bf16.msra.mxu0 0
    %4618 = vmatpush.bf16.msra.mxu0 0
    %4619 = vmatpush.bf16.msra.mxu0 0
    %4620 = vmatpush.bf16.msra.mxu0 0
    %4621 = vmatpush.bf16.msra.mxu0 %v4612
    %4622 = vmatpush.bf16.msra.mxu0 %v4598
    %4623 = vmatpush.bf16.msra.mxu0 %v4596
    %4624 = vmatpush.bf16.msra.mxu0 %v4594
    %4625 = vmatmul.bf16.gmra.mxu0 %v4609
    %v4626 = vpop.f32.mrf.mxu0
    %v4627 = vadd.f32 0.0, %v4626
    %v4628 = vpop.f32.mrf.mxu0
    %v4629 = vadd.f32 0.0, %v4628
    %4630 = vdwg.mxu0
    %4631 = vmatpush.bf16.msra.mxu0 0
    %4632 = vmatpush.bf16.msra.mxu0 0
    %4633 = vmatpush.bf16.msra.mxu0 0
    %4634 = vmatpush.bf16.msra.mxu0 0
    %4635 = vmatpush.bf16.msra.mxu0 %v4615
    %4636 = vmatpush.bf16.msra.mxu0 %v4599
    %4637 = vmatpush.bf16.msra.mxu0 %v4597
    %4638 = vmatpush.bf16.msra.mxu0 %v4595
    %4639 = vmatmul.bf16.gmra.mxu0 %v4609
    %v4640 = vpop.f32.mrf.mxu0
    %v4641 = vadd.f32 0.0, %v4640
    %v4642 = vpop.f32.mrf.mxu0
    %v4643 = vadd.f32 0.0, %v4642
    %4644 = vdwg.mxu0
    %v4652 = vunpack.c.l.b16 %v4556
    %v4653 = vunpack.c.h.b16 %v4556
    %v4654 = vunpack.c.l.b16 %v4557
    %v4655 = vunpack.c.h.b16 %v4557
    %v4656 = vunpack.c.l.b16 %v4558
    %v4657 = vunpack.c.h.b16 %v4558
    %v4658 = vunpack.c.l.b16 %v4559
    %v4659 = vunpack.c.h.b16 %v4559
    %v4660 = vunpack.c.l.b16 %v4560
    %v4661 = vunpack.c.h.b16 %v4560
    %v4662 = vunpack.c.l.b16 %v4561
    %v4663 = vunpack.c.h.b16 %v4561
    %v4664 = vunpack.c.l.b16 %v4562
    %v4665 = vunpack.c.h.b16 %v4562
    %v4666 = vpack.c.b16 %v4654, %v4652
    %v4667 = vpack.c.b16 %v4655, %v4653
    %v4668 = vpack.c.b16 %v4658, %v4656
    %v4669 = vpack.c.b16 %v4659, %v4657
    %v4670 = vpack.c.b16 %v4662, %v4660
    %v4671 = vpack.c.b16 %v4663, %v4661
    %v4672 = vpack.c.b16 %v4664, %v4664
    %v4673 = vpack.c.b16 %v4665, %v4665
    %v4681 = vsel %vm267, %v4555, 0
    %v4684 = vsel %vm271, %v4672, 0
    %v4687 = vsel %vm271, %v4673, 0
    %4689 = vmatpush.bf16.msra.mxu0 0
    %4690 = vmatpush.bf16.msra.mxu0 0
    %4691 = vmatpush.bf16.msra.mxu0 0
    %4692 = vmatpush.bf16.msra.mxu0 0
    %4693 = vmatpush.bf16.msra.mxu0 %v4684
    %4694 = vmatpush.bf16.msra.mxu0 %v4670
    %4695 = vmatpush.bf16.msra.mxu0 %v4668
    %4696 = vmatpush.bf16.msra.mxu0 %v4666
    %4697 = vmatmul.bf16.gmra.mxu0 %v4681
    %v4698 = vpop.f32.mrf.mxu0
    %v4699 = vadd.f32 %v4627, %v4698
    %v4700 = vpop.f32.mrf.mxu0
    %v4701 = vadd.f32 %v4629, %v4700
    %4702 = vdwg.mxu0
    %4703 = vmatpush.bf16.msra.mxu0 0
    %4704 = vmatpush.bf16.msra.mxu0 0
    %4705 = vmatpush.bf16.msra.mxu0 0
    %4706 = vmatpush.bf16.msra.mxu0 0
    %4707 = vmatpush.bf16.msra.mxu0 %v4687
    %4708 = vmatpush.bf16.msra.mxu0 %v4671
    %4709 = vmatpush.bf16.msra.mxu0 %v4669
    %4710 = vmatpush.bf16.msra.mxu0 %v4667
    %4711 = vmatmul.bf16.gmra.mxu0 %v4681
    %v4712 = vpop.f32.mrf.mxu0
    %v4713 = vadd.f32 %v4641, %v4712
    %v4714 = vpop.f32.mrf.mxu0
    %v4715 = vadd.f32 %v4643, %v4714
    %4716 = vdwg.mxu0
    %v4717 = vld [vmem:[%s0 + $0x14] sm:$0xff]
    %v4718 = vld [vmem:[%s0 + $0x1c] sm:$0xff]
    %v4719 = vpack.c.bf16 %v4718, %v4717
    %v4720 = vld [vmem:[%s381] sm:$0xff]
    %v4721 = vld [vmem:[%s381 + $0x8] sm:$0xff]
    %v4722 = vld [vmem:[%s381 + $0x10] sm:$0xff]
    %v4723 = vld [vmem:[%s381 + $0x18] sm:$0xff]
    %v4724 = vld [vmem:[%s381 + $0x20] sm:$0xff]
    %v4725 = vld [vmem:[%s381 + $0x28] sm:$0xff]
    %v4726 = vld [vmem:[%s381 + $0x30] sm:$0x77]
    %v4734 = vunpack.c.l.b16 %v4720
    %v4735 = vunpack.c.h.b16 %v4720
    %v4736 = vunpack.c.l.b16 %v4721
    %v4737 = vunpack.c.h.b16 %v4721
    %v4738 = vunpack.c.l.b16 %v4722
    %v4739 = vunpack.c.h.b16 %v4722
    %v4740 = vunpack.c.l.b16 %v4723
    %v4741 = vunpack.c.h.b16 %v4723
    %v4742 = vunpack.c.l.b16 %v4724
    %v4743 = vunpack.c.h.b16 %v4724
    %v4744 = vunpack.c.l.b16 %v4725
    %v4745 = vunpack.c.h.b16 %v4725
    %v4746 = vunpack.c.l.b16 %v4726
    %v4747 = vunpack.c.h.b16 %v4726
    %v4748 = vpack.c.b16 %v4736, %v4734
    %v4749 = vpack.c.b16 %v4737, %v4735
    %v4750 = vpack.c.b16 %v4740, %v4738
    %v4751 = vpack.c.b16 %v4741, %v4739
    %v4752 = vpack.c.b16 %v4744, %v4742
    %v4753 = vpack.c.b16 %v4745, %v4743
    %v4754 = vpack.c.b16 %v4746, %v4746
    %v4755 = vpack.c.b16 %v4747, %v4747
    %v4763 = vsel %vm267, %v4719, 0
    %v4766 = vsel %vm271, %v4754, 0
    %v4769 = vsel %vm271, %v4755, 0
    %4771 = vmatpush.bf16.msra.mxu0 0
    %4772 = vmatpush.bf16.msra.mxu0 0
    %4773 = vmatpush.bf16.msra.mxu0 0
    %4774 = vmatpush.bf16.msra.mxu0 0
    %4775 = vmatpush.bf16.msra.mxu0 %v4766
    %4776 = vmatpush.bf16.msra.mxu0 %v4752
    %4777 = vmatpush.bf16.msra.mxu0 %v4750
    %4778 = vmatpush.bf16.msra.mxu0 %v4748
    %4779 = vmatmul.bf16.gmra.mxu0 %v4763
    %v4780 = vpop.f32.mrf.mxu0
    %v4781 = vadd.f32 0.0, %v4780
    %v4782 = vpop.f32.mrf.mxu0
    %v4783 = vadd.f32 0.0, %v4782
    %4784 = vdwg.mxu0
    %4785 = vmatpush.bf16.msra.mxu0 0
    %4786 = vmatpush.bf16.msra.mxu0 0
    %4787 = vmatpush.bf16.msra.mxu0 0
    %4788 = vmatpush.bf16.msra.mxu0 0
    %4789 = vmatpush.bf16.msra.mxu0 %v4769
    %4790 = vmatpush.bf16.msra.mxu0 %v4753
    %4791 = vmatpush.bf16.msra.mxu0 %v4751
    %4792 = vmatpush.bf16.msra.mxu0 %v4749
    %4793 = vmatmul.bf16.gmra.mxu0 %v4763
    %v4794 = vpop.f32.mrf.mxu0
    %v4795 = vadd.f32 0.0, %v4794
    %v4796 = vpop.f32.mrf.mxu0
    %v4797 = vadd.f32 0.0, %v4796
    %4798 = vdwg.mxu0
    %v4799 = vadd.f32 %v4699, %v4781
    %v4800 = vadd.f32 %v4713, %v4795
    %v4801 = vadd.f32 %v4701, %v4783
    %v4802 = vadd.f32 %v4715, %v4797
    %v4803 = vld [vmem:[#allocation15] sm:$0x3]
    %v4805 = vperm.slane %v4803, 0
    %v4806 = vperm.slane %v4803, 1
    %v4809 = vmul.f32 %v4799, %v4805
    %v4810 = vmul.f32 %v4800, %v4806
    %v4811 = vmul.f32 %v4801, %v4805
    %v4812 = vmul.f32 %v4802, %v4806
    %v4813 = vld [vmem:[%s13] sm:$0x3]
    %v4815 = vperm.slane %v4813, 0
    %v4816 = vperm.slane %v4813, 1
    %v4819 = vadd.f32 %v4809, %v4815
    %v4820 = vadd.f32 %v4810, %v4816
    %v4821 = vadd.f32 %v4811, %v4815
    %v4822 = vadd.f32 %v4812, %v4816
    %v4823 = vmax.f32 %v4819, 0.0
    %v4824 = vmax.f32 %v4820, 0.0
    %v4825 = vmax.f32 %v4821, 0.0
    %v4826 = vmax.f32 %v4822, 0.0
    %v4827 = vpack.c.bf16 %v4825, %v4823
    %v4828 = vpack.c.bf16 %v4826, %v4824
    %v4829 = vld [vmem:[%s4] sm:$0xf]
    %v4831 = vsel %vm492, %v4829, 0
    %4833 = vmatpush.bf16.msra.mxu0 0
    %4834 = vmatpush.bf16.msra.mxu0 0
    %4835 = vmatpush.bf16.msra.mxu0 0
    %4836 = vmatpush.bf16.msra.mxu0 0
    %4837 = vmatpush.bf16.msra.mxu0 0
    %4838 = vmatpush.bf16.msra.mxu0 0
    %4839 = vmatpush.bf16.msra.mxu0 0
    %4840 = vmatpush.bf16.msra.mxu0 %v4827
    %4841 = vmatmul.bf16.gmra.mxu0 %v4831
    %v4842 = vpop.f32.mrf.mxu0
    %v4843 = vadd.f32 0.0, %v4842
    %v4844 = vpop.f32.mrf.mxu0
    %4845 = vdwg.mxu0
    %4846 = vmatpush.bf16.msra.mxu0 0
    %4847 = vmatpush.bf16.msra.mxu0 0
    %4848 = vmatpush.bf16.msra.mxu0 0
    %4849 = vmatpush.bf16.msra.mxu0 0
    %4850 = vmatpush.bf16.msra.mxu0 0
    %4851 = vmatpush.bf16.msra.mxu0 0
    %4852 = vmatpush.bf16.msra.mxu0 0
    %4853 = vmatpush.bf16.msra.mxu0 %v4828
    %4854 = vmatmul.bf16.gmra.mxu0 %v4831
    %v4855 = vpop.f32.mrf.mxu0
    %v4856 = vadd.f32 0.0, %v4855
    %v4857 = vpop.f32.mrf.mxu0
    %4858 = vdwg.mxu0
    %v4859 = vld [vmem:[%s522] sm:$0xf]
    %v4861 = vsel %vm492, %v4859, 0
    %4863 = vmatpush.bf16.msra.mxu0 0
    %4864 = vmatpush.bf16.msra.mxu0 0
    %4865 = vmatpush.bf16.msra.mxu0 0
    %4866 = vmatpush.bf16.msra.mxu0 0
    %4867 = vmatpush.bf16.msra.mxu0 0
    %4868 = vmatpush.bf16.msra.mxu0 0
    %4869 = vmatpush.bf16.msra.mxu0 0
    %4870 = vmatpush.bf16.msra.mxu0 %v4827
    %4871 = vmatmul.bf16.gmra.mxu0 %v4861
    %v4872 = vpop.f32.mrf.mxu0
    %v4873 = vadd.f32 0.0, %v4872
    %v4874 = vpop.f32.mrf.mxu0
    %4875 = vdwg.mxu0
    %4876 = vmatpush.bf16.msra.mxu0 0
    %4877 = vmatpush.bf16.msra.mxu0 0
    %4878 = vmatpush.bf16.msra.mxu0 0
    %4879 = vmatpush.bf16.msra.mxu0 0
    %4880 = vmatpush.bf16.msra.mxu0 0
    %4881 = vmatpush.bf16.msra.mxu0 0
    %4882 = vmatpush.bf16.msra.mxu0 0
    %4883 = vmatpush.bf16.msra.mxu0 %v4828
    %4884 = vmatmul.bf16.gmra.mxu0 %v4861
    %v4885 = vpop.f32.mrf.mxu0
    %v4886 = vadd.f32 0.0, %v4885
    %v4887 = vpop.f32.mrf.mxu0
    %4888 = vdwg.mxu0
    %v4889 = vmax.f32 %v4843, %v4873
    %v4890 = vmax.f32 %v4856, %v4886
    %v4891 = vpack.c.bf16 %v4889, %v4889
    %v4892 = vpack.c.bf16 %v4890, %v4890
    %v4893 = vld [vmem:[#allocation10] sm:$0xf]
    %v4894 = vld [vmem:[#allocation10 + $0x4] sm:$0xf]
    %v4895 = vld [vmem:[#allocation10 + $0x8] sm:$0xf]
    %v4896 = vld [vmem:[#allocation10 + $0xc] sm:$0xf]
    %v4897 = vld [vmem:[#allocation10 + $0x10] sm:$0xf]
    %v4898 = vld [vmem:[#allocation10 + $0x14] sm:$0xf]
    %v4899 = vld [vmem:[#allocation10 + $0x18] sm:$0xf]
    %v4900 = vld [vmem:[#allocation10 + $0x1c] sm:$0xf]
    %v4901 = vld [vmem:[#allocation10 + $0x20] sm:$0xf]
    %v4902 = vld [vmem:[#allocation10 + $0x24] sm:$0xf]
    %v4903 = vld [vmem:[#allocation10 + $0x28] sm:$0xf]
    %v4904 = vld [vmem:[#allocation10 + $0x2c] sm:$0xf]
    %v4905 = vld [vmem:[#allocation10 + $0x30] sm:$0xf]
    %v4906 = vld [vmem:[#allocation10 + $0x34] sm:$0xf]
    %v4907 = vld [vmem:[#allocation10 + $0x38] sm:$0xf]
    %v4908 = vld [vmem:[#allocation10 + $0x3c] sm:$0xf]
    %v4909 = vld [vmem:[#allocation10 + $0x40] sm:$0xf]
    %v4910 = vld [vmem:[#allocation10 + $0x44] sm:$0xf]
    %v4911 = vld [vmem:[#allocation10 + $0x48] sm:$0xf]
    %v4912 = vld [vmem:[#allocation10 + $0x4c] sm:$0xf]
    %v4913 = vld [vmem:[#allocation10 + $0x50] sm:$0xf]
    %v4914 = vld [vmem:[#allocation10 + $0x54] sm:$0xf]
    %v4915 = vld [vmem:[#allocation10 + $0x58] sm:$0xf]
    %v4916 = vld [vmem:[#allocation10 + $0x5c] sm:$0xf]
    %v4917 = vld [vmem:[#allocation10 + $0x60] sm:$0xf]
    %v4918 = vld [vmem:[#allocation10 + $0x64] sm:$0xf]
    %v4919 = vld [vmem:[#allocation10 + $0x68] sm:$0xf]
    %v4920 = vld [vmem:[#allocation10 + $0x6c] sm:$0xf]
    %v4921 = vld [vmem:[#allocation10 + $0x70] sm:$0xf]
    %v4922 = vld [vmem:[#allocation10 + $0x74] sm:$0xf]
    %v4923 = vld [vmem:[#allocation10 + $0x78] sm:$0xf]
    %v4924 = vld [vmem:[#allocation10 + $0x7c] sm:$0xf]
    %v4957 = vunpack.c.l.b16 %v4893
    %v4958 = vunpack.c.l.b16 %v4894
    %v4959 = vunpack.c.l.b16 %v4895
    %v4960 = vunpack.c.l.b16 %v4896
    %v4961 = vunpack.c.l.b16 %v4897
    %v4962 = vunpack.c.l.b16 %v4898
    %v4963 = vunpack.c.l.b16 %v4899
    %v4964 = vunpack.c.l.b16 %v4900
    %v4965 = vunpack.c.l.b16 %v4901
    %v4966 = vunpack.c.l.b16 %v4902
    %v4967 = vunpack.c.l.b16 %v4903
    %v4968 = vunpack.c.l.b16 %v4904
    %v4969 = vunpack.c.l.b16 %v4905
    %v4970 = vunpack.c.l.b16 %v4906
    %v4971 = vunpack.c.l.b16 %v4907
    %v4972 = vunpack.c.l.b16 %v4908
    %v4973 = vunpack.c.l.b16 %v4909
    %v4974 = vunpack.c.l.b16 %v4910
    %v4975 = vunpack.c.l.b16 %v4911
    %v4976 = vunpack.c.l.b16 %v4912
    %v4977 = vunpack.c.l.b16 %v4913
    %v4978 = vunpack.c.l.b16 %v4914
    %v4979 = vunpack.c.l.b16 %v4915
    %v4980 = vunpack.c.l.b16 %v4916
    %v4981 = vunpack.c.l.b16 %v4917
    %v4982 = vunpack.c.l.b16 %v4918
    %v4983 = vunpack.c.l.b16 %v4919
    %v4984 = vunpack.c.l.b16 %v4920
    %v4985 = vunpack.c.l.b16 %v4921
    %v4986 = vunpack.c.l.b16 %v4922
    %v4987 = vunpack.c.l.b16 %v4923
    %v4988 = vunpack.c.l.b16 %v4924
    %v4989 = vpack.c.b16 %v4958, %v4957
    %v4990 = vpack.c.b16 %v4960, %v4959
    %v4991 = vpack.c.b16 %v4962, %v4961
    %v4992 = vpack.c.b16 %v4964, %v4963
    %v4993 = vpack.c.b16 %v4966, %v4965
    %v4994 = vpack.c.b16 %v4968, %v4967
    %v4995 = vpack.c.b16 %v4970, %v4969
    %v4996 = vpack.c.b16 %v4972, %v4971
    %v4997 = vpack.c.b16 %v4974, %v4973
    %v4998 = vpack.c.b16 %v4976, %v4975
    %v4999 = vpack.c.b16 %v4978, %v4977
    %v5000 = vpack.c.b16 %v4980, %v4979
    %v5001 = vpack.c.b16 %v4982, %v4981
    %v5002 = vpack.c.b16 %v4984, %v4983
    %v5003 = vpack.c.b16 %v4986, %v4985
    %v5004 = vpack.c.b16 %v4988, %v4987
    %5021 = vmatpush.bf16.msra.mxu0 %v4996
    %5022 = vmatpush.bf16.msra.mxu0 %v4995
    %5023 = vmatpush.bf16.msra.mxu0 %v4994
    %5024 = vmatpush.bf16.msra.mxu0 %v4993
    %5025 = vmatpush.bf16.msra.mxu0 %v4992
    %5026 = vmatpush.bf16.msra.mxu0 %v4991
    %5027 = vmatpush.bf16.msra.mxu0 %v4990
    %5028 = vmatpush.bf16.msra.mxu0 %v4989
    %5029 = vmatmul.bf16.gmra.mxu0 %v4891
    %v5030 = vpop.f32.mrf.mxu0
    %v5031 = vadd.f32 0.0, %v5030
    %v5032 = vpop.f32.mrf.mxu0
    %5033 = vdwg.mxu0
    %5034 = vmatpush.bf16.msra.mxu0 %v5004
    %5035 = vmatpush.bf16.msra.mxu0 %v5003
    %5036 = vmatpush.bf16.msra.mxu0 %v5002
    %5037 = vmatpush.bf16.msra.mxu0 %v5001
    %5038 = vmatpush.bf16.msra.mxu0 %v5000
    %5039 = vmatpush.bf16.msra.mxu0 %v4999
    %5040 = vmatpush.bf16.msra.mxu0 %v4998
    %5041 = vmatpush.bf16.msra.mxu0 %v4997
    %5042 = vmatmul.bf16.gmra.mxu0 %v4892
    %v5043 = vpop.f32.mrf.mxu0
    %v5044 = vadd.f32 %v5031, %v5043
    %v5045 = vpop.f32.mrf.mxu0
    %5046 = vdwg.mxu0
    %v5047 = vld [vmem:[%s711] sm:$0xf]
    %v5048 = vld [vmem:[%s711 + $0x4] sm:$0xf]
    %v5049 = vld [vmem:[%s711 + $0x8] sm:$0xf]
    %v5050 = vld [vmem:[%s711 + $0xc] sm:$0xf]
    %v5051 = vld [vmem:[%s711 + $0x10] sm:$0xf]
    %v5052 = vld [vmem:[%s711 + $0x14] sm:$0xf]
    %v5053 = vld [vmem:[%s711 + $0x18] sm:$0xf]
    %v5054 = vld [vmem:[%s711 + $0x1c] sm:$0xf]
    %v5055 = vld [vmem:[%s711 + $0x20] sm:$0xf]
    %v5056 = vld [vmem:[%s711 + $0x24] sm:$0xf]
    %v5057 = vld [vmem:[%s711 + $0x28] sm:$0xf]
    %v5058 = vld [vmem:[%s711 + $0x2c] sm:$0xf]
    %v5059 = vld [vmem:[%s711 + $0x30] sm:$0xf]
    %v5060 = vld [vmem:[%s711 + $0x34] sm:$0xf]
    %v5061 = vld [vmem:[%s711 + $0x38] sm:$0xf]
    %v5062 = vld [vmem:[%s711 + $0x3c] sm:$0xf]
    %v5063 = vld [vmem:[%s711 + $0x40] sm:$0xf]
    %v5064 = vld [vmem:[%s711 + $0x44] sm:$0xf]
    %v5065 = vld [vmem:[%s711 + $0x48] sm:$0xf]
    %v5066 = vld [vmem:[%s711 + $0x4c] sm:$0xf]
    %v5067 = vld [vmem:[%s711 + $0x50] sm:$0xf]
    %v5068 = vld [vmem:[%s711 + $0x54] sm:$0xf]
    %v5069 = vld [vmem:[%s711 + $0x58] sm:$0xf]
    %v5070 = vld [vmem:[%s711 + $0x5c] sm:$0xf]
    %v5071 = vld [vmem:[%s711 + $0x60] sm:$0xf]
    %v5072 = vld [vmem:[%s711 + $0x64] sm:$0xf]
    %v5073 = vld [vmem:[%s711 + $0x68] sm:$0xf]
    %v5074 = vld [vmem:[%s711 + $0x6c] sm:$0xf]
    %v5075 = vld [vmem:[%s711 + $0x70] sm:$0xf]
    %v5076 = vld [vmem:[%s711 + $0x74] sm:$0xf]
    %v5077 = vld [vmem:[%s711 + $0x78] sm:$0xf]
    %v5078 = vld [vmem:[%s711 + $0x7c] sm:$0xf]
    %v5111 = vunpack.c.l.b16 %v5047
    %v5112 = vunpack.c.l.b16 %v5048
    %v5113 = vunpack.c.l.b16 %v5049
    %v5114 = vunpack.c.l.b16 %v5050
    %v5115 = vunpack.c.l.b16 %v5051
    %v5116 = vunpack.c.l.b16 %v5052
    %v5117 = vunpack.c.l.b16 %v5053
    %v5118 = vunpack.c.l.b16 %v5054
    %v5119 = vunpack.c.l.b16 %v5055
    %v5120 = vunpack.c.l.b16 %v5056
    %v5121 = vunpack.c.l.b16 %v5057
    %v5122 = vunpack.c.l.b16 %v5058
    %v5123 = vunpack.c.l.b16 %v5059
    %v5124 = vunpack.c.l.b16 %v5060
    %v5125 = vunpack.c.l.b16 %v5061
    %v5126 = vunpack.c.l.b16 %v5062
    %v5127 = vunpack.c.l.b16 %v5063
    %v5128 = vunpack.c.l.b16 %v5064
    %v5129 = vunpack.c.l.b16 %v5065
    %v5130 = vunpack.c.l.b16 %v5066
    %v5131 = vunpack.c.l.b16 %v5067
    %v5132 = vunpack.c.l.b16 %v5068
    %v5133 = vunpack.c.l.b16 %v5069
    %v5134 = vunpack.c.l.b16 %v5070
    %v5135 = vunpack.c.l.b16 %v5071
    %v5136 = vunpack.c.l.b16 %v5072
    %v5137 = vunpack.c.l.b16 %v5073
    %v5138 = vunpack.c.l.b16 %v5074
    %v5139 = vunpack.c.l.b16 %v5075
    %v5140 = vunpack.c.l.b16 %v5076
    %v5141 = vunpack.c.l.b16 %v5077
    %v5142 = vunpack.c.l.b16 %v5078
    %v5143 = vpack.c.b16 %v5112, %v5111
    %v5144 = vpack.c.b16 %v5114, %v5113
    %v5145 = vpack.c.b16 %v5116, %v5115
    %v5146 = vpack.c.b16 %v5118, %v5117
    %v5147 = vpack.c.b16 %v5120, %v5119
    %v5148 = vpack.c.b16 %v5122, %v5121
    %v5149 = vpack.c.b16 %v5124, %v5123
    %v5150 = vpack.c.b16 %v5126, %v5125
    %v5151 = vpack.c.b16 %v5128, %v5127
    %v5152 = vpack.c.b16 %v5130, %v5129
    %v5153 = vpack.c.b16 %v5132, %v5131
    %v5154 = vpack.c.b16 %v5134, %v5133
    %v5155 = vpack.c.b16 %v5136, %v5135
    %v5156 = vpack.c.b16 %v5138, %v5137
    %v5157 = vpack.c.b16 %v5140, %v5139
    %v5158 = vpack.c.b16 %v5142, %v5141
    %5175 = vmatpush.bf16.msra.mxu0 %v5150
    %5176 = vmatpush.bf16.msra.mxu0 %v5149
    %5177 = vmatpush.bf16.msra.mxu0 %v5148
    %5178 = vmatpush.bf16.msra.mxu0 %v5147
    %5179 = vmatpush.bf16.msra.mxu0 %v5146
    %5180 = vmatpush.bf16.msra.mxu0 %v5145
    %5181 = vmatpush.bf16.msra.mxu0 %v5144
    %5182 = vmatpush.bf16.msra.mxu0 %v5143
    %5183 = vmatmul.bf16.gmra.mxu0 %v4891
    %v5184 = vpop.f32.mrf.mxu0
    %v5185 = vadd.f32 0.0, %v5184
    %v5186 = vpop.f32.mrf.mxu0
    %5187 = vdwg.mxu0
    %5188 = vmatpush.bf16.msra.mxu0 %v5158
    %5189 = vmatpush.bf16.msra.mxu0 %v5157
    %5190 = vmatpush.bf16.msra.mxu0 %v5156
    %5191 = vmatpush.bf16.msra.mxu0 %v5155
    %5192 = vmatpush.bf16.msra.mxu0 %v5154
    %5193 = vmatpush.bf16.msra.mxu0 %v5153
    %5194 = vmatpush.bf16.msra.mxu0 %v5152
    %5195 = vmatpush.bf16.msra.mxu0 %v5151
    %5196 = vmatmul.bf16.gmra.mxu0 %v4892
    %v5197 = vpop.f32.mrf.mxu0
    %v5198 = vadd.f32 %v5185, %v5197
    %v5199 = vpop.f32.mrf.mxu0
    %5200 = vdwg.mxu0
    %v5201 = vmax.f32 %v5044, %v5198
    %v5203 = vrot.slane %v5201, 5
    %5204 = vrot.lane.b32.xlu0 %v5203, 16
    %v5205 = vpop.permute.xlu0 %5204
    %vm5207 = vcmask 1047683
    %5208 = vst.msk [vmem:[#allocation2 + $0x10] sm:$0xf8] %vm5207, %v5205
    %vm5209 = vcmask 130051
    %5210 = vst.msk [vmem:[#allocation2 + $0x18] sm:$0xf8] %vm5209, %v5205
    %vm5211 = vcmask 1042560
    %5212 = vst.msk [vmem:[#allocation2 + $0x20] sm:$0x7] %vm5211, %v5205
    %vm5213 = vcmask 124928
    %5214 = vst.msk [vmem:[#allocation2 + $0x28] sm:$0x7] %vm5213, %v5205
    %v5215 = vld [vmem:[#allocation2 + $0x10] sm:$0xfc]
    %v5216 = vld [vmem:[#allocation2 + $0x18] sm:$0xfc]
    %v5217 = vld [vmem:[#allocation2 + $0x20] sm:$0x3]
    %v5218 = vld [vmem:[#allocation2 + $0x28] sm:$0x3]
    %v5219 = vpack.c.bf16 %v5217, %v5215
    %v5220 = vpack.c.bf16 %v5218, %v5216
    %v5221 = vld [vmem:[%s2] sm:$0xff]
    %v5222 = vld [vmem:[%s2 + $0x8] sm:$0xff]
    %v5223 = vld [vmem:[%s2 + $0x10] sm:$0xff]
    %v5224 = vld [vmem:[%s2 + $0x18] sm:$0xff]
    %v5225 = vld [vmem:[%s2 + $0x20] sm:$0xff]
    %v5226 = vld [vmem:[%s2 + $0x28] sm:$0xff]
    %v5227 = vld [vmem:[%s2 + $0x30] sm:$0xff]
    %v5228 = vld [vmem:[%s2 + $0x38] sm:$0xff]
    %v5229 = vld [vmem:[%s2 + $0x40] sm:$0xff]
    %v5230 = vld [vmem:[%s2 + $0x48] sm:$0xff]
    %v5231 = vld [vmem:[%s2 + $0x50] sm:$0xff]
    %v5232 = vld [vmem:[%s2 + $0x58] sm:$0xff]
    %v5233 = vld [vmem:[%s2 + $0x60] sm:$0xff]
    %v5234 = vld [vmem:[%s2 + $0x68] sm:$0xff]
    %v5235 = vld [vmem:[%s2 + $0x70] sm:$0xff]
    %v5236 = vld [vmem:[%s2 + $0x78] sm:$0xff]
    %v5237 = vld [vmem:[%s2 + $0x80] sm:$0xff]
    %v5238 = vld [vmem:[%s2 + $0x88] sm:$0xff]
    %v5239 = vld [vmem:[%s2 + $0x90] sm:$0xff]
    %v5240 = vld [vmem:[%s2 + $0x98] sm:$0xff]
    %v5241 = vld [vmem:[#allocation2 + $0x10] sm:$0xf8]
    %v5242 = vld [vmem:[#allocation2 + $0x18] sm:$0xf8]
    %v5243 = vld [vmem:[#allocation2 + $0x20] sm:$0x7]
    %v5244 = vld [vmem:[#allocation2 + $0x28] sm:$0x7]
    %v5245 = vpack.c.bf16 %v5243, %v5241
    %v5246 = vpack.c.bf16 %v5244, %v5242
    %v5247 = vld [vmem:[%s910] sm:$0xff]
    %v5248 = vld [vmem:[%s910 + $0x8] sm:$0xff]
    %v5249 = vld [vmem:[%s910 + $0x10] sm:$0xff]
    %v5250 = vld [vmem:[%s910 + $0x18] sm:$0xff]
    %v5251 = vld [vmem:[%s910 + $0x20] sm:$0xff]
    %v5252 = vld [vmem:[%s910 + $0x28] sm:$0xff]
    %v5253 = vld [vmem:[%s910 + $0x30] sm:$0xff]
    %v5254 = vld [vmem:[%s910 + $0x38] sm:$0xff]
    %v5255 = vld [vmem:[%s910 + $0x40] sm:$0xff]
    %v5256 = vld [vmem:[%s910 + $0x48] sm:$0xff]
    %v5257 = vld [vmem:[%s910 + $0x50] sm:$0xff]
    %v5258 = vld [vmem:[%s910 + $0x58] sm:$0xff]
    %v5259 = vld [vmem:[%s910 + $0x60] sm:$0xff]
    %v5260 = vld [vmem:[%s910 + $0x68] sm:$0xff]
    %v5261 = vld [vmem:[%s910 + $0x70] sm:$0xff]
    %v5262 = vld [vmem:[%s910 + $0x78] sm:$0xff]
    %v5263 = vld [vmem:[%s910 + $0x80] sm:$0xff]
    %v5264 = vld [vmem:[%s910 + $0x88] sm:$0xff]
    %v5265 = vld [vmem:[%s910 + $0x90] sm:$0xff]
    %v5266 = vld [vmem:[%s910 + $0x98] sm:$0xff]
    %v5268 = vshrl.u32 %v5245, 16
    %v5270 = vrot.slane %v5268, 1
    %v5271 = vshll.u32 %v5245, 16
    %v5273 = vrot.slane %v5271, 2
    %v5274 = vor.u32 %v5270, %v5273
    %v5276 = vshrl.u32 %v5246, 16
    %v5278 = vrot.slane %v5276, 1
    %v5279 = vshll.u32 %v5246, 16
    %v5281 = vrot.slane %v5279, 2
    %v5282 = vor.u32 %v5278, %v5281
    %v5304 = vunpack.c.l.b16 %v5247
    %v5305 = vunpack.c.h.b16 %v5247
    %v5306 = vunpack.c.l.b16 %v5248
    %v5307 = vunpack.c.h.b16 %v5248
    %v5308 = vunpack.c.l.b16 %v5249
    %v5309 = vunpack.c.h.b16 %v5249
    %v5310 = vunpack.c.l.b16 %v5250
    %v5311 = vunpack.c.h.b16 %v5250
    %v5312 = vunpack.c.l.b16 %v5251
    %v5313 = vunpack.c.h.b16 %v5251
    %v5314 = vunpack.c.l.b16 %v5252
    %v5315 = vunpack.c.h.b16 %v5252
    %v5316 = vunpack.c.l.b16 %v5253
    %v5317 = vunpack.c.h.b16 %v5253
    %v5318 = vunpack.c.l.b16 %v5254
    %v5319 = vunpack.c.h.b16 %v5254
    %v5320 = vunpack.c.l.b16 %v5255
    %v5321 = vunpack.c.h.b16 %v5255
    %v5322 = vunpack.c.l.b16 %v5256
    %v5323 = vunpack.c.h.b16 %v5256
    %v5324 = vunpack.c.l.b16 %v5257
    %v5325 = vunpack.c.h.b16 %v5257
    %v5326 = vunpack.c.l.b16 %v5258
    %v5327 = vunpack.c.h.b16 %v5258
    %v5328 = vunpack.c.l.b16 %v5259
    %v5329 = vunpack.c.h.b16 %v5259
    %v5330 = vunpack.c.l.b16 %v5260
    %v5331 = vunpack.c.h.b16 %v5260
    %v5332 = vunpack.c.l.b16 %v5261
    %v5333 = vunpack.c.h.b16 %v5261
    %v5334 = vunpack.c.l.b16 %v5262
    %v5335 = vunpack.c.h.b16 %v5262
    %v5336 = vunpack.c.l.b16 %v5263
    %v5337 = vunpack.c.h.b16 %v5263
    %v5338 = vunpack.c.l.b16 %v5264
    %v5339 = vunpack.c.h.b16 %v5264
    %v5340 = vunpack.c.l.b16 %v5265
    %v5341 = vunpack.c.h.b16 %v5265
    %v5342 = vunpack.c.l.b16 %v5266
    %v5343 = vunpack.c.h.b16 %v5266
    %v5344 = vpack.c.b16 %v5306, %v5304
    %v5345 = vpack.c.b16 %v5307, %v5305
    %v5346 = vpack.c.b16 %v5310, %v5308
    %v5347 = vpack.c.b16 %v5311, %v5309
    %v5348 = vpack.c.b16 %v5314, %v5312
    %v5349 = vpack.c.b16 %v5315, %v5313
    %v5350 = vpack.c.b16 %v5318, %v5316
    %v5351 = vpack.c.b16 %v5319, %v5317
    %v5352 = vpack.c.b16 %v5322, %v5320
    %v5353 = vpack.c.b16 %v5323, %v5321
    %v5354 = vpack.c.b16 %v5326, %v5324
    %v5355 = vpack.c.b16 %v5327, %v5325
    %v5356 = vpack.c.b16 %v5330, %v5328
    %v5357 = vpack.c.b16 %v5331, %v5329
    %v5358 = vpack.c.b16 %v5334, %v5332
    %v5359 = vpack.c.b16 %v5335, %v5333
    %v5360 = vpack.c.b16 %v5338, %v5336
    %v5361 = vpack.c.b16 %v5339, %v5337
    %v5362 = vpack.c.b16 %v5342, %v5340
    %v5363 = vpack.c.b16 %v5343, %v5341
    %v5385 = vsel %vm198, %v5282, 0
    %5387 = vmatpush.bf16.msra.mxu0 %v5358
    %5388 = vmatpush.bf16.msra.mxu0 %v5356
    %5389 = vmatpush.bf16.msra.mxu0 %v5354
    %5390 = vmatpush.bf16.msra.mxu0 %v5352
    %5391 = vmatpush.bf16.msra.mxu0 %v5350
    %5392 = vmatpush.bf16.msra.mxu0 %v5348
    %5393 = vmatpush.bf16.msra.mxu0 %v5346
    %5394 = vmatpush.bf16.msra.mxu0 %v5344
    %5395 = vmatmul.bf16.gmra.mxu0 %v5274
    %v5396 = vpop.f32.mrf.mxu0
    %v5397 = vadd.f32 0.0, %v5396
    %v5398 = vpop.f32.mrf.mxu0
    %5399 = vdwg.mxu0
    %5400 = vmatpush.bf16.msra.mxu0 0
    %5401 = vmatpush.bf16.msra.mxu0 0
    %5402 = vmatpush.bf16.msra.mxu0 0
    %5403 = vmatpush.bf16.msra.mxu0 0
    %5404 = vmatpush.bf16.msra.mxu0 0
    %5405 = vmatpush.bf16.msra.mxu0 0
    %5406 = vmatpush.bf16.msra.mxu0 %v5362
    %5407 = vmatpush.bf16.msra.mxu0 %v5360
    %5408 = vmatmul.bf16.gmra.mxu0 %v5385
    %v5409 = vpop.f32.mrf.mxu0
    %v5410 = vadd.f32 %v5397, %v5409
    %v5411 = vpop.f32.mrf.mxu0
    %5412 = vdwg.mxu0
    %5413 = vmatpush.bf16.msra.mxu0 %v5359
    %5414 = vmatpush.bf16.msra.mxu0 %v5357
    %5415 = vmatpush.bf16.msra.mxu0 %v5355
    %5416 = vmatpush.bf16.msra.mxu0 %v5353
    %5417 = vmatpush.bf16.msra.mxu0 %v5351
    %5418 = vmatpush.bf16.msra.mxu0 %v5349
    %5419 = vmatpush.bf16.msra.mxu0 %v5347
    %5420 = vmatpush.bf16.msra.mxu0 %v5345
    %5421 = vmatmul.bf16.gmra.mxu0 %v5274
    %v5422 = vpop.f32.mrf.mxu0
    %v5423 = vadd.f32 0.0, %v5422
    %v5424 = vpop.f32.mrf.mxu0
    %5425 = vdwg.mxu0
    %5426 = vmatpush.bf16.msra.mxu0 0
    %5427 = vmatpush.bf16.msra.mxu0 0
    %5428 = vmatpush.bf16.msra.mxu0 0
    %5429 = vmatpush.bf16.msra.mxu0 0
    %5430 = vmatpush.bf16.msra.mxu0 0
    %5431 = vmatpush.bf16.msra.mxu0 0
    %5432 = vmatpush.bf16.msra.mxu0 %v5363
    %5433 = vmatpush.bf16.msra.mxu0 %v5361
    %5434 = vmatmul.bf16.gmra.mxu0 %v5385
    %v5435 = vpop.f32.mrf.mxu0
    %v5436 = vadd.f32 %v5423, %v5435
    %v5437 = vpop.f32.mrf.mxu0
    %5438 = vdwg.mxu0
    %v5441 = vrot.slane %v5219, 1
    %v5442 = vrot.slane %v5220, 1
    %v5464 = vunpack.c.l.b16 %v5221
    %v5465 = vunpack.c.h.b16 %v5221
    %v5466 = vunpack.c.l.b16 %v5222
    %v5467 = vunpack.c.h.b16 %v5222
    %v5468 = vunpack.c.l.b16 %v5223
    %v5469 = vunpack.c.h.b16 %v5223
    %v5470 = vunpack.c.l.b16 %v5224
    %v5471 = vunpack.c.h.b16 %v5224
    %v5472 = vunpack.c.l.b16 %v5225
    %v5473 = vunpack.c.h.b16 %v5225
    %v5474 = vunpack.c.l.b16 %v5226
    %v5475 = vunpack.c.h.b16 %v5226
    %v5476 = vunpack.c.l.b16 %v5227
    %v5477 = vunpack.c.h.b16 %v5227
    %v5478 = vunpack.c.l.b16 %v5228
    %v5479 = vunpack.c.h.b16 %v5228
    %v5480 = vunpack.c.l.b16 %v5229
    %v5481 = vunpack.c.h.b16 %v5229
    %v5482 = vunpack.c.l.b16 %v5230
    %v5483 = vunpack.c.h.b16 %v5230
    %v5484 = vunpack.c.l.b16 %v5231
    %v5485 = vunpack.c.h.b16 %v5231
    %v5486 = vunpack.c.l.b16 %v5232
    %v5487 = vunpack.c.h.b16 %v5232
    %v5488 = vunpack.c.l.b16 %v5233
    %v5489 = vunpack.c.h.b16 %v5233
    %v5490 = vunpack.c.l.b16 %v5234
    %v5491 = vunpack.c.h.b16 %v5234
    %v5492 = vunpack.c.l.b16 %v5235
    %v5493 = vunpack.c.h.b16 %v5235
    %v5494 = vunpack.c.l.b16 %v5236
    %v5495 = vunpack.c.h.b16 %v5236
    %v5496 = vunpack.c.l.b16 %v5237
    %v5497 = vunpack.c.h.b16 %v5237
    %v5498 = vunpack.c.l.b16 %v5238
    %v5499 = vunpack.c.h.b16 %v5238
    %v5500 = vunpack.c.l.b16 %v5239
    %v5501 = vunpack.c.h.b16 %v5239
    %v5502 = vunpack.c.l.b16 %v5240
    %v5503 = vunpack.c.h.b16 %v5240
    %v5504 = vpack.c.b16 %v5466, %v5464
    %v5505 = vpack.c.b16 %v5467, %v5465
    %v5506 = vpack.c.b16 %v5470, %v5468
    %v5507 = vpack.c.b16 %v5471, %v5469
    %v5508 = vpack.c.b16 %v5474, %v5472
    %v5509 = vpack.c.b16 %v5475, %v5473
    %v5510 = vpack.c.b16 %v5478, %v5476
    %v5511 = vpack.c.b16 %v5479, %v5477
    %v5512 = vpack.c.b16 %v5482, %v5480
    %v5513 = vpack.c.b16 %v5483, %v5481
    %v5514 = vpack.c.b16 %v5486, %v5484
    %v5515 = vpack.c.b16 %v5487, %v5485
    %v5516 = vpack.c.b16 %v5490, %v5488
    %v5517 = vpack.c.b16 %v5491, %v5489
    %v5518 = vpack.c.b16 %v5494, %v5492
    %v5519 = vpack.c.b16 %v5495, %v5493
    %v5520 = vpack.c.b16 %v5498, %v5496
    %v5521 = vpack.c.b16 %v5499, %v5497
    %v5522 = vpack.c.b16 %v5502, %v5500
    %v5523 = vpack.c.b16 %v5503, %v5501
    %v5545 = vsel %vm198, %v5442, 0
    %5547 = vmatpush.bf16.msra.mxu0 %v5518
    %5548 = vmatpush.bf16.msra.mxu0 %v5516
    %5549 = vmatpush.bf16.msra.mxu0 %v5514
    %5550 = vmatpush.bf16.msra.mxu0 %v5512
    %5551 = vmatpush.bf16.msra.mxu0 %v5510
    %5552 = vmatpush.bf16.msra.mxu0 %v5508
    %5553 = vmatpush.bf16.msra.mxu0 %v5506
    %5554 = vmatpush.bf16.msra.mxu0 %v5504
    %5555 = vmatmul.bf16.gmra.mxu0 %v5441
    %v5556 = vpop.f32.mrf.mxu0
    %v5557 = vadd.f32 %v5410, %v5556
    %v5558 = vpop.f32.mrf.mxu0
    %5559 = vdwg.mxu0
    %5560 = vmatpush.bf16.msra.mxu0 0
    %5561 = vmatpush.bf16.msra.mxu0 0
    %5562 = vmatpush.bf16.msra.mxu0 0
    %5563 = vmatpush.bf16.msra.mxu0 0
    %5564 = vmatpush.bf16.msra.mxu0 0
    %5565 = vmatpush.bf16.msra.mxu0 0
    %5566 = vmatpush.bf16.msra.mxu0 %v5522
    %5567 = vmatpush.bf16.msra.mxu0 %v5520
    %5568 = vmatmul.bf16.gmra.mxu0 %v5545
    %v5569 = vpop.f32.mrf.mxu0
    %v5570 = vadd.f32 %v5557, %v5569
    %v5571 = vpop.f32.mrf.mxu0
    %5572 = vdwg.mxu0
    %5573 = vmatpush.bf16.msra.mxu0 %v5519
    %5574 = vmatpush.bf16.msra.mxu0 %v5517
    %5575 = vmatpush.bf16.msra.mxu0 %v5515
    %5576 = vmatpush.bf16.msra.mxu0 %v5513
    %5577 = vmatpush.bf16.msra.mxu0 %v5511
    %5578 = vmatpush.bf16.msra.mxu0 %v5509
    %5579 = vmatpush.bf16.msra.mxu0 %v5507
    %5580 = vmatpush.bf16.msra.mxu0 %v5505
    %5581 = vmatmul.bf16.gmra.mxu0 %v5441
    %v5582 = vpop.f32.mrf.mxu0
    %v5583 = vadd.f32 %v5436, %v5582
    %v5584 = vpop.f32.mrf.mxu0
    %5585 = vdwg.mxu0
    %5586 = vmatpush.bf16.msra.mxu0 0
    %5587 = vmatpush.bf16.msra.mxu0 0
    %5588 = vmatpush.bf16.msra.mxu0 0
    %5589 = vmatpush.bf16.msra.mxu0 0
    %5590 = vmatpush.bf16.msra.mxu0 0
    %5591 = vmatpush.bf16.msra.mxu0 0
    %5592 = vmatpush.bf16.msra.mxu0 %v5523
    %5593 = vmatpush.bf16.msra.mxu0 %v5521
    %5594 = vmatmul.bf16.gmra.mxu0 %v5545
    %v5595 = vpop.f32.mrf.mxu0
    %v5596 = vadd.f32 %v5583, %v5595
    %v5597 = vpop.f32.mrf.mxu0
    %5598 = vdwg.mxu0
    %v5599 = vld [vmem:[#allocation2 + $0x10] sm:$0xf0]
    %v5600 = vld [vmem:[#allocation2 + $0x18] sm:$0xf0]
    %v5601 = vld [vmem:[#allocation2 + $0x20] sm:$0xf]
    %v5602 = vld [vmem:[#allocation2 + $0x28] sm:$0xf]
    %v5603 = vpack.c.bf16 %v5601, %v5599
    %v5604 = vpack.c.bf16 %v5602, %v5600
    %v5605 = vld [vmem:[%s1262] sm:$0xff]
    %v5606 = vld [vmem:[%s1262 + $0x8] sm:$0xff]
    %v5607 = vld [vmem:[%s1262 + $0x10] sm:$0xff]
    %v5608 = vld [vmem:[%s1262 + $0x18] sm:$0xff]
    %v5609 = vld [vmem:[%s1262 + $0x20] sm:$0xff]
    %v5610 = vld [vmem:[%s1262 + $0x28] sm:$0xff]
    %v5611 = vld [vmem:[%s1262 + $0x30] sm:$0xff]
    %v5612 = vld [vmem:[%s1262 + $0x38] sm:$0xff]
    %v5613 = vld [vmem:[%s1262 + $0x40] sm:$0xff]
    %v5614 = vld [vmem:[%s1262 + $0x48] sm:$0xff]
    %v5615 = vld [vmem:[%s1262 + $0x50] sm:$0xff]
    %v5616 = vld [vmem:[%s1262 + $0x58] sm:$0xff]
    %v5617 = vld [vmem:[%s1262 + $0x60] sm:$0xff]
    %v5618 = vld [vmem:[%s1262 + $0x68] sm:$0xff]
    %v5619 = vld [vmem:[%s1262 + $0x70] sm:$0xff]
    %v5620 = vld [vmem:[%s1262 + $0x78] sm:$0xff]
    %v5621 = vld [vmem:[%s1262 + $0x80] sm:$0xff]
    %v5622 = vld [vmem:[%s1262 + $0x88] sm:$0xff]
    %v5623 = vld [vmem:[%s1262 + $0x90] sm:$0xff]
    %v5624 = vld [vmem:[%s1262 + $0x98] sm:$0xff]
    %v5627 = vrot.slane %v5603, 2
    %v5628 = vrot.slane %v5604, 2
    %v5650 = vunpack.c.l.b16 %v5605
    %v5651 = vunpack.c.h.b16 %v5605
    %v5652 = vunpack.c.l.b16 %v5606
    %v5653 = vunpack.c.h.b16 %v5606
    %v5654 = vunpack.c.l.b16 %v5607
    %v5655 = vunpack.c.h.b16 %v5607
    %v5656 = vunpack.c.l.b16 %v5608
    %v5657 = vunpack.c.h.b16 %v5608
    %v5658 = vunpack.c.l.b16 %v5609
    %v5659 = vunpack.c.h.b16 %v5609
    %v5660 = vunpack.c.l.b16 %v5610
    %v5661 = vunpack.c.h.b16 %v5610
    %v5662 = vunpack.c.l.b16 %v5611
    %v5663 = vunpack.c.h.b16 %v5611
    %v5664 = vunpack.c.l.b16 %v5612
    %v5665 = vunpack.c.h.b16 %v5612
    %v5666 = vunpack.c.l.b16 %v5613
    %v5667 = vunpack.c.h.b16 %v5613
    %v5668 = vunpack.c.l.b16 %v5614
    %v5669 = vunpack.c.h.b16 %v5614
    %v5670 = vunpack.c.l.b16 %v5615
    %v5671 = vunpack.c.h.b16 %v5615
    %v5672 = vunpack.c.l.b16 %v5616
    %v5673 = vunpack.c.h.b16 %v5616
    %v5674 = vunpack.c.l.b16 %v5617
    %v5675 = vunpack.c.h.b16 %v5617
    %v5676 = vunpack.c.l.b16 %v5618
    %v5677 = vunpack.c.h.b16 %v5618
    %v5678 = vunpack.c.l.b16 %v5619
    %v5679 = vunpack.c.h.b16 %v5619
    %v5680 = vunpack.c.l.b16 %v5620
    %v5681 = vunpack.c.h.b16 %v5620
    %v5682 = vunpack.c.l.b16 %v5621
    %v5683 = vunpack.c.h.b16 %v5621
    %v5684 = vunpack.c.l.b16 %v5622
    %v5685 = vunpack.c.h.b16 %v5622
    %v5686 = vunpack.c.l.b16 %v5623
    %v5687 = vunpack.c.h.b16 %v5623
    %v5688 = vunpack.c.l.b16 %v5624
    %v5689 = vunpack.c.h.b16 %v5624
    %v5690 = vpack.c.b16 %v5652, %v5650
    %v5691 = vpack.c.b16 %v5653, %v5651
    %v5692 = vpack.c.b16 %v5656, %v5654
    %v5693 = vpack.c.b16 %v5657, %v5655
    %v5694 = vpack.c.b16 %v5660, %v5658
    %v5695 = vpack.c.b16 %v5661, %v5659
    %v5696 = vpack.c.b16 %v5664, %v5662
    %v5697 = vpack.c.b16 %v5665, %v5663
    %v5698 = vpack.c.b16 %v5668, %v5666
    %v5699 = vpack.c.b16 %v5669, %v5667
    %v5700 = vpack.c.b16 %v5672, %v5670
    %v5701 = vpack.c.b16 %v5673, %v5671
    %v5702 = vpack.c.b16 %v5676, %v5674
    %v5703 = vpack.c.b16 %v5677, %v5675
    %v5704 = vpack.c.b16 %v5680, %v5678
    %v5705 = vpack.c.b16 %v5681, %v5679
    %v5706 = vpack.c.b16 %v5684, %v5682
    %v5707 = vpack.c.b16 %v5685, %v5683
    %v5708 = vpack.c.b16 %v5688, %v5686
    %v5709 = vpack.c.b16 %v5689, %v5687
    %v5731 = vsel %vm198, %v5628, 0
    %5733 = vmatpush.bf16.msra.mxu0 %v5704
    %5734 = vmatpush.bf16.msra.mxu0 %v5702
    %5735 = vmatpush.bf16.msra.mxu0 %v5700
    %5736 = vmatpush.bf16.msra.mxu0 %v5698
    %5737 = vmatpush.bf16.msra.mxu0 %v5696
    %5738 = vmatpush.bf16.msra.mxu0 %v5694
    %5739 = vmatpush.bf16.msra.mxu0 %v5692
    %5740 = vmatpush.bf16.msra.mxu0 %v5690
    %5741 = vmatmul.bf16.gmra.mxu0 %v5627
    %v5742 = vpop.f32.mrf.mxu0
    %v5743 = vadd.f32 0.0, %v5742
    %v5744 = vpop.f32.mrf.mxu0
    %5745 = vdwg.mxu0
    %5746 = vmatpush.bf16.msra.mxu0 0
    %5747 = vmatpush.bf16.msra.mxu0 0
    %5748 = vmatpush.bf16.msra.mxu0 0
    %5749 = vmatpush.bf16.msra.mxu0 0
    %5750 = vmatpush.bf16.msra.mxu0 0
    %5751 = vmatpush.bf16.msra.mxu0 0
    %5752 = vmatpush.bf16.msra.mxu0 %v5708
    %5753 = vmatpush.bf16.msra.mxu0 %v5706
    %5754 = vmatmul.bf16.gmra.mxu0 %v5731
    %v5755 = vpop.f32.mrf.mxu0
    %v5756 = vadd.f32 %v5743, %v5755
    %v5757 = vpop.f32.mrf.mxu0
    %5758 = vdwg.mxu0
    %5759 = vmatpush.bf16.msra.mxu0 %v5705
    %5760 = vmatpush.bf16.msra.mxu0 %v5703
    %5761 = vmatpush.bf16.msra.mxu0 %v5701
    %5762 = vmatpush.bf16.msra.mxu0 %v5699
    %5763 = vmatpush.bf16.msra.mxu0 %v5697
    %5764 = vmatpush.bf16.msra.mxu0 %v5695
    %5765 = vmatpush.bf16.msra.mxu0 %v5693
    %5766 = vmatpush.bf16.msra.mxu0 %v5691
    %5767 = vmatmul.bf16.gmra.mxu0 %v5627
    %v5768 = vpop.f32.mrf.mxu0
    %v5769 = vadd.f32 0.0, %v5768
    %v5770 = vpop.f32.mrf.mxu0
    %5771 = vdwg.mxu0
    %5772 = vmatpush.bf16.msra.mxu0 0
    %5773 = vmatpush.bf16.msra.mxu0 0
    %5774 = vmatpush.bf16.msra.mxu0 0
    %5775 = vmatpush.bf16.msra.mxu0 0
    %5776 = vmatpush.bf16.msra.mxu0 0
    %5777 = vmatpush.bf16.msra.mxu0 0
    %5778 = vmatpush.bf16.msra.mxu0 %v5709
    %5779 = vmatpush.bf16.msra.mxu0 %v5707
    %5780 = vmatmul.bf16.gmra.mxu0 %v5731
    %v5781 = vpop.f32.mrf.mxu0
    %v5782 = vadd.f32 %v5769, %v5781
    %v5783 = vpop.f32.mrf.mxu0
    %5784 = vdwg.mxu0
    %v5785 = vadd.f32 %v5570, %v5756
    %v5786 = vadd.f32 %v5596, %v5782
    %v5787 = vld [vmem:[#allocation16] sm:$0x3]
    %v5789 = vperm.slane %v5787, 0
    %v5790 = vperm.slane %v5787, 1
    %v5793 = vmul.f32 %v5785, %v5789
    %v5794 = vmul.f32 %v5786, %v5790
    %v5795 = vld [vmem:[%s14] sm:$0x3]
    %v5797 = vperm.slane %v5795, 0
    %v5798 = vperm.slane %v5795, 1
    %v5801 = vadd.f32 %v5793, %v5797
    %v5802 = vadd.f32 %v5794, %v5798
    %v5803 = vmax.f32 %v5801, 0.0
    %v5804 = vmax.f32 %v5802, 0.0
    %v5805 = vpack.c.bf16 %v5803, %v5803
    %v5806 = vpack.c.bf16 %v5804, %v5804
    %v5807 = vld [vmem:[#allocation7] sm:$0x3]
    %v5809 = vsel %vm1466, %v5807, 0
    %v5812 = vsel %vm1470, %v5805, 0
    %v5815 = vsel %vm1470, %v5806, 0
    %5817 = vmatpush.bf16.msra.mxu0 0
    %5818 = vmatpush.bf16.msra.mxu0 0
    %5819 = vmatpush.bf16.msra.mxu0 0
    %5820 = vmatpush.bf16.msra.mxu0 0
    %5821 = vmatpush.bf16.msra.mxu0 0
    %5822 = vmatpush.bf16.msra.mxu0 0
    %5823 = vmatpush.bf16.msra.mxu0 0
    %5824 = vmatpush.bf16.msra.mxu0 %v5812
    %5825 = vmatmul.bf16.gmra.mxu0 %v5809
    %v5826 = vpop.f32.mrf.mxu0
    %v5827 = vadd.f32 0.0, %v5826
    %v5828 = vpop.f32.mrf.mxu0
    %5829 = vdwg.mxu0
    %5830 = vmatpush.bf16.msra.mxu0 0
    %5831 = vmatpush.bf16.msra.mxu0 0
    %5832 = vmatpush.bf16.msra.mxu0 0
    %5833 = vmatpush.bf16.msra.mxu0 0
    %5834 = vmatpush.bf16.msra.mxu0 0
    %5835 = vmatpush.bf16.msra.mxu0 0
    %5836 = vmatpush.bf16.msra.mxu0 0
    %5837 = vmatpush.bf16.msra.mxu0 %v5815
    %5838 = vmatmul.bf16.gmra.mxu0 %v5809
    %v5839 = vpop.f32.mrf.mxu0
    %v5840 = vadd.f32 0.0, %v5839
    %v5841 = vpop.f32.mrf.mxu0
    %5842 = vdwg.mxu0
    %v5843 = vld [vmem:[%s1503] sm:$0x3]
    %v5845 = vsel %vm1466, %v5843, 0
    %5847 = vmatpush.bf16.msra.mxu0 0
    %5848 = vmatpush.bf16.msra.mxu0 0
    %5849 = vmatpush.bf16.msra.mxu0 0
    %5850 = vmatpush.bf16.msra.mxu0 0
    %5851 = vmatpush.bf16.msra.mxu0 0
    %5852 = vmatpush.bf16.msra.mxu0 0
    %5853 = vmatpush.bf16.msra.mxu0 0
    %5854 = vmatpush.bf16.msra.mxu0 %v5812
    %5855 = vmatmul.bf16.gmra.mxu0 %v5845
    %v5856 = vpop.f32.mrf.mxu0
    %v5857 = vadd.f32 0.0, %v5856
    %v5858 = vpop.f32.mrf.mxu0
    %5859 = vdwg.mxu0
    %5860 = vmatpush.bf16.msra.mxu0 0
    %5861 = vmatpush.bf16.msra.mxu0 0
    %5862 = vmatpush.bf16.msra.mxu0 0
    %5863 = vmatpush.bf16.msra.mxu0 0
    %5864 = vmatpush.bf16.msra.mxu0 0
    %5865 = vmatpush.bf16.msra.mxu0 0
    %5866 = vmatpush.bf16.msra.mxu0 0
    %5867 = vmatpush.bf16.msra.mxu0 %v5815
    %5868 = vmatmul.bf16.gmra.mxu0 %v5845
    %v5869 = vpop.f32.mrf.mxu0
    %v5870 = vadd.f32 0.0, %v5869
    %v5871 = vpop.f32.mrf.mxu0
    %5872 = vdwg.mxu0
    %v5873 = vmax.f32 %v5827, %v5857
    %v5874 = vmax.f32 %v5840, %v5870
    %v5875 = vpack.c.bf16 %v5873, %v5873
    %v5876 = vpack.c.bf16 %v5874, %v5874
    %v5877 = vld [vmem:[#allocation12] sm:$0xf]
    %v5878 = vld [vmem:[#allocation12 + $0x4] sm:$0xf]
    %v5879 = vld [vmem:[#allocation12 + $0x8] sm:$0xf]
    %v5880 = vld [vmem:[#allocation12 + $0xc] sm:$0xf]
    %v5881 = vld [vmem:[#allocation12 + $0x10] sm:$0xf]
    %v5882 = vld [vmem:[#allocation12 + $0x14] sm:$0xf]
    %v5883 = vld [vmem:[#allocation12 + $0x18] sm:$0xf]
    %v5884 = vld [vmem:[#allocation12 + $0x1c] sm:$0xf]
    %v5885 = vld [vmem:[#allocation12 + $0x20] sm:$0xf]
    %v5886 = vld [vmem:[#allocation12 + $0x24] sm:$0xf]
    %v5887 = vld [vmem:[#allocation12 + $0x28] sm:$0xf]
    %v5888 = vld [vmem:[#allocation12 + $0x2c] sm:$0xf]
    %v5889 = vld [vmem:[#allocation12 + $0x30] sm:$0xf]
    %v5890 = vld [vmem:[#allocation12 + $0x34] sm:$0xf]
    %v5891 = vld [vmem:[#allocation12 + $0x38] sm:$0xf]
    %v5892 = vld [vmem:[#allocation12 + $0x3c] sm:$0xf]
    %v5893 = vld [vmem:[#allocation12 + $0x40] sm:$0xf]
    %v5894 = vld [vmem:[#allocation12 + $0x44] sm:$0xf]
    %v5895 = vld [vmem:[#allocation12 + $0x48] sm:$0xf]
    %v5896 = vld [vmem:[#allocation12 + $0x4c] sm:$0xf]
    %v5897 = vld [vmem:[#allocation12 + $0x50] sm:$0xf]
    %v5898 = vld [vmem:[#allocation12 + $0x54] sm:$0xf]
    %v5899 = vld [vmem:[#allocation12 + $0x58] sm:$0xf]
    %v5900 = vld [vmem:[#allocation12 + $0x5c] sm:$0xf]
    %v5901 = vld [vmem:[#allocation12 + $0x60] sm:$0xf]
    %v5902 = vld [vmem:[#allocation12 + $0x64] sm:$0xf]
    %v5903 = vld [vmem:[#allocation12 + $0x68] sm:$0xf]
    %v5904 = vld [vmem:[#allocation12 + $0x6c] sm:$0xf]
    %v5905 = vld [vmem:[#allocation12 + $0x70] sm:$0xf]
    %v5906 = vld [vmem:[#allocation12 + $0x74] sm:$0xf]
    %v5907 = vld [vmem:[#allocation12 + $0x78] sm:$0xf]
    %v5908 = vld [vmem:[#allocation12 + $0x7c] sm:$0xf]
    %v5941 = vunpack.c.l.b16 %v5877
    %v5942 = vunpack.c.l.b16 %v5878
    %v5943 = vunpack.c.l.b16 %v5879
    %v5944 = vunpack.c.l.b16 %v5880
    %v5945 = vunpack.c.l.b16 %v5881
    %v5946 = vunpack.c.l.b16 %v5882
    %v5947 = vunpack.c.l.b16 %v5883
    %v5948 = vunpack.c.l.b16 %v5884
    %v5949 = vunpack.c.l.b16 %v5885
    %v5950 = vunpack.c.l.b16 %v5886
    %v5951 = vunpack.c.l.b16 %v5887
    %v5952 = vunpack.c.l.b16 %v5888
    %v5953 = vunpack.c.l.b16 %v5889
    %v5954 = vunpack.c.l.b16 %v5890
    %v5955 = vunpack.c.l.b16 %v5891
    %v5956 = vunpack.c.l.b16 %v5892
    %v5957 = vunpack.c.l.b16 %v5893
    %v5958 = vunpack.c.l.b16 %v5894
    %v5959 = vunpack.c.l.b16 %v5895
    %v5960 = vunpack.c.l.b16 %v5896
    %v5961 = vunpack.c.l.b16 %v5897
    %v5962 = vunpack.c.l.b16 %v5898
    %v5963 = vunpack.c.l.b16 %v5899
    %v5964 = vunpack.c.l.b16 %v5900
    %v5965 = vunpack.c.l.b16 %v5901
    %v5966 = vunpack.c.l.b16 %v5902
    %v5967 = vunpack.c.l.b16 %v5903
    %v5968 = vunpack.c.l.b16 %v5904
    %v5969 = vunpack.c.l.b16 %v5905
    %v5970 = vunpack.c.l.b16 %v5906
    %v5971 = vunpack.c.l.b16 %v5907
    %v5972 = vunpack.c.l.b16 %v5908
    %v5973 = vpack.c.b16 %v5942, %v5941
    %v5974 = vpack.c.b16 %v5944, %v5943
    %v5975 = vpack.c.b16 %v5946, %v5945
    %v5976 = vpack.c.b16 %v5948, %v5947
    %v5977 = vpack.c.b16 %v5950, %v5949
    %v5978 = vpack.c.b16 %v5952, %v5951
    %v5979 = vpack.c.b16 %v5954, %v5953
    %v5980 = vpack.c.b16 %v5956, %v5955
    %v5981 = vpack.c.b16 %v5958, %v5957
    %v5982 = vpack.c.b16 %v5960, %v5959
    %v5983 = vpack.c.b16 %v5962, %v5961
    %v5984 = vpack.c.b16 %v5964, %v5963
    %v5985 = vpack.c.b16 %v5966, %v5965
    %v5986 = vpack.c.b16 %v5968, %v5967
    %v5987 = vpack.c.b16 %v5970, %v5969
    %v5988 = vpack.c.b16 %v5972, %v5971
    %6005 = vmatpush.bf16.msra.mxu0 %v5980
    %6006 = vmatpush.bf16.msra.mxu0 %v5979
    %6007 = vmatpush.bf16.msra.mxu0 %v5978
    %6008 = vmatpush.bf16.msra.mxu0 %v5977
    %6009 = vmatpush.bf16.msra.mxu0 %v5976
    %6010 = vmatpush.bf16.msra.mxu0 %v5975
    %6011 = vmatpush.bf16.msra.mxu0 %v5974
    %6012 = vmatpush.bf16.msra.mxu0 %v5973
    %6013 = vmatmul.bf16.gmra.mxu0 %v5875
    %v6014 = vpop.f32.mrf.mxu0
    %v6015 = vadd.f32 0.0, %v6014
    %v6016 = vpop.f32.mrf.mxu0
    %6017 = vdwg.mxu0
    %6018 = vmatpush.bf16.msra.mxu0 %v5988
    %6019 = vmatpush.bf16.msra.mxu0 %v5987
    %6020 = vmatpush.bf16.msra.mxu0 %v5986
    %6021 = vmatpush.bf16.msra.mxu0 %v5985
    %6022 = vmatpush.bf16.msra.mxu0 %v5984
    %6023 = vmatpush.bf16.msra.mxu0 %v5983
    %6024 = vmatpush.bf16.msra.mxu0 %v5982
    %6025 = vmatpush.bf16.msra.mxu0 %v5981
    %6026 = vmatmul.bf16.gmra.mxu0 %v5876
    %v6027 = vpop.f32.mrf.mxu0
    %v6028 = vadd.f32 %v6015, %v6027
    %v6029 = vpop.f32.mrf.mxu0
    %6030 = vdwg.mxu0
    %v6031 = vld [vmem:[%s1692] sm:$0xf]
    %v6032 = vld [vmem:[%s1692 + $0x4] sm:$0xf]
    %v6033 = vld [vmem:[%s1692 + $0x8] sm:$0xf]
    %v6034 = vld [vmem:[%s1692 + $0xc] sm:$0xf]
    %v6035 = vld [vmem:[%s1692 + $0x10] sm:$0xf]
    %v6036 = vld [vmem:[%s1692 + $0x14] sm:$0xf]
    %v6037 = vld [vmem:[%s1692 + $0x18] sm:$0xf]
    %v6038 = vld [vmem:[%s1692 + $0x1c] sm:$0xf]
    %v6039 = vld [vmem:[%s1692 + $0x20] sm:$0xf]
    %v6040 = vld [vmem:[%s1692 + $0x24] sm:$0xf]
    %v6041 = vld [vmem:[%s1692 + $0x28] sm:$0xf]
    %v6042 = vld [vmem:[%s1692 + $0x2c] sm:$0xf]
    %v6043 = vld [vmem:[%s1692 + $0x30] sm:$0xf]
    %v6044 = vld [vmem:[%s1692 + $0x34] sm:$0xf]
    %v6045 = vld [vmem:[%s1692 + $0x38] sm:$0xf]
    %v6046 = vld [vmem:[%s1692 + $0x3c] sm:$0xf]
    %v6047 = vld [vmem:[%s1692 + $0x40] sm:$0xf]
    %v6048 = vld [vmem:[%s1692 + $0x44] sm:$0xf]
    %v6049 = vld [vmem:[%s1692 + $0x48] sm:$0xf]
    %v6050 = vld [vmem:[%s1692 + $0x4c] sm:$0xf]
    %v6051 = vld [vmem:[%s1692 + $0x50] sm:$0xf]
    %v6052 = vld [vmem:[%s1692 + $0x54] sm:$0xf]
    %v6053 = vld [vmem:[%s1692 + $0x58] sm:$0xf]
    %v6054 = vld [vmem:[%s1692 + $0x5c] sm:$0xf]
    %v6055 = vld [vmem:[%s1692 + $0x60] sm:$0xf]
    %v6056 = vld [vmem:[%s1692 + $0x64] sm:$0xf]
    %v6057 = vld [vmem:[%s1692 + $0x68] sm:$0xf]
    %v6058 = vld [vmem:[%s1692 + $0x6c] sm:$0xf]
    %v6059 = vld [vmem:[%s1692 + $0x70] sm:$0xf]
    %v6060 = vld [vmem:[%s1692 + $0x74] sm:$0xf]
    %v6061 = vld [vmem:[%s1692 + $0x78] sm:$0xf]
    %v6062 = vld [vmem:[%s1692 + $0x7c] sm:$0xf]
    %v6095 = vunpack.c.l.b16 %v6031
    %v6096 = vunpack.c.l.b16 %v6032
    %v6097 = vunpack.c.l.b16 %v6033
    %v6098 = vunpack.c.l.b16 %v6034
    %v6099 = vunpack.c.l.b16 %v6035
    %v6100 = vunpack.c.l.b16 %v6036
    %v6101 = vunpack.c.l.b16 %v6037
    %v6102 = vunpack.c.l.b16 %v6038
    %v6103 = vunpack.c.l.b16 %v6039
    %v6104 = vunpack.c.l.b16 %v6040
    %v6105 = vunpack.c.l.b16 %v6041
    %v6106 = vunpack.c.l.b16 %v6042
    %v6107 = vunpack.c.l.b16 %v6043
    %v6108 = vunpack.c.l.b16 %v6044
    %v6109 = vunpack.c.l.b16 %v6045
    %v6110 = vunpack.c.l.b16 %v6046
    %v6111 = vunpack.c.l.b16 %v6047
    %v6112 = vunpack.c.l.b16 %v6048
    %v6113 = vunpack.c.l.b16 %v6049
    %v6114 = vunpack.c.l.b16 %v6050
    %v6115 = vunpack.c.l.b16 %v6051
    %v6116 = vunpack.c.l.b16 %v6052
    %v6117 = vunpack.c.l.b16 %v6053
    %v6118 = vunpack.c.l.b16 %v6054
    %v6119 = vunpack.c.l.b16 %v6055
    %v6120 = vunpack.c.l.b16 %v6056
    %v6121 = vunpack.c.l.b16 %v6057
    %v6122 = vunpack.c.l.b16 %v6058
    %v6123 = vunpack.c.l.b16 %v6059
    %v6124 = vunpack.c.l.b16 %v6060
    %v6125 = vunpack.c.l.b16 %v6061
    %v6126 = vunpack.c.l.b16 %v6062
    %v6127 = vpack.c.b16 %v6096, %v6095
    %v6128 = vpack.c.b16 %v6098, %v6097
    %v6129 = vpack.c.b16 %v6100, %v6099
    %v6130 = vpack.c.b16 %v6102, %v6101
    %v6131 = vpack.c.b16 %v6104, %v6103
    %v6132 = vpack.c.b16 %v6106, %v6105
    %v6133 = vpack.c.b16 %v6108, %v6107
    %v6134 = vpack.c.b16 %v6110, %v6109
    %v6135 = vpack.c.b16 %v6112, %v6111
    %v6136 = vpack.c.b16 %v6114, %v6113
    %v6137 = vpack.c.b16 %v6116, %v6115
    %v6138 = vpack.c.b16 %v6118, %v6117
    %v6139 = vpack.c.b16 %v6120, %v6119
    %v6140 = vpack.c.b16 %v6122, %v6121
    %v6141 = vpack.c.b16 %v6124, %v6123
    %v6142 = vpack.c.b16 %v6126, %v6125
    %6159 = vmatpush.bf16.msra.mxu0 %v6134
    %6160 = vmatpush.bf16.msra.mxu0 %v6133
    %6161 = vmatpush.bf16.msra.mxu0 %v6132
    %6162 = vmatpush.bf16.msra.mxu0 %v6131
    %6163 = vmatpush.bf16.msra.mxu0 %v6130
    %6164 = vmatpush.bf16.msra.mxu0 %v6129
    %6165 = vmatpush.bf16.msra.mxu0 %v6128
    %6166 = vmatpush.bf16.msra.mxu0 %v6127
    %6167 = vmatmul.bf16.gmra.mxu0 %v5875
    %v6168 = vpop.f32.mrf.mxu0
    %v6169 = vadd.f32 0.0, %v6168
    %v6170 = vpop.f32.mrf.mxu0
    %6171 = vdwg.mxu0
    %6172 = vmatpush.bf16.msra.mxu0 %v6142
    %6173 = vmatpush.bf16.msra.mxu0 %v6141
    %6174 = vmatpush.bf16.msra.mxu0 %v6140
    %6175 = vmatpush.bf16.msra.mxu0 %v6139
    %6176 = vmatpush.bf16.msra.mxu0 %v6138
    %6177 = vmatpush.bf16.msra.mxu0 %v6137
    %6178 = vmatpush.bf16.msra.mxu0 %v6136
    %6179 = vmatpush.bf16.msra.mxu0 %v6135
    %6180 = vmatmul.bf16.gmra.mxu0 %v5876
    %v6181 = vpop.f32.mrf.mxu0
    %v6182 = vadd.f32 %v6169, %v6181
    %v6183 = vpop.f32.mrf.mxu0
    %6184 = vdwg.mxu0
    %v6185 = vmax.f32 %v6028, %v6182
    %v6187 = vrot.slane %v6185, 1
    %6188 = vrot.lane.b32.xlu0 %v6187, 32
    %v6189 = vpop.permute.xlu0 %6188
    %vm6191 = vcmask 1047815
    %6192 = vst.msk [vmem:[#allocation3] sm:$0x80] %vm6191, %v6189
    %vm6193 = vcmask 261127
    %6194 = vst.msk [vmem:[#allocation3 + $0x8] sm:$0x80] %vm6193, %v6189
    %vm6195 = vcmask 1042688
    %6196 = vst.msk [vmem:[#allocation3 + $0x10] sm:$0x7] %vm6195, %v6189
    %vm6197 = vcmask 256000
    %6198 = vst.msk [vmem:[#allocation3 + $0x18] sm:$0x7] %vm6197, %v6189
    %v6199 = vld [vmem:[#allocation3] sm:$0xc0]
    %v6200 = vld [vmem:[#allocation3 + $0x8] sm:$0xc0]
    %v6201 = vld [vmem:[#allocation3 + $0x10] sm:$0x3]
    %v6202 = vld [vmem:[#allocation3 + $0x18] sm:$0x3]
    %v6203 = vpack.c.bf16 %v6201, %v6199
    %v6204 = vpack.c.bf16 %v6202, %v6200
    %v6205 = vld [vmem:[#allocation4] sm:$0xff]
    %v6206 = vld [vmem:[#allocation4 + $0x8] sm:$0xff]
    %v6207 = vld [vmem:[#allocation4 + $0x10] sm:$0xff]
    %v6208 = vld [vmem:[#allocation4 + $0x18] sm:$0xff]
    %v6209 = vld [vmem:[#allocation4 + $0x20] sm:$0xff]
    %v6210 = vld [vmem:[#allocation4 + $0x28] sm:$0xff]
    %v6211 = vld [vmem:[#allocation4 + $0x30] sm:$0xff]
    %v6212 = vld [vmem:[#allocation4 + $0x38] sm:$0xff]
    %v6213 = vld [vmem:[#allocation4 + $0x40] sm:$0xff]
    %v6214 = vld [vmem:[#allocation4 + $0x48] sm:$0xff]
    %v6215 = vld [vmem:[#allocation4 + $0x50] sm:$0xff]
    %v6216 = vld [vmem:[#allocation4 + $0x58] sm:$0xff]
    %v6217 = vld [vmem:[#allocation4 + $0x60] sm:$0xff]
    %v6218 = vld [vmem:[#allocation4 + $0x68] sm:$0xff]
    %v6219 = vld [vmem:[#allocation4 + $0x70] sm:$0xff]
    %v6220 = vld [vmem:[#allocation4 + $0x78] sm:$0xff]
    %v6221 = vld [vmem:[#allocation4 + $0x80] sm:$0xff]
    %v6222 = vld [vmem:[#allocation4 + $0x88] sm:$0xff]
    %v6223 = vld [vmem:[#allocation4 + $0x90] sm:$0xff]
    %v6224 = vld [vmem:[#allocation4 + $0x98] sm:$0xff]
    %v6225 = vld [vmem:[#allocation4 + $0xa0] sm:$0xff]
    %v6226 = vld [vmem:[#allocation4 + $0xa8] sm:$0xff]
    %v6227 = vld [vmem:[#allocation4 + $0xb0] sm:$0xff]
    %v6228 = vld [vmem:[#allocation4 + $0xb8] sm:$0xff]
    %v6229 = vld [vmem:[#allocation4 + $0xc0] sm:$0xff]
    %v6230 = vld [vmem:[#allocation4 + $0xc8] sm:$0xff]
    %v6231 = vld [vmem:[#allocation4 + $0xd0] sm:$0xff]
    %v6232 = vld [vmem:[#allocation4 + $0xd8] sm:$0xff]
    %v6233 = vld [vmem:[#allocation4 + $0xe0] sm:$0xff]
    %v6234 = vld [vmem:[#allocation4 + $0xe8] sm:$0xff]
    %v6235 = vld [vmem:[#allocation4 + $0xf0] sm:$0xff]
    %v6236 = vld [vmem:[#allocation4 + $0xf8] sm:$0xff]
    %v6237 = vld [vmem:[#allocation4 + $0x100] sm:$0xff]
    %v6238 = vld [vmem:[#allocation4 + $0x108] sm:$0xff]
    %v6239 = vld [vmem:[#allocation4 + $0x110] sm:$0xff]
    %v6240 = vld [vmem:[#allocation4 + $0x118] sm:$0xff]
    %v6241 = vld [vmem:[#allocation4 + $0x120] sm:$0xff]
    %v6242 = vld [vmem:[#allocation4 + $0x128] sm:$0xff]
    %v6243 = vld [vmem:[#allocation4 + $0x130] sm:$0xff]
    %v6244 = vld [vmem:[#allocation4 + $0x138] sm:$0xff]
    %v6245 = vld [vmem:[#allocation4 + $0x140] sm:$0xff]
    %v6246 = vld [vmem:[#allocation4 + $0x148] sm:$0xff]
    %v6247 = vld [vmem:[#allocation4 + $0x150] sm:$0xff]
    %v6248 = vld [vmem:[#allocation4 + $0x158] sm:$0xff]
    %v6249 = vld [vmem:[#allocation4 + $0x160] sm:$0xff]
    %v6250 = vld [vmem:[#allocation4 + $0x168] sm:$0xff]
    %v6251 = vld [vmem:[#allocation4 + $0x170] sm:$0xff]
    %v6252 = vld [vmem:[#allocation4 + $0x178] sm:$0xff]
    %v6253 = vld [vmem:[#allocation3] sm:$0x80]
    %v6254 = vld [vmem:[#allocation3 + $0x8] sm:$0x80]
    %v6255 = vld [vmem:[#allocation3 + $0x10] sm:$0x7]
    %v6256 = vld [vmem:[#allocation3 + $0x18] sm:$0x7]
    %v6257 = vpack.c.bf16 %v6255, %v6253
    %v6258 = vpack.c.bf16 %v6256, %v6254
    %v6259 = vld [vmem:[%s1913] sm:$0xff]
    %v6260 = vld [vmem:[%s1913 + $0x8] sm:$0xff]
    %v6261 = vld [vmem:[%s1913 + $0x10] sm:$0xff]
    %v6262 = vld [vmem:[%s1913 + $0x18] sm:$0xff]
    %v6263 = vld [vmem:[%s1913 + $0x20] sm:$0xff]
    %v6264 = vld [vmem:[%s1913 + $0x28] sm:$0xff]
    %v6265 = vld [vmem:[%s1913 + $0x30] sm:$0xff]
    %v6266 = vld [vmem:[%s1913 + $0x38] sm:$0xff]
    %v6267 = vld [vmem:[%s1913 + $0x40] sm:$0xff]
    %v6268 = vld [vmem:[%s1913 + $0x48] sm:$0xff]
    %v6269 = vld [vmem:[%s1913 + $0x50] sm:$0xff]
    %v6270 = vld [vmem:[%s1913 + $0x58] sm:$0xff]
    %v6271 = vld [vmem:[%s1913 + $0x60] sm:$0xff]
    %v6272 = vld [vmem:[%s1913 + $0x68] sm:$0xff]
    %v6273 = vld [vmem:[%s1913 + $0x70] sm:$0xff]
    %v6274 = vld [vmem:[%s1913 + $0x78] sm:$0xff]
    %v6275 = vld [vmem:[%s1913 + $0x80] sm:$0xff]
    %v6276 = vld [vmem:[%s1913 + $0x88] sm:$0xff]
    %v6277 = vld [vmem:[%s1913 + $0x90] sm:$0xff]
    %v6278 = vld [vmem:[%s1913 + $0x98] sm:$0xff]
    %v6279 = vld [vmem:[%s1913 + $0xa0] sm:$0xff]
    %v6280 = vld [vmem:[%s1913 + $0xa8] sm:$0xff]
    %v6281 = vld [vmem:[%s1913 + $0xb0] sm:$0xff]
    %v6282 = vld [vmem:[%s1913 + $0xb8] sm:$0xff]
    %v6283 = vld [vmem:[%s1913 + $0xc0] sm:$0xff]
    %v6284 = vld [vmem:[%s1913 + $0xc8] sm:$0xff]
    %v6285 = vld [vmem:[%s1913 + $0xd0] sm:$0xff]
    %v6286 = vld [vmem:[%s1913 + $0xd8] sm:$0xff]
    %v6287 = vld [vmem:[%s1913 + $0xe0] sm:$0xff]
    %v6288 = vld [vmem:[%s1913 + $0xe8] sm:$0xff]
    %v6289 = vld [vmem:[%s1913 + $0xf0] sm:$0xff]
    %v6290 = vld [vmem:[%s1913 + $0xf8] sm:$0xff]
    %v6291 = vld [vmem:[%s1913 + $0x100] sm:$0xff]
    %v6292 = vld [vmem:[%s1913 + $0x108] sm:$0xff]
    %v6293 = vld [vmem:[%s1913 + $0x110] sm:$0xff]
    %v6294 = vld [vmem:[%s1913 + $0x118] sm:$0xff]
    %v6295 = vld [vmem:[%s1913 + $0x120] sm:$0xff]
    %v6296 = vld [vmem:[%s1913 + $0x128] sm:$0xff]
    %v6297 = vld [vmem:[%s1913 + $0x130] sm:$0xff]
    %v6298 = vld [vmem:[%s1913 + $0x138] sm:$0xff]
    %v6299 = vld [vmem:[%s1913 + $0x140] sm:$0xff]
    %v6300 = vld [vmem:[%s1913 + $0x148] sm:$0xff]
    %v6301 = vld [vmem:[%s1913 + $0x150] sm:$0xff]
    %v6302 = vld [vmem:[%s1913 + $0x158] sm:$0xff]
    %v6303 = vld [vmem:[%s1913 + $0x160] sm:$0xff]
    %v6304 = vld [vmem:[%s1913 + $0x168] sm:$0xff]
    %v6305 = vld [vmem:[%s1913 + $0x170] sm:$0xff]
    %v6306 = vld [vmem:[%s1913 + $0x178] sm:$0xff]
    %v6308 = vshrl.u32 %v6257, 16
    %v6310 = vrot.slane %v6308, 3
    %v6311 = vshll.u32 %v6257, 16
    %v6313 = vrot.slane %v6311, 4
    %v6314 = vor.u32 %v6310, %v6313
    %v6316 = vshrl.u32 %v6258, 16
    %v6318 = vrot.slane %v6316, 3
    %v6319 = vshll.u32 %v6258, 16
    %v6321 = vrot.slane %v6319, 4
    %v6322 = vor.u32 %v6318, %v6321
    %v6372 = vunpack.c.l.b16 %v6259
    %v6373 = vunpack.c.h.b16 %v6259
    %v6374 = vunpack.c.l.b16 %v6260
    %v6375 = vunpack.c.h.b16 %v6260
    %v6376 = vunpack.c.l.b16 %v6261
    %v6377 = vunpack.c.h.b16 %v6261
    %v6378 = vunpack.c.l.b16 %v6262
    %v6379 = vunpack.c.h.b16 %v6262
    %v6380 = vunpack.c.l.b16 %v6263
    %v6381 = vunpack.c.h.b16 %v6263
    %v6382 = vunpack.c.l.b16 %v6264
    %v6383 = vunpack.c.h.b16 %v6264
    %v6384 = vunpack.c.l.b16 %v6265
    %v6385 = vunpack.c.h.b16 %v6265
    %v6386 = vunpack.c.l.b16 %v6266
    %v6387 = vunpack.c.h.b16 %v6266
    %v6388 = vunpack.c.l.b16 %v6267
    %v6389 = vunpack.c.h.b16 %v6267
    %v6390 = vunpack.c.l.b16 %v6268
    %v6391 = vunpack.c.h.b16 %v6268
    %v6392 = vunpack.c.l.b16 %v6269
    %v6393 = vunpack.c.h.b16 %v6269
    %v6394 = vunpack.c.l.b16 %v6270
    %v6395 = vunpack.c.h.b16 %v6270
    %v6396 = vunpack.c.l.b16 %v6271
    %v6397 = vunpack.c.h.b16 %v6271
    %v6398 = vunpack.c.l.b16 %v6272
    %v6399 = vunpack.c.h.b16 %v6272
    %v6400 = vunpack.c.l.b16 %v6273
    %v6401 = vunpack.c.h.b16 %v6273
    %v6402 = vunpack.c.l.b16 %v6274
    %v6403 = vunpack.c.h.b16 %v6274
    %v6404 = vunpack.c.l.b16 %v6275
    %v6405 = vunpack.c.h.b16 %v6275
    %v6406 = vunpack.c.l.b16 %v6276
    %v6407 = vunpack.c.h.b16 %v6276
    %v6408 = vunpack.c.l.b16 %v6277
    %v6409 = vunpack.c.h.b16 %v6277
    %v6410 = vunpack.c.l.b16 %v6278
    %v6411 = vunpack.c.h.b16 %v6278
    %v6412 = vunpack.c.l.b16 %v6279
    %v6413 = vunpack.c.h.b16 %v6279
    %v6414 = vunpack.c.l.b16 %v6280
    %v6415 = vunpack.c.h.b16 %v6280
    %v6416 = vunpack.c.l.b16 %v6281
    %v6417 = vunpack.c.h.b16 %v6281
    %v6418 = vunpack.c.l.b16 %v6282
    %v6419 = vunpack.c.h.b16 %v6282
    %v6420 = vunpack.c.l.b16 %v6283
    %v6421 = vunpack.c.h.b16 %v6283
    %v6422 = vunpack.c.l.b16 %v6284
    %v6423 = vunpack.c.h.b16 %v6284
    %v6424 = vunpack.c.l.b16 %v6285
    %v6425 = vunpack.c.h.b16 %v6285
    %v6426 = vunpack.c.l.b16 %v6286
    %v6427 = vunpack.c.h.b16 %v6286
    %v6428 = vunpack.c.l.b16 %v6287
    %v6429 = vunpack.c.h.b16 %v6287
    %v6430 = vunpack.c.l.b16 %v6288
    %v6431 = vunpack.c.h.b16 %v6288
    %v6432 = vunpack.c.l.b16 %v6289
    %v6433 = vunpack.c.h.b16 %v6289
    %v6434 = vunpack.c.l.b16 %v6290
    %v6435 = vunpack.c.h.b16 %v6290
    %v6436 = vunpack.c.l.b16 %v6291
    %v6437 = vunpack.c.h.b16 %v6291
    %v6438 = vunpack.c.l.b16 %v6292
    %v6439 = vunpack.c.h.b16 %v6292
    %v6440 = vunpack.c.l.b16 %v6293
    %v6441 = vunpack.c.h.b16 %v6293
    %v6442 = vunpack.c.l.b16 %v6294
    %v6443 = vunpack.c.h.b16 %v6294
    %v6444 = vunpack.c.l.b16 %v6295
    %v6445 = vunpack.c.h.b16 %v6295
    %v6446 = vunpack.c.l.b16 %v6296
    %v6447 = vunpack.c.h.b16 %v6296
    %v6448 = vunpack.c.l.b16 %v6297
    %v6449 = vunpack.c.h.b16 %v6297
    %v6450 = vunpack.c.l.b16 %v6298
    %v6451 = vunpack.c.h.b16 %v6298
    %v6452 = vunpack.c.l.b16 %v6299
    %v6453 = vunpack.c.h.b16 %v6299
    %v6454 = vunpack.c.l.b16 %v6300
    %v6455 = vunpack.c.h.b16 %v6300
    %v6456 = vunpack.c.l.b16 %v6301
    %v6457 = vunpack.c.h.b16 %v6301
    %v6458 = vunpack.c.l.b16 %v6302
    %v6459 = vunpack.c.h.b16 %v6302
    %v6460 = vunpack.c.l.b16 %v6303
    %v6461 = vunpack.c.h.b16 %v6303
    %v6462 = vunpack.c.l.b16 %v6304
    %v6463 = vunpack.c.h.b16 %v6304
    %v6464 = vunpack.c.l.b16 %v6305
    %v6465 = vunpack.c.h.b16 %v6305
    %v6466 = vunpack.c.l.b16 %v6306
    %v6467 = vunpack.c.h.b16 %v6306
    %v6468 = vpack.c.b16 %v6376, %v6372
    %v6469 = vpack.c.b16 %v6377, %v6373
    %v6470 = vpack.c.b16 %v6378, %v6374
    %v6471 = vpack.c.b16 %v6379, %v6375
    %v6472 = vpack.c.b16 %v6384, %v6380
    %v6473 = vpack.c.b16 %v6385, %v6381
    %v6474 = vpack.c.b16 %v6386, %v6382
    %v6475 = vpack.c.b16 %v6387, %v6383
    %v6476 = vpack.c.b16 %v6392, %v6388
    %v6477 = vpack.c.b16 %v6393, %v6389
    %v6478 = vpack.c.b16 %v6394, %v6390
    %v6479 = vpack.c.b16 %v6395, %v6391
    %v6480 = vpack.c.b16 %v6400, %v6396
    %v6481 = vpack.c.b16 %v6401, %v6397
    %v6482 = vpack.c.b16 %v6402, %v6398
    %v6483 = vpack.c.b16 %v6403, %v6399
    %v6484 = vpack.c.b16 %v6408, %v6404
    %v6485 = vpack.c.b16 %v6409, %v6405
    %v6486 = vpack.c.b16 %v6410, %v6406
    %v6487 = vpack.c.b16 %v6411, %v6407
    %v6488 = vpack.c.b16 %v6416, %v6412
    %v6489 = vpack.c.b16 %v6417, %v6413
    %v6490 = vpack.c.b16 %v6418, %v6414
    %v6491 = vpack.c.b16 %v6419, %v6415
    %v6492 = vpack.c.b16 %v6424, %v6420
    %v6493 = vpack.c.b16 %v6425, %v6421
    %v6494 = vpack.c.b16 %v6426, %v6422
    %v6495 = vpack.c.b16 %v6427, %v6423
    %v6496 = vpack.c.b16 %v6432, %v6428
    %v6497 = vpack.c.b16 %v6433, %v6429
    %v6498 = vpack.c.b16 %v6434, %v6430
    %v6499 = vpack.c.b16 %v6435, %v6431
    %v6500 = vpack.c.b16 %v6440, %v6436
    %v6501 = vpack.c.b16 %v6441, %v6437
    %v6502 = vpack.c.b16 %v6442, %v6438
    %v6503 = vpack.c.b16 %v6443, %v6439
    %v6504 = vpack.c.b16 %v6448, %v6444
    %v6505 = vpack.c.b16 %v6449, %v6445
    %v6506 = vpack.c.b16 %v6450, %v6446
    %v6507 = vpack.c.b16 %v6451, %v6447
    %v6508 = vpack.c.b16 %v6456, %v6452
    %v6509 = vpack.c.b16 %v6457, %v6453
    %v6510 = vpack.c.b16 %v6458, %v6454
    %v6511 = vpack.c.b16 %v6459, %v6455
    %v6512 = vpack.c.b16 %v6464, %v6460
    %v6513 = vpack.c.b16 %v6465, %v6461
    %v6514 = vpack.c.b16 %v6466, %v6462
    %v6515 = vpack.c.b16 %v6467, %v6463
    %v6565 = vsel %vm206, %v6322, 0
    %6567 = vmatpush.bf16.msra.mxu0 %v6496
    %6568 = vmatpush.bf16.msra.mxu0 %v6492
    %6569 = vmatpush.bf16.msra.mxu0 %v6488
    %6570 = vmatpush.bf16.msra.mxu0 %v6484
    %6571 = vmatpush.bf16.msra.mxu0 %v6480
    %6572 = vmatpush.bf16.msra.mxu0 %v6476
    %6573 = vmatpush.bf16.msra.mxu0 %v6472
    %6574 = vmatpush.bf16.msra.mxu0 %v6468
    %6575 = vmatmul.bf16.gmra.mxu0 %v6314
    %v6576 = vpop.f32.mrf.mxu0
    %v6577 = vadd.f32 0.0, %v6576
    %v6578 = vpop.f32.mrf.mxu0
    %6579 = vdwg.mxu0
    %6580 = vmatpush.bf16.msra.mxu0 0
    %6581 = vmatpush.bf16.msra.mxu0 0
    %6582 = vmatpush.bf16.msra.mxu0 0
    %6583 = vmatpush.bf16.msra.mxu0 0
    %6584 = vmatpush.bf16.msra.mxu0 %v6512
    %6585 = vmatpush.bf16.msra.mxu0 %v6508
    %6586 = vmatpush.bf16.msra.mxu0 %v6504
    %6587 = vmatpush.bf16.msra.mxu0 %v6500
    %6588 = vmatmul.bf16.gmra.mxu0 %v6565
    %v6589 = vpop.f32.mrf.mxu0
    %v6590 = vadd.f32 %v6577, %v6589
    %v6591 = vpop.f32.mrf.mxu0
    %6592 = vdwg.mxu0
    %6593 = vmatpush.bf16.msra.mxu0 %v6497
    %6594 = vmatpush.bf16.msra.mxu0 %v6493
    %6595 = vmatpush.bf16.msra.mxu0 %v6489
    %6596 = vmatpush.bf16.msra.mxu0 %v6485
    %6597 = vmatpush.bf16.msra.mxu0 %v6481
    %6598 = vmatpush.bf16.msra.mxu0 %v6477
    %6599 = vmatpush.bf16.msra.mxu0 %v6473
    %6600 = vmatpush.bf16.msra.mxu0 %v6469
    %6601 = vmatmul.bf16.gmra.mxu0 %v6314
    %v6602 = vpop.f32.mrf.mxu0
    %v6603 = vadd.f32 0.0, %v6602
    %v6604 = vpop.f32.mrf.mxu0
    %6605 = vdwg.mxu0
    %6606 = vmatpush.bf16.msra.mxu0 0
    %6607 = vmatpush.bf16.msra.mxu0 0
    %6608 = vmatpush.bf16.msra.mxu0 0
    %6609 = vmatpush.bf16.msra.mxu0 0
    %6610 = vmatpush.bf16.msra.mxu0 %v6513
    %6611 = vmatpush.bf16.msra.mxu0 %v6509
    %6612 = vmatpush.bf16.msra.mxu0 %v6505
    %6613 = vmatpush.bf16.msra.mxu0 %v6501
    %6614 = vmatmul.bf16.gmra.mxu0 %v6565
    %v6615 = vpop.f32.mrf.mxu0
    %v6616 = vadd.f32 %v6603, %v6615
    %v6617 = vpop.f32.mrf.mxu0
    %6618 = vdwg.mxu0
    %6619 = vmatpush.bf16.msra.mxu0 %v6498
    %6620 = vmatpush.bf16.msra.mxu0 %v6494
    %6621 = vmatpush.bf16.msra.mxu0 %v6490
    %6622 = vmatpush.bf16.msra.mxu0 %v6486
    %6623 = vmatpush.bf16.msra.mxu0 %v6482
    %6624 = vmatpush.bf16.msra.mxu0 %v6478
    %6625 = vmatpush.bf16.msra.mxu0 %v6474
    %6626 = vmatpush.bf16.msra.mxu0 %v6470
    %6627 = vmatmul.bf16.gmra.mxu0 %v6314
    %v6628 = vpop.f32.mrf.mxu0
    %v6629 = vadd.f32 0.0, %v6628
    %v6630 = vpop.f32.mrf.mxu0
    %6631 = vdwg.mxu0
    %6632 = vmatpush.bf16.msra.mxu0 0
    %6633 = vmatpush.bf16.msra.mxu0 0
    %6634 = vmatpush.bf16.msra.mxu0 0
    %6635 = vmatpush.bf16.msra.mxu0 0
    %6636 = vmatpush.bf16.msra.mxu0 %v6514
    %6637 = vmatpush.bf16.msra.mxu0 %v6510
    %6638 = vmatpush.bf16.msra.mxu0 %v6506
    %6639 = vmatpush.bf16.msra.mxu0 %v6502
    %6640 = vmatmul.bf16.gmra.mxu0 %v6565
    %v6641 = vpop.f32.mrf.mxu0
    %v6642 = vadd.f32 %v6629, %v6641
    %v6643 = vpop.f32.mrf.mxu0
    %6644 = vdwg.mxu0
    %6645 = vmatpush.bf16.msra.mxu0 %v6499
    %6646 = vmatpush.bf16.msra.mxu0 %v6495
    %6647 = vmatpush.bf16.msra.mxu0 %v6491
    %6648 = vmatpush.bf16.msra.mxu0 %v6487
    %6649 = vmatpush.bf16.msra.mxu0 %v6483
    %6650 = vmatpush.bf16.msra.mxu0 %v6479
    %6651 = vmatpush.bf16.msra.mxu0 %v6475
    %6652 = vmatpush.bf16.msra.mxu0 %v6471
    %6653 = vmatmul.bf16.gmra.mxu0 %v6314
    %v6654 = vpop.f32.mrf.mxu0
    %v6655 = vadd.f32 0.0, %v6654
    %v6656 = vpop.f32.mrf.mxu0
    %6657 = vdwg.mxu0
    %6658 = vmatpush.bf16.msra.mxu0 0
    %6659 = vmatpush.bf16.msra.mxu0 0
    %6660 = vmatpush.bf16.msra.mxu0 0
    %6661 = vmatpush.bf16.msra.mxu0 0
    %6662 = vmatpush.bf16.msra.mxu0 %v6515
    %6663 = vmatpush.bf16.msra.mxu0 %v6511
    %6664 = vmatpush.bf16.msra.mxu0 %v6507
    %6665 = vmatpush.bf16.msra.mxu0 %v6503
    %6666 = vmatmul.bf16.gmra.mxu0 %v6565
    %v6667 = vpop.f32.mrf.mxu0
    %v6668 = vadd.f32 %v6655, %v6667
    %v6669 = vpop.f32.mrf.mxu0
    %6670 = vdwg.mxu0
    %v6673 = vrot.slane %v6203, 3
    %v6674 = vrot.slane %v6204, 3
    %v6724 = vunpack.c.l.b16 %v6205
    %v6725 = vunpack.c.h.b16 %v6205
    %v6726 = vunpack.c.l.b16 %v6206
    %v6727 = vunpack.c.h.b16 %v6206
    %v6728 = vunpack.c.l.b16 %v6207
    %v6729 = vunpack.c.h.b16 %v6207
    %v6730 = vunpack.c.l.b16 %v6208
    %v6731 = vunpack.c.h.b16 %v6208
    %v6732 = vunpack.c.l.b16 %v6209
    %v6733 = vunpack.c.h.b16 %v6209
    %v6734 = vunpack.c.l.b16 %v6210
    %v6735 = vunpack.c.h.b16 %v6210
    %v6736 = vunpack.c.l.b16 %v6211
    %v6737 = vunpack.c.h.b16 %v6211
    %v6738 = vunpack.c.l.b16 %v6212
    %v6739 = vunpack.c.h.b16 %v6212
    %v6740 = vunpack.c.l.b16 %v6213
    %v6741 = vunpack.c.h.b16 %v6213
    %v6742 = vunpack.c.l.b16 %v6214
    %v6743 = vunpack.c.h.b16 %v6214
    %v6744 = vunpack.c.l.b16 %v6215
    %v6745 = vunpack.c.h.b16 %v6215
    %v6746 = vunpack.c.l.b16 %v6216
    %v6747 = vunpack.c.h.b16 %v6216
    %v6748 = vunpack.c.l.b16 %v6217
    %v6749 = vunpack.c.h.b16 %v6217
    %v6750 = vunpack.c.l.b16 %v6218
    %v6751 = vunpack.c.h.b16 %v6218
    %v6752 = vunpack.c.l.b16 %v6219
    %v6753 = vunpack.c.h.b16 %v6219
    %v6754 = vunpack.c.l.b16 %v6220
    %v6755 = vunpack.c.h.b16 %v6220
    %v6756 = vunpack.c.l.b16 %v6221
    %v6757 = vunpack.c.h.b16 %v6221
    %v6758 = vunpack.c.l.b16 %v6222
    %v6759 = vunpack.c.h.b16 %v6222
    %v6760 = vunpack.c.l.b16 %v6223
    %v6761 = vunpack.c.h.b16 %v6223
    %v6762 = vunpack.c.l.b16 %v6224
    %v6763 = vunpack.c.h.b16 %v6224
    %v6764 = vunpack.c.l.b16 %v6225
    %v6765 = vunpack.c.h.b16 %v6225
    %v6766 = vunpack.c.l.b16 %v6226
    %v6767 = vunpack.c.h.b16 %v6226
    %v6768 = vunpack.c.l.b16 %v6227
    %v6769 = vunpack.c.h.b16 %v6227
    %v6770 = vunpack.c.l.b16 %v6228
    %v6771 = vunpack.c.h.b16 %v6228
    %v6772 = vunpack.c.l.b16 %v6229
    %v6773 = vunpack.c.h.b16 %v6229
    %v6774 = vunpack.c.l.b16 %v6230
    %v6775 = vunpack.c.h.b16 %v6230
    %v6776 = vunpack.c.l.b16 %v6231
    %v6777 = vunpack.c.h.b16 %v6231
    %v6778 = vunpack.c.l.b16 %v6232
    %v6779 = vunpack.c.h.b16 %v6232
    %v6780 = vunpack.c.l.b16 %v6233
    %v6781 = vunpack.c.h.b16 %v6233
    %v6782 = vunpack.c.l.b16 %v6234
    %v6783 = vunpack.c.h.b16 %v6234
    %v6784 = vunpack.c.l.b16 %v6235
    %v6785 = vunpack.c.h.b16 %v6235
    %v6786 = vunpack.c.l.b16 %v6236
    %v6787 = vunpack.c.h.b16 %v6236
    %v6788 = vunpack.c.l.b16 %v6237
    %v6789 = vunpack.c.h.b16 %v6237
    %v6790 = vunpack.c.l.b16 %v6238
    %v6791 = vunpack.c.h.b16 %v6238
    %v6792 = vunpack.c.l.b16 %v6239
    %v6793 = vunpack.c.h.b16 %v6239
    %v6794 = vunpack.c.l.b16 %v6240
    %v6795 = vunpack.c.h.b16 %v6240
    %v6796 = vunpack.c.l.b16 %v6241
    %v6797 = vunpack.c.h.b16 %v6241
    %v6798 = vunpack.c.l.b16 %v6242
    %v6799 = vunpack.c.h.b16 %v6242
    %v6800 = vunpack.c.l.b16 %v6243
    %v6801 = vunpack.c.h.b16 %v6243
    %v6802 = vunpack.c.l.b16 %v6244
    %v6803 = vunpack.c.h.b16 %v6244
    %v6804 = vunpack.c.l.b16 %v6245
    %v6805 = vunpack.c.h.b16 %v6245
    %v6806 = vunpack.c.l.b16 %v6246
    %v6807 = vunpack.c.h.b16 %v6246
    %v6808 = vunpack.c.l.b16 %v6247
    %v6809 = vunpack.c.h.b16 %v6247
    %v6810 = vunpack.c.l.b16 %v6248
    %v6811 = vunpack.c.h.b16 %v6248
    %v6812 = vunpack.c.l.b16 %v6249
    %v6813 = vunpack.c.h.b16 %v6249
    %v6814 = vunpack.c.l.b16 %v6250
    %v6815 = vunpack.c.h.b16 %v6250
    %v6816 = vunpack.c.l.b16 %v6251
    %v6817 = vunpack.c.h.b16 %v6251
    %v6818 = vunpack.c.l.b16 %v6252
    %v6819 = vunpack.c.h.b16 %v6252
    %v6820 = vpack.c.b16 %v6728, %v6724
    %v6821 = vpack.c.b16 %v6729, %v6725
    %v6822 = vpack.c.b16 %v6730, %v6726
    %v6823 = vpack.c.b16 %v6731, %v6727
    %v6824 = vpack.c.b16 %v6736, %v6732
    %v6825 = vpack.c.b16 %v6737, %v6733
    %v6826 = vpack.c.b16 %v6738, %v6734
    %v6827 = vpack.c.b16 %v6739, %v6735
    %v6828 = vpack.c.b16 %v6744, %v6740
    %v6829 = vpack.c.b16 %v6745, %v6741
    %v6830 = vpack.c.b16 %v6746, %v6742
    %v6831 = vpack.c.b16 %v6747, %v6743
    %v6832 = vpack.c.b16 %v6752, %v6748
    %v6833 = vpack.c.b16 %v6753, %v6749
    %v6834 = vpack.c.b16 %v6754, %v6750
    %v6835 = vpack.c.b16 %v6755, %v6751
    %v6836 = vpack.c.b16 %v6760, %v6756
    %v6837 = vpack.c.b16 %v6761, %v6757
    %v6838 = vpack.c.b16 %v6762, %v6758
    %v6839 = vpack.c.b16 %v6763, %v6759
    %v6840 = vpack.c.b16 %v6768, %v6764
    %v6841 = vpack.c.b16 %v6769, %v6765
    %v6842 = vpack.c.b16 %v6770, %v6766
    %v6843 = vpack.c.b16 %v6771, %v6767
    %v6844 = vpack.c.b16 %v6776, %v6772
    %v6845 = vpack.c.b16 %v6777, %v6773
    %v6846 = vpack.c.b16 %v6778, %v6774
    %v6847 = vpack.c.b16 %v6779, %v6775
    %v6848 = vpack.c.b16 %v6784, %v6780
    %v6849 = vpack.c.b16 %v6785, %v6781
    %v6850 = vpack.c.b16 %v6786, %v6782
    %v6851 = vpack.c.b16 %v6787, %v6783
    %v6852 = vpack.c.b16 %v6792, %v6788
    %v6853 = vpack.c.b16 %v6793, %v6789
    %v6854 = vpack.c.b16 %v6794, %v6790
    %v6855 = vpack.c.b16 %v6795, %v6791
    %v6856 = vpack.c.b16 %v6800, %v6796
    %v6857 = vpack.c.b16 %v6801, %v6797
    %v6858 = vpack.c.b16 %v6802, %v6798
    %v6859 = vpack.c.b16 %v6803, %v6799
    %v6860 = vpack.c.b16 %v6808, %v6804
    %v6861 = vpack.c.b16 %v6809, %v6805
    %v6862 = vpack.c.b16 %v6810, %v6806
    %v6863 = vpack.c.b16 %v6811, %v6807
    %v6864 = vpack.c.b16 %v6816, %v6812
    %v6865 = vpack.c.b16 %v6817, %v6813
    %v6866 = vpack.c.b16 %v6818, %v6814
    %v6867 = vpack.c.b16 %v6819, %v6815
    %v6917 = vsel %vm206, %v6674, 0
    %6919 = vmatpush.bf16.msra.mxu0 %v6848
    %6920 = vmatpush.bf16.msra.mxu0 %v6844
    %6921 = vmatpush.bf16.msra.mxu0 %v6840
    %6922 = vmatpush.bf16.msra.mxu0 %v6836
    %6923 = vmatpush.bf16.msra.mxu0 %v6832
    %6924 = vmatpush.bf16.msra.mxu0 %v6828
    %6925 = vmatpush.bf16.msra.mxu0 %v6824
    %6926 = vmatpush.bf16.msra.mxu0 %v6820
    %6927 = vmatmul.bf16.gmra.mxu0 %v6673
    %v6928 = vpop.f32.mrf.mxu0
    %v6929 = vadd.f32 %v6590, %v6928
    %v6930 = vpop.f32.mrf.mxu0
    %6931 = vdwg.mxu0
    %6932 = vmatpush.bf16.msra.mxu0 0
    %6933 = vmatpush.bf16.msra.mxu0 0
    %6934 = vmatpush.bf16.msra.mxu0 0
    %6935 = vmatpush.bf16.msra.mxu0 0
    %6936 = vmatpush.bf16.msra.mxu0 %v6864
    %6937 = vmatpush.bf16.msra.mxu0 %v6860
    %6938 = vmatpush.bf16.msra.mxu0 %v6856
    %6939 = vmatpush.bf16.msra.mxu0 %v6852
    %6940 = vmatmul.bf16.gmra.mxu0 %v6917
    %v6941 = vpop.f32.mrf.mxu0
    %v6942 = vadd.f32 %v6929, %v6941
    %v6943 = vpop.f32.mrf.mxu0
    %6944 = vdwg.mxu0
    %6945 = vmatpush.bf16.msra.mxu0 %v6849
    %6946 = vmatpush.bf16.msra.mxu0 %v6845
    %6947 = vmatpush.bf16.msra.mxu0 %v6841
    %6948 = vmatpush.bf16.msra.mxu0 %v6837
    %6949 = vmatpush.bf16.msra.mxu0 %v6833
    %6950 = vmatpush.bf16.msra.mxu0 %v6829
    %6951 = vmatpush.bf16.msra.mxu0 %v6825
    %6952 = vmatpush.bf16.msra.mxu0 %v6821
    %6953 = vmatmul.bf16.gmra.mxu0 %v6673
    %v6954 = vpop.f32.mrf.mxu0
    %v6955 = vadd.f32 %v6616, %v6954
    %v6956 = vpop.f32.mrf.mxu0
    %6957 = vdwg.mxu0
    %6958 = vmatpush.bf16.msra.mxu0 0
    %6959 = vmatpush.bf16.msra.mxu0 0
    %6960 = vmatpush.bf16.msra.mxu0 0
    %6961 = vmatpush.bf16.msra.mxu0 0
    %6962 = vmatpush.bf16.msra.mxu0 %v6865
    %6963 = vmatpush.bf16.msra.mxu0 %v6861
    %6964 = vmatpush.bf16.msra.mxu0 %v6857
    %6965 = vmatpush.bf16.msra.mxu0 %v6853
    %6966 = vmatmul.bf16.gmra.mxu0 %v6917
    %v6967 = vpop.f32.mrf.mxu0
    %v6968 = vadd.f32 %v6955, %v6967
    %v6969 = vpop.f32.mrf.mxu0
    %6970 = vdwg.mxu0
    %6971 = vmatpush.bf16.msra.mxu0 %v6850
    %6972 = vmatpush.bf16.msra.mxu0 %v6846
    %6973 = vmatpush.bf16.msra.mxu0 %v6842
    %6974 = vmatpush.bf16.msra.mxu0 %v6838
    %6975 = vmatpush.bf16.msra.mxu0 %v6834
    %6976 = vmatpush.bf16.msra.mxu0 %v6830
    %6977 = vmatpush.bf16.msra.mxu0 %v6826
    %6978 = vmatpush.bf16.msra.mxu0 %v6822
    %6979 = vmatmul.bf16.gmra.mxu0 %v6673
    %v6980 = vpop.f32.mrf.mxu0
    %v6981 = vadd.f32 %v6642, %v6980
    %v6982 = vpop.f32.mrf.mxu0
    %6983 = vdwg.mxu0
    %6984 = vmatpush.bf16.msra.mxu0 0
    %6985 = vmatpush.bf16.msra.mxu0 0
    %6986 = vmatpush.bf16.msra.mxu0 0
    %6987 = vmatpush.bf16.msra.mxu0 0
    %6988 = vmatpush.bf16.msra.mxu0 %v6866
    %6989 = vmatpush.bf16.msra.mxu0 %v6862
    %6990 = vmatpush.bf16.msra.mxu0 %v6858
    %6991 = vmatpush.bf16.msra.mxu0 %v6854
    %6992 = vmatmul.bf16.gmra.mxu0 %v6917
    %v6993 = vpop.f32.mrf.mxu0
    %v6994 = vadd.f32 %v6981, %v6993
    %v6995 = vpop.f32.mrf.mxu0
    %6996 = vdwg.mxu0
    %6997 = vmatpush.bf16.msra.mxu0 %v6851
    %6998 = vmatpush.bf16.msra.mxu0 %v6847
    %6999 = vmatpush.bf16.msra.mxu0 %v6843
    %7000 = vmatpush.bf16.msra.mxu0 %v6839
    %7001 = vmatpush.bf16.msra.mxu0 %v6835
    %7002 = vmatpush.bf16.msra.mxu0 %v6831
    %7003 = vmatpush.bf16.msra.mxu0 %v6827
    %7004 = vmatpush.bf16.msra.mxu0 %v6823
    %7005 = vmatmul.bf16.gmra.mxu0 %v6673
    %v7006 = vpop.f32.mrf.mxu0
    %v7007 = vadd.f32 %v6668, %v7006
    %v7008 = vpop.f32.mrf.mxu0
    %7009 = vdwg.mxu0
    %7010 = vmatpush.bf16.msra.mxu0 0
    %7011 = vmatpush.bf16.msra.mxu0 0
    %7012 = vmatpush.bf16.msra.mxu0 0
    %7013 = vmatpush.bf16.msra.mxu0 0
    %7014 = vmatpush.bf16.msra.mxu0 %v6867
    %7015 = vmatpush.bf16.msra.mxu0 %v6863
    %7016 = vmatpush.bf16.msra.mxu0 %v6859
    %7017 = vmatpush.bf16.msra.mxu0 %v6855
    %7018 = vmatmul.bf16.gmra.mxu0 %v6917
    %v7019 = vpop.f32.mrf.mxu0
    %v7020 = vadd.f32 %v7007, %v7019
    %v7021 = vpop.f32.mrf.mxu0
    %7022 = vdwg.mxu0
    %v7023 = vld [vmem:[#allocation3 + $0x10] sm:$0xf]
    %v7024 = vld [vmem:[#allocation3 + $0x18] sm:$0xf]
    %v7025 = vpack.c.bf16 %v7023, %v7023
    %v7026 = vpack.c.bf16 %v7024, %v7024
    %v7027 = vld [vmem:[%s2675] sm:$0xff]
    %v7028 = vld [vmem:[%s2675 + $0x8] sm:$0xff]
    %v7029 = vld [vmem:[%s2675 + $0x10] sm:$0xff]
    %v7030 = vld [vmem:[%s2675 + $0x18] sm:$0xff]
    %v7031 = vld [vmem:[%s2675 + $0x20] sm:$0xff]
    %v7032 = vld [vmem:[%s2675 + $0x28] sm:$0xff]
    %v7033 = vld [vmem:[%s2675 + $0x30] sm:$0xff]
    %v7034 = vld [vmem:[%s2675 + $0x38] sm:$0xff]
    %v7035 = vld [vmem:[%s2675 + $0x40] sm:$0xff]
    %v7036 = vld [vmem:[%s2675 + $0x48] sm:$0xff]
    %v7037 = vld [vmem:[%s2675 + $0x50] sm:$0xff]
    %v7038 = vld [vmem:[%s2675 + $0x58] sm:$0xff]
    %v7039 = vld [vmem:[%s2675 + $0x60] sm:$0xff]
    %v7040 = vld [vmem:[%s2675 + $0x68] sm:$0xff]
    %v7041 = vld [vmem:[%s2675 + $0x70] sm:$0xff]
    %v7042 = vld [vmem:[%s2675 + $0x78] sm:$0xff]
    %v7043 = vld [vmem:[%s2675 + $0x80] sm:$0xff]
    %v7044 = vld [vmem:[%s2675 + $0x88] sm:$0xff]
    %v7045 = vld [vmem:[%s2675 + $0x90] sm:$0xff]
    %v7046 = vld [vmem:[%s2675 + $0x98] sm:$0xff]
    %v7047 = vld [vmem:[%s2675 + $0xa0] sm:$0xff]
    %v7048 = vld [vmem:[%s2675 + $0xa8] sm:$0xff]
    %v7049 = vld [vmem:[%s2675 + $0xb0] sm:$0xff]
    %v7050 = vld [vmem:[%s2675 + $0xb8] sm:$0xff]
    %v7051 = vld [vmem:[%s2675 + $0xc0] sm:$0xff]
    %v7052 = vld [vmem:[%s2675 + $0xc8] sm:$0xff]
    %v7053 = vld [vmem:[%s2675 + $0xd0] sm:$0xff]
    %v7054 = vld [vmem:[%s2675 + $0xd8] sm:$0xff]
    %v7055 = vld [vmem:[%s2675 + $0xe0] sm:$0xff]
    %v7056 = vld [vmem:[%s2675 + $0xe8] sm:$0xff]
    %v7057 = vld [vmem:[%s2675 + $0xf0] sm:$0xff]
    %v7058 = vld [vmem:[%s2675 + $0xf8] sm:$0xff]
    %v7059 = vld [vmem:[%s2675 + $0x100] sm:$0xff]
    %v7060 = vld [vmem:[%s2675 + $0x108] sm:$0xff]
    %v7061 = vld [vmem:[%s2675 + $0x110] sm:$0xff]
    %v7062 = vld [vmem:[%s2675 + $0x118] sm:$0xff]
    %v7063 = vld [vmem:[%s2675 + $0x120] sm:$0xff]
    %v7064 = vld [vmem:[%s2675 + $0x128] sm:$0xff]
    %v7065 = vld [vmem:[%s2675 + $0x130] sm:$0xff]
    %v7066 = vld [vmem:[%s2675 + $0x138] sm:$0xff]
    %v7067 = vld [vmem:[%s2675 + $0x140] sm:$0xff]
    %v7068 = vld [vmem:[%s2675 + $0x148] sm:$0xff]
    %v7069 = vld [vmem:[%s2675 + $0x150] sm:$0xff]
    %v7070 = vld [vmem:[%s2675 + $0x158] sm:$0xff]
    %v7071 = vld [vmem:[%s2675 + $0x160] sm:$0xff]
    %v7072 = vld [vmem:[%s2675 + $0x168] sm:$0xff]
    %v7073 = vld [vmem:[%s2675 + $0x170] sm:$0xff]
    %v7074 = vld [vmem:[%s2675 + $0x178] sm:$0xff]
    %v7123 = vunpack.c.l.b16 %v7027
    %v7124 = vunpack.c.h.b16 %v7027
    %v7125 = vunpack.c.l.b16 %v7028
    %v7126 = vunpack.c.h.b16 %v7028
    %v7127 = vunpack.c.l.b16 %v7029
    %v7128 = vunpack.c.h.b16 %v7029
    %v7129 = vunpack.c.l.b16 %v7030
    %v7130 = vunpack.c.h.b16 %v7030
    %v7131 = vunpack.c.l.b16 %v7031
    %v7132 = vunpack.c.h.b16 %v7031
    %v7133 = vunpack.c.l.b16 %v7032
    %v7134 = vunpack.c.h.b16 %v7032
    %v7135 = vunpack.c.l.b16 %v7033
    %v7136 = vunpack.c.h.b16 %v7033
    %v7137 = vunpack.c.l.b16 %v7034
    %v7138 = vunpack.c.h.b16 %v7034
    %v7139 = vunpack.c.l.b16 %v7035
    %v7140 = vunpack.c.h.b16 %v7035
    %v7141 = vunpack.c.l.b16 %v7036
    %v7142 = vunpack.c.h.b16 %v7036
    %v7143 = vunpack.c.l.b16 %v7037
    %v7144 = vunpack.c.h.b16 %v7037
    %v7145 = vunpack.c.l.b16 %v7038
    %v7146 = vunpack.c.h.b16 %v7038
    %v7147 = vunpack.c.l.b16 %v7039
    %v7148 = vunpack.c.h.b16 %v7039
    %v7149 = vunpack.c.l.b16 %v7040
    %v7150 = vunpack.c.h.b16 %v7040
    %v7151 = vunpack.c.l.b16 %v7041
    %v7152 = vunpack.c.h.b16 %v7041
    %v7153 = vunpack.c.l.b16 %v7042
    %v7154 = vunpack.c.h.b16 %v7042
    %v7155 = vunpack.c.l.b16 %v7043
    %v7156 = vunpack.c.h.b16 %v7043
    %v7157 = vunpack.c.l.b16 %v7044
    %v7158 = vunpack.c.h.b16 %v7044
    %v7159 = vunpack.c.l.b16 %v7045
    %v7160 = vunpack.c.h.b16 %v7045
    %v7161 = vunpack.c.l.b16 %v7046
    %v7162 = vunpack.c.h.b16 %v7046
    %v7163 = vunpack.c.l.b16 %v7047
    %v7164 = vunpack.c.h.b16 %v7047
    %v7165 = vunpack.c.l.b16 %v7048
    %v7166 = vunpack.c.h.b16 %v7048
    %v7167 = vunpack.c.l.b16 %v7049
    %v7168 = vunpack.c.h.b16 %v7049
    %v7169 = vunpack.c.l.b16 %v7050
    %v7170 = vunpack.c.h.b16 %v7050
    %v7171 = vunpack.c.l.b16 %v7051
    %v7172 = vunpack.c.h.b16 %v7051
    %v7173 = vunpack.c.l.b16 %v7052
    %v7174 = vunpack.c.h.b16 %v7052
    %v7175 = vunpack.c.l.b16 %v7053
    %v7176 = vunpack.c.h.b16 %v7053
    %v7177 = vunpack.c.l.b16 %v7054
    %v7178 = vunpack.c.h.b16 %v7054
    %v7179 = vunpack.c.l.b16 %v7055
    %v7180 = vunpack.c.h.b16 %v7055
    %v7181 = vunpack.c.l.b16 %v7056
    %v7182 = vunpack.c.h.b16 %v7056
    %v7183 = vunpack.c.l.b16 %v7057
    %v7184 = vunpack.c.h.b16 %v7057
    %v7185 = vunpack.c.l.b16 %v7058
    %v7186 = vunpack.c.h.b16 %v7058
    %v7187 = vunpack.c.l.b16 %v7059
    %v7188 = vunpack.c.h.b16 %v7059
    %v7189 = vunpack.c.l.b16 %v7060
    %v7190 = vunpack.c.h.b16 %v7060
    %v7191 = vunpack.c.l.b16 %v7061
    %v7192 = vunpack.c.h.b16 %v7061
    %v7193 = vunpack.c.l.b16 %v7062
    %v7194 = vunpack.c.h.b16 %v7062
    %v7195 = vunpack.c.l.b16 %v7063
    %v7196 = vunpack.c.h.b16 %v7063
    %v7197 = vunpack.c.l.b16 %v7064
    %v7198 = vunpack.c.h.b16 %v7064
    %v7199 = vunpack.c.l.b16 %v7065
    %v7200 = vunpack.c.h.b16 %v7065
    %v7201 = vunpack.c.l.b16 %v7066
    %v7202 = vunpack.c.h.b16 %v7066
    %v7203 = vunpack.c.l.b16 %v7067
    %v7204 = vunpack.c.h.b16 %v7067
    %v7205 = vunpack.c.l.b16 %v7068
    %v7206 = vunpack.c.h.b16 %v7068
    %v7207 = vunpack.c.l.b16 %v7069
    %v7208 = vunpack.c.h.b16 %v7069
    %v7209 = vunpack.c.l.b16 %v7070
    %v7210 = vunpack.c.h.b16 %v7070
    %v7211 = vunpack.c.l.b16 %v7071
    %v7212 = vunpack.c.h.b16 %v7071
    %v7213 = vunpack.c.l.b16 %v7072
    %v7214 = vunpack.c.h.b16 %v7072
    %v7215 = vunpack.c.l.b16 %v7073
    %v7216 = vunpack.c.h.b16 %v7073
    %v7217 = vunpack.c.l.b16 %v7074
    %v7218 = vunpack.c.h.b16 %v7074
    %v7219 = vpack.c.b16 %v7127, %v7123
    %v7220 = vpack.c.b16 %v7128, %v7124
    %v7221 = vpack.c.b16 %v7129, %v7125
    %v7222 = vpack.c.b16 %v7130, %v7126
    %v7223 = vpack.c.b16 %v7135, %v7131
    %v7224 = vpack.c.b16 %v7136, %v7132
    %v7225 = vpack.c.b16 %v7137, %v7133
    %v7226 = vpack.c.b16 %v7138, %v7134
    %v7227 = vpack.c.b16 %v7143, %v7139
    %v7228 = vpack.c.b16 %v7144, %v7140
    %v7229 = vpack.c.b16 %v7145, %v7141
    %v7230 = vpack.c.b16 %v7146, %v7142
    %v7231 = vpack.c.b16 %v7151, %v7147
    %v7232 = vpack.c.b16 %v7152, %v7148
    %v7233 = vpack.c.b16 %v7153, %v7149
    %v7234 = vpack.c.b16 %v7154, %v7150
    %v7235 = vpack.c.b16 %v7159, %v7155
    %v7236 = vpack.c.b16 %v7160, %v7156
    %v7237 = vpack.c.b16 %v7161, %v7157
    %v7238 = vpack.c.b16 %v7162, %v7158
    %v7239 = vpack.c.b16 %v7167, %v7163
    %v7240 = vpack.c.b16 %v7168, %v7164
    %v7241 = vpack.c.b16 %v7169, %v7165
    %v7242 = vpack.c.b16 %v7170, %v7166
    %v7243 = vpack.c.b16 %v7175, %v7171
    %v7244 = vpack.c.b16 %v7176, %v7172
    %v7245 = vpack.c.b16 %v7177, %v7173
    %v7246 = vpack.c.b16 %v7178, %v7174
    %v7247 = vpack.c.b16 %v7183, %v7179
    %v7248 = vpack.c.b16 %v7184, %v7180
    %v7249 = vpack.c.b16 %v7185, %v7181
    %v7250 = vpack.c.b16 %v7186, %v7182
    %v7251 = vpack.c.b16 %v7191, %v7187
    %v7252 = vpack.c.b16 %v7192, %v7188
    %v7253 = vpack.c.b16 %v7193, %v7189
    %v7254 = vpack.c.b16 %v7194, %v7190
    %v7255 = vpack.c.b16 %v7199, %v7195
    %v7256 = vpack.c.b16 %v7200, %v7196
    %v7257 = vpack.c.b16 %v7201, %v7197
    %v7258 = vpack.c.b16 %v7202, %v7198
    %v7259 = vpack.c.b16 %v7207, %v7203
    %v7260 = vpack.c.b16 %v7208, %v7204
    %v7261 = vpack.c.b16 %v7209, %v7205
    %v7262 = vpack.c.b16 %v7210, %v7206
    %v7263 = vpack.c.b16 %v7215, %v7211
    %v7264 = vpack.c.b16 %v7216, %v7212
    %v7265 = vpack.c.b16 %v7217, %v7213
    %v7266 = vpack.c.b16 %v7218, %v7214
    %v7316 = vsel %vm206, %v7026, 0
    %7318 = vmatpush.bf16.msra.mxu0 %v7247
    %7319 = vmatpush.bf16.msra.mxu0 %v7243
    %7320 = vmatpush.bf16.msra.mxu0 %v7239
    %7321 = vmatpush.bf16.msra.mxu0 %v7235
    %7322 = vmatpush.bf16.msra.mxu0 %v7231
    %7323 = vmatpush.bf16.msra.mxu0 %v7227
    %7324 = vmatpush.bf16.msra.mxu0 %v7223
    %7325 = vmatpush.bf16.msra.mxu0 %v7219
    %7326 = vmatmul.bf16.gmra.mxu0 %v7025
    %v7327 = vpop.f32.mrf.mxu0
    %v7328 = vadd.f32 0.0, %v7327
    %v7329 = vpop.f32.mrf.mxu0
    %7330 = vdwg.mxu0
    %7331 = vmatpush.bf16.msra.mxu0 0
    %7332 = vmatpush.bf16.msra.mxu0 0
    %7333 = vmatpush.bf16.msra.mxu0 0
    %7334 = vmatpush.bf16.msra.mxu0 0
    %7335 = vmatpush.bf16.msra.mxu0 %v7263
    %7336 = vmatpush.bf16.msra.mxu0 %v7259
    %7337 = vmatpush.bf16.msra.mxu0 %v7255
    %7338 = vmatpush.bf16.msra.mxu0 %v7251
    %7339 = vmatmul.bf16.gmra.mxu0 %v7316
    %v7340 = vpop.f32.mrf.mxu0
    %v7341 = vadd.f32 %v7328, %v7340
    %v7342 = vpop.f32.mrf.mxu0
    %7343 = vdwg.mxu0
    %7344 = vmatpush.bf16.msra.mxu0 %v7248
    %7345 = vmatpush.bf16.msra.mxu0 %v7244
    %7346 = vmatpush.bf16.msra.mxu0 %v7240
    %7347 = vmatpush.bf16.msra.mxu0 %v7236
    %7348 = vmatpush.bf16.msra.mxu0 %v7232
    %7349 = vmatpush.bf16.msra.mxu0 %v7228
    %7350 = vmatpush.bf16.msra.mxu0 %v7224
    %7351 = vmatpush.bf16.msra.mxu0 %v7220
    %7352 = vmatmul.bf16.gmra.mxu0 %v7025
    %v7353 = vpop.f32.mrf.mxu0
    %v7354 = vadd.f32 0.0, %v7353
    %v7355 = vpop.f32.mrf.mxu0
    %7356 = vdwg.mxu0
    %7357 = vmatpush.bf16.msra.mxu0 0
    %7358 = vmatpush.bf16.msra.mxu0 0
    %7359 = vmatpush.bf16.msra.mxu0 0
    %7360 = vmatpush.bf16.msra.mxu0 0
    %7361 = vmatpush.bf16.msra.mxu0 %v7264
    %7362 = vmatpush.bf16.msra.mxu0 %v7260
    %7363 = vmatpush.bf16.msra.mxu0 %v7256
    %7364 = vmatpush.bf16.msra.mxu0 %v7252
    %7365 = vmatmul.bf16.gmra.mxu0 %v7316
    %v7366 = vpop.f32.mrf.mxu0
    %v7367 = vadd.f32 %v7354, %v7366
    %v7368 = vpop.f32.mrf.mxu0
    %7369 = vdwg.mxu0
    %7370 = vmatpush.bf16.msra.mxu0 %v7249
    %7371 = vmatpush.bf16.msra.mxu0 %v7245
    %7372 = vmatpush.bf16.msra.mxu0 %v7241
    %7373 = vmatpush.bf16.msra.mxu0 %v7237
    %7374 = vmatpush.bf16.msra.mxu0 %v7233
    %7375 = vmatpush.bf16.msra.mxu0 %v7229
    %7376 = vmatpush.bf16.msra.mxu0 %v7225
    %7377 = vmatpush.bf16.msra.mxu0 %v7221
    %7378 = vmatmul.bf16.gmra.mxu0 %v7025
    %v7379 = vpop.f32.mrf.mxu0
    %v7380 = vadd.f32 0.0, %v7379
    %v7381 = vpop.f32.mrf.mxu0
    %7382 = vdwg.mxu0
    %7383 = vmatpush.bf16.msra.mxu0 0
    %7384 = vmatpush.bf16.msra.mxu0 0
    %7385 = vmatpush.bf16.msra.mxu0 0
    %7386 = vmatpush.bf16.msra.mxu0 0
    %7387 = vmatpush.bf16.msra.mxu0 %v7265
    %7388 = vmatpush.bf16.msra.mxu0 %v7261
    %7389 = vmatpush.bf16.msra.mxu0 %v7257
    %7390 = vmatpush.bf16.msra.mxu0 %v7253
    %7391 = vmatmul.bf16.gmra.mxu0 %v7316
    %v7392 = vpop.f32.mrf.mxu0
    %v7393 = vadd.f32 %v7380, %v7392
    %v7394 = vpop.f32.mrf.mxu0
    %7395 = vdwg.mxu0
    %7396 = vmatpush.bf16.msra.mxu0 %v7250
    %7397 = vmatpush.bf16.msra.mxu0 %v7246
    %7398 = vmatpush.bf16.msra.mxu0 %v7242
    %7399 = vmatpush.bf16.msra.mxu0 %v7238
    %7400 = vmatpush.bf16.msra.mxu0 %v7234
    %7401 = vmatpush.bf16.msra.mxu0 %v7230
    %7402 = vmatpush.bf16.msra.mxu0 %v7226
    %7403 = vmatpush.bf16.msra.mxu0 %v7222
    %7404 = vmatmul.bf16.gmra.mxu0 %v7025
    %v7405 = vpop.f32.mrf.mxu0
    %v7406 = vadd.f32 0.0, %v7405
    %v7407 = vpop.f32.mrf.mxu0
    %7408 = vdwg.mxu0
    %7409 = vmatpush.bf16.msra.mxu0 0
    %7410 = vmatpush.bf16.msra.mxu0 0
    %7411 = vmatpush.bf16.msra.mxu0 0
    %7412 = vmatpush.bf16.msra.mxu0 0
    %7413 = vmatpush.bf16.msra.mxu0 %v7266
    %7414 = vmatpush.bf16.msra.mxu0 %v7262
    %7415 = vmatpush.bf16.msra.mxu0 %v7258
    %7416 = vmatpush.bf16.msra.mxu0 %v7254
    %7417 = vmatmul.bf16.gmra.mxu0 %v7316
    %v7418 = vpop.f32.mrf.mxu0
    %v7419 = vadd.f32 %v7406, %v7418
    %v7420 = vpop.f32.mrf.mxu0
    %7421 = vdwg.mxu0
    %v7422 = vadd.f32 %v6942, %v7341
    %v7423 = vadd.f32 %v6968, %v7367
    %v7424 = vadd.f32 %v6994, %v7393
    %v7425 = vadd.f32 %v7020, %v7419
    %v7426 = vld [vmem:[%s12] sm:$0xf]
    %v7428 = vperm.slane %v7426, 0
    %v7429 = vperm.slane %v7426, 1
    %v7430 = vperm.slane %v7426, 2
    %v7431 = vperm.slane %v7426, 3
    %v7436 = vmul.f32 %v7422, %v7428
    %v7437 = vmul.f32 %v7423, %v7429
    %v7438 = vmul.f32 %v7424, %v7430
    %v7439 = vmul.f32 %v7425, %v7431
    %v7440 = vld [vmem:[%s15] sm:$0xf]
    %v7442 = vperm.slane %v7440, 0
    %v7443 = vperm.slane %v7440, 1
    %v7444 = vperm.slane %v7440, 2
    %v7445 = vperm.slane %v7440, 3
    %v7450 = vadd.f32 %v7436, %v7442
    %v7451 = vadd.f32 %v7437, %v7443
    %v7452 = vadd.f32 %v7438, %v7444
    %v7453 = vadd.f32 %v7439, %v7445
    %v7454 = vmax.f32 %v7450, 0.0
    %v7455 = vmax.f32 %v7451, 0.0
    %v7456 = vmax.f32 %v7452, 0.0
    %v7457 = vmax.f32 %v7453, 0.0
    %v7458 = vpack.c.bf16 %v7454, %v7454
    %v7459 = vpack.c.bf16 %v7455, %v7455
    %v7460 = vpack.c.bf16 %v7456, %v7456
    %v7461 = vpack.c.bf16 %v7457, %v7457
    %v7462 = vld [vmem:[#allocation9] sm:$0x1]
    %v7464 = vsel %vm3117, %v7462, 0
    %v7467 = vsel %vm3121, %v7458, 0
    %v7470 = vsel %vm3121, %v7459, 0
    %v7473 = vsel %vm3121, %v7460, 0
    %v7476 = vsel %vm3121, %v7461, 0
    %7478 = vmatpush.bf16.msra.mxu0 0
    %7479 = vmatpush.bf16.msra.mxu0 0
    %7480 = vmatpush.bf16.msra.mxu0 0
    %7481 = vmatpush.bf16.msra.mxu0 0
    %7482 = vmatpush.bf16.msra.mxu0 0
    %7483 = vmatpush.bf16.msra.mxu0 0
    %7484 = vmatpush.bf16.msra.mxu0 0
    %7485 = vmatpush.bf16.msra.mxu0 %v7467
    %7486 = vmatmul.bf16.gmra.mxu0 %v7464
    %v7487 = vpop.f32.mrf.mxu0
    %v7488 = vadd.f32 0.0, %v7487
    %v7489 = vpop.f32.mrf.mxu0
    %7490 = vdwg.mxu0
    %7491 = vmatpush.bf16.msra.mxu0 0
    %7492 = vmatpush.bf16.msra.mxu0 0
    %7493 = vmatpush.bf16.msra.mxu0 0
    %7494 = vmatpush.bf16.msra.mxu0 0
    %7495 = vmatpush.bf16.msra.mxu0 0
    %7496 = vmatpush.bf16.msra.mxu0 0
    %7497 = vmatpush.bf16.msra.mxu0 0
    %7498 = vmatpush.bf16.msra.mxu0 %v7470
    %7499 = vmatmul.bf16.gmra.mxu0 %v7464
    %v7500 = vpop.f32.mrf.mxu0
    %v7501 = vadd.f32 0.0, %v7500
    %v7502 = vpop.f32.mrf.mxu0
    %7503 = vdwg.mxu0
    %7504 = vmatpush.bf16.msra.mxu0 0
    %7505 = vmatpush.bf16.msra.mxu0 0
    %7506 = vmatpush.bf16.msra.mxu0 0
    %7507 = vmatpush.bf16.msra.mxu0 0
    %7508 = vmatpush.bf16.msra.mxu0 0
    %7509 = vmatpush.bf16.msra.mxu0 0
    %7510 = vmatpush.bf16.msra.mxu0 0
    %7511 = vmatpush.bf16.msra.mxu0 %v7473
    %7512 = vmatmul.bf16.gmra.mxu0 %v7464
    %v7513 = vpop.f32.mrf.mxu0
    %v7514 = vadd.f32 0.0, %v7513
    %v7515 = vpop.f32.mrf.mxu0
    %7516 = vdwg.mxu0
    %7517 = vmatpush.bf16.msra.mxu0 0
    %7518 = vmatpush.bf16.msra.mxu0 0
    %7519 = vmatpush.bf16.msra.mxu0 0
    %7520 = vmatpush.bf16.msra.mxu0 0
    %7521 = vmatpush.bf16.msra.mxu0 0
    %7522 = vmatpush.bf16.msra.mxu0 0
    %7523 = vmatpush.bf16.msra.mxu0 0
    %7524 = vmatpush.bf16.msra.mxu0 %v7476
    %7525 = vmatmul.bf16.gmra.mxu0 %v7464
    %v7526 = vpop.f32.mrf.mxu0
    %v7527 = vadd.f32 0.0, %v7526
    %v7528 = vpop.f32.mrf.mxu0
    %7529 = vdwg.mxu0
    %v7530 = vld [vmem:[%s3186] sm:$0x1]
    %v7532 = vsel %vm3117, %v7530, 0
    %7534 = vmatpush.bf16.msra.mxu0 0
    %7535 = vmatpush.bf16.msra.mxu0 0
    %7536 = vmatpush.bf16.msra.mxu0 0
    %7537 = vmatpush.bf16.msra.mxu0 0
    %7538 = vmatpush.bf16.msra.mxu0 0
    %7539 = vmatpush.bf16.msra.mxu0 0
    %7540 = vmatpush.bf16.msra.mxu0 0
    %7541 = vmatpush.bf16.msra.mxu0 %v7467
    %7542 = vmatmul.bf16.gmra.mxu0 %v7532
    %v7543 = vpop.f32.mrf.mxu0
    %v7544 = vadd.f32 0.0, %v7543
    %v7545 = vpop.f32.mrf.mxu0
    %7546 = vdwg.mxu0
    %7547 = vmatpush.bf16.msra.mxu0 0
    %7548 = vmatpush.bf16.msra.mxu0 0
    %7549 = vmatpush.bf16.msra.mxu0 0
    %7550 = vmatpush.bf16.msra.mxu0 0
    %7551 = vmatpush.bf16.msra.mxu0 0
    %7552 = vmatpush.bf16.msra.mxu0 0
    %7553 = vmatpush.bf16.msra.mxu0 0
    %7554 = vmatpush.bf16.msra.mxu0 %v7470
    %7555 = vmatmul.bf16.gmra.mxu0 %v7532
    %v7556 = vpop.f32.mrf.mxu0
    %v7557 = vadd.f32 0.0, %v7556
    %v7558 = vpop.f32.mrf.mxu0
    %7559 = vdwg.mxu0
    %7560 = vmatpush.bf16.msra.mxu0 0
    %7561 = vmatpush.bf16.msra.mxu0 0
    %7562 = vmatpush.bf16.msra.mxu0 0
    %7563 = vmatpush.bf16.msra.mxu0 0
    %7564 = vmatpush.bf16.msra.mxu0 0
    %7565 = vmatpush.bf16.msra.mxu0 0
    %7566 = vmatpush.bf16.msra.mxu0 0
    %7567 = vmatpush.bf16.msra.mxu0 %v7473
    %7568 = vmatmul.bf16.gmra.mxu0 %v7532
    %v7569 = vpop.f32.mrf.mxu0
    %v7570 = vadd.f32 0.0, %v7569
    %v7571 = vpop.f32.mrf.mxu0
    %7572 = vdwg.mxu0
    %7573 = vmatpush.bf16.msra.mxu0 0
    %7574 = vmatpush.bf16.msra.mxu0 0
    %7575 = vmatpush.bf16.msra.mxu0 0
    %7576 = vmatpush.bf16.msra.mxu0 0
    %7577 = vmatpush.bf16.msra.mxu0 0
    %7578 = vmatpush.bf16.msra.mxu0 0
    %7579 = vmatpush.bf16.msra.mxu0 0
    %7580 = vmatpush.bf16.msra.mxu0 %v7476
    %7581 = vmatmul.bf16.gmra.mxu0 %v7532
    %v7582 = vpop.f32.mrf.mxu0
    %v7583 = vadd.f32 0.0, %v7582
    %v7584 = vpop.f32.mrf.mxu0
    %7585 = vdwg.mxu0
    %v7586 = vmax.f32 %v7488, %v7544
    %v7587 = vmax.f32 %v7501, %v7557
    %v7588 = vmax.f32 %v7514, %v7570
    %v7589 = vmax.f32 %v7527, %v7583
    %v7590 = vpack.c.bf16 %v7586, %v7586
    %v7591 = vpack.c.bf16 %v7587, %v7587
    %v7592 = vpack.c.bf16 %v7588, %v7588
    %v7593 = vpack.c.bf16 %v7589, %v7589
    %v7594 = vld [vmem:[#allocation13] sm:$0xff]
    %v7595 = vld [vmem:[#allocation13 + $0x8] sm:$0xff]
    %v7596 = vld [vmem:[#allocation13 + $0x10] sm:$0xff]
    %v7597 = vld [vmem:[#allocation13 + $0x18] sm:$0xff]
    %v7598 = vld [vmem:[#allocation13 + $0x20] sm:$0xff]
    %v7599 = vld [vmem:[#allocation13 + $0x28] sm:$0xff]
    %v7600 = vld [vmem:[#allocation13 + $0x30] sm:$0xff]
    %v7601 = vld [vmem:[#allocation13 + $0x38] sm:$0xff]
    %v7602 = vld [vmem:[#allocation13 + $0x40] sm:$0xff]
    %v7603 = vld [vmem:[#allocation13 + $0x48] sm:$0xff]
    %v7604 = vld [vmem:[#allocation13 + $0x50] sm:$0xff]
    %v7605 = vld [vmem:[#allocation13 + $0x58] sm:$0xff]
    %v7606 = vld [vmem:[#allocation13 + $0x60] sm:$0xff]
    %v7607 = vld [vmem:[#allocation13 + $0x68] sm:$0xff]
    %v7608 = vld [vmem:[#allocation13 + $0x70] sm:$0xff]
    %v7609 = vld [vmem:[#allocation13 + $0x78] sm:$0xff]
    %v7610 = vld [vmem:[#allocation13 + $0x80] sm:$0xff]
    %v7611 = vld [vmem:[#allocation13 + $0x88] sm:$0xff]
    %v7612 = vld [vmem:[#allocation13 + $0x90] sm:$0xff]
    %v7613 = vld [vmem:[#allocation13 + $0x98] sm:$0xff]
    %v7614 = vld [vmem:[#allocation13 + $0xa0] sm:$0xff]
    %v7615 = vld [vmem:[#allocation13 + $0xa8] sm:$0xff]
    %v7616 = vld [vmem:[#allocation13 + $0xb0] sm:$0xff]
    %v7617 = vld [vmem:[#allocation13 + $0xb8] sm:$0xff]
    %v7618 = vld [vmem:[#allocation13 + $0xc0] sm:$0xff]
    %v7619 = vld [vmem:[#allocation13 + $0xc8] sm:$0xff]
    %v7620 = vld [vmem:[#allocation13 + $0xd0] sm:$0xff]
    %v7621 = vld [vmem:[#allocation13 + $0xd8] sm:$0xff]
    %v7622 = vld [vmem:[#allocation13 + $0xe0] sm:$0xff]
    %v7623 = vld [vmem:[#allocation13 + $0xe8] sm:$0xff]
    %v7624 = vld [vmem:[#allocation13 + $0xf0] sm:$0xff]
    %v7625 = vld [vmem:[#allocation13 + $0xf8] sm:$0xff]
    %v7626 = vld [vmem:[#allocation13 + $0x100] sm:$0xff]
    %v7627 = vld [vmem:[#allocation13 + $0x108] sm:$0xff]
    %v7628 = vld [vmem:[#allocation13 + $0x110] sm:$0xff]
    %v7629 = vld [vmem:[#allocation13 + $0x118] sm:$0xff]
    %v7630 = vld [vmem:[#allocation13 + $0x120] sm:$0xff]
    %v7631 = vld [vmem:[#allocation13 + $0x128] sm:$0xff]
    %v7632 = vld [vmem:[#allocation13 + $0x130] sm:$0xff]
    %v7633 = vld [vmem:[#allocation13 + $0x138] sm:$0xff]
    %v7634 = vld [vmem:[#allocation13 + $0x140] sm:$0xff]
    %v7635 = vld [vmem:[#allocation13 + $0x148] sm:$0xff]
    %v7636 = vld [vmem:[#allocation13 + $0x150] sm:$0xff]
    %v7637 = vld [vmem:[#allocation13 + $0x158] sm:$0xff]
    %v7638 = vld [vmem:[#allocation13 + $0x160] sm:$0xff]
    %v7639 = vld [vmem:[#allocation13 + $0x168] sm:$0xff]
    %v7640 = vld [vmem:[#allocation13 + $0x170] sm:$0xff]
    %v7641 = vld [vmem:[#allocation13 + $0x178] sm:$0xff]
    %v7642 = vld [vmem:[#allocation13 + $0x180] sm:$0xff]
    %v7643 = vld [vmem:[#allocation13 + $0x188] sm:$0xff]
    %v7644 = vld [vmem:[#allocation13 + $0x190] sm:$0xff]
    %v7645 = vld [vmem:[#allocation13 + $0x198] sm:$0xff]
    %v7646 = vld [vmem:[#allocation13 + $0x1a0] sm:$0xff]
    %v7647 = vld [vmem:[#allocation13 + $0x1a8] sm:$0xff]
    %v7648 = vld [vmem:[#allocation13 + $0x1b0] sm:$0xff]
    %v7649 = vld [vmem:[#allocation13 + $0x1b8] sm:$0xff]
    %v7650 = vld [vmem:[#allocation13 + $0x1c0] sm:$0xff]
    %v7651 = vld [vmem:[#allocation13 + $0x1c8] sm:$0xff]
    %v7652 = vld [vmem:[#allocation13 + $0x1d0] sm:$0xff]
    %v7653 = vld [vmem:[#allocation13 + $0x1d8] sm:$0xff]
    %v7654 = vld [vmem:[#allocation13 + $0x1e0] sm:$0xff]
    %v7655 = vld [vmem:[#allocation13 + $0x1e8] sm:$0xff]
    %v7656 = vld [vmem:[#allocation13 + $0x1f0] sm:$0xff]
    %v7657 = vld [vmem:[#allocation13 + $0x1f8] sm:$0xff]
    %v7722 = vunpack.c.l.b16 %v7594
    %v7723 = vunpack.c.h.b16 %v7594
    %v7724 = vunpack.c.l.b16 %v7595
    %v7725 = vunpack.c.h.b16 %v7595
    %v7726 = vunpack.c.l.b16 %v7596
    %v7727 = vunpack.c.h.b16 %v7596
    %v7728 = vunpack.c.l.b16 %v7597
    %v7729 = vunpack.c.h.b16 %v7597
    %v7730 = vunpack.c.l.b16 %v7598
    %v7731 = vunpack.c.h.b16 %v7598
    %v7732 = vunpack.c.l.b16 %v7599
    %v7733 = vunpack.c.h.b16 %v7599
    %v7734 = vunpack.c.l.b16 %v7600
    %v7735 = vunpack.c.h.b16 %v7600
    %v7736 = vunpack.c.l.b16 %v7601
    %v7737 = vunpack.c.h.b16 %v7601
    %v7738 = vunpack.c.l.b16 %v7602
    %v7739 = vunpack.c.h.b16 %v7602
    %v7740 = vunpack.c.l.b16 %v7603
    %v7741 = vunpack.c.h.b16 %v7603
    %v7742 = vunpack.c.l.b16 %v7604
    %v7743 = vunpack.c.h.b16 %v7604
    %v7744 = vunpack.c.l.b16 %v7605
    %v7745 = vunpack.c.h.b16 %v7605
    %v7746 = vunpack.c.l.b16 %v7606
    %v7747 = vunpack.c.h.b16 %v7606
    %v7748 = vunpack.c.l.b16 %v7607
    %v7749 = vunpack.c.h.b16 %v7607
    %v7750 = vunpack.c.l.b16 %v7608
    %v7751 = vunpack.c.h.b16 %v7608
    %v7752 = vunpack.c.l.b16 %v7609
    %v7753 = vunpack.c.h.b16 %v7609
    %v7754 = vunpack.c.l.b16 %v7610
    %v7755 = vunpack.c.h.b16 %v7610
    %v7756 = vunpack.c.l.b16 %v7611
    %v7757 = vunpack.c.h.b16 %v7611
    %v7758 = vunpack.c.l.b16 %v7612
    %v7759 = vunpack.c.h.b16 %v7612
    %v7760 = vunpack.c.l.b16 %v7613
    %v7761 = vunpack.c.h.b16 %v7613
    %v7762 = vunpack.c.l.b16 %v7614
    %v7763 = vunpack.c.h.b16 %v7614
    %v7764 = vunpack.c.l.b16 %v7615
    %v7765 = vunpack.c.h.b16 %v7615
    %v7766 = vunpack.c.l.b16 %v7616
    %v7767 = vunpack.c.h.b16 %v7616
    %v7768 = vunpack.c.l.b16 %v7617
    %v7769 = vunpack.c.h.b16 %v7617
    %v7770 = vunpack.c.l.b16 %v7618
    %v7771 = vunpack.c.h.b16 %v7618
    %v7772 = vunpack.c.l.b16 %v7619
    %v7773 = vunpack.c.h.b16 %v7619
    %v7774 = vunpack.c.l.b16 %v7620
    %v7775 = vunpack.c.h.b16 %v7620
    %v7776 = vunpack.c.l.b16 %v7621
    %v7777 = vunpack.c.h.b16 %v7621
    %v7778 = vunpack.c.l.b16 %v7622
    %v7779 = vunpack.c.h.b16 %v7622
    %v7780 = vunpack.c.l.b16 %v7623
    %v7781 = vunpack.c.h.b16 %v7623
    %v7782 = vunpack.c.l.b16 %v7624
    %v7783 = vunpack.c.h.b16 %v7624
    %v7784 = vunpack.c.l.b16 %v7625
    %v7785 = vunpack.c.h.b16 %v7625
    %v7786 = vunpack.c.l.b16 %v7626
    %v7787 = vunpack.c.h.b16 %v7626
    %v7788 = vunpack.c.l.b16 %v7627
    %v7789 = vunpack.c.h.b16 %v7627
    %v7790 = vunpack.c.l.b16 %v7628
    %v7791 = vunpack.c.h.b16 %v7628
    %v7792 = vunpack.c.l.b16 %v7629
    %v7793 = vunpack.c.h.b16 %v7629
    %v7794 = vunpack.c.l.b16 %v7630
    %v7795 = vunpack.c.h.b16 %v7630
    %v7796 = vunpack.c.l.b16 %v7631
    %v7797 = vunpack.c.h.b16 %v7631
    %v7798 = vunpack.c.l.b16 %v7632
    %v7799 = vunpack.c.h.b16 %v7632
    %v7800 = vunpack.c.l.b16 %v7633
    %v7801 = vunpack.c.h.b16 %v7633
    %v7802 = vunpack.c.l.b16 %v7634
    %v7803 = vunpack.c.h.b16 %v7634
    %v7804 = vunpack.c.l.b16 %v7635
    %v7805 = vunpack.c.h.b16 %v7635
    %v7806 = vunpack.c.l.b16 %v7636
    %v7807 = vunpack.c.h.b16 %v7636
    %v7808 = vunpack.c.l.b16 %v7637
    %v7809 = vunpack.c.h.b16 %v7637
    %v7810 = vunpack.c.l.b16 %v7638
    %v7811 = vunpack.c.h.b16 %v7638
    %v7812 = vunpack.c.l.b16 %v7639
    %v7813 = vunpack.c.h.b16 %v7639
    %v7814 = vunpack.c.l.b16 %v7640
    %v7815 = vunpack.c.h.b16 %v7640
    %v7816 = vunpack.c.l.b16 %v7641
    %v7817 = vunpack.c.h.b16 %v7641
    %v7818 = vunpack.c.l.b16 %v7642
    %v7819 = vunpack.c.h.b16 %v7642
    %v7820 = vunpack.c.l.b16 %v7643
    %v7821 = vunpack.c.h.b16 %v7643
    %v7822 = vunpack.c.l.b16 %v7644
    %v7823 = vunpack.c.h.b16 %v7644
    %v7824 = vunpack.c.l.b16 %v7645
    %v7825 = vunpack.c.h.b16 %v7645
    %v7826 = vunpack.c.l.b16 %v7646
    %v7827 = vunpack.c.h.b16 %v7646
    %v7828 = vunpack.c.l.b16 %v7647
    %v7829 = vunpack.c.h.b16 %v7647
    %v7830 = vunpack.c.l.b16 %v7648
    %v7831 = vunpack.c.h.b16 %v7648
    %v7832 = vunpack.c.l.b16 %v7649
    %v7833 = vunpack.c.h.b16 %v7649
    %v7834 = vunpack.c.l.b16 %v7650
    %v7835 = vunpack.c.h.b16 %v7650
    %v7836 = vunpack.c.l.b16 %v7651
    %v7837 = vunpack.c.h.b16 %v7651
    %v7838 = vunpack.c.l.b16 %v7652
    %v7839 = vunpack.c.h.b16 %v7652
    %v7840 = vunpack.c.l.b16 %v7653
    %v7841 = vunpack.c.h.b16 %v7653
    %v7842 = vunpack.c.l.b16 %v7654
    %v7843 = vunpack.c.h.b16 %v7654
    %v7844 = vunpack.c.l.b16 %v7655
    %v7845 = vunpack.c.h.b16 %v7655
    %v7846 = vunpack.c.l.b16 %v7656
    %v7847 = vunpack.c.h.b16 %v7656
    %v7848 = vunpack.c.l.b16 %v7657
    %v7849 = vunpack.c.h.b16 %v7657
    %v7850 = vpack.c.b16 %v7724, %v7722
    %v7851 = vpack.c.b16 %v7725, %v7723
    %v7852 = vpack.c.b16 %v7728, %v7726
    %v7853 = vpack.c.b16 %v7729, %v7727
    %v7854 = vpack.c.b16 %v7732, %v7730
    %v7855 = vpack.c.b16 %v7733, %v7731
    %v7856 = vpack.c.b16 %v7736, %v7734
    %v7857 = vpack.c.b16 %v7737, %v7735
    %v7858 = vpack.c.b16 %v7740, %v7738
    %v7859 = vpack.c.b16 %v7741, %v7739
    %v7860 = vpack.c.b16 %v7744, %v7742
    %v7861 = vpack.c.b16 %v7745, %v7743
    %v7862 = vpack.c.b16 %v7748, %v7746
    %v7863 = vpack.c.b16 %v7749, %v7747
    %v7864 = vpack.c.b16 %v7752, %v7750
    %v7865 = vpack.c.b16 %v7753, %v7751
    %v7866 = vpack.c.b16 %v7756, %v7754
    %v7867 = vpack.c.b16 %v7757, %v7755
    %v7868 = vpack.c.b16 %v7760, %v7758
    %v7869 = vpack.c.b16 %v7761, %v7759
    %v7870 = vpack.c.b16 %v7764, %v7762
    %v7871 = vpack.c.b16 %v7765, %v7763
    %v7872 = vpack.c.b16 %v7768, %v7766
    %v7873 = vpack.c.b16 %v7769, %v7767
    %v7874 = vpack.c.b16 %v7772, %v7770
    %v7875 = vpack.c.b16 %v7773, %v7771
    %v7876 = vpack.c.b16 %v7776, %v7774
    %v7877 = vpack.c.b16 %v7777, %v7775
    %v7878 = vpack.c.b16 %v7780, %v7778
    %v7879 = vpack.c.b16 %v7781, %v7779
    %v7880 = vpack.c.b16 %v7784, %v7782
    %v7881 = vpack.c.b16 %v7785, %v7783
    %v7882 = vpack.c.b16 %v7788, %v7786
    %v7883 = vpack.c.b16 %v7789, %v7787
    %v7884 = vpack.c.b16 %v7792, %v7790
    %v7885 = vpack.c.b16 %v7793, %v7791
    %v7886 = vpack.c.b16 %v7796, %v7794
    %v7887 = vpack.c.b16 %v7797, %v7795
    %v7888 = vpack.c.b16 %v7800, %v7798
    %v7889 = vpack.c.b16 %v7801, %v7799
    %v7890 = vpack.c.b16 %v7804, %v7802
    %v7891 = vpack.c.b16 %v7805, %v7803
    %v7892 = vpack.c.b16 %v7808, %v7806
    %v7893 = vpack.c.b16 %v7809, %v7807
    %v7894 = vpack.c.b16 %v7812, %v7810
    %v7895 = vpack.c.b16 %v7813, %v7811
    %v7896 = vpack.c.b16 %v7816, %v7814
    %v7897 = vpack.c.b16 %v7817, %v7815
    %v7898 = vpack.c.b16 %v7820, %v7818
    %v7899 = vpack.c.b16 %v7821, %v7819
    %v7900 = vpack.c.b16 %v7824, %v7822
    %v7901 = vpack.c.b16 %v7825, %v7823
    %v7902 = vpack.c.b16 %v7828, %v7826
    %v7903 = vpack.c.b16 %v7829, %v7827
    %v7904 = vpack.c.b16 %v7832, %v7830
    %v7905 = vpack.c.b16 %v7833, %v7831
    %v7906 = vpack.c.b16 %v7836, %v7834
    %v7907 = vpack.c.b16 %v7837, %v7835
    %v7908 = vpack.c.b16 %v7840, %v7838
    %v7909 = vpack.c.b16 %v7841, %v7839
    %v7910 = vpack.c.b16 %v7844, %v7842
    %v7911 = vpack.c.b16 %v7845, %v7843
    %v7912 = vpack.c.b16 %v7848, %v7846
    %v7913 = vpack.c.b16 %v7849, %v7847
    %7978 = vmatpush.bf16.msra.mxu0 %v7864
    %7979 = vmatpush.bf16.msra.mxu0 %v7862
    %7980 = vmatpush.bf16.msra.mxu0 %v7860
    %7981 = vmatpush.bf16.msra.mxu0 %v7858
    %7982 = vmatpush.bf16.msra.mxu0 %v7856
    %7983 = vmatpush.bf16.msra.mxu0 %v7854
    %7984 = vmatpush.bf16.msra.mxu0 %v7852
    %7985 = vmatpush.bf16.msra.mxu0 %v7850
    %7986 = vmatmul.bf16.gmra.mxu0 %v7590
    %v7987 = vpop.f32.mrf.mxu0
    %v7988 = vadd.f32 0.0, %v7987
    %v7989 = vpop.f32.mrf.mxu0
    %7990 = vdwg.mxu0
    %7991 = vmatpush.bf16.msra.mxu0 %v7880
    %7992 = vmatpush.bf16.msra.mxu0 %v7878
    %7993 = vmatpush.bf16.msra.mxu0 %v7876
    %7994 = vmatpush.bf16.msra.mxu0 %v7874
    %7995 = vmatpush.bf16.msra.mxu0 %v7872
    %7996 = vmatpush.bf16.msra.mxu0 %v7870
    %7997 = vmatpush.bf16.msra.mxu0 %v7868
    %7998 = vmatpush.bf16.msra.mxu0 %v7866
    %7999 = vmatmul.bf16.gmra.mxu0 %v7591
    %v8000 = vpop.f32.mrf.mxu0
    %v8001 = vadd.f32 %v7988, %v8000
    %v8002 = vpop.f32.mrf.mxu0
    %8003 = vdwg.mxu0
    %8004 = vmatpush.bf16.msra.mxu0 %v7896
    %8005 = vmatpush.bf16.msra.mxu0 %v7894
    %8006 = vmatpush.bf16.msra.mxu0 %v7892
    %8007 = vmatpush.bf16.msra.mxu0 %v7890
    %8008 = vmatpush.bf16.msra.mxu0 %v7888
    %8009 = vmatpush.bf16.msra.mxu0 %v7886
    %8010 = vmatpush.bf16.msra.mxu0 %v7884
    %8011 = vmatpush.bf16.msra.mxu0 %v7882
    %8012 = vmatmul.bf16.gmra.mxu0 %v7592
    %v8013 = vpop.f32.mrf.mxu0
    %v8014 = vadd.f32 %v8001, %v8013
    %v8015 = vpop.f32.mrf.mxu0
    %8016 = vdwg.mxu0
    %8017 = vmatpush.bf16.msra.mxu0 %v7912
    %8018 = vmatpush.bf16.msra.mxu0 %v7910
    %8019 = vmatpush.bf16.msra.mxu0 %v7908
    %8020 = vmatpush.bf16.msra.mxu0 %v7906
    %8021 = vmatpush.bf16.msra.mxu0 %v7904
    %8022 = vmatpush.bf16.msra.mxu0 %v7902
    %8023 = vmatpush.bf16.msra.mxu0 %v7900
    %8024 = vmatpush.bf16.msra.mxu0 %v7898
    %8025 = vmatmul.bf16.gmra.mxu0 %v7593
    %v8026 = vpop.f32.mrf.mxu0
    %v8027 = vadd.f32 %v8014, %v8026
    %v8028 = vpop.f32.mrf.mxu0
    %8029 = vdwg.mxu0
    %8030 = vmatpush.bf16.msra.mxu0 %v7865
    %8031 = vmatpush.bf16.msra.mxu0 %v7863
    %8032 = vmatpush.bf16.msra.mxu0 %v7861
    %8033 = vmatpush.bf16.msra.mxu0 %v7859
    %8034 = vmatpush.bf16.msra.mxu0 %v7857
    %8035 = vmatpush.bf16.msra.mxu0 %v7855
    %8036 = vmatpush.bf16.msra.mxu0 %v7853
    %8037 = vmatpush.bf16.msra.mxu0 %v7851
    %8038 = vmatmul.bf16.gmra.mxu0 %v7590
    %v8039 = vpop.f32.mrf.mxu0
    %v8040 = vadd.f32 0.0, %v8039
    %v8041 = vpop.f32.mrf.mxu0
    %8042 = vdwg.mxu0
    %8043 = vmatpush.bf16.msra.mxu0 %v7881
    %8044 = vmatpush.bf16.msra.mxu0 %v7879
    %8045 = vmatpush.bf16.msra.mxu0 %v7877
    %8046 = vmatpush.bf16.msra.mxu0 %v7875
    %8047 = vmatpush.bf16.msra.mxu0 %v7873
    %8048 = vmatpush.bf16.msra.mxu0 %v7871
    %8049 = vmatpush.bf16.msra.mxu0 %v7869
    %8050 = vmatpush.bf16.msra.mxu0 %v7867
    %8051 = vmatmul.bf16.gmra.mxu0 %v7591
    %v8052 = vpop.f32.mrf.mxu0
    %v8053 = vadd.f32 %v8040, %v8052
    %v8054 = vpop.f32.mrf.mxu0
    %8055 = vdwg.mxu0
    %8056 = vmatpush.bf16.msra.mxu0 %v7897
    %8057 = vmatpush.bf16.msra.mxu0 %v7895
    %8058 = vmatpush.bf16.msra.mxu0 %v7893
    %8059 = vmatpush.bf16.msra.mxu0 %v7891
    %8060 = vmatpush.bf16.msra.mxu0 %v7889
    %8061 = vmatpush.bf16.msra.mxu0 %v7887
    %8062 = vmatpush.bf16.msra.mxu0 %v7885
    %8063 = vmatpush.bf16.msra.mxu0 %v7883
    %8064 = vmatmul.bf16.gmra.mxu0 %v7592
    %v8065 = vpop.f32.mrf.mxu0
    %v8066 = vadd.f32 %v8053, %v8065
    %v8067 = vpop.f32.mrf.mxu0
    %8068 = vdwg.mxu0
    %8069 = vmatpush.bf16.msra.mxu0 %v7913
    %8070 = vmatpush.bf16.msra.mxu0 %v7911
    %8071 = vmatpush.bf16.msra.mxu0 %v7909
    %8072 = vmatpush.bf16.msra.mxu0 %v7907
    %8073 = vmatpush.bf16.msra.mxu0 %v7905
    %8074 = vmatpush.bf16.msra.mxu0 %v7903
    %8075 = vmatpush.bf16.msra.mxu0 %v7901
    %8076 = vmatpush.bf16.msra.mxu0 %v7899
    %8077 = vmatmul.bf16.gmra.mxu0 %v7593
    %v8078 = vpop.f32.mrf.mxu0
    %v8079 = vadd.f32 %v8066, %v8078
    %v8080 = vpop.f32.mrf.mxu0
    %8081 = vdwg.mxu0
    %v8082 = vld [vmem:[%s3739] sm:$0xff]
    %v8083 = vld [vmem:[%s3739 + $0x8] sm:$0xff]
    %v8084 = vld [vmem:[%s3739 + $0x10] sm:$0xff]
    %v8085 = vld [vmem:[%s3739 + $0x18] sm:$0xff]
    %v8086 = vld [vmem:[%s3739 + $0x20] sm:$0xff]
    %v8087 = vld [vmem:[%s3739 + $0x28] sm:$0xff]
    %v8088 = vld [vmem:[%s3739 + $0x30] sm:$0xff]
    %v8089 = vld [vmem:[%s3739 + $0x38] sm:$0xff]
    %v8090 = vld [vmem:[%s3739 + $0x40] sm:$0xff]
    %v8091 = vld [vmem:[%s3739 + $0x48] sm:$0xff]
    %v8092 = vld [vmem:[%s3739 + $0x50] sm:$0xff]
    %v8093 = vld [vmem:[%s3739 + $0x58] sm:$0xff]
    %v8094 = vld [vmem:[%s3739 + $0x60] sm:$0xff]
    %v8095 = vld [vmem:[%s3739 + $0x68] sm:$0xff]
    %v8096 = vld [vmem:[%s3739 + $0x70] sm:$0xff]
    %v8097 = vld [vmem:[%s3739 + $0x78] sm:$0xff]
    %v8098 = vld [vmem:[%s3739 + $0x80] sm:$0xff]
    %v8099 = vld [vmem:[%s3739 + $0x88] sm:$0xff]
    %v8100 = vld [vmem:[%s3739 + $0x90] sm:$0xff]
    %v8101 = vld [vmem:[%s3739 + $0x98] sm:$0xff]
    %v8102 = vld [vmem:[%s3739 + $0xa0] sm:$0xff]
    %v8103 = vld [vmem:[%s3739 + $0xa8] sm:$0xff]
    %v8104 = vld [vmem:[%s3739 + $0xb0] sm:$0xff]
    %v8105 = vld [vmem:[%s3739 + $0xb8] sm:$0xff]
    %v8106 = vld [vmem:[%s3739 + $0xc0] sm:$0xff]
    %v8107 = vld [vmem:[%s3739 + $0xc8] sm:$0xff]
    %v8108 = vld [vmem:[%s3739 + $0xd0] sm:$0xff]
    %v8109 = vld [vmem:[%s3739 + $0xd8] sm:$0xff]
    %v8110 = vld [vmem:[%s3739 + $0xe0] sm:$0xff]
    %v8111 = vld [vmem:[%s3739 + $0xe8] sm:$0xff]
    %v8112 = vld [vmem:[%s3739 + $0xf0] sm:$0xff]
    %v8113 = vld [vmem:[%s3739 + $0xf8] sm:$0xff]
    %v8114 = vld [vmem:[%s3739 + $0x100] sm:$0xff]
    %v8115 = vld [vmem:[%s3739 + $0x108] sm:$0xff]
    %v8116 = vld [vmem:[%s3739 + $0x110] sm:$0xff]
    %v8117 = vld [vmem:[%s3739 + $0x118] sm:$0xff]
    %v8118 = vld [vmem:[%s3739 + $0x120] sm:$0xff]
    %v8119 = vld [vmem:[%s3739 + $0x128] sm:$0xff]
    %v8120 = vld [vmem:[%s3739 + $0x130] sm:$0xff]
    %v8121 = vld [vmem:[%s3739 + $0x138] sm:$0xff]
    %v8122 = vld [vmem:[%s3739 + $0x140] sm:$0xff]
    %v8123 = vld [vmem:[%s3739 + $0x148] sm:$0xff]
    %v8124 = vld [vmem:[%s3739 + $0x150] sm:$0xff]
    %v8125 = vld [vmem:[%s3739 + $0x158] sm:$0xff]
    %v8126 = vld [vmem:[%s3739 + $0x160] sm:$0xff]
    %v8127 = vld [vmem:[%s3739 + $0x168] sm:$0xff]
    %v8128 = vld [vmem:[%s3739 + $0x170] sm:$0xff]
    %v8129 = vld [vmem:[%s3739 + $0x178] sm:$0xff]
    %v8130 = vld [vmem:[%s3739 + $0x180] sm:$0xff]
    %v8131 = vld [vmem:[%s3739 + $0x188] sm:$0xff]
    %v8132 = vld [vmem:[%s3739 + $0x190] sm:$0xff]
    %v8133 = vld [vmem:[%s3739 + $0x198] sm:$0xff]
    %v8134 = vld [vmem:[%s3739 + $0x1a0] sm:$0xff]
    %v8135 = vld [vmem:[%s3739 + $0x1a8] sm:$0xff]
    %v8136 = vld [vmem:[%s3739 + $0x1b0] sm:$0xff]
    %v8137 = vld [vmem:[%s3739 + $0x1b8] sm:$0xff]
    %v8138 = vld [vmem:[%s3739 + $0x1c0] sm:$0xff]
    %v8139 = vld [vmem:[%s3739 + $0x1c8] sm:$0xff]
    %v8140 = vld [vmem:[%s3739 + $0x1d0] sm:$0xff]
    %v8141 = vld [vmem:[%s3739 + $0x1d8] sm:$0xff]
    %v8142 = vld [vmem:[%s3739 + $0x1e0] sm:$0xff]
    %v8143 = vld [vmem:[%s3739 + $0x1e8] sm:$0xff]
    %v8144 = vld [vmem:[%s3739 + $0x1f0] sm:$0xff]
    %v8145 = vld [vmem:[%s3739 + $0x1f8] sm:$0xff]
    %v8210 = vunpack.c.l.b16 %v8082
    %v8211 = vunpack.c.h.b16 %v8082
    %v8212 = vunpack.c.l.b16 %v8083
    %v8213 = vunpack.c.h.b16 %v8083
    %v8214 = vunpack.c.l.b16 %v8084
    %v8215 = vunpack.c.h.b16 %v8084
    %v8216 = vunpack.c.l.b16 %v8085
    %v8217 = vunpack.c.h.b16 %v8085
    %v8218 = vunpack.c.l.b16 %v8086
    %v8219 = vunpack.c.h.b16 %v8086
    %v8220 = vunpack.c.l.b16 %v8087
    %v8221 = vunpack.c.h.b16 %v8087
    %v8222 = vunpack.c.l.b16 %v8088
    %v8223 = vunpack.c.h.b16 %v8088
    %v8224 = vunpack.c.l.b16 %v8089
    %v8225 = vunpack.c.h.b16 %v8089
    %v8226 = vunpack.c.l.b16 %v8090
    %v8227 = vunpack.c.h.b16 %v8090
    %v8228 = vunpack.c.l.b16 %v8091
    %v8229 = vunpack.c.h.b16 %v8091
    %v8230 = vunpack.c.l.b16 %v8092
    %v8231 = vunpack.c.h.b16 %v8092
    %v8232 = vunpack.c.l.b16 %v8093
    %v8233 = vunpack.c.h.b16 %v8093
    %v8234 = vunpack.c.l.b16 %v8094
    %v8235 = vunpack.c.h.b16 %v8094
    %v8236 = vunpack.c.l.b16 %v8095
    %v8237 = vunpack.c.h.b16 %v8095
    %v8238 = vunpack.c.l.b16 %v8096
    %v8239 = vunpack.c.h.b16 %v8096
    %v8240 = vunpack.c.l.b16 %v8097
    %v8241 = vunpack.c.h.b16 %v8097
    %v8242 = vunpack.c.l.b16 %v8098
    %v8243 = vunpack.c.h.b16 %v8098
    %v8244 = vunpack.c.l.b16 %v8099
    %v8245 = vunpack.c.h.b16 %v8099
    %v8246 = vunpack.c.l.b16 %v8100
    %v8247 = vunpack.c.h.b16 %v8100
    %v8248 = vunpack.c.l.b16 %v8101
    %v8249 = vunpack.c.h.b16 %v8101
    %v8250 = vunpack.c.l.b16 %v8102
    %v8251 = vunpack.c.h.b16 %v8102
    %v8252 = vunpack.c.l.b16 %v8103
    %v8253 = vunpack.c.h.b16 %v8103
    %v8254 = vunpack.c.l.b16 %v8104
    %v8255 = vunpack.c.h.b16 %v8104
    %v8256 = vunpack.c.l.b16 %v8105
    %v8257 = vunpack.c.h.b16 %v8105
    %v8258 = vunpack.c.l.b16 %v8106
    %v8259 = vunpack.c.h.b16 %v8106
    %v8260 = vunpack.c.l.b16 %v8107
    %v8261 = vunpack.c.h.b16 %v8107
    %v8262 = vunpack.c.l.b16 %v8108
    %v8263 = vunpack.c.h.b16 %v8108
    %v8264 = vunpack.c.l.b16 %v8109
    %v8265 = vunpack.c.h.b16 %v8109
    %v8266 = vunpack.c.l.b16 %v8110
    %v8267 = vunpack.c.h.b16 %v8110
    %v8268 = vunpack.c.l.b16 %v8111
    %v8269 = vunpack.c.h.b16 %v8111
    %v8270 = vunpack.c.l.b16 %v8112
    %v8271 = vunpack.c.h.b16 %v8112
    %v8272 = vunpack.c.l.b16 %v8113
    %v8273 = vunpack.c.h.b16 %v8113
    %v8274 = vunpack.c.l.b16 %v8114
    %v8275 = vunpack.c.h.b16 %v8114
    %v8276 = vunpack.c.l.b16 %v8115
    %v8277 = vunpack.c.h.b16 %v8115
    %v8278 = vunpack.c.l.b16 %v8116
    %v8279 = vunpack.c.h.b16 %v8116
    %v8280 = vunpack.c.l.b16 %v8117
    %v8281 = vunpack.c.h.b16 %v8117
    %v8282 = vunpack.c.l.b16 %v8118
    %v8283 = vunpack.c.h.b16 %v8118
    %v8284 = vunpack.c.l.b16 %v8119
    %v8285 = vunpack.c.h.b16 %v8119
    %v8286 = vunpack.c.l.b16 %v8120
    %v8287 = vunpack.c.h.b16 %v8120
    %v8288 = vunpack.c.l.b16 %v8121
    %v8289 = vunpack.c.h.b16 %v8121
    %v8290 = vunpack.c.l.b16 %v8122
    %v8291 = vunpack.c.h.b16 %v8122
    %v8292 = vunpack.c.l.b16 %v8123
    %v8293 = vunpack.c.h.b16 %v8123
    %v8294 = vunpack.c.l.b16 %v8124
    %v8295 = vunpack.c.h.b16 %v8124
    %v8296 = vunpack.c.l.b16 %v8125
    %v8297 = vunpack.c.h.b16 %v8125
    %v8298 = vunpack.c.l.b16 %v8126
    %v8299 = vunpack.c.h.b16 %v8126
    %v8300 = vunpack.c.l.b16 %v8127
    %v8301 = vunpack.c.h.b16 %v8127
    %v8302 = vunpack.c.l.b16 %v8128
    %v8303 = vunpack.c.h.b16 %v8128
    %v8304 = vunpack.c.l.b16 %v8129
    %v8305 = vunpack.c.h.b16 %v8129
    %v8306 = vunpack.c.l.b16 %v8130
    %v8307 = vunpack.c.h.b16 %v8130
    %v8308 = vunpack.c.l.b16 %v8131
    %v8309 = vunpack.c.h.b16 %v8131
    %v8310 = vunpack.c.l.b16 %v8132
    %v8311 = vunpack.c.h.b16 %v8132
    %v8312 = vunpack.c.l.b16 %v8133
    %v8313 = vunpack.c.h.b16 %v8133
    %v8314 = vunpack.c.l.b16 %v8134
    %v8315 = vunpack.c.h.b16 %v8134
    %v8316 = vunpack.c.l.b16 %v8135
    %v8317 = vunpack.c.h.b16 %v8135
    %v8318 = vunpack.c.l.b16 %v8136
    %v8319 = vunpack.c.h.b16 %v8136
    %v8320 = vunpack.c.l.b16 %v8137
    %v8321 = vunpack.c.h.b16 %v8137
    %v8322 = vunpack.c.l.b16 %v8138
    %v8323 = vunpack.c.h.b16 %v8138
    %v8324 = vunpack.c.l.b16 %v8139
    %v8325 = vunpack.c.h.b16 %v8139
    %v8326 = vunpack.c.l.b16 %v8140
    %v8327 = vunpack.c.h.b16 %v8140
    %v8328 = vunpack.c.l.b16 %v8141
    %v8329 = vunpack.c.h.b16 %v8141
    %v8330 = vunpack.c.l.b16 %v8142
    %v8331 = vunpack.c.h.b16 %v8142
    %v8332 = vunpack.c.l.b16 %v8143
    %v8333 = vunpack.c.h.b16 %v8143
    %v8334 = vunpack.c.l.b16 %v8144
    %v8335 = vunpack.c.h.b16 %v8144
    %v8336 = vunpack.c.l.b16 %v8145
    %v8337 = vunpack.c.h.b16 %v8145
    %v8338 = vpack.c.b16 %v8212, %v8210
    %v8339 = vpack.c.b16 %v8213, %v8211
    %v8340 = vpack.c.b16 %v8216, %v8214
    %v8341 = vpack.c.b16 %v8217, %v8215
    %v8342 = vpack.c.b16 %v8220, %v8218
    %v8343 = vpack.c.b16 %v8221, %v8219
    %v8344 = vpack.c.b16 %v8224, %v8222
    %v8345 = vpack.c.b16 %v8225, %v8223
    %v8346 = vpack.c.b16 %v8228, %v8226
    %v8347 = vpack.c.b16 %v8229, %v8227
    %v8348 = vpack.c.b16 %v8232, %v8230
    %v8349 = vpack.c.b16 %v8233, %v8231
    %v8350 = vpack.c.b16 %v8236, %v8234
    %v8351 = vpack.c.b16 %v8237, %v8235
    %v8352 = vpack.c.b16 %v8240, %v8238
    %v8353 = vpack.c.b16 %v8241, %v8239
    %v8354 = vpack.c.b16 %v8244, %v8242
    %v8355 = vpack.c.b16 %v8245, %v8243
    %v8356 = vpack.c.b16 %v8248, %v8246
    %v8357 = vpack.c.b16 %v8249, %v8247
    %v8358 = vpack.c.b16 %v8252, %v8250
    %v8359 = vpack.c.b16 %v8253, %v8251
    %v8360 = vpack.c.b16 %v8256, %v8254
    %v8361 = vpack.c.b16 %v8257, %v8255
    %v8362 = vpack.c.b16 %v8260, %v8258
    %v8363 = vpack.c.b16 %v8261, %v8259
    %v8364 = vpack.c.b16 %v8264, %v8262
    %v8365 = vpack.c.b16 %v8265, %v8263
    %v8366 = vpack.c.b16 %v8268, %v8266
    %v8367 = vpack.c.b16 %v8269, %v8267
    %v8368 = vpack.c.b16 %v8272, %v8270
    %v8369 = vpack.c.b16 %v8273, %v8271
    %v8370 = vpack.c.b16 %v8276, %v8274
    %v8371 = vpack.c.b16 %v8277, %v8275
    %v8372 = vpack.c.b16 %v8280, %v8278
    %v8373 = vpack.c.b16 %v8281, %v8279
    %v8374 = vpack.c.b16 %v8284, %v8282
    %v8375 = vpack.c.b16 %v8285, %v8283
    %v8376 = vpack.c.b16 %v8288, %v8286
    %v8377 = vpack.c.b16 %v8289, %v8287
    %v8378 = vpack.c.b16 %v8292, %v8290
    %v8379 = vpack.c.b16 %v8293, %v8291
    %v8380 = vpack.c.b16 %v8296, %v8294
    %v8381 = vpack.c.b16 %v8297, %v8295
    %v8382 = vpack.c.b16 %v8300, %v8298
    %v8383 = vpack.c.b16 %v8301, %v8299
    %v8384 = vpack.c.b16 %v8304, %v8302
    %v8385 = vpack.c.b16 %v8305, %v8303
    %v8386 = vpack.c.b16 %v8308, %v8306
    %v8387 = vpack.c.b16 %v8309, %v8307
    %v8388 = vpack.c.b16 %v8312, %v8310
    %v8389 = vpack.c.b16 %v8313, %v8311
    %v8390 = vpack.c.b16 %v8316, %v8314
    %v8391 = vpack.c.b16 %v8317, %v8315
    %v8392 = vpack.c.b16 %v8320, %v8318
    %v8393 = vpack.c.b16 %v8321, %v8319
    %v8394 = vpack.c.b16 %v8324, %v8322
    %v8395 = vpack.c.b16 %v8325, %v8323
    %v8396 = vpack.c.b16 %v8328, %v8326
    %v8397 = vpack.c.b16 %v8329, %v8327
    %v8398 = vpack.c.b16 %v8332, %v8330
    %v8399 = vpack.c.b16 %v8333, %v8331
    %v8400 = vpack.c.b16 %v8336, %v8334
    %v8401 = vpack.c.b16 %v8337, %v8335
    %8466 = vmatpush.bf16.msra.mxu0 %v8352
    %8467 = vmatpush.bf16.msra.mxu0 %v8350
    %8468 = vmatpush.bf16.msra.mxu0 %v8348
    %8469 = vmatpush.bf16.msra.mxu0 %v8346
    %8470 = vmatpush.bf16.msra.mxu0 %v8344
    %8471 = vmatpush.bf16.msra.mxu0 %v8342
    %8472 = vmatpush.bf16.msra.mxu0 %v8340
    %8473 = vmatpush.bf16.msra.mxu0 %v8338
    %8474 = vmatmul.bf16.gmra.mxu0 %v7590
    %v8475 = vpop.f32.mrf.mxu0
    %v8476 = vadd.f32 0.0, %v8475
    %v8477 = vpop.f32.mrf.mxu0
    %8478 = vdwg.mxu0
    %8479 = vmatpush.bf16.msra.mxu0 %v8368
    %8480 = vmatpush.bf16.msra.mxu0 %v8366
    %8481 = vmatpush.bf16.msra.mxu0 %v8364
    %8482 = vmatpush.bf16.msra.mxu0 %v8362
    %8483 = vmatpush.bf16.msra.mxu0 %v8360
    %8484 = vmatpush.bf16.msra.mxu0 %v8358
    %8485 = vmatpush.bf16.msra.mxu0 %v8356
    %8486 = vmatpush.bf16.msra.mxu0 %v8354
    %8487 = vmatmul.bf16.gmra.mxu0 %v7591
    %v8488 = vpop.f32.mrf.mxu0
    %v8489 = vadd.f32 %v8476, %v8488
    %v8490 = vpop.f32.mrf.mxu0
    %8491 = vdwg.mxu0
    %8492 = vmatpush.bf16.msra.mxu0 %v8384
    %8493 = vmatpush.bf16.msra.mxu0 %v8382
    %8494 = vmatpush.bf16.msra.mxu0 %v8380
    %8495 = vmatpush.bf16.msra.mxu0 %v8378
    %8496 = vmatpush.bf16.msra.mxu0 %v8376
    %8497 = vmatpush.bf16.msra.mxu0 %v8374
    %8498 = vmatpush.bf16.msra.mxu0 %v8372
    %8499 = vmatpush.bf16.msra.mxu0 %v8370
    %8500 = vmatmul.bf16.gmra.mxu0 %v7592
    %v8501 = vpop.f32.mrf.mxu0
    %v8502 = vadd.f32 %v8489, %v8501
    %v8503 = vpop.f32.mrf.mxu0
    %8504 = vdwg.mxu0
    %8505 = vmatpush.bf16.msra.mxu0 %v8400
    %8506 = vmatpush.bf16.msra.mxu0 %v8398
    %8507 = vmatpush.bf16.msra.mxu0 %v8396
    %8508 = vmatpush.bf16.msra.mxu0 %v8394
    %8509 = vmatpush.bf16.msra.mxu0 %v8392
    %8510 = vmatpush.bf16.msra.mxu0 %v8390
    %8511 = vmatpush.bf16.msra.mxu0 %v8388
    %8512 = vmatpush.bf16.msra.mxu0 %v8386
    %8513 = vmatmul.bf16.gmra.mxu0 %v7593
    %v8514 = vpop.f32.mrf.mxu0
    %v8515 = vadd.f32 %v8502, %v8514
    %v8516 = vpop.f32.mrf.mxu0
    %8517 = vdwg.mxu0
    %8518 = vmatpush.bf16.msra.mxu0 %v8353
    %8519 = vmatpush.bf16.msra.mxu0 %v8351
    %8520 = vmatpush.bf16.msra.mxu0 %v8349
    %8521 = vmatpush.bf16.msra.mxu0 %v8347
    %8522 = vmatpush.bf16.msra.mxu0 %v8345
    %8523 = vmatpush.bf16.msra.mxu0 %v8343
    %8524 = vmatpush.bf16.msra.mxu0 %v8341
    %8525 = vmatpush.bf16.msra.mxu0 %v8339
    %8526 = vmatmul.bf16.gmra.mxu0 %v7590
    %v8527 = vpop.f32.mrf.mxu0
    %v8528 = vadd.f32 0.0, %v8527
    %v8529 = vpop.f32.mrf.mxu0
    %8530 = vdwg.mxu0
    %8531 = vmatpush.bf16.msra.mxu0 %v8369
    %8532 = vmatpush.bf16.msra.mxu0 %v8367
    %8533 = vmatpush.bf16.msra.mxu0 %v8365
    %8534 = vmatpush.bf16.msra.mxu0 %v8363
    %8535 = vmatpush.bf16.msra.mxu0 %v8361
    %8536 = vmatpush.bf16.msra.mxu0 %v8359
    %8537 = vmatpush.bf16.msra.mxu0 %v8357
    %8538 = vmatpush.bf16.msra.mxu0 %v8355
    %8539 = vmatmul.bf16.gmra.mxu0 %v7591
    %v8540 = vpop.f32.mrf.mxu0
    %v8541 = vadd.f32 %v8528, %v8540
    %v8542 = vpop.f32.mrf.mxu0
    %8543 = vdwg.mxu0
    %8544 = vmatpush.bf16.msra.mxu0 %v8385
    %8545 = vmatpush.bf16.msra.mxu0 %v8383
    %8546 = vmatpush.bf16.msra.mxu0 %v8381
    %8547 = vmatpush.bf16.msra.mxu0 %v8379
    %8548 = vmatpush.bf16.msra.mxu0 %v8377
    %8549 = vmatpush.bf16.msra.mxu0 %v8375
    %8550 = vmatpush.bf16.msra.mxu0 %v8373
    %8551 = vmatpush.bf16.msra.mxu0 %v8371
    %8552 = vmatmul.bf16.gmra.mxu0 %v7592
    %v8553 = vpop.f32.mrf.mxu0
    %v8554 = vadd.f32 %v8541, %v8553
    %v8555 = vpop.f32.mrf.mxu0
    %8556 = vdwg.mxu0
    %8557 = vmatpush.bf16.msra.mxu0 %v8401
    %8558 = vmatpush.bf16.msra.mxu0 %v8399
    %8559 = vmatpush.bf16.msra.mxu0 %v8397
    %8560 = vmatpush.bf16.msra.mxu0 %v8395
    %8561 = vmatpush.bf16.msra.mxu0 %v8393
    %8562 = vmatpush.bf16.msra.mxu0 %v8391
    %8563 = vmatpush.bf16.msra.mxu0 %v8389
    %8564 = vmatpush.bf16.msra.mxu0 %v8387
    %8565 = vmatmul.bf16.gmra.mxu0 %v7593
    %v8566 = vpop.f32.mrf.mxu0
    %v8567 = vadd.f32 %v8554, %v8566
    %v8568 = vpop.f32.mrf.mxu0
    %8569 = vdwg.mxu0
    %v8570 = vmax.f32 %v8027, %v8515
    %v8571 = vmax.f32 %v8079, %v8567
    %v8572 = vld [vmem:[%s17] sm:$0x1]
    %v8573 = vpack.c.bf16 %v8570, %v8570
    %v8574 = vpack.c.bf16 %v8571, %v8571
    %v8575 = vld [vmem:[#allocation18] sm:$0xf]
    %v8576 = vld [vmem:[#allocation18 + $0x4] sm:$0xf]
    %v8577 = vld [vmem:[#allocation18 + $0x8] sm:$0xf]
    %v8578 = vld [vmem:[#allocation18 + $0xc] sm:$0xf]
    %v8579 = vld [vmem:[#allocation18 + $0x10] sm:$0xf]
    %v8580 = vld [vmem:[#allocation18 + $0x14] sm:$0xf]
    %v8581 = vld [vmem:[#allocation18 + $0x18] sm:$0xf]
    %v8582 = vld [vmem:[#allocation18 + $0x1c] sm:$0xf]
    %v8583 = vld [vmem:[#allocation18 + $0x20] sm:$0xf]
    %v8584 = vld [vmem:[#allocation18 + $0x24] sm:$0xf]
    %v8585 = vld [vmem:[#allocation18 + $0x28] sm:$0xf]
    %v8586 = vld [vmem:[#allocation18 + $0x2c] sm:$0xf]
    %v8587 = vld [vmem:[#allocation18 + $0x30] sm:$0xf]
    %v8588 = vld [vmem:[#allocation18 + $0x34] sm:$0xf]
    %v8589 = vld [vmem:[#allocation18 + $0x38] sm:$0xf]
    %v8590 = vld [vmem:[#allocation18 + $0x3c] sm:$0xf]
    %v8591 = vld [vmem:[#allocation18 + $0x40] sm:$0xf]
    %v8592 = vld [vmem:[#allocation18 + $0x44] sm:$0xf]
    %v8593 = vld [vmem:[#allocation18 + $0x48] sm:$0xf]
    %v8594 = vld [vmem:[#allocation18 + $0x4c] sm:$0xf]
    %v8595 = vld [vmem:[#allocation18 + $0x50] sm:$0xf]
    %v8596 = vld [vmem:[#allocation18 + $0x54] sm:$0xf]
    %v8597 = vld [vmem:[#allocation18 + $0x58] sm:$0xf]
    %v8598 = vld [vmem:[#allocation18 + $0x5c] sm:$0xf]
    %v8599 = vld [vmem:[#allocation18 + $0x60] sm:$0xf]
    %v8600 = vld [vmem:[#allocation18 + $0x64] sm:$0xf]
    %v8601 = vld [vmem:[#allocation18 + $0x68] sm:$0xf]
    %v8602 = vld [vmem:[#allocation18 + $0x6c] sm:$0xf]
    %v8603 = vld [vmem:[#allocation18 + $0x70] sm:$0xf]
    %v8604 = vld [vmem:[#allocation18 + $0x74] sm:$0xf]
    %v8605 = vld [vmem:[#allocation18 + $0x78] sm:$0xf]
    %v8606 = vld [vmem:[#allocation18 + $0x7c] sm:$0xf]
    %v8639 = vunpack.c.l.b16 %v8575
    %v8640 = vunpack.c.l.b16 %v8576
    %v8641 = vunpack.c.l.b16 %v8577
    %v8642 = vunpack.c.l.b16 %v8578
    %v8643 = vunpack.c.l.b16 %v8579
    %v8644 = vunpack.c.l.b16 %v8580
    %v8645 = vunpack.c.l.b16 %v8581
    %v8646 = vunpack.c.l.b16 %v8582
    %v8647 = vunpack.c.l.b16 %v8583
    %v8648 = vunpack.c.l.b16 %v8584
    %v8649 = vunpack.c.l.b16 %v8585
    %v8650 = vunpack.c.l.b16 %v8586
    %v8651 = vunpack.c.l.b16 %v8587
    %v8652 = vunpack.c.l.b16 %v8588
    %v8653 = vunpack.c.l.b16 %v8589
    %v8654 = vunpack.c.l.b16 %v8590
    %v8655 = vunpack.c.l.b16 %v8591
    %v8656 = vunpack.c.l.b16 %v8592
    %v8657 = vunpack.c.l.b16 %v8593
    %v8658 = vunpack.c.l.b16 %v8594
    %v8659 = vunpack.c.l.b16 %v8595
    %v8660 = vunpack.c.l.b16 %v8596
    %v8661 = vunpack.c.l.b16 %v8597
    %v8662 = vunpack.c.l.b16 %v8598
    %v8663 = vunpack.c.l.b16 %v8599
    %v8664 = vunpack.c.l.b16 %v8600
    %v8665 = vunpack.c.l.b16 %v8601
    %v8666 = vunpack.c.l.b16 %v8602
    %v8667 = vunpack.c.l.b16 %v8603
    %v8668 = vunpack.c.l.b16 %v8604
    %v8669 = vunpack.c.l.b16 %v8605
    %v8670 = vunpack.c.l.b16 %v8606
    %v8671 = vpack.c.b16 %v8640, %v8639
    %v8672 = vpack.c.b16 %v8642, %v8641
    %v8673 = vpack.c.b16 %v8644, %v8643
    %v8674 = vpack.c.b16 %v8646, %v8645
    %v8675 = vpack.c.b16 %v8648, %v8647
    %v8676 = vpack.c.b16 %v8650, %v8649
    %v8677 = vpack.c.b16 %v8652, %v8651
    %v8678 = vpack.c.b16 %v8654, %v8653
    %v8679 = vpack.c.b16 %v8656, %v8655
    %v8680 = vpack.c.b16 %v8658, %v8657
    %v8681 = vpack.c.b16 %v8660, %v8659
    %v8682 = vpack.c.b16 %v8662, %v8661
    %v8683 = vpack.c.b16 %v8664, %v8663
    %v8684 = vpack.c.b16 %v8666, %v8665
    %v8685 = vpack.c.b16 %v8668, %v8667
    %v8686 = vpack.c.b16 %v8670, %v8669
    %8703 = vmatpush.bf16.msra.mxu0 %v8678
    %8704 = vmatpush.bf16.msra.mxu0 %v8677
    %8705 = vmatpush.bf16.msra.mxu0 %v8676
    %8706 = vmatpush.bf16.msra.mxu0 %v8675
    %8707 = vmatpush.bf16.msra.mxu0 %v8674
    %8708 = vmatpush.bf16.msra.mxu0 %v8673
    %8709 = vmatpush.bf16.msra.mxu0 %v8672
    %8710 = vmatpush.bf16.msra.mxu0 %v8671
    %8711 = vmatmul.bf16.gmra.mxu0 %v8573
    %v8712 = vpop.f32.mrf.mxu0
    %v8713 = vadd.f32 0.0, %v8712
    %v8714 = vpop.f32.mrf.mxu0
    %8715 = vdwg.mxu0
    %8716 = vmatpush.bf16.msra.mxu0 %v8686
    %8717 = vmatpush.bf16.msra.mxu0 %v8685
    %8718 = vmatpush.bf16.msra.mxu0 %v8684
    %8719 = vmatpush.bf16.msra.mxu0 %v8683
    %8720 = vmatpush.bf16.msra.mxu0 %v8682
    %8721 = vmatpush.bf16.msra.mxu0 %v8681
    %8722 = vmatpush.bf16.msra.mxu0 %v8680
    %8723 = vmatpush.bf16.msra.mxu0 %v8679
    %8724 = vmatmul.bf16.gmra.mxu0 %v8574
    %v8725 = vpop.f32.mrf.mxu0
    %v8726 = vadd.f32 %v8713, %v8725
    %v8727 = vpop.f32.mrf.mxu0
    %8728 = vdwg.mxu0
    %v8729 = vadd.f32 %v8572, %v8726
    %v8730 = vld [vmem:[%s4388] sm:$0xf]
    %v8731 = vld [vmem:[%s4388 + $0x4] sm:$0xf]
    %v8732 = vld [vmem:[%s4388 + $0x8] sm:$0xf]
    %v8733 = vld [vmem:[%s4388 + $0xc] sm:$0xf]
    %v8734 = vld [vmem:[%s4388 + $0x10] sm:$0xf]
    %v8735 = vld [vmem:[%s4388 + $0x14] sm:$0xf]
    %v8736 = vld [vmem:[%s4388 + $0x18] sm:$0xf]
    %v8737 = vld [vmem:[%s4388 + $0x1c] sm:$0xf]
    %v8738 = vld [vmem:[%s4388 + $0x20] sm:$0xf]
    %v8739 = vld [vmem:[%s4388 + $0x24] sm:$0xf]
    %v8740 = vld [vmem:[%s4388 + $0x28] sm:$0xf]
    %v8741 = vld [vmem:[%s4388 + $0x2c] sm:$0xf]
    %v8742 = vld [vmem:[%s4388 + $0x30] sm:$0xf]
    %v8743 = vld [vmem:[%s4388 + $0x34] sm:$0xf]
    %v8744 = vld [vmem:[%s4388 + $0x38] sm:$0xf]
    %v8745 = vld [vmem:[%s4388 + $0x3c] sm:$0xf]
    %v8746 = vld [vmem:[%s4388 + $0x40] sm:$0xf]
    %v8747 = vld [vmem:[%s4388 + $0x44] sm:$0xf]
    %v8748 = vld [vmem:[%s4388 + $0x48] sm:$0xf]
    %v8749 = vld [vmem:[%s4388 + $0x4c] sm:$0xf]
    %v8750 = vld [vmem:[%s4388 + $0x50] sm:$0xf]
    %v8751 = vld [vmem:[%s4388 + $0x54] sm:$0xf]
    %v8752 = vld [vmem:[%s4388 + $0x58] sm:$0xf]
    %v8753 = vld [vmem:[%s4388 + $0x5c] sm:$0xf]
    %v8754 = vld [vmem:[%s4388 + $0x60] sm:$0xf]
    %v8755 = vld [vmem:[%s4388 + $0x64] sm:$0xf]
    %v8756 = vld [vmem:[%s4388 + $0x68] sm:$0xf]
    %v8757 = vld [vmem:[%s4388 + $0x6c] sm:$0xf]
    %v8758 = vld [vmem:[%s4388 + $0x70] sm:$0xf]
    %v8759 = vld [vmem:[%s4388 + $0x74] sm:$0xf]
    %v8760 = vld [vmem:[%s4388 + $0x78] sm:$0xf]
    %v8761 = vld [vmem:[%s4388 + $0x7c] sm:$0xf]
    %v8763 = vshrl.u32 %v8573, 16
    %v8766 = vshrl.u32 %v8574, 16
    %v8802 = vunpack.c.l.b16 %v8730
    %v8803 = vunpack.c.l.b16 %v8731
    %v8804 = vunpack.c.l.b16 %v8732
    %v8805 = vunpack.c.l.b16 %v8733
    %v8806 = vunpack.c.l.b16 %v8734
    %v8807 = vunpack.c.l.b16 %v8735
    %v8808 = vunpack.c.l.b16 %v8736
    %v8809 = vunpack.c.l.b16 %v8737
    %v8810 = vunpack.c.l.b16 %v8738
    %v8811 = vunpack.c.l.b16 %v8739
    %v8812 = vunpack.c.l.b16 %v8740
    %v8813 = vunpack.c.l.b16 %v8741
    %v8814 = vunpack.c.l.b16 %v8742
    %v8815 = vunpack.c.l.b16 %v8743
    %v8816 = vunpack.c.l.b16 %v8744
    %v8817 = vunpack.c.l.b16 %v8745
    %v8818 = vunpack.c.l.b16 %v8746
    %v8819 = vunpack.c.l.b16 %v8747
    %v8820 = vunpack.c.l.b16 %v8748
    %v8821 = vunpack.c.l.b16 %v8749
    %v8822 = vunpack.c.l.b16 %v8750
    %v8823 = vunpack.c.l.b16 %v8751
    %v8824 = vunpack.c.l.b16 %v8752
    %v8825 = vunpack.c.l.b16 %v8753
    %v8826 = vunpack.c.l.b16 %v8754
    %v8827 = vunpack.c.l.b16 %v8755
    %v8828 = vunpack.c.l.b16 %v8756
    %v8829 = vunpack.c.l.b16 %v8757
    %v8830 = vunpack.c.l.b16 %v8758
    %v8831 = vunpack.c.l.b16 %v8759
    %v8832 = vunpack.c.l.b16 %v8760
    %v8833 = vunpack.c.l.b16 %v8761
    %v8834 = vpack.c.b16 %v8803, %v8802
    %v8835 = vpack.c.b16 %v8805, %v8804
    %v8836 = vpack.c.b16 %v8807, %v8806
    %v8837 = vpack.c.b16 %v8809, %v8808
    %v8838 = vpack.c.b16 %v8811, %v8810
    %v8839 = vpack.c.b16 %v8813, %v8812
    %v8840 = vpack.c.b16 %v8815, %v8814
    %v8841 = vpack.c.b16 %v8817, %v8816
    %v8842 = vpack.c.b16 %v8819, %v8818
    %v8843 = vpack.c.b16 %v8821, %v8820
    %v8844 = vpack.c.b16 %v8823, %v8822
    %v8845 = vpack.c.b16 %v8825, %v8824
    %v8846 = vpack.c.b16 %v8827, %v8826
    %v8847 = vpack.c.b16 %v8829, %v8828
    %v8848 = vpack.c.b16 %v8831, %v8830
    %v8849 = vpack.c.b16 %v8833, %v8832
    %8866 = vmatpush.bf16.msra.mxu0 %v8841
    %8867 = vmatpush.bf16.msra.mxu0 %v8840
    %8868 = vmatpush.bf16.msra.mxu0 %v8839
    %8869 = vmatpush.bf16.msra.mxu0 %v8838
    %8870 = vmatpush.bf16.msra.mxu0 %v8837
    %8871 = vmatpush.bf16.msra.mxu0 %v8836
    %8872 = vmatpush.bf16.msra.mxu0 %v8835
    %8873 = vmatpush.bf16.msra.mxu0 %v8834
    %8874 = vmatmul.bf16.gmra.mxu0 %v8763
    %v8875 = vpop.f32.mrf.mxu0
    %v8876 = vadd.f32 0.0, %v8875
    %v8877 = vpop.f32.mrf.mxu0
    %8878 = vdwg.mxu0
    %8879 = vmatpush.bf16.msra.mxu0 %v8849
    %8880 = vmatpush.bf16.msra.mxu0 %v8848
    %8881 = vmatpush.bf16.msra.mxu0 %v8847
    %8882 = vmatpush.bf16.msra.mxu0 %v8846
    %8883 = vmatpush.bf16.msra.mxu0 %v8845
    %8884 = vmatpush.bf16.msra.mxu0 %v8844
    %8885 = vmatpush.bf16.msra.mxu0 %v8843
    %8886 = vmatpush.bf16.msra.mxu0 %v8842
    %8887 = vmatmul.bf16.gmra.mxu0 %v8766
    %v8888 = vpop.f32.mrf.mxu0
    %v8889 = vadd.f32 %v8876, %v8888
    %v8890 = vpop.f32.mrf.mxu0
    %8891 = vdwg.mxu0
    %v8892 = vadd.f32 %v8729, %v8889
    %8893 = vst [vmem:[#allocation19 + $0x1] sm:$0x1] %v8892
    // Predicated region
    $region110: #{forward.1} parent=1 // pred_check
      _
    $region111: #{forward.1} parent=1 // pred_check_branch
      %8895 = sbr.rel (0) target = $region113
    $region112: #{forward.1} parent=1 // pred_region
      %8897 = vsyncadd [#allocation6], 0
      %s8899 = sshll.u32 [#allocation19], 4
      %s8900 = int_to_ptr.vmem [resolvable:$true] %s8899
      %s8901 = sshll.u32 %s18, 4
      %s8902 = int_to_ptr.hbm [resolvable:$true] %s8901
      %8904 = dma.vmem_to_hbm [thread:$0]  %s8900, 32, %s8902, [#allocation6]
    $region113: #{forward.1} parent=1 // pred_fallthru
      _
    // Predicated region
    $region114: #{forward.1} parent=1 // pred_check
      _
    $region115: #{forward.1} parent=1 // pred_check_branch
      %8906 = sbr.rel (0) target = $region117
    $region116: #{forward.1} parent=1 // pred_region
      %8908 = dma.done [#allocation6], 32
    $region117: #{forward.1} parent=1 // pred_fallthru
      _
    %8909 = vsyncpa [#allocation5], 1
    %8910 = vsyncpa [#allocation8], 1
    %8911 = vsyncpa [#allocation11], 1
    %8912 = vsyncpa [#allocation14], 1
    %8913 = vsyncpa [#allocation17], 1
    %8914 = vsyncpa [#allocation6], 1

</llo_original>
